<compile_context>
chip_gen: v7x
topology: tpu7x:2x2x1
jax: 0.10.0
libtpu: 0.0.40
codegen_flags: <defaults>
</compile_context>

<pallas_src>
import functools
import math

import jax
import jax.numpy as jnp
from jax.experimental import pallas as pl
from jax.experimental.pallas import tpu as pltpu

OUTW = 128        # lane-dense output / slab width (field uses lanes 0:2)
MAX_TILE = 2048   # pixel rows per grid step; single step at current sizes


def _round_up(x, m):
    return ((x + m - 1) // m) * m


def _gelu(x):
    # TODO(synk): PyTorch nn.GELU defaults to exact erf; tanh approximation
    # used here (jax.nn.gelu default, guaranteed to lower on Mosaic).
    return jax.nn.gelu(x)


# ----------------------------------------------------------------------------
# Fused per-stage Pallas kernel: all 1x1 convs of one PixelViTStage
# ----------------------------------------------------------------------------
def _stage_kernel(x_ref, w_ref, v_ref, o_ref, *, S, F, Cxp, offs):
    """One pixel tile: fused encoders -> residual MLP -> deformer -> field."""
    f32, bf16 = jnp.float32, jnp.bfloat16
    TM = x_ref.shape[0]
    F2, F4, F8 = F // 2, F // 4, F // 8

    def mm(x, r0, k, n, brow):
        w = w_ref[r0:r0 + k, :n]                   # static slice of weight slab
        b = v_ref[brow:brow + 1, :n]
        return jnp.dot(x.astype(bf16), w, preferred_element_type=f32) + b

    x = x_ref[...]                                 # (TM, Cxp) bf16

    # Fused feature+image encoders: one matmul, combined bias.
    # TODO(synk): ProjectionLayer definition unavailable; modeled as 1x1 conv.
    h = mm(x, offs["enc"], Cxp, F, 0)

    # "transformer" = ConvolutionalStage stand-in: image-conditioned residual
    # pointwise MLP block.  TODO(synk): real ConvolutionalStage unavailable.
    y = _gelu(mm(h, offs["t1"], F, F, 1))
    y = mm(y, offs["t2"], F, F, 2)
    t = h + y

    # Deformer head: first three 1x1 convs on the MXU.
    d = _gelu(mm(t, offs["d1"], F, F2, 3))
    d = _gelu(mm(d, offs["d2"], F2, F4, 4))
    d = _gelu(mm(d, offs["d3"], F4, F8, 5))        # (TM, F//8) f32

    # Base sampling grid generated in-kernel (VPU filler under the matmuls).
    # TODO(synk): make_base_locations unavailable; identity grid at pixel
    # centers, align_corners=False convention, (x, y) ordering.
    row = (jax.lax.broadcasted_iota(jnp.int32, (TM, 1), 0)
           + pl.program_id(0) * TM).astype(f32)
    ss = float(S * S)
    rem = row - jnp.floor((row + 0.5) * (1.0 / ss)) * ss
    py = jnp.floor((rem + 0.5) * (1.0 / float(S)))
    px = rem - py * float(S)
    base_x = (px + 0.5) * (2.0 / S) - 1.0
    base_y = (py + 0.5) * (2.0 / S) - 1.0
    lane = jax.lax.broadcasted_iota(jnp.int32, (TM, OUTW), 1)
    acc = jnp.where(lane == 0, base_x, jnp.where(lane == 1, base_y, 0.0))

    # Last 1x1 conv (F//8 -> 2) as VPU broadcast FMAs (no MXU fill/drain for a
    # K=4, 2-real-lane matmul).  field = base + deform stored lane-dense.
    acc = acc + v_ref[6:7, :]                      # d4 bias (lanes 0:2 real)
    for k in range(F8):
        acc = acc + d[:, k:k + 1] * v_ref[7 + k:8 + k, :]

    o_ref[...] = acc.astype(o_ref.dtype)


# ----------------------------------------------------------------------------
# Weight packing + pallas_call wrapper
# ----------------------------------------------------------------------------
def _pack_stage_params(p, Cxp):
    """Pack the 14 per-stage weights/biases into two VMEM-resident slabs."""
    F = p["t1_w"].shape[0]
    F2, F4, F8 = F // 2, F // 4, F // 8
    assert F <= OUTW and F % 8 == 0

    segs = [("enc", Cxp), ("t1", F), ("t2", F), ("d1", F), ("d2", F2), ("d3", F4)]
    offs, r = {}, 0
    for name, k in segs:
        offs[name] = r
        r += _round_up(k, 16)        # 16-row alignment keeps bf16 slices aligned
    rows = _round_up(r, 16)

    enc_w = jnp.concatenate([p["feat_w"], p["img_w"]], axis=0)   # (Cin+Cimg, F)
    w = jnp.zeros((rows, OUTW), jnp.float32)
    for name, mat in (("enc", enc_w), ("t1", p["t1_w"]), ("t2", p["t2_w"]),
                      ("d1", p["d1_w"]), ("d2", p["d2_w"]), ("d3", p["d3_w"])):
        k, n = mat.shape
        w = w.at[offs[name]:offs[name] + k, :n].set(mat)
    w_slab = w.astype(jnp.bfloat16)

    vrows = _round_up(7 + F8, 8)
    v = jnp.zeros((vrows, OUTW), jnp.float32)
    biases = [p["feat_b"] + p["img_b"], p["t1_b"], p["t2_b"],
              p["d1_b"], p["d2_b"], p["d3_b"], p["d4_b"]]
    for i, b in enumerate(biases):
        v = v.at[i, :b.shape[0]].set(b)
    v = v.at[7:7 + F8, :p["d4_w"].shape[1]].set(p["d4_w"])
    return w_slab, v, offs


def _choose_tiling(m):
    # Single grid step unless the pixel count is large enough to amortize the
    # ~600-cycle per-step cost (also lets v7x megacore shard at big M).
    ntiles = max(1, pl.cdiv(m, MAX_TILE))
    tm = _round_up(pl.cdiv(m, ntiles), 8)
    return tm, pl.cdiv(m, tm)


def fused_stage(feat_nhwc, img_nhwc, p):
    """Run one PixelViTStage's whole pointwise chain in a single pallas_call.

    feat_nhwc: (B, S, S, Cin) features
    img_nhwc:  (B, S, S, Cimg) image already bilinearly resized to S
    returns field = base_locations + deform, shape (B, S, S, 2)
    """
    B, S, _, Cin = feat_nhwc.shape
    Cimg = img_nhwc.shape[-1]
    F = p["t1_w"].shape[0]
    M = B * S * S
    Cx = Cin + Cimg
    Cxp = _round_up(Cx, 8)

    # One packed bf16 pixel slab: [features | image], lane-padded to 8.
    x = jnp.concatenate(
        [feat_nhwc.reshape(M, Cin), img_nhwc.reshape(M, Cimg)], axis=-1)
    if Cxp != Cx:
        x = jnp.pad(x, ((0, 0), (0, Cxp - Cx)))
    x = x.astype(jnp.bfloat16)

    w_slab, v_slab, offs = _pack_stage_params(p, Cxp)
    TM, ntiles = _choose_tiling(M)

    kern = functools.partial(_stage_kernel, S=S, F=F, Cxp=Cxp, offs=offs)

    out = pl.pallas_call(
        kern,
        out_shape=jax.ShapeDtypeStruct((M, OUTW), jnp.float32),
        grid_spec=pltpu.PrefetchScalarGridSpec(
            num_scalar_prefetch=0,
            grid=(ntiles,),
            in_specs=[
                pl.BlockSpec((TM, Cxp), lambda i: (i, 0)),
                pl.BlockSpec(w_slab.shape, lambda i: (0, 0)),   # resident slab
                pl.BlockSpec(v_slab.shape, lambda i: (0, 0)),   # resident slab
            ],
            out_specs=pl.BlockSpec((TM, OUTW), lambda i: (i, 0)),
        ),
        compiler_params=pltpu.CompilerParams(
            dimension_semantics=("parallel",)),
    )(x, w_slab, v_slab)

    return out[:, :2].reshape(B, S, S, 2)


# ----------------------------------------------------------------------------
# Plain-JAX glue (fused by the surrounding jax.jit at these sizes)
# ----------------------------------------------------------------------------
def _bilinear_matrix(out_n, in_n):
    c = (jnp.arange(out_n, dtype=jnp.float32) + 0.5) * (in_n / out_n) - 0.5
    c = jnp.clip(c, 0.0, in_n - 1.0)
    i0f = jnp.floor(c)
    frac = c - i0f
    i0 = i0f.astype(jnp.int32)
    i1 = jnp.minimum(i0 + 1, in_n - 1)
    return (jax.nn.one_hot(i0, in_n, dtype=jnp.float32) * (1.0 - frac)[:, None]
            + jax.nn.one_hot(i1, in_n, dtype=jnp.float32) * frac[:, None])


def bilinear_resize_nhwc(x, out_size):
    """interpolate(..., mode='bilinear', align_corners=False) as two tiny
    dense interp-matrix contractions (MXU-friendly, no gathers)."""
    B, H, W, C = x.shape
    if out_size == H and out_size == W:
        return x
    my = _bilinear_matrix(out_size, H)
    mx = _bilinear_matrix(out_size, W)
    x = jnp.einsum("oh,bhwc->bowc", my, x)
    return jnp.einsum("pw,bowc->bopc", mx, x)


def nearest_resize_nhwc(x, out_size):
    """interpolate(..., mode='nearest') integer upscale on NHWC."""
    factor = out_size // x.shape[1]
    return jnp.repeat(jnp.repeat(x, factor, axis=1), factor, axis=2)


def grid_sample_bilinear_border_nhwc(inp, grid):
    """grid_sample(padding_mode='border', align_corners=False) on NHWC input."""
    B, Hin, Win, C = inp.shape
    gx, gy = grid[..., 0], grid[..., 1]
    ix = jnp.clip(((gx + 1.0) * Win - 1.0) * 0.5, 0.0, Win - 1.0)
    iy = jnp.clip(((gy + 1.0) * Hin - 1.0) * 0.5, 0.0, Hin - 1.0)
    ix0 = jnp.floor(ix)
    iy0 = jnp.floor(iy)
    wx = (ix - ix0)[..., None]
    wy = (iy - iy0)[..., None]
    x0 = ix0.astype(jnp.int32)
    y0 = iy0.astype(jnp.int32)
    x1 = jnp.minimum(x0 + 1, Win - 1)
    y1 = jnp.minimum(y0 + 1, Hin - 1)

    def one(im, y0_, y1_, x0_, x1_, wx_, wy_):
        v00, v01 = im[y0_, x0_], im[y0_, x1_]
        v10, v11 = im[y1_, x0_], im[y1_, x1_]
        return (v00 * (1 - wx_) * (1 - wy_) + v01 * wx_ * (1 - wy_)
                + v10 * (1 - wx_) * wy_ + v11 * wx_ * wy_)

    return jax.vmap(one)(inp, y0, y1, x0, x1, wx, wy)


# ----------------------------------------------------------------------------
# Parameters (deterministic in-script init)
# ----------------------------------------------------------------------------
def _linear_params(key, cin, cout, std=None):
    std = (1.0 / math.sqrt(cin)) if std is None else std
    w = jax.random.normal(key, (cin, cout), jnp.float32) * std
    b = jnp.zeros((cout,), jnp.float32)
    return w, b


def init_stage_params(key, n_features, n_features_in, n_image_features):
    F = n_features
    keys = jax.random.split(key, 8)
    p = {}
    # TODO(synk): ProjectionLayer definition unavailable; modeled as 1x1 conv.
    p["img_w"], p["img_b"] = _linear_params(keys[0], n_image_features, F)
    p["feat_w"], p["feat_b"] = _linear_params(keys[1], n_features_in, F)
    # TODO(synk): ConvolutionalStage definition unavailable; modeled as an
    # image-conditioned residual pointwise MLP block.
    p["t1_w"], p["t1_b"] = _linear_params(keys[2], F, F)
    p["t2_w"], p["t2_b"] = _linear_params(keys[3], F, F)
    # deformer: Conv-Act-Conv-Act-Conv-Act-Conv (last: normal std=0.01, zero b)
    p["d1_w"], p["d1_b"] = _linear_params(keys[4], F, F // 2)
    p["d2_w"], p["d2_b"] = _linear_params(keys[5], F // 2, F // 4)
    p["d3_w"], p["d3_b"] = _linear_params(keys[6], F // 4, F // 8)
    p["d4_w"], p["d4_b"] = _linear_params(keys[7], F // 8, 2, std=0.01)
    return p


# ----------------------------------------------------------------------------
# Forward pass (jitted end-to-end; NHWC internally)
# ----------------------------------------------------------------------------
def pixelvit_forward(stage_params, features_nchw, images_nchw):
    feats = jnp.transpose(features_nchw, (0, 2, 3, 1))   # -> NHWC, once
    imgs = jnp.transpose(images_nchw, (0, 2, 3, 1))      # -> NHWC, once
    outputs = []
    n = len(stage_params)
    for i in range(n):
        p = stage_params[i]
        B, S = feats.shape[0], feats.shape[1]
        # bilinear resize commuted in front of the (linear) image encoder:
        # conv1x1(resize(x)) == resize(conv1x1(x)) exactly for a 1x1 conv.
        img_s = bilinear_resize_nhwc(imgs, S)
        field = fused_stage(feats, img_s, p)              # (B, S, S, 2)
        deformed_nhwc = grid_sample_bilinear_border_nhwc(feats, field)
        outputs.append(dict(
            deformed=jnp.transpose(deformed_nhwc, (0, 3, 1, 2)),  # NCHW out
            field=field))
        if i < n - 1:
            feats = nearest_resize_nhwc(deformed_nhwc, 2 * S)
    return outputs


pixelvit_forward_jit = jax.jit(pixelvit_forward)


# ----------------------------------------------------------------------------
# Driver
# ----------------------------------------------------------------------------
if __name__ == "__main__":
    config = dict(
        n_features_in=4,
        n_frequencies=2,
        n_wavelets=1,
        n_intermediate_features={"r8": 32, "r16": 32},
        start_size=8,
        target_size=16,
    )
    n_features_in = config["n_features_in"]
    n_pe_features = 2 * config["n_frequencies"]
    n_image_features = 6 + 3 * 3 * config["n_wavelets"] + n_pe_features  # = 19
    n_upscales = int(math.log2(config["target_size"] // config["start_size"])) + 1
    assert n_upscales == len(config["n_intermediate_features"]), \
        "Incompatible resolutions and feature config"

    key = jax.random.PRNGKey(0)
    k_feat, k_img, k_params = jax.random.split(key, 3)

    B = 2
    features = jax.random.normal(
        k_feat, (B, n_features_in, config["start_size"], config["start_size"]),
        jnp.float32)
    images = jax.random.normal(
        k_img, (B, n_image_features, config["target_size"], config["target_size"]),
        jnp.float32)

    stage_keys = jax.random.split(k_params, len(config["n_intermediate_features"]))
    stage_params = [
        init_stage_params(sk, config["n_intermediate_features"][r],
                          n_features_in, n_image_features)
        for sk, r in zip(stage_keys, config["n_intermediate_features"])
    ]

    outputs = pixelvit_forward_jit(stage_params, features, images)
    for res in outputs:
        jax.block_until_ready(res["deformed"])
        jax.block_until_ready(res["field"])

    # sanity on shapes / values
    assert outputs[0]["deformed"].shape == (B, n_features_in, 8, 8)
    assert outputs[0]["field"].shape == (B, 8, 8, 2)
    assert outputs[1]["deformed"].shape == (B, n_features_in, 16, 16)
    assert outputs[1]["field"].shape == (B, 16, 16, 2)
    assert all(bool(jnp.isfinite(res["deformed"]).all()) for res in outputs)
    assert all(bool(jnp.isfinite(res["field"]).all()) for res in outputs)

    print("KERNEL_OK")
</pallas_src>

<mosaic_0001>
module attributes {stable_mosaic.version = 11 : i64} {
  func.func @_stage_kernel(%arg0: i32, %arg1: memref<128x24xbf16, #tpu.memory_space<vmem>>, %arg2: memref<160x128xbf16, #tpu.memory_space<vmem>>, %arg3: memref<16x128xf32, #tpu.memory_space<vmem>>, %arg4: memref<128x128xf32, #tpu.memory_space<vmem>>) attributes {dimension_semantics = [#tpu.dimension_semantics<parallel>], iteration_bounds = array<i64: 1>, scalar_prefetch = 0 : i64, scratch_operands = 0 : i64, tpu.core_type = #tpu.core_type<tc>, window_params = [{transform_indices = @transform_0, window_bounds = array<i64: 128, 24>}, {pipeline_mode = #tpu.pipeline_mode<synchronous>, transform_indices = @transform_1, window_bounds = array<i64: 160, 128>}, {pipeline_mode = #tpu.pipeline_mode<synchronous>, transform_indices = @transform_2, window_bounds = array<i64: 16, 128>}, {transform_indices = @transform_3, window_bounds = array<i64: 128, 128>}]} {
    %c0 = arith.constant 0 : index
    %c0_0 = arith.constant 0 : index
    %0 = vector.load %arg1[%c0, %c0_0] : memref<128x24xbf16, #tpu.memory_space<vmem>>, vector<128x24xbf16>
    %c0_1 = arith.constant 0 : index
    %c0_2 = arith.constant 0 : index
    %1 = vector.load %arg2[%c0_1, %c0_2] : memref<160x128xbf16, #tpu.memory_space<vmem>>, vector<24x32xbf16>
    %c0_3 = arith.constant 0 : index
    %c0_4 = arith.constant 0 : index
    %2 = vector.load %arg3[%c0_3, %c0_4] : memref<16x128xf32, #tpu.memory_space<vmem>>, vector<1x32xf32>
    %cst = arith.constant dense<0.000000e+00> : vector<128x32xf32>
    %3 = tpu.matmul %0, %1, %cst {dimension_numbers = #tpu.dot_dimension_numbers<[1], [0], [0], [1], [0, 0, 1, 1], [], []>} : vector<128x24xbf16>, vector<24x32xbf16>, vector<128x32xf32> -> vector<128x32xf32>
    %4 = vector.broadcast %2 : vector<1x32xf32> to vector<128x32xf32>
    %5 = arith.addf %3, %4 : vector<128x32xf32>
    %c32 = arith.constant 32 : index
    %c0_5 = arith.constant 0 : index
    %6 = vector.load %arg2[%c32, %c0_5] : memref<160x128xbf16, #tpu.memory_space<vmem>>, vector<32x32xbf16>
    %c1 = arith.constant 1 : index
    %c0_6 = arith.constant 0 : index
    %7 = vector.load %arg3[%c1, %c0_6] : memref<16x128xf32, #tpu.memory_space<vmem>>, vector<1x32xf32>
    %8 = arith.truncf %5 : vector<128x32xf32> to vector<128x32xbf16>
    %cst_7 = arith.constant dense<0.000000e+00> : vector<128x32xf32>
    %9 = tpu.matmul %8, %6, %cst_7 {dimension_numbers = #tpu.dot_dimension_numbers<[1], [0], [0], [1], [0, 0, 1, 1], [], []>} : vector<128x32xbf16>, vector<32x32xbf16>, vector<128x32xf32> -> vector<128x32xf32>
    %10 = vector.broadcast %7 : vector<1x32xf32> to vector<128x32xf32>
    %11 = arith.addf %9, %10 : vector<128x32xf32>
    %12 = arith.mulf %11, %11 : vector<128x32xf32>
    %13 = arith.mulf %11, %12 : vector<128x32xf32>
    %cst_8 = arith.constant 4.471500e-02 : f32
    %14 = vector.broadcast %cst_8 : f32 to vector<128x32xf32>
    %15 = arith.mulf %14, %13 : vector<128x32xf32>
    %16 = arith.addf %11, %15 : vector<128x32xf32>
    %cst_9 = arith.constant 0.797884583 : f32
    %17 = vector.broadcast %cst_9 : f32 to vector<128x32xf32>
    %18 = arith.mulf %17, %16 : vector<128x32xf32>
    %19 = math.tanh %18 : vector<128x32xf32>
    %cst_10 = arith.constant 1.000000e+00 : f32
    %20 = vector.broadcast %cst_10 : f32 to vector<128x32xf32>
    %21 = arith.addf %20, %19 : vector<128x32xf32>
    %cst_11 = arith.constant 5.000000e-01 : f32
    %22 = vector.broadcast %cst_11 : f32 to vector<128x32xf32>
    %23 = arith.mulf %22, %21 : vector<128x32xf32>
    %24 = arith.mulf %11, %23 : vector<128x32xf32>
    %c64 = arith.constant 64 : index
    %c0_12 = arith.constant 0 : index
    %25 = vector.load %arg2[%c64, %c0_12] : memref<160x128xbf16, #tpu.memory_space<vmem>>, vector<32x32xbf16>
    %c2 = arith.constant 2 : index
    %c0_13 = arith.constant 0 : index
    %26 = vector.load %arg3[%c2, %c0_13] : memref<16x128xf32, #tpu.memory_space<vmem>>, vector<1x32xf32>
    %27 = arith.truncf %24 : vector<128x32xf32> to vector<128x32xbf16>
    %cst_14 = arith.constant dense<0.000000e+00> : vector<128x32xf32>
    %28 = tpu.matmul %27, %25, %cst_14 {dimension_numbers = #tpu.dot_dimension_numbers<[1], [0], [0], [1], [0, 0, 1, 1], [], []>} : vector<128x32xbf16>, vector<32x32xbf16>, vector<128x32xf32> -> vector<128x32xf32>
    %29 = vector.broadcast %26 : vector<1x32xf32> to vector<128x32xf32>
    %30 = arith.addf %28, %29 : vector<128x32xf32>
    %31 = arith.addf %5, %30 : vector<128x32xf32>
    %c96 = arith.constant 96 : index
    %c0_15 = arith.constant 0 : index
    %32 = vector.load %arg2[%c96, %c0_15] : memref<160x128xbf16, #tpu.memory_space<vmem>>, vector<32x16xbf16>
    %c3 = arith.constant 3 : index
    %c0_16 = arith.constant 0 : index
    %33 = vector.load %arg3[%c3, %c0_16] : memref<16x128xf32, #tpu.memory_space<vmem>>, vector<1x16xf32>
    %34 = arith.truncf %31 : vector<128x32xf32> to vector<128x32xbf16>
    %cst_17 = arith.constant dense<0.000000e+00> : vector<128x16xf32>
    %35 = tpu.matmul %34, %32, %cst_17 {dimension_numbers = #tpu.dot_dimension_numbers<[1], [0], [0], [1], [0, 0, 1, 1], [], []>} : vector<128x32xbf16>, vector<32x16xbf16>, vector<128x16xf32> -> vector<128x16xf32>
    %36 = vector.broadcast %33 : vector<1x16xf32> to vector<128x16xf32>
    %37 = arith.addf %35, %36 : vector<128x16xf32>
    %38 = arith.mulf %37, %37 : vector<128x16xf32>
    %39 = arith.mulf %37, %38 : vector<128x16xf32>
    %cst_18 = arith.constant 4.471500e-02 : f32
    %40 = vector.broadcast %cst_18 : f32 to vector<128x16xf32>
    %41 = arith.mulf %40, %39 : vector<128x16xf32>
    %42 = arith.addf %37, %41 : vector<128x16xf32>
    %cst_19 = arith.constant 0.797884583 : f32
    %43 = vector.broadcast %cst_19 : f32 to vector<128x16xf32>
    %44 = arith.mulf %43, %42 : vector<128x16xf32>
    %45 = math.tanh %44 : vector<128x16xf32>
    %cst_20 = arith.constant 1.000000e+00 : f32
    %46 = vector.broadcast %cst_20 : f32 to vector<128x16xf32>
    %47 = arith.addf %46, %45 : vector<128x16xf32>
    %cst_21 = arith.constant 5.000000e-01 : f32
    %48 = vector.broadcast %cst_21 : f32 to vector<128x16xf32>
    %49 = arith.mulf %48, %47 : vector<128x16xf32>
    %50 = arith.mulf %37, %49 : vector<128x16xf32>
    %c128 = arith.constant 128 : index
    %c0_22 = arith.constant 0 : index
    %51 = vector.load %arg2[%c128, %c0_22] : memref<160x128xbf16, #tpu.memory_space<vmem>>, vector<16x8xbf16>
    %c4 = arith.constant 4 : index
    %c0_23 = arith.constant 0 : index
    %52 = vector.load %arg3[%c4, %c0_23] : memref<16x128xf32, #tpu.memory_space<vmem>>, vector<1x8xf32>
    %53 = arith.truncf %50 : vector<128x16xf32> to vector<128x16xbf16>
    %cst_24 = arith.constant dense<0.000000e+00> : vector<128x8xf32>
    %54 = tpu.matmul %53, %51, %cst_24 {dimension_numbers = #tpu.dot_dimension_numbers<[1], [0], [0], [1], [0, 0, 1, 1], [], []>} : vector<128x16xbf16>, vector<16x8xbf16>, vector<128x8xf32> -> vector<128x8xf32>
    %55 = vector.broadcast %52 : vector<1x8xf32> to vector<128x8xf32>
    %56 = arith.addf %54, %55 : vector<128x8xf32>
    %57 = arith.mulf %56, %56 : vector<128x8xf32>
    %58 = arith.mulf %56, %57 : vector<128x8xf32>
    %cst_25 = arith.constant 4.471500e-02 : f32
    %59 = vector.broadcast %cst_25 : f32 to vector<128x8xf32>
    %60 = arith.mulf %59, %58 : vector<128x8xf32>
    %61 = arith.addf %56, %60 : vector<128x8xf32>
    %cst_26 = arith.constant 0.797884583 : f32
    %62 = vector.broadcast %cst_26 : f32 to vector<128x8xf32>
    %63 = arith.mulf %62, %61 : vector<128x8xf32>
    %64 = math.tanh %63 : vector<128x8xf32>
    %cst_27 = arith.constant 1.000000e+00 : f32
    %65 = vector.broadcast %cst_27 : f32 to vector<128x8xf32>
    %66 = arith.addf %65, %64 : vector<128x8xf32>
    %cst_28 = arith.constant 5.000000e-01 : f32
    %67 = vector.broadcast %cst_28 : f32 to vector<128x8xf32>
    %68 = arith.mulf %67, %66 : vector<128x8xf32>
    %69 = arith.mulf %56, %68 : vector<128x8xf32>
    %c144 = arith.constant 144 : index
    %c0_29 = arith.constant 0 : index
    %70 = vector.load %arg2[%c144, %c0_29] : memref<160x128xbf16, #tpu.memory_space<vmem>>, vector<8x4xbf16>
    %c5 = arith.constant 5 : index
    %c0_30 = arith.constant 0 : index
    %71 = vector.load %arg3[%c5, %c0_30] : memref<16x128xf32, #tpu.memory_space<vmem>>, vector<1x4xf32>
    %72 = arith.truncf %69 : vector<128x8xf32> to vector<128x8xbf16>
    %cst_31 = arith.constant dense<0.000000e+00> : vector<128x4xf32>
    %73 = tpu.matmul %72, %70, %cst_31 {dimension_numbers = #tpu.dot_dimension_numbers<[1], [0], [0], [1], [0, 0, 1, 1], [], []>} : vector<128x8xbf16>, vector<8x4xbf16>, vector<128x4xf32> -> vector<128x4xf32>
    %74 = vector.broadcast %71 : vector<1x4xf32> to vector<128x4xf32>
    %75 = arith.addf %73, %74 : vector<128x4xf32>
    %76 = arith.mulf %75, %75 : vector<128x4xf32>
    %77 = arith.mulf %75, %76 : vector<128x4xf32>
    %cst_32 = arith.constant 4.471500e-02 : f32
    %78 = vector.broadcast %cst_32 : f32 to vector<128x4xf32>
    %79 = arith.mulf %78, %77 : vector<128x4xf32>
    %80 = arith.addf %75, %79 : vector<128x4xf32>
    %cst_33 = arith.constant 0.797884583 : f32
    %81 = vector.broadcast %cst_33 : f32 to vector<128x4xf32>
    %82 = arith.mulf %81, %80 : vector<128x4xf32>
    %83 = math.tanh %82 : vector<128x4xf32>
    %cst_34 = arith.constant 1.000000e+00 : f32
    %84 = vector.broadcast %cst_34 : f32 to vector<128x4xf32>
    %85 = arith.addf %84, %83 : vector<128x4xf32>
    %cst_35 = arith.constant 5.000000e-01 : f32
    %86 = vector.broadcast %cst_35 : f32 to vector<128x4xf32>
    %87 = arith.mulf %86, %85 : vector<128x4xf32>
    %88 = arith.mulf %75, %87 : vector<128x4xf32>
    %89 = tpu.iota {dimensions = array<i32: 0>} : vector<128x1xi32>
    %c128_i32 = arith.constant 128 : i32
    %90 = arith.muli %arg0, %c128_i32 : i32
    %91 = vector.broadcast %90 : i32 to vector<128x1xi32>
    %92 = arith.addi %89, %91 : vector<128x1xi32>
    %93 = arith.sitofp %92 : vector<128x1xi32> to vector<128x1xf32>
    %cst_36 = arith.constant 5.000000e-01 : f32
    %94 = vector.broadcast %cst_36 : f32 to vector<128x1xf32>
    %95 = arith.addf %93, %94 : vector<128x1xf32>
    %cst_37 = arith.constant 1.562500e-02 : f32
    %96 = vector.broadcast %cst_37 : f32 to vector<128x1xf32>
    %97 = arith.mulf %95, %96 : vector<128x1xf32>
    %98 = math.floor %97 : vector<128x1xf32>
    %cst_38 = arith.constant 6.400000e+01 : f32
    %99 = vector.broadcast %cst_38 : f32 to vector<128x1xf32>
    %100 = arith.mulf %98, %99 : vector<128x1xf32>
    %101 = arith.subf %93, %100 : vector<128x1xf32>
    %cst_39 = arith.constant 5.000000e-01 : f32
    %102 = vector.broadcast %cst_39 : f32 to vector<128x1xf32>
    %103 = arith.addf %101, %102 : vector<128x1xf32>
    %cst_40 = arith.constant 1.250000e-01 : f32
    %104 = vector.broadcast %cst_40 : f32 to vector<128x1xf32>
    %105 = arith.mulf %103, %104 : vector<128x1xf32>
    %106 = math.floor %105 : vector<128x1xf32>
    %cst_41 = arith.constant 8.000000e+00 : f32
    %107 = vector.broadcast %cst_41 : f32 to vector<128x1xf32>
    %108 = arith.mulf %106, %107 : vector<128x1xf32>
    %109 = arith.subf %101, %108 : vector<128x1xf32>
    %cst_42 = arith.constant 5.000000e-01 : f32
    %110 = vector.broadcast %cst_42 : f32 to vector<128x1xf32>
    %111 = arith.addf %109, %110 : vector<128x1xf32>
    %cst_43 = arith.constant 2.500000e-01 : f32
    %112 = vector.broadcast %cst_43 : f32 to vector<128x1xf32>
    %113 = arith.mulf %111, %112 : vector<128x1xf32>
    %cst_44 = arith.constant 1.000000e+00 : f32
    %114 = vector.broadcast %cst_44 : f32 to vector<128x1xf32>
    %115 = arith.subf %113, %114 : vector<128x1xf32>
    %cst_45 = arith.constant 5.000000e-01 : f32
    %116 = vector.broadcast %cst_45 : f32 to vector<128x1xf32>
    %117 = arith.addf %106, %116 : vector<128x1xf32>
    %cst_46 = arith.constant 2.500000e-01 : f32
    %118 = vector.broadcast %cst_46 : f32 to vector<128x1xf32>
    %119 = arith.mulf %117, %118 : vector<128x1xf32>
    %cst_47 = arith.constant 1.000000e+00 : f32
    %120 = vector.broadcast %cst_47 : f32 to vector<128x1xf32>
    %121 = arith.subf %119, %120 : vector<128x1xf32>
    %122 = tpu.iota {dimensions = array<i32: 1>} : vector<128x128xi32>
    %c0_i32 = arith.constant 0 : i32
    %123 = vector.broadcast %c0_i32 : i32 to vector<128x128xi32>
    %124 = arith.cmpi eq, %122, %123 : vector<128x128xi32>
    %c1_i32 = arith.constant 1 : i32
    %125 = vector.broadcast %c1_i32 : i32 to vector<128x128xi32>
    %126 = arith.cmpi eq, %122, %125 : vector<128x128xi32>
    %cst_48 = arith.constant 0.000000e+00 : f32
    %127 = vector.shape_cast %121 : vector<128x1xf32> to vector<128x1xf32>
    %128 = vector.broadcast %127 : vector<128x1xf32> to vector<128x128xf32>
    %129 = vector.broadcast %cst_48 : f32 to vector<128x128xf32>
    %130 = arith.select %126, %128, %129 : vector<128x128xi1>, vector<128x128xf32>
    %131 = vector.shape_cast %115 : vector<128x1xf32> to vector<128x1xf32>
    %132 = vector.broadcast %131 : vector<128x1xf32> to vector<128x128xf32>
    %133 = arith.select %124, %132, %130 : vector<128x128xi1>, vector<128x128xf32>
    %c6 = arith.constant 6 : index
    %c0_49 = arith.constant 0 : index
    %134 = vector.load %arg3[%c6, %c0_49] : memref<16x128xf32, #tpu.memory_space<vmem>>, vector<1x128xf32>
    %135 = vector.broadcast %134 : vector<1x128xf32> to vector<128x128xf32>
    %136 = arith.addf %133, %135 : vector<128x128xf32>
    %137 = vector.extract_strided_slice %88 {offsets = [0, 0], sizes = [128, 1], strides = [1, 1]} : vector<128x4xf32> to vector<128x1xf32>
    %c7 = arith.constant 7 : index
    %c0_50 = arith.constant 0 : index
    %138 = vector.load %arg3[%c7, %c0_50] : memref<16x128xf32, #tpu.memory_space<vmem>>, vector<1x128xf32>
    %139 = vector.broadcast %137 : vector<128x1xf32> to vector<128x128xf32>
    %140 = vector.broadcast %138 : vector<1x128xf32> to vector<128x128xf32>
    %141 = arith.mulf %139, %140 : vector<128x128xf32>
    %142 = arith.addf %136, %141 : vector<128x128xf32>
    %143 = vector.extract_strided_slice %88 {offsets = [0, 1], sizes = [128, 1], strides = [1, 1]} : vector<128x4xf32> to vector<128x1xf32>
    %c8 = arith.constant 8 : index
    %c0_51 = arith.constant 0 : index
    %144 = vector.load %arg3[%c8, %c0_51] : memref<16x128xf32, #tpu.memory_space<vmem>>, vector<1x128xf32>
    %145 = vector.broadcast %143 : vector<128x1xf32> to vector<128x128xf32>
    %146 = vector.broadcast %144 : vector<1x128xf32> to vector<128x128xf32>
    %147 = arith.mulf %145, %146 : vector<128x128xf32>
    %148 = arith.addf %142, %147 : vector<128x128xf32>
    %149 = vector.extract_strided_slice %88 {offsets = [0, 2], sizes = [128, 1], strides = [1, 1]} : vector<128x4xf32> to vector<128x1xf32>
    %c9 = arith.constant 9 : index
    %c0_52 = arith.constant 0 : index
    %150 = vector.load %arg3[%c9, %c0_52] : memref<16x128xf32, #tpu.memory_space<vmem>>, vector<1x128xf32>
    %151 = vector.broadcast %149 : vector<128x1xf32> to vector<128x128xf32>
    %152 = vector.broadcast %150 : vector<1x128xf32> to vector<128x128xf32>
    %153 = arith.mulf %151, %152 : vector<128x128xf32>
    %154 = arith.addf %148, %153 : vector<128x128xf32>
    %155 = vector.extract_strided_slice %88 {offsets = [0, 3], sizes = [128, 1], strides = [1, 1]} : vector<128x4xf32> to vector<128x1xf32>
    %c10 = arith.constant 10 : index
    %c0_53 = arith.constant 0 : index
    %156 = vector.load %arg3[%c10, %c0_53] : memref<16x128xf32, #tpu.memory_space<vmem>>, vector<1x128xf32>
    %157 = vector.broadcast %155 : vector<128x1xf32> to vector<128x128xf32>
    %158 = vector.broadcast %156 : vector<1x128xf32> to vector<128x128xf32>
    %159 = arith.mulf %157, %158 : vector<128x128xf32>
    %160 = arith.addf %154, %159 : vector<128x128xf32>
    %c0_54 = arith.constant 0 : index
    %c0_55 = arith.constant 0 : index
    %161 = vector.load %arg4[%c0_54, %c0_55] : memref<128x128xf32, #tpu.memory_space<vmem>>, vector<128x128xf32>
    tpu.vector_store %arg4[%c0_54, %c0_55], %160 {strides = array<i32>} : memref<128x128xf32, #tpu.memory_space<vmem>>, vector<128x128xf32>,
    return
  }
  func.func @transform_0(%arg0: i32) -> (i32, i32) {
    %c0_i32 = arith.constant 0 : i32
    %c0_i32_0 = arith.constant 0 : i32
    return %arg0, %c0_i32 : i32, i32
  }
  func.func @transform_1(%arg0: i32) -> (i32, i32) {
    %c0_i32 = arith.constant 0 : i32
    %c0_i32_0 = arith.constant 0 : i32
    %c0_i32_1 = arith.constant 0 : i32
    return %c0_i32, %c0_i32_0 : i32, i32
  }
  func.func @transform_2(%arg0: i32) -> (i32, i32) {
    %c0_i32 = arith.constant 0 : i32
    %c0_i32_0 = arith.constant 0 : i32
    %c0_i32_1 = arith.constant 0 : i32
    return %c0_i32, %c0_i32_0 : i32, i32
  }
  func.func @transform_3(%arg0: i32) -> (i32, i32) {
    %c0_i32 = arith.constant 0 : i32
    %c0_i32_0 = arith.constant 0 : i32
    return %arg0, %c0_i32 : i32, i32
  }
}

module attributes {stable_mosaic.version = 11 : i64} {
  func.func @_stage_kernel(%arg0: i32, %arg1: memref<512x24xbf16, #tpu.memory_space<vmem>>, %arg2: memref<160x128xbf16, #tpu.memory_space<vmem>>, %arg3: memref<16x128xf32, #tpu.memory_space<vmem>>, %arg4: memref<512x128xf32, #tpu.memory_space<vmem>>) attributes {dimension_semantics = [#tpu.dimension_semantics<parallel>], iteration_bounds = array<i64: 1>, scalar_prefetch = 0 : i64, scratch_operands = 0 : i64, tpu.core_type = #tpu.core_type<tc>, window_params = [{transform_indices = @transform_0, window_bounds = array<i64: 512, 24>}, {pipeline_mode = #tpu.pipeline_mode<synchronous>, transform_indices = @transform_1, window_bounds = array<i64: 160, 128>}, {pipeline_mode = #tpu.pipeline_mode<synchronous>, transform_indices = @transform_2, window_bounds = array<i64: 16, 128>}, {transform_indices = @transform_3, window_bounds = array<i64: 512, 128>}]} {
    %c0 = arith.constant 0 : index
    %c0_0 = arith.constant 0 : index
    %0 = vector.load %arg1[%c0, %c0_0] : memref<512x24xbf16, #tpu.memory_space<vmem>>, vector<512x24xbf16>
    %c0_1 = arith.constant 0 : index
    %c0_2 = arith.constant 0 : index
    %1 = vector.load %arg2[%c0_1, %c0_2] : memref<160x128xbf16, #tpu.memory_space<vmem>>, vector<24x32xbf16>
    %c0_3 = arith.constant 0 : index
    %c0_4 = arith.constant 0 : index
    %2 = vector.load %arg3[%c0_3, %c0_4] : memref<16x128xf32, #tpu.memory_space<vmem>>, vector<1x32xf32>
    %cst = arith.constant dense<0.000000e+00> : vector<512x32xf32>
    %3 = tpu.matmul %0, %1, %cst {dimension_numbers = #tpu.dot_dimension_numbers<[1], [0], [0], [1], [0, 0, 1, 1], [], []>} : vector<512x24xbf16>, vector<24x32xbf16>, vector<512x32xf32> -> vector<512x32xf32>
    %4 = vector.broadcast %2 : vector<1x32xf32> to vector<512x32xf32>
    %5 = arith.addf %3, %4 : vector<512x32xf32>
    %c32 = arith.constant 32 : index
    %c0_5 = arith.constant 0 : index
    %6 = vector.load %arg2[%c32, %c0_5] : memref<160x128xbf16, #tpu.memory_space<vmem>>, vector<32x32xbf16>
    %c1 = arith.constant 1 : index
    %c0_6 = arith.constant 0 : index
    %7 = vector.load %arg3[%c1, %c0_6] : memref<16x128xf32, #tpu.memory_space<vmem>>, vector<1x32xf32>
    %8 = arith.truncf %5 : vector<512x32xf32> to vector<512x32xbf16>
    %cst_7 = arith.constant dense<0.000000e+00> : vector<512x32xf32>
    %9 = tpu.matmul %8, %6, %cst_7 {dimension_numbers = #tpu.dot_dimension_numbers<[1], [0], [0], [1], [0, 0, 1, 1], [], []>} : vector<512x32xbf16>, vector<32x32xbf16>, vector<512x32xf32> -> vector<512x32xf32>
    %10 = vector.broadcast %7 : vector<1x32xf32> to vector<512x32xf32>
    %11 = arith.addf %9, %10 : vector<512x32xf32>
    %12 = arith.mulf %11, %11 : vector<512x32xf32>
    %13 = arith.mulf %11, %12 : vector<512x32xf32>
    %cst_8 = arith.constant 4.471500e-02 : f32
    %14 = vector.broadcast %cst_8 : f32 to vector<512x32xf32>
    %15 = arith.mulf %14, %13 : vector<512x32xf32>
    %16 = arith.addf %11, %15 : vector<512x32xf32>
    %cst_9 = arith.constant 0.797884583 : f32
    %17 = vector.broadcast %cst_9 : f32 to vector<512x32xf32>
    %18 = arith.mulf %17, %16 : vector<512x32xf32>
    %19 = math.tanh %18 : vector<512x32xf32>
    %cst_10 = arith.constant 1.000000e+00 : f32
    %20 = vector.broadcast %cst_10 : f32 to vector<512x32xf32>
    %21 = arith.addf %20, %19 : vector<512x32xf32>
    %cst_11 = arith.constant 5.000000e-01 : f32
    %22 = vector.broadcast %cst_11 : f32 to vector<512x32xf32>
    %23 = arith.mulf %22, %21 : vector<512x32xf32>
    %24 = arith.mulf %11, %23 : vector<512x32xf32>
    %c64 = arith.constant 64 : index
    %c0_12 = arith.constant 0 : index
    %25 = vector.load %arg2[%c64, %c0_12] : memref<160x128xbf16, #tpu.memory_space<vmem>>, vector<32x32xbf16>
    %c2 = arith.constant 2 : index
    %c0_13 = arith.constant 0 : index
    %26 = vector.load %arg3[%c2, %c0_13] : memref<16x128xf32, #tpu.memory_space<vmem>>, vector<1x32xf32>
    %27 = arith.truncf %24 : vector<512x32xf32> to vector<512x32xbf16>
    %cst_14 = arith.constant dense<0.000000e+00> : vector<512x32xf32>
    %28 = tpu.matmul %27, %25, %cst_14 {dimension_numbers = #tpu.dot_dimension_numbers<[1], [0], [0], [1], [0, 0, 1, 1], [], []>} : vector<512x32xbf16>, vector<32x32xbf16>, vector<512x32xf32> -> vector<512x32xf32>
    %29 = vector.broadcast %26 : vector<1x32xf32> to vector<512x32xf32>
    %30 = arith.addf %28, %29 : vector<512x32xf32>
    %31 = arith.addf %5, %30 : vector<512x32xf32>
    %c96 = arith.constant 96 : index
    %c0_15 = arith.constant 0 : index
    %32 = vector.load %arg2[%c96, %c0_15] : memref<160x128xbf16, #tpu.memory_space<vmem>>, vector<32x16xbf16>
    %c3 = arith.constant 3 : index
    %c0_16 = arith.constant 0 : index
    %33 = vector.load %arg3[%c3, %c0_16] : memref<16x128xf32, #tpu.memory_space<vmem>>, vector<1x16xf32>
    %34 = arith.truncf %31 : vector<512x32xf32> to vector<512x32xbf16>
    %cst_17 = arith.constant dense<0.000000e+00> : vector<512x16xf32>
    %35 = tpu.matmul %34, %32, %cst_17 {dimension_numbers = #tpu.dot_dimension_numbers<[1], [0], [0], [1], [0, 0, 1, 1], [], []>} : vector<512x32xbf16>, vector<32x16xbf16>, vector<512x16xf32> -> vector<512x16xf32>
    %36 = vector.broadcast %33 : vector<1x16xf32> to vector<512x16xf32>
    %37 = arith.addf %35, %36 : vector<512x16xf32>
    %38 = arith.mulf %37, %37 : vector<512x16xf32>
    %39 = arith.mulf %37, %38 : vector<512x16xf32>
    %cst_18 = arith.constant 4.471500e-02 : f32
    %40 = vector.broadcast %cst_18 : f32 to vector<512x16xf32>
    %41 = arith.mulf %40, %39 : vector<512x16xf32>
    %42 = arith.addf %37, %41 : vector<512x16xf32>
    %cst_19 = arith.constant 0.797884583 : f32
    %43 = vector.broadcast %cst_19 : f32 to vector<512x16xf32>
    %44 = arith.mulf %43, %42 : vector<512x16xf32>
    %45 = math.tanh %44 : vector<512x16xf32>
    %cst_20 = arith.constant 1.000000e+00 : f32
    %46 = vector.broadcast %cst_20 : f32 to vector<512x16xf32>
    %47 = arith.addf %46, %45 : vector<512x16xf32>
    %cst_21 = arith.constant 5.000000e-01 : f32
    %48 = vector.broadcast %cst_21 : f32 to vector<512x16xf32>
    %49 = arith.mulf %48, %47 : vector<512x16xf32>
    %50 = arith.mulf %37, %49 : vector<512x16xf32>
    %c128 = arith.constant 128 : index
    %c0_22 = arith.constant 0 : index
    %51 = vector.load %arg2[%c128, %c0_22] : memref<160x128xbf16, #tpu.memory_space<vmem>>, vector<16x8xbf16>
    %c4 = arith.constant 4 : index
    %c0_23 = arith.constant 0 : index
    %52 = vector.load %arg3[%c4, %c0_23] : memref<16x128xf32, #tpu.memory_space<vmem>>, vector<1x8xf32>
    %53 = arith.truncf %50 : vector<512x16xf32> to vector<512x16xbf16>
    %cst_24 = arith.constant dense<0.000000e+00> : vector<512x8xf32>
    %54 = tpu.matmul %53, %51, %cst_24 {dimension_numbers = #tpu.dot_dimension_numbers<[1], [0], [0], [1], [0, 0, 1, 1], [], []>} : vector<512x16xbf16>, vector<16x8xbf16>, vector<512x8xf32> -> vector<512x8xf32>
    %55 = vector.broadcast %52 : vector<1x8xf32> to vector<512x8xf32>
    %56 = arith.addf %54, %55 : vector<512x8xf32>
    %57 = arith.mulf %56, %56 : vector<512x8xf32>
    %58 = arith.mulf %56, %57 : vector<512x8xf32>
    %cst_25 = arith.constant 4.471500e-02 : f32
    %59 = vector.broadcast %cst_25 : f32 to vector<512x8xf32>
    %60 = arith.mulf %59, %58 : vector<512x8xf32>
    %61 = arith.addf %56, %60 : vector<512x8xf32>
    %cst_26 = arith.constant 0.797884583 : f32
    %62 = vector.broadcast %cst_26 : f32 to vector<512x8xf32>
    %63 = arith.mulf %62, %61 : vector<512x8xf32>
    %64 = math.tanh %63 : vector<512x8xf32>
    %cst_27 = arith.constant 1.000000e+00 : f32
    %65 = vector.broadcast %cst_27 : f32 to vector<512x8xf32>
    %66 = arith.addf %65, %64 : vector<512x8xf32>
    %cst_28 = arith.constant 5.000000e-01 : f32
    %67 = vector.broadcast %cst_28 : f32 to vector<512x8xf32>
    %68 = arith.mulf %67, %66 : vector<512x8xf32>
    %69 = arith.mulf %56, %68 : vector<512x8xf32>
    %c144 = arith.constant 144 : index
    %c0_29 = arith.constant 0 : index
    %70 = vector.load %arg2[%c144, %c0_29] : memref<160x128xbf16, #tpu.memory_space<vmem>>, vector<8x4xbf16>
    %c5 = arith.constant 5 : index
    %c0_30 = arith.constant 0 : index
    %71 = vector.load %arg3[%c5, %c0_30] : memref<16x128xf32, #tpu.memory_space<vmem>>, vector<1x4xf32>
    %72 = arith.truncf %69 : vector<512x8xf32> to vector<512x8xbf16>
    %cst_31 = arith.constant dense<0.000000e+00> : vector<512x4xf32>
    %73 = tpu.matmul %72, %70, %cst_31 {dimension_numbers = #tpu.dot_dimension_numbers<[1], [0], [0], [1], [0, 0, 1, 1], [], []>} : vector<512x8xbf16>, vector<8x4xbf16>, vector<512x4xf32> -> vector<512x4xf32>
    %74 = vector.broadcast %71 : vector<1x4xf32> to vector<512x4xf32>
    %75 = arith.addf %73, %74 : vector<512x4xf32>
    %76 = arith.mulf %75, %75 : vector<512x4xf32>
    %77 = arith.mulf %75, %76 : vector<512x4xf32>
    %cst_32 = arith.constant 4.471500e-02 : f32
    %78 = vector.broadcast %cst_32 : f32 to vector<512x4xf32>
    %79 = arith.mulf %78, %77 : vector<512x4xf32>
    %80 = arith.addf %75, %79 : vector<512x4xf32>
    %cst_33 = arith.constant 0.797884583 : f32
    %81 = vector.broadcast %cst_33 : f32 to vector<512x4xf32>
    %82 = arith.mulf %81, %80 : vector<512x4xf32>
    %83 = math.tanh %82 : vector<512x4xf32>
    %cst_34 = arith.constant 1.000000e+00 : f32
    %84 = vector.broadcast %cst_34 : f32 to vector<512x4xf32>
    %85 = arith.addf %84, %83 : vector<512x4xf32>
    %cst_35 = arith.constant 5.000000e-01 : f32
    %86 = vector.broadcast %cst_35 : f32 to vector<512x4xf32>
    %87 = arith.mulf %86, %85 : vector<512x4xf32>
    %88 = arith.mulf %75, %87 : vector<512x4xf32>
    %89 = tpu.iota {dimensions = array<i32: 0>} : vector<512x1xi32>
    %c512_i32 = arith.constant 512 : i32
    %90 = arith.muli %arg0, %c512_i32 : i32
    %91 = vector.broadcast %90 : i32 to vector<512x1xi32>
    %92 = arith.addi %89, %91 : vector<512x1xi32>
    %93 = arith.sitofp %92 : vector<512x1xi32> to vector<512x1xf32>
    %cst_36 = arith.constant 5.000000e-01 : f32
    %94 = vector.broadcast %cst_36 : f32 to vector<512x1xf32>
    %95 = arith.addf %93, %94 : vector<512x1xf32>
    %cst_37 = arith.constant 3.906250e-03 : f32
    %96 = vector.broadcast %cst_37 : f32 to vector<512x1xf32>
    %97 = arith.mulf %95, %96 : vector<512x1xf32>
    %98 = math.floor %97 : vector<512x1xf32>
    %cst_38 = arith.constant 2.560000e+02 : f32
    %99 = vector.broadcast %cst_38 : f32 to vector<512x1xf32>
    %100 = arith.mulf %98, %99 : vector<512x1xf32>
    %101 = arith.subf %93, %100 : vector<512x1xf32>
    %cst_39 = arith.constant 5.000000e-01 : f32
    %102 = vector.broadcast %cst_39 : f32 to vector<512x1xf32>
    %103 = arith.addf %101, %102 : vector<512x1xf32>
    %cst_40 = arith.constant 6.250000e-02 : f32
    %104 = vector.broadcast %cst_40 : f32 to vector<512x1xf32>
    %105 = arith.mulf %103, %104 : vector<512x1xf32>
    %106 = math.floor %105 : vector<512x1xf32>
    %cst_41 = arith.constant 1.600000e+01 : f32
    %107 = vector.broadcast %cst_41 : f32 to vector<512x1xf32>
    %108 = arith.mulf %106, %107 : vector<512x1xf32>
    %109 = arith.subf %101, %108 : vector<512x1xf32>
    %cst_42 = arith.constant 5.000000e-01 : f32
    %110 = vector.broadcast %cst_42 : f32 to vector<512x1xf32>
    %111 = arith.addf %109, %110 : vector<512x1xf32>
    %cst_43 = arith.constant 1.250000e-01 : f32
    %112 = vector.broadcast %cst_43 : f32 to vector<512x1xf32>
    %113 = arith.mulf %111, %112 : vector<512x1xf32>
    %cst_44 = arith.constant 1.000000e+00 : f32
    %114 = vector.broadcast %cst_44 : f32 to vector<512x1xf32>
    %115 = arith.subf %113, %114 : vector<512x1xf32>
    %cst_45 = arith.constant 5.000000e-01 : f32
    %116 = vector.broadcast %cst_45 : f32 to vector<512x1xf32>
    %117 = arith.addf %106, %116 : vector<512x1xf32>
    %cst_46 = arith.constant 1.250000e-01 : f32
    %118 = vector.broadcast %cst_46 : f32 to vector<512x1xf32>
    %119 = arith.mulf %117, %118 : vector<512x1xf32>
    %cst_47 = arith.constant 1.000000e+00 : f32
    %120 = vector.broadcast %cst_47 : f32 to vector<512x1xf32>
    %121 = arith.subf %119, %120 : vector<512x1xf32>
    %122 = tpu.iota {dimensions = array<i32: 1>} : vector<512x128xi32>
    %c0_i32 = arith.constant 0 : i32
    %123 = vector.broadcast %c0_i32 : i32 to vector<512x128xi32>
    %124 = arith.cmpi eq, %122, %123 : vector<512x128xi32>
    %c1_i32 = arith.constant 1 : i32
    %125 = vector.broadcast %c1_i32 : i32 to vector<512x128xi32>
    %126 = arith.cmpi eq, %122, %125 : vector<512x128xi32>
    %cst_48 = arith.constant 0.000000e+00 : f32
    %127 = vector.shape_cast %121 : vector<512x1xf32> to vector<512x1xf32>
    %128 = vector.broadcast %127 : vector<512x1xf32> to vector<512x128xf32>
    %129 = vector.broadcast %cst_48 : f32 to vector<512x128xf32>
    %130 = arith.select %126, %128, %129 : vector<512x128xi1>, vector<512x128xf32>
    %131 = vector.shape_cast %115 : vector<512x1xf32> to vector<512x1xf32>
    %132 = vector.broadcast %131 : vector<512x1xf32> to vector<512x128xf32>
    %133 = arith.select %124, %132, %130 : vector<512x128xi1>, vector<512x128xf32>
    %c6 = arith.constant 6 : index
    %c0_49 = arith.constant 0 : index
    %134 = vector.load %arg3[%c6, %c0_49] : memref<16x128xf32, #tpu.memory_space<vmem>>, vector<1x128xf32>
    %135 = vector.broadcast %134 : vector<1x128xf32> to vector<512x128xf32>
    %136 = arith.addf %133, %135 : vector<512x128xf32>
    %137 = vector.extract_strided_slice %88 {offsets = [0, 0], sizes = [512, 1], strides = [1, 1]} : vector<512x4xf32> to vector<512x1xf32>
    %c7 = arith.constant 7 : index
    %c0_50 = arith.constant 0 : index
    %138 = vector.load %arg3[%c7, %c0_50] : memref<16x128xf32, #tpu.memory_space<vmem>>, vector<1x128xf32>
    %139 = vector.broadcast %137 : vector<512x1xf32> to vector<512x128xf32>
    %140 = vector.broadcast %138 : vector<1x128xf32> to vector<512x128xf32>
    %141 = arith.mulf %139, %140 : vector<512x128xf32>
    %142 = arith.addf %136, %141 : vector<512x128xf32>
    %143 = vector.extract_strided_slice %88 {offsets = [0, 1], sizes = [512, 1], strides = [1, 1]} : vector<512x4xf32> to vector<512x1xf32>
    %c8 = arith.constant 8 : index
    %c0_51 = arith.constant 0 : index
    %144 = vector.load %arg3[%c8, %c0_51] : memref<16x128xf32, #tpu.memory_space<vmem>>, vector<1x128xf32>
    %145 = vector.broadcast %143 : vector<512x1xf32> to vector<512x128xf32>
    %146 = vector.broadcast %144 : vector<1x128xf32> to vector<512x128xf32>
    %147 = arith.mulf %145, %146 : vector<512x128xf32>
    %148 = arith.addf %142, %147 : vector<512x128xf32>
    %149 = vector.extract_strided_slice %88 {offsets = [0, 2], sizes = [512, 1], strides = [1, 1]} : vector<512x4xf32> to vector<512x1xf32>
    %c9 = arith.constant 9 : index
    %c0_52 = arith.constant 0 : index
    %150 = vector.load %arg3[%c9, %c0_52] : memref<16x128xf32, #tpu.memory_space<vmem>>, vector<1x128xf32>
    %151 = vector.broadcast %149 : vector<512x1xf32> to vector<512x128xf32>
    %152 = vector.broadcast %150 : vector<1x128xf32> to vector<512x128xf32>
    %153 = arith.mulf %151, %152 : vector<512x128xf32>
    %154 = arith.addf %148, %153 : vector<512x128xf32>
    %155 = vector.extract_strided_slice %88 {offsets = [0, 3], sizes = [512, 1], strides = [1, 1]} : vector<512x4xf32> to vector<512x1xf32>
    %c10 = arith.constant 10 : index
    %c0_53 = arith.constant 0 : index
    %156 = vector.load %arg3[%c10, %c0_53] : memref<16x128xf32, #tpu.memory_space<vmem>>, vector<1x128xf32>
    %157 = vector.broadcast %155 : vector<512x1xf32> to vector<512x128xf32>
    %158 = vector.broadcast %156 : vector<1x128xf32> to vector<512x128xf32>
    %159 = arith.mulf %157, %158 : vector<512x128xf32>
    %160 = arith.addf %154, %159 : vector<512x128xf32>
    %c0_54 = arith.constant 0 : index
    %c0_55 = arith.constant 0 : index
    %161 = vector.load %arg4[%c0_54, %c0_55] : memref<512x128xf32, #tpu.memory_space<vmem>>, vector<512x128xf32>
    tpu.vector_store %arg4[%c0_54, %c0_55], %160 {strides = array<i32>} : memref<512x128xf32, #tpu.memory_space<vmem>>, vector<512x128xf32>,
    return
  }
  func.func @transform_0(%arg0: i32) -> (i32, i32) {
    %c0_i32 = arith.constant 0 : i32
    %c0_i32_0 = arith.constant 0 : i32
    return %arg0, %c0_i32 : i32, i32
  }
  func.func @transform_1(%arg0: i32) -> (i32, i32) {
    %c0_i32 = arith.constant 0 : i32
    %c0_i32_0 = arith.constant 0 : i32
    %c0_i32_1 = arith.constant 0 : i32
    return %c0_i32, %c0_i32_0 : i32, i32
  }
  func.func @transform_2(%arg0: i32) -> (i32, i32) {
    %c0_i32 = arith.constant 0 : i32
    %c0_i32_0 = arith.constant 0 : i32
    %c0_i32_1 = arith.constant 0 : i32
    return %c0_i32, %c0_i32_0 : i32, i32
  }
  func.func @transform_3(%arg0: i32) -> (i32, i32) {
    %c0_i32 = arith.constant 0 : i32
    %c0_i32_0 = arith.constant 0 : i32
    return %arg0, %c0_i32 : i32, i32
  }
}

</mosaic_0001>

<llo_original>
// kernel: pixelvit_forward.2
$region0: #{pixelvit_forward.2}
  #allocation0 [shape = 'u32[]', space=smem, size = 0x4, offset = 0x4, fixed_abs, tag = 'smem constant byte address 0x4 - core index']
  #allocation1 [shape = 'u32[144,128]{1,0:T(1,128)}', space=vmem, size = 0x12000, scoped, tag = 'internal scratch']
  %s0 = inlined_call_operand.vmem [shape: bf16[128,24], index: 0, kind: input, shape index: {}]
  %s1 = inlined_call_operand.vmem [shape: bf16[160,128], index: 1, kind: input, shape index: {}]
  %s2 = inlined_call_operand.vmem [shape: f32[16,128], index: 2, kind: input, shape index: {}]
  %s3 = inlined_call_operand.vmem [shape: f32[128,128], index: 3, kind: output, shape index: {}]
  %s4 = sld [smem:[#allocation0]]
  $region22: #{pixelvit_forward.2} parent=0
    _
  %s6 = ssub.s32 1, %s4
  %s7 = scalar_select 0, %s6, %s4
  // Predicated region
  $region2: #{pixelvit_forward.2} parent=0 // pred_check
    _
  $region3: #{pixelvit_forward.2} parent=0 // pred_check_branch
    %9 = sbr.rel (0) target = $region5
  $region4: #{pixelvit_forward.2} parent=0 // pred_region
    _
  $region5: #{pixelvit_forward.2} parent=0 // pred_fallthru
    _
  // Predicated region
  $region6: #{pixelvit_forward.2} parent=0 // pred_check
    _
  $region7: #{pixelvit_forward.2} parent=0 // pred_check_branch
    %11 = sbr.rel (0) target = $region9
  $region8: #{pixelvit_forward.2} parent=0 // pred_region
    _
  $region9: #{pixelvit_forward.2} parent=0 // pred_fallthru
    _
  // Predicated region
  $region10: #{pixelvit_forward.2} parent=0 // pred_check
    _
  $region11: #{pixelvit_forward.2} parent=0 // pred_check_branch
    %13 = sbr.rel (0) target = $region13
  $region12: #{pixelvit_forward.2} parent=0 // pred_region
    _
  $region13: #{pixelvit_forward.2} parent=0 // pred_fallthru
    _
  %v15 = vld [vmem:[%s0] sm:$0xf]
  %v16 = vld [vmem:[%s0 + $0x4] sm:$0xf]
  %v17 = vld [vmem:[%s0 + $0x8] sm:$0xf]
  %v18 = vld [vmem:[%s0 + $0xc] sm:$0xf]
  %v19 = vld [vmem:[%s0 + $0x10] sm:$0xf]
  %v20 = vld [vmem:[%s0 + $0x14] sm:$0xf]
  %v21 = vld [vmem:[%s0 + $0x18] sm:$0xf]
  %v22 = vld [vmem:[%s0 + $0x1c] sm:$0xf]
  %v23 = vld [vmem:[%s0 + $0x20] sm:$0xf]
  %v24 = vld [vmem:[%s0 + $0x24] sm:$0xf]
  %v25 = vld [vmem:[%s0 + $0x28] sm:$0xf]
  %v26 = vld [vmem:[%s0 + $0x2c] sm:$0xf]
  %v27 = vld [vmem:[%s0 + $0x30] sm:$0xf]
  %v28 = vld [vmem:[%s0 + $0x34] sm:$0xf]
  %v29 = vld [vmem:[%s0 + $0x38] sm:$0xf]
  %v30 = vld [vmem:[%s0 + $0x3c] sm:$0xf]
  %v31 = vld [vmem:[%s1] sm:$0xf]
  %v32 = vld [vmem:[%s1 + $0x4] sm:$0xf]
  %v33 = vld [vmem:[%s1 + $0x8] sm:$0xf]
  %v34 = vld [vmem:[%s2] sm:$0x1]
  %v35 = vlaneseq
  %v36 = vshrl.u32 %v35, 7
  %v37 = vsub.s32 0, %v36
  %v38 = vrot.slane %v34, %v37
  %v55 = vunpack.c.l.b16 %v15
  %v56 = vunpack.c.l.b16 %v16
  %v57 = vunpack.c.l.b16 %v17
  %v58 = vunpack.c.l.b16 %v18
  %v59 = vunpack.c.l.b16 %v19
  %v60 = vunpack.c.l.b16 %v20
  %v61 = vunpack.c.l.b16 %v21
  %v62 = vunpack.c.l.b16 %v22
  %v63 = vunpack.c.l.b16 %v23
  %v64 = vunpack.c.l.b16 %v24
  %v65 = vunpack.c.l.b16 %v25
  %v66 = vunpack.c.l.b16 %v26
  %v67 = vunpack.c.l.b16 %v27
  %v68 = vunpack.c.l.b16 %v28
  %v69 = vunpack.c.l.b16 %v29
  %v70 = vunpack.c.l.b16 %v30
  %v71 = vpack.c.b16 %v56, %v55
  %v72 = vpack.c.b16 %v58, %v57
  %v73 = vpack.c.b16 %v60, %v59
  %v74 = vpack.c.b16 %v62, %v61
  %v75 = vpack.c.b16 %v64, %v63
  %v76 = vpack.c.b16 %v66, %v65
  %v77 = vpack.c.b16 %v68, %v67
  %v78 = vpack.c.b16 %v70, %v69
  %v82 = vunpack.c.l.b16 %v31
  %v83 = vunpack.c.l.b16 %v32
  %v84 = vunpack.c.l.b16 %v33
  %v85 = vpack.c.b16 %v83, %v82
  %v86 = vpack.c.b16 %v84, %v84
  %vm88 = vcmask 195584
  %v90 = vsel %vm88, %v71, 0
  %v93 = vsel %vm88, %v72, 0
  %v96 = vsel %vm88, %v73, 0
  %v99 = vsel %vm88, %v74, 0
  %v102 = vsel %vm88, %v75, 0
  %v105 = vsel %vm88, %v76, 0
  %v108 = vsel %vm88, %v77, 0
  %v111 = vsel %vm88, %v78, 0
  %vm113 = vcmask 1043456
  %v115 = vsel %vm113, %v86, 0
  %117 = vmatprep.subr.bf16.mxu0 0
  %118 = vmatpush1.bf16.msra.mxu0 %v85
  %119 = vmatprep.subr.bf16.mxu0 0
  %120 = vmatpush1.bf16.msra.mxu0 %v115
  %121 = vmatprep.subr.bf16.mxu0 0
  %122 = vmatpush1.bf16.msra.mxu0 0
  %123 = vmatprep.subr.bf16.mxu0 0
  %124 = vmatpush1.bf16.msra.mxu0 0
  %125 = vmatprep.subr.bf16.mxu0 0
  %126 = vmatpush1.bf16.msra.mxu0 0
  %127 = vmatprep.subr.bf16.mxu0 0
  %128 = vmatpush1.bf16.msra.mxu0 0
  %129 = vmatprep.subr.bf16.mxu0 0
  %130 = vmatpush1.bf16.msra.mxu0 0
  %131 = vmatprep.subr.bf16.mxu0 0
  %132 = vmatpush1.bf16.msra.mxu0 0
  %133 = vmatprep.subr.bf16.mxu0 0
  %134 = vmatpush1.bf16.msra.mxu0 0
  %135 = vmatprep.subr.bf16.mxu0 0
  %136 = vmatpush1.bf16.msra.mxu0 0
  %137 = vmatprep.subr.bf16.mxu0 0
  %138 = vmatpush1.bf16.msra.mxu0 0
  %139 = vmatprep.subr.bf16.mxu0 0
  %140 = vmatpush1.bf16.msra.mxu0 0
  %141 = vmatprep.subr.bf16.mxu0 0
  %142 = vmatpush1.bf16.msra.mxu0 0
  %143 = vmatprep.subr.bf16.mxu0 0
  %144 = vmatpush1.bf16.msra.mxu0 0
  %145 = vmatprep.subr.bf16.mxu0 0
  %146 = vmatpush1.bf16.msra.mxu0 0
  %147 = vmatprep.subr.bf16.mxu0 0
  %148 = vmatpush1.bf16.msra.mxu0 0
  %149 = vmatprep.mubr.bf16.mxu0 0
  %150 = vmatmul.mubr.bf16.gmra.mrb[0].mxu0 %v90
  %v151 = vpop.f32.mrb[0].mxu0
  %v152 = vadd.f32 %v38, %v151
  %v153 = vpop.f32.mrb[0].mxu0
  %v154 = vpop.f32.mrb[0].mxu0
  %v155 = vadd.f32 %v38, %v154
  %v156 = vpop.f32.mrb[0].mxu0
  %157 = vmatprep.mubr.bf16.mxu0 0
  %158 = vmatmul.mubr.bf16.gmra.mrb[0].mxu0 %v93
  %v159 = vpop.f32.mrb[0].mxu0
  %v160 = vadd.f32 %v38, %v159
  %v161 = vpop.f32.mrb[0].mxu0
  %v162 = vpop.f32.mrb[0].mxu0
  %v163 = vadd.f32 %v38, %v162
  %v164 = vpop.f32.mrb[0].mxu0
  %165 = vmatprep.mubr.bf16.mxu0 0
  %166 = vmatmul.mubr.bf16.gmra.mrb[0].mxu0 %v96
  %v167 = vpop.f32.mrb[0].mxu0
  %v168 = vadd.f32 %v38, %v167
  %v169 = vpop.f32.mrb[0].mxu0
  %v170 = vpop.f32.mrb[0].mxu0
  %v171 = vadd.f32 %v38, %v170
  %v172 = vpop.f32.mrb[0].mxu0
  %173 = vmatprep.mubr.bf16.mxu0 0
  %174 = vmatmul.mubr.bf16.gmra.mrb[0].mxu0 %v99
  %v175 = vpop.f32.mrb[0].mxu0
  %v176 = vadd.f32 %v38, %v175
  %v177 = vpop.f32.mrb[0].mxu0
  %v178 = vpop.f32.mrb[0].mxu0
  %v179 = vadd.f32 %v38, %v178
  %v180 = vpop.f32.mrb[0].mxu0
  %181 = vmatprep.mubr.bf16.mxu0 0
  %182 = vmatmul.mubr.bf16.gmra.mrb[0].mxu0 %v102
  %v183 = vpop.f32.mrb[0].mxu0
  %v184 = vadd.f32 %v38, %v183
  %v185 = vpop.f32.mrb[0].mxu0
  %v186 = vpop.f32.mrb[0].mxu0
  %v187 = vadd.f32 %v38, %v186
  %v188 = vpop.f32.mrb[0].mxu0
  %189 = vmatprep.mubr.bf16.mxu0 0
  %190 = vmatmul.mubr.bf16.gmra.mrb[0].mxu0 %v105
  %v191 = vpop.f32.mrb[0].mxu0
  %v192 = vadd.f32 %v38, %v191
  %v193 = vpop.f32.mrb[0].mxu0
  %v194 = vpop.f32.mrb[0].mxu0
  %v195 = vadd.f32 %v38, %v194
  %v196 = vpop.f32.mrb[0].mxu0
  %197 = vmatprep.mubr.bf16.mxu0 0
  %198 = vmatmul.mubr.bf16.gmra.mrb[0].mxu0 %v108
  %v199 = vpop.f32.mrb[0].mxu0
  %v200 = vadd.f32 %v38, %v199
  %v201 = vpop.f32.mrb[0].mxu0
  %v202 = vpop.f32.mrb[0].mxu0
  %v203 = vadd.f32 %v38, %v202
  %v204 = vpop.f32.mrb[0].mxu0
  %205 = vmatprep.mubr.bf16.mxu0 0
  %206 = vmatmul.mubr.bf16.gmra.mrb[0].mxu0 %v111
  %v207 = vpop.f32.mrb[0].mxu0
  %v208 = vadd.f32 %v38, %v207
  %v209 = vpop.f32.mrb[0].mxu0
  %v210 = vpop.f32.mrb[0].mxu0
  %v211 = vadd.f32 %v38, %v210
  %v212 = vpop.f32.mrb[0].mxu0
  %213 = vdwg.mxu0
  %v214 = vld [vmem:[%s1 + $0x10] sm:$0xf]
  %v215 = vld [vmem:[%s1 + $0x14] sm:$0xf]
  %v216 = vld [vmem:[%s1 + $0x18] sm:$0xf]
  %v217 = vld [vmem:[%s1 + $0x1c] sm:$0xf]
  %v218 = vld [vmem:[%s2 + $0x1] sm:$0x1]
  %v219 = vpack.c.bf16 %v155, %v152
  %v220 = vpack.c.bf16 %v163, %v160
  %v221 = vpack.c.bf16 %v171, %v168
  %v222 = vpack.c.bf16 %v179, %v176
  %v223 = vpack.c.bf16 %v187, %v184
  %v224 = vpack.c.bf16 %v195, %v192
  %v225 = vpack.c.bf16 %v203, %v200
  %v226 = vpack.c.bf16 %v211, %v208
  %v227 = vlaneseq
  %v228 = vshrl.u32 %v227, 7
  %v229 = vsub.s32 0, %v228
  %v230 = vrot.slane %v218, %v229
  %v235 = vunpack.c.l.b16 %v214
  %v236 = vunpack.c.l.b16 %v215
  %v237 = vunpack.c.l.b16 %v216
  %v238 = vunpack.c.l.b16 %v217
  %v239 = vpack.c.b16 %v236, %v235
  %v240 = vpack.c.b16 %v238, %v237
  %vm243 = vcmask 261120
  %v245 = vsel %vm243, %v219, 0
  %v248 = vsel %vm243, %v220, 0
  %v251 = vsel %vm243, %v221, 0
  %v254 = vsel %vm243, %v222, 0
  %v257 = vsel %vm243, %v223, 0
  %v260 = vsel %vm243, %v224, 0
  %v263 = vsel %vm243, %v225, 0
  %v266 = vsel %vm243, %v226, 0
  %268 = vmatprep.subr.bf16.mxu0 0
  %269 = vmatpush1.bf16.msra.mxu0 %v239
  %270 = vmatprep.subr.bf16.mxu0 0
  %271 = vmatpush1.bf16.msra.mxu0 %v240
  %272 = vmatprep.subr.bf16.mxu0 0
  %273 = vmatpush1.bf16.msra.mxu0 0
  %274 = vmatprep.subr.bf16.mxu0 0
  %275 = vmatpush1.bf16.msra.mxu0 0
  %276 = vmatprep.subr.bf16.mxu0 0
  %277 = vmatpush1.bf16.msra.mxu0 0
  %278 = vmatprep.subr.bf16.mxu0 0
  %279 = vmatpush1.bf16.msra.mxu0 0
  %280 = vmatprep.subr.bf16.mxu0 0
  %281 = vmatpush1.bf16.msra.mxu0 0
  %282 = vmatprep.subr.bf16.mxu0 0
  %283 = vmatpush1.bf16.msra.mxu0 0
  %284 = vmatprep.subr.bf16.mxu0 0
  %285 = vmatpush1.bf16.msra.mxu0 0
  %286 = vmatprep.subr.bf16.mxu0 0
  %287 = vmatpush1.bf16.msra.mxu0 0
  %288 = vmatprep.subr.bf16.mxu0 0
  %289 = vmatpush1.bf16.msra.mxu0 0
  %290 = vmatprep.subr.bf16.mxu0 0
  %291 = vmatpush1.bf16.msra.mxu0 0
  %292 = vmatprep.subr.bf16.mxu0 0
  %293 = vmatpush1.bf16.msra.mxu0 0
  %294 = vmatprep.subr.bf16.mxu0 0
  %295 = vmatpush1.bf16.msra.mxu0 0
  %296 = vmatprep.subr.bf16.mxu0 0
  %297 = vmatpush1.bf16.msra.mxu0 0
  %298 = vmatprep.subr.bf16.mxu0 0
  %299 = vmatpush1.bf16.msra.mxu0 0
  %300 = vmatprep.mubr.bf16.mxu0 0
  %301 = vmatmul.mubr.bf16.gmra.mrb[0].mxu0 %v245
  %v302 = vpop.f32.mrb[0].mxu0
  %v303 = vadd.f32 %v230, %v302
  %v304 = vpop.f32.mrb[0].mxu0
  %v305 = vpop.f32.mrb[0].mxu0
  %v306 = vadd.f32 %v230, %v305
  %v307 = vpop.f32.mrb[0].mxu0
  %308 = vmatprep.mubr.bf16.mxu0 0
  %309 = vmatmul.mubr.bf16.gmra.mrb[0].mxu0 %v248
  %v310 = vpop.f32.mrb[0].mxu0
  %v311 = vadd.f32 %v230, %v310
  %v312 = vpop.f32.mrb[0].mxu0
  %v313 = vpop.f32.mrb[0].mxu0
  %v314 = vadd.f32 %v230, %v313
  %v315 = vpop.f32.mrb[0].mxu0
  %316 = vmatprep.mubr.bf16.mxu0 0
  %317 = vmatmul.mubr.bf16.gmra.mrb[0].mxu0 %v251
  %v318 = vpop.f32.mrb[0].mxu0
  %v319 = vadd.f32 %v230, %v318
  %v320 = vpop.f32.mrb[0].mxu0
  %v321 = vpop.f32.mrb[0].mxu0
  %v322 = vadd.f32 %v230, %v321
  %v323 = vpop.f32.mrb[0].mxu0
  %324 = vmatprep.mubr.bf16.mxu0 0
  %325 = vmatmul.mubr.bf16.gmra.mrb[0].mxu0 %v254
  %v326 = vpop.f32.mrb[0].mxu0
  %v327 = vadd.f32 %v230, %v326
  %v328 = vpop.f32.mrb[0].mxu0
  %v329 = vpop.f32.mrb[0].mxu0
  %v330 = vadd.f32 %v230, %v329
  %v331 = vpop.f32.mrb[0].mxu0
  %332 = vmatprep.mubr.bf16.mxu0 0
  %333 = vmatmul.mubr.bf16.gmra.mrb[0].mxu0 %v257
  %v334 = vpop.f32.mrb[0].mxu0
  %v335 = vadd.f32 %v230, %v334
  %v336 = vpop.f32.mrb[0].mxu0
  %v337 = vpop.f32.mrb[0].mxu0
  %v338 = vadd.f32 %v230, %v337
  %v339 = vpop.f32.mrb[0].mxu0
  %340 = vmatprep.mubr.bf16.mxu0 0
  %341 = vmatmul.mubr.bf16.gmra.mrb[0].mxu0 %v260
  %v342 = vpop.f32.mrb[0].mxu0
  %v343 = vadd.f32 %v230, %v342
  %v344 = vpop.f32.mrb[0].mxu0
  %v345 = vpop.f32.mrb[0].mxu0
  %v346 = vadd.f32 %v230, %v345
  %v347 = vpop.f32.mrb[0].mxu0
  %348 = vmatprep.mubr.bf16.mxu0 0
  %349 = vmatmul.mubr.bf16.gmra.mrb[0].mxu0 %v263
  %v350 = vpop.f32.mrb[0].mxu0
  %v351 = vadd.f32 %v230, %v350
  %v352 = vpop.f32.mrb[0].mxu0
  %v353 = vpop.f32.mrb[0].mxu0
  %v354 = vadd.f32 %v230, %v353
  %v355 = vpop.f32.mrb[0].mxu0
  %356 = vmatprep.mubr.bf16.mxu0 0
  %357 = vmatmul.mubr.bf16.gmra.mrb[0].mxu0 %v266
  %v358 = vpop.f32.mrb[0].mxu0
  %v359 = vadd.f32 %v230, %v358
  %v360 = vpop.f32.mrb[0].mxu0
  %v361 = vpop.f32.mrb[0].mxu0
  %v362 = vadd.f32 %v230, %v361
  %v363 = vpop.f32.mrb[0].mxu0
  %364 = vdwg.mxu0
  %v365 = vmul.f32 %v303, %v303
  %v366 = vmul.f32 %v306, %v306
  %v367 = vmul.f32 %v311, %v311
  %v368 = vmul.f32 %v314, %v314
  %v369 = vmul.f32 %v319, %v319
  %v370 = vmul.f32 %v322, %v322
  %v371 = vmul.f32 %v327, %v327
  %v372 = vmul.f32 %v330, %v330
  %v373 = vmul.f32 %v335, %v335
  %v374 = vmul.f32 %v338, %v338
  %v375 = vmul.f32 %v343, %v343
  %v376 = vmul.f32 %v346, %v346
  %v377 = vmul.f32 %v351, %v351
  %v378 = vmul.f32 %v354, %v354
  %v379 = vmul.f32 %v359, %v359
  %v380 = vmul.f32 %v362, %v362
  %v381 = vmul.f32 %v303, %v365
  %v382 = vmul.f32 %v306, %v366
  %v383 = vmul.f32 %v311, %v367
  %v384 = vmul.f32 %v314, %v368
  %v385 = vmul.f32 %v319, %v369
  %v386 = vmul.f32 %v322, %v370
  %v387 = vmul.f32 %v327, %v371
  %v388 = vmul.f32 %v330, %v372
  %v389 = vmul.f32 %v335, %v373
  %v390 = vmul.f32 %v338, %v374
  %v391 = vmul.f32 %v343, %v375
  %v392 = vmul.f32 %v346, %v376
  %v393 = vmul.f32 %v351, %v377
  %v394 = vmul.f32 %v354, %v378
  %v395 = vmul.f32 %v359, %v379
  %v396 = vmul.f32 %v362, %v380
  %v397 = vmul.f32 %v381, 0.044715
  %v398 = vmul.f32 %v382, 0.044715
  %v399 = vmul.f32 %v383, 0.044715
  %v400 = vmul.f32 %v384, 0.044715
  %v401 = vmul.f32 %v385, 0.044715
  %v402 = vmul.f32 %v386, 0.044715
  %v403 = vmul.f32 %v387, 0.044715
  %v404 = vmul.f32 %v388, 0.044715
  %v405 = vmul.f32 %v389, 0.044715
  %v406 = vmul.f32 %v390, 0.044715
  %v407 = vmul.f32 %v391, 0.044715
  %v408 = vmul.f32 %v392, 0.044715
  %v409 = vmul.f32 %v393, 0.044715
  %v410 = vmul.f32 %v394, 0.044715
  %v411 = vmul.f32 %v395, 0.044715
  %v412 = vmul.f32 %v396, 0.044715
  %v413 = vadd.f32 %v303, %v397
  %v414 = vadd.f32 %v306, %v398
  %v415 = vadd.f32 %v311, %v399
  %v416 = vadd.f32 %v314, %v400
  %v417 = vadd.f32 %v319, %v401
  %v418 = vadd.f32 %v322, %v402
  %v419 = vadd.f32 %v327, %v403
  %v420 = vadd.f32 %v330, %v404
  %v421 = vadd.f32 %v335, %v405
  %v422 = vadd.f32 %v338, %v406
  %v423 = vadd.f32 %v343, %v407
  %v424 = vadd.f32 %v346, %v408
  %v425 = vadd.f32 %v351, %v409
  %v426 = vadd.f32 %v354, %v410
  %v427 = vadd.f32 %v359, %v411
  %v428 = vadd.f32 %v362, %v412
  %v429 = vmul.f32 %v413, 0.7978846
  %v430 = vmul.f32 %v414, 0.7978846
  %v431 = vmul.f32 %v415, 0.7978846
  %v432 = vmul.f32 %v416, 0.7978846
  %v433 = vmul.f32 %v417, 0.7978846
  %v434 = vmul.f32 %v418, 0.7978846
  %v435 = vmul.f32 %v419, 0.7978846
  %v436 = vmul.f32 %v420, 0.7978846
  %v437 = vmul.f32 %v421, 0.7978846
  %v438 = vmul.f32 %v422, 0.7978846
  %v439 = vmul.f32 %v423, 0.7978846
  %v440 = vmul.f32 %v424, 0.7978846
  %v441 = vmul.f32 %v425, 0.7978846
  %v442 = vmul.f32 %v426, 0.7978846
  %v443 = vmul.f32 %v427, 0.7978846
  %v444 = vmul.f32 %v428, 0.7978846
  %v445 = vtanh.pop %v429
  %v446 = vtanh.pop %v430
  %v447 = vtanh.pop %v431
  %v448 = vtanh.pop %v432
  %v449 = vtanh.pop %v433
  %v450 = vtanh.pop %v434
  %v451 = vtanh.pop %v435
  %v452 = vtanh.pop %v436
  %v453 = vtanh.pop %v437
  %v454 = vtanh.pop %v438
  %v455 = vtanh.pop %v439
  %v456 = vtanh.pop %v440
  %v457 = vtanh.pop %v441
  %v458 = vtanh.pop %v442
  %v459 = vtanh.pop %v443
  %v460 = vtanh.pop %v444
  %v461 = vadd.f32 %v445, 1.0
  %v462 = vadd.f32 %v446, 1.0
  %v463 = vadd.f32 %v447, 1.0
  %v464 = vadd.f32 %v448, 1.0
  %v465 = vadd.f32 %v449, 1.0
  %v466 = vadd.f32 %v450, 1.0
  %v467 = vadd.f32 %v451, 1.0
  %v468 = vadd.f32 %v452, 1.0
  %v469 = vadd.f32 %v453, 1.0
  %v470 = vadd.f32 %v454, 1.0
  %v471 = vadd.f32 %v455, 1.0
  %v472 = vadd.f32 %v456, 1.0
  %v473 = vadd.f32 %v457, 1.0
  %v474 = vadd.f32 %v458, 1.0
  %v475 = vadd.f32 %v459, 1.0
  %v476 = vadd.f32 %v460, 1.0
  %v477 = vmul.f32 %v461, 0.5
  %v478 = vmul.f32 %v462, 0.5
  %v479 = vmul.f32 %v463, 0.5
  %v480 = vmul.f32 %v464, 0.5
  %v481 = vmul.f32 %v465, 0.5
  %v482 = vmul.f32 %v466, 0.5
  %v483 = vmul.f32 %v467, 0.5
  %v484 = vmul.f32 %v468, 0.5
  %v485 = vmul.f32 %v469, 0.5
  %v486 = vmul.f32 %v470, 0.5
  %v487 = vmul.f32 %v471, 0.5
  %v488 = vmul.f32 %v472, 0.5
  %v489 = vmul.f32 %v473, 0.5
  %v490 = vmul.f32 %v474, 0.5
  %v491 = vmul.f32 %v475, 0.5
  %v492 = vmul.f32 %v476, 0.5
  %v493 = vmul.f32 %v303, %v477
  %v494 = vmul.f32 %v306, %v478
  %v495 = vmul.f32 %v311, %v479
  %v496 = vmul.f32 %v314, %v480
  %v497 = vmul.f32 %v319, %v481
  %v498 = vmul.f32 %v322, %v482
  %v499 = vmul.f32 %v327, %v483
  %v500 = vmul.f32 %v330, %v484
  %v501 = vmul.f32 %v335, %v485
  %v502 = vmul.f32 %v338, %v486
  %v503 = vmul.f32 %v343, %v487
  %v504 = vmul.f32 %v346, %v488
  %v505 = vmul.f32 %v351, %v489
  %v506 = vmul.f32 %v354, %v490
  %v507 = vmul.f32 %v359, %v491
  %v508 = vmul.f32 %v362, %v492
  %v509 = vld [vmem:[%s1 + $0x20] sm:$0xf]
  %v510 = vld [vmem:[%s1 + $0x24] sm:$0xf]
  %v511 = vld [vmem:[%s1 + $0x28] sm:$0xf]
  %v512 = vld [vmem:[%s1 + $0x2c] sm:$0xf]
  %v513 = vld [vmem:[%s2 + $0x2] sm:$0x1]
  %v514 = vpack.c.bf16 %v494, %v493
  %v515 = vpack.c.bf16 %v496, %v495
  %v516 = vpack.c.bf16 %v498, %v497
  %v517 = vpack.c.bf16 %v500, %v499
  %v518 = vpack.c.bf16 %v502, %v501
  %v519 = vpack.c.bf16 %v504, %v503
  %v520 = vpack.c.bf16 %v506, %v505
  %v521 = vpack.c.bf16 %v508, %v507
  %v522 = vlaneseq
  %v523 = vshrl.u32 %v522, 7
  %v524 = vsub.s32 0, %v523
  %v525 = vrot.slane %v513, %v524
  %v530 = vunpack.c.l.b16 %v509
  %v531 = vunpack.c.l.b16 %v510
  %v532 = vunpack.c.l.b16 %v511
  %v533 = vunpack.c.l.b16 %v512
  %v534 = vpack.c.b16 %v531, %v530
  %v535 = vpack.c.b16 %v533, %v532
  %v539 = vsel %vm243, %v514, 0
  %v542 = vsel %vm243, %v515, 0
  %v545 = vsel %vm243, %v516, 0
  %v548 = vsel %vm243, %v517, 0
  %v551 = vsel %vm243, %v518, 0
  %v554 = vsel %vm243, %v519, 0
  %v557 = vsel %vm243, %v520, 0
  %v560 = vsel %vm243, %v521, 0
  %562 = vmatprep.subr.bf16.mxu0 0
  %563 = vmatpush1.bf16.msra.mxu0 %v534
  %564 = vmatprep.subr.bf16.mxu0 0
  %565 = vmatpush1.bf16.msra.mxu0 %v535
  %566 = vmatprep.subr.bf16.mxu0 0
  %567 = vmatpush1.bf16.msra.mxu0 0
  %568 = vmatprep.subr.bf16.mxu0 0
  %569 = vmatpush1.bf16.msra.mxu0 0
  %570 = vmatprep.subr.bf16.mxu0 0
  %571 = vmatpush1.bf16.msra.mxu0 0
  %572 = vmatprep.subr.bf16.mxu0 0
  %573 = vmatpush1.bf16.msra.mxu0 0
  %574 = vmatprep.subr.bf16.mxu0 0
  %575 = vmatpush1.bf16.msra.mxu0 0
  %576 = vmatprep.subr.bf16.mxu0 0
  %577 = vmatpush1.bf16.msra.mxu0 0
  %578 = vmatprep.subr.bf16.mxu0 0
  %579 = vmatpush1.bf16.msra.mxu0 0
  %580 = vmatprep.subr.bf16.mxu0 0
  %581 = vmatpush1.bf16.msra.mxu0 0
  %582 = vmatprep.subr.bf16.mxu0 0
  %583 = vmatpush1.bf16.msra.mxu0 0
  %584 = vmatprep.subr.bf16.mxu0 0
  %585 = vmatpush1.bf16.msra.mxu0 0
  %586 = vmatprep.subr.bf16.mxu0 0
  %587 = vmatpush1.bf16.msra.mxu0 0
  %588 = vmatprep.subr.bf16.mxu0 0
  %589 = vmatpush1.bf16.msra.mxu0 0
  %590 = vmatprep.subr.bf16.mxu0 0
  %591 = vmatpush1.bf16.msra.mxu0 0
  %592 = vmatprep.subr.bf16.mxu0 0
  %593 = vmatpush1.bf16.msra.mxu0 0
  %594 = vmatprep.mubr.bf16.mxu0 0
  %595 = vmatmul.mubr.bf16.gmra.mrb[0].mxu0 %v539
  %v596 = vpop.f32.mrb[0].mxu0
  %v597 = vadd.f32 %v525, %v596
  %v598 = vpop.f32.mrb[0].mxu0
  %v599 = vpop.f32.mrb[0].mxu0
  %v600 = vadd.f32 %v525, %v599
  %v601 = vpop.f32.mrb[0].mxu0
  %602 = vmatprep.mubr.bf16.mxu0 0
  %603 = vmatmul.mubr.bf16.gmra.mrb[0].mxu0 %v542
  %v604 = vpop.f32.mrb[0].mxu0
  %v605 = vadd.f32 %v525, %v604
  %v606 = vpop.f32.mrb[0].mxu0
  %v607 = vpop.f32.mrb[0].mxu0
  %v608 = vadd.f32 %v525, %v607
  %v609 = vpop.f32.mrb[0].mxu0
  %610 = vmatprep.mubr.bf16.mxu0 0
  %611 = vmatmul.mubr.bf16.gmra.mrb[0].mxu0 %v545
  %v612 = vpop.f32.mrb[0].mxu0
  %v613 = vadd.f32 %v525, %v612
  %v614 = vpop.f32.mrb[0].mxu0
  %v615 = vpop.f32.mrb[0].mxu0
  %v616 = vadd.f32 %v525, %v615
  %v617 = vpop.f32.mrb[0].mxu0
  %618 = vmatprep.mubr.bf16.mxu0 0
  %619 = vmatmul.mubr.bf16.gmra.mrb[0].mxu0 %v548
  %v620 = vpop.f32.mrb[0].mxu0
  %v621 = vadd.f32 %v525, %v620
  %v622 = vpop.f32.mrb[0].mxu0
  %v623 = vpop.f32.mrb[0].mxu0
  %v624 = vadd.f32 %v525, %v623
  %v625 = vpop.f32.mrb[0].mxu0
  %626 = vmatprep.mubr.bf16.mxu0 0
  %627 = vmatmul.mubr.bf16.gmra.mrb[0].mxu0 %v551
  %v628 = vpop.f32.mrb[0].mxu0
  %v629 = vadd.f32 %v525, %v628
  %v630 = vpop.f32.mrb[0].mxu0
  %v631 = vpop.f32.mrb[0].mxu0
  %v632 = vadd.f32 %v525, %v631
  %v633 = vpop.f32.mrb[0].mxu0
  %634 = vmatprep.mubr.bf16.mxu0 0
  %635 = vmatmul.mubr.bf16.gmra.mrb[0].mxu0 %v554
  %v636 = vpop.f32.mrb[0].mxu0
  %v637 = vadd.f32 %v525, %v636
  %v638 = vpop.f32.mrb[0].mxu0
  %v639 = vpop.f32.mrb[0].mxu0
  %v640 = vadd.f32 %v525, %v639
  %v641 = vpop.f32.mrb[0].mxu0
  %642 = vmatprep.mubr.bf16.mxu0 0
  %643 = vmatmul.mubr.bf16.gmra.mrb[0].mxu0 %v557
  %v644 = vpop.f32.mrb[0].mxu0
  %v645 = vadd.f32 %v525, %v644
  %v646 = vpop.f32.mrb[0].mxu0
  %v647 = vpop.f32.mrb[0].mxu0
  %v648 = vadd.f32 %v525, %v647
  %v649 = vpop.f32.mrb[0].mxu0
  %650 = vmatprep.mubr.bf16.mxu0 0
  %651 = vmatmul.mubr.bf16.gmra.mrb[0].mxu0 %v560
  %v652 = vpop.f32.mrb[0].mxu0
  %v653 = vadd.f32 %v525, %v652
  %v654 = vpop.f32.mrb[0].mxu0
  %v655 = vpop.f32.mrb[0].mxu0
  %v656 = vadd.f32 %v525, %v655
  %v657 = vpop.f32.mrb[0].mxu0
  %658 = vdwg.mxu0
  %v659 = vadd.f32 %v152, %v597
  %v660 = vadd.f32 %v155, %v600
  %v661 = vadd.f32 %v160, %v605
  %v662 = vadd.f32 %v163, %v608
  %v663 = vadd.f32 %v168, %v613
  %v664 = vadd.f32 %v171, %v616
  %v665 = vadd.f32 %v176, %v621
  %v666 = vadd.f32 %v179, %v624
  %v667 = vadd.f32 %v184, %v629
  %v668 = vadd.f32 %v187, %v632
  %v669 = vadd.f32 %v192, %v637
  %v670 = vadd.f32 %v195, %v640
  %v671 = vadd.f32 %v200, %v645
  %v672 = vadd.f32 %v203, %v648
  %v673 = vadd.f32 %v208, %v653
  %v674 = vadd.f32 %v211, %v656
  %v675 = vld [vmem:[%s1 + $0x30] sm:$0xf]
  %v676 = vld [vmem:[%s1 + $0x34] sm:$0xf]
  %v677 = vld [vmem:[%s1 + $0x38] sm:$0xf]
  %v678 = vld [vmem:[%s1 + $0x3c] sm:$0xf]
  %v679 = vld [vmem:[%s2 + $0x3] sm:$0x1]
  %v680 = vpack.c.bf16 %v660, %v659
  %v681 = vpack.c.bf16 %v662, %v661
  %v682 = vpack.c.bf16 %v664, %v663
  %v683 = vpack.c.bf16 %v666, %v665
  %v684 = vpack.c.bf16 %v668, %v667
  %v685 = vpack.c.bf16 %v670, %v669
  %v686 = vpack.c.bf16 %v672, %v671
  %v687 = vpack.c.bf16 %v674, %v673
  %v688 = vlaneseq
  %v689 = vshrl.u32 %v688, 7
  %v690 = vsub.s32 0, %v689
  %v691 = vrot.slane %v679, %v690
  %v696 = vunpack.c.l.b16 %v675
  %v697 = vunpack.c.l.b16 %v676
  %v698 = vunpack.c.l.b16 %v677
  %v699 = vunpack.c.l.b16 %v678
  %v700 = vpack.c.b16 %v697, %v696
  %v701 = vpack.c.b16 %v699, %v698
  %v705 = vsel %vm243, %v680, 0
  %v708 = vsel %vm243, %v681, 0
  %v711 = vsel %vm243, %v682, 0
  %v714 = vsel %vm243, %v683, 0
  %v717 = vsel %vm243, %v684, 0
  %v720 = vsel %vm243, %v685, 0
  %v723 = vsel %vm243, %v686, 0
  %v726 = vsel %vm243, %v687, 0
  %728 = vmatprep.subr.bf16.mxu0 0
  %729 = vmatpush1.bf16.msra.mxu0 %v700
  %730 = vmatprep.subr.bf16.mxu0 0
  %731 = vmatpush1.bf16.msra.mxu0 %v701
  %732 = vmatprep.subr.bf16.mxu0 0
  %733 = vmatpush1.bf16.msra.mxu0 0
  %734 = vmatprep.subr.bf16.mxu0 0
  %735 = vmatpush1.bf16.msra.mxu0 0
  %736 = vmatprep.subr.bf16.mxu0 0
  %737 = vmatpush1.bf16.msra.mxu0 0
  %738 = vmatprep.subr.bf16.mxu0 0
  %739 = vmatpush1.bf16.msra.mxu0 0
  %740 = vmatprep.subr.bf16.mxu0 0
  %741 = vmatpush1.bf16.msra.mxu0 0
  %742 = vmatprep.subr.bf16.mxu0 0
  %743 = vmatpush1.bf16.msra.mxu0 0
  %744 = vmatprep.subr.bf16.mxu0 0
  %745 = vmatpush1.bf16.msra.mxu0 0
  %746 = vmatprep.subr.bf16.mxu0 0
  %747 = vmatpush1.bf16.msra.mxu0 0
  %748 = vmatprep.subr.bf16.mxu0 0
  %749 = vmatpush1.bf16.msra.mxu0 0
  %750 = vmatprep.subr.bf16.mxu0 0
  %751 = vmatpush1.bf16.msra.mxu0 0
  %752 = vmatprep.subr.bf16.mxu0 0
  %753 = vmatpush1.bf16.msra.mxu0 0
  %754 = vmatprep.subr.bf16.mxu0 0
  %755 = vmatpush1.bf16.msra.mxu0 0
  %756 = vmatprep.subr.bf16.mxu0 0
  %757 = vmatpush1.bf16.msra.mxu0 0
  %758 = vmatprep.subr.bf16.mxu0 0
  %759 = vmatpush1.bf16.msra.mxu0 0
  %760 = vmatprep.mubr.bf16.mxu0 0
  %761 = vmatmul.mubr.bf16.gmra.mrb[0].mxu0 %v705
  %v762 = vpop.f32.mrb[0].mxu0
  %v763 = vadd.f32 %v691, %v762
  %v764 = vpop.f32.mrb[0].mxu0
  %v765 = vpop.f32.mrb[0].mxu0
  %v766 = vadd.f32 %v691, %v765
  %v767 = vpop.f32.mrb[0].mxu0
  %768 = vmatprep.mubr.bf16.mxu0 0
  %769 = vmatmul.mubr.bf16.gmra.mrb[0].mxu0 %v708
  %v770 = vpop.f32.mrb[0].mxu0
  %v771 = vadd.f32 %v691, %v770
  %v772 = vpop.f32.mrb[0].mxu0
  %v773 = vpop.f32.mrb[0].mxu0
  %v774 = vadd.f32 %v691, %v773
  %v775 = vpop.f32.mrb[0].mxu0
  %776 = vmatprep.mubr.bf16.mxu0 0
  %777 = vmatmul.mubr.bf16.gmra.mrb[0].mxu0 %v711
  %v778 = vpop.f32.mrb[0].mxu0
  %v779 = vadd.f32 %v691, %v778
  %v780 = vpop.f32.mrb[0].mxu0
  %v781 = vpop.f32.mrb[0].mxu0
  %v782 = vadd.f32 %v691, %v781
  %v783 = vpop.f32.mrb[0].mxu0
  %784 = vmatprep.mubr.bf16.mxu0 0
  %785 = vmatmul.mubr.bf16.gmra.mrb[0].mxu0 %v714
  %v786 = vpop.f32.mrb[0].mxu0
  %v787 = vadd.f32 %v691, %v786
  %v788 = vpop.f32.mrb[0].mxu0
  %v789 = vpop.f32.mrb[0].mxu0
  %v790 = vadd.f32 %v691, %v789
  %v791 = vpop.f32.mrb[0].mxu0
  %792 = vmatprep.mubr.bf16.mxu0 0
  %793 = vmatmul.mubr.bf16.gmra.mrb[0].mxu0 %v717
  %v794 = vpop.f32.mrb[0].mxu0
  %v795 = vadd.f32 %v691, %v794
  %v796 = vpop.f32.mrb[0].mxu0
  %v797 = vpop.f32.mrb[0].mxu0
  %v798 = vadd.f32 %v691, %v797
  %v799 = vpop.f32.mrb[0].mxu0
  %800 = vmatprep.mubr.bf16.mxu0 0
  %801 = vmatmul.mubr.bf16.gmra.mrb[0].mxu0 %v720
  %v802 = vpop.f32.mrb[0].mxu0
  %v803 = vadd.f32 %v691, %v802
  %v804 = vpop.f32.mrb[0].mxu0
  %v805 = vpop.f32.mrb[0].mxu0
  %v806 = vadd.f32 %v691, %v805
  %v807 = vpop.f32.mrb[0].mxu0
  %808 = vmatprep.mubr.bf16.mxu0 0
  %809 = vmatmul.mubr.bf16.gmra.mrb[0].mxu0 %v723
  %v810 = vpop.f32.mrb[0].mxu0
  %v811 = vadd.f32 %v691, %v810
  %v812 = vpop.f32.mrb[0].mxu0
  %v813 = vpop.f32.mrb[0].mxu0
  %v814 = vadd.f32 %v691, %v813
  %v815 = vpop.f32.mrb[0].mxu0
  %816 = vmatprep.mubr.bf16.mxu0 0
  %817 = vmatmul.mubr.bf16.gmra.mrb[0].mxu0 %v726
  %v818 = vpop.f32.mrb[0].mxu0
  %v819 = vadd.f32 %v691, %v818
  %v820 = vpop.f32.mrb[0].mxu0
  %v821 = vpop.f32.mrb[0].mxu0
  %v822 = vadd.f32 %v691, %v821
  %v823 = vpop.f32.mrb[0].mxu0
  %824 = vdwg.mxu0
  %v825 = vmul.f32 %v763, %v763
  %v826 = vmul.f32 %v766, %v766
  %v827 = vmul.f32 %v771, %v771
  %v828 = vmul.f32 %v774, %v774
  %v829 = vmul.f32 %v779, %v779
  %v830 = vmul.f32 %v782, %v782
  %v831 = vmul.f32 %v787, %v787
  %v832 = vmul.f32 %v790, %v790
  %v833 = vmul.f32 %v795, %v795
  %v834 = vmul.f32 %v798, %v798
  %v835 = vmul.f32 %v803, %v803
  %v836 = vmul.f32 %v806, %v806
  %v837 = vmul.f32 %v811, %v811
  %v838 = vmul.f32 %v814, %v814
  %v839 = vmul.f32 %v819, %v819
  %v840 = vmul.f32 %v822, %v822
  %v841 = vmul.f32 %v763, %v825
  %v842 = vmul.f32 %v766, %v826
  %v843 = vmul.f32 %v771, %v827
  %v844 = vmul.f32 %v774, %v828
  %v845 = vmul.f32 %v779, %v829
  %v846 = vmul.f32 %v782, %v830
  %v847 = vmul.f32 %v787, %v831
  %v848 = vmul.f32 %v790, %v832
  %v849 = vmul.f32 %v795, %v833
  %v850 = vmul.f32 %v798, %v834
  %v851 = vmul.f32 %v803, %v835
  %v852 = vmul.f32 %v806, %v836
  %v853 = vmul.f32 %v811, %v837
  %v854 = vmul.f32 %v814, %v838
  %v855 = vmul.f32 %v819, %v839
  %v856 = vmul.f32 %v822, %v840
  %v857 = vmul.f32 %v841, 0.044715
  %v858 = vmul.f32 %v842, 0.044715
  %v859 = vmul.f32 %v843, 0.044715
  %v860 = vmul.f32 %v844, 0.044715
  %v861 = vmul.f32 %v845, 0.044715
  %v862 = vmul.f32 %v846, 0.044715
  %v863 = vmul.f32 %v847, 0.044715
  %v864 = vmul.f32 %v848, 0.044715
  %v865 = vmul.f32 %v849, 0.044715
  %v866 = vmul.f32 %v850, 0.044715
  %v867 = vmul.f32 %v851, 0.044715
  %v868 = vmul.f32 %v852, 0.044715
  %v869 = vmul.f32 %v853, 0.044715
  %v870 = vmul.f32 %v854, 0.044715
  %v871 = vmul.f32 %v855, 0.044715
  %v872 = vmul.f32 %v856, 0.044715
  %v873 = vadd.f32 %v763, %v857
  %v874 = vadd.f32 %v766, %v858
  %v875 = vadd.f32 %v771, %v859
  %v876 = vadd.f32 %v774, %v860
  %v877 = vadd.f32 %v779, %v861
  %v878 = vadd.f32 %v782, %v862
  %v879 = vadd.f32 %v787, %v863
  %v880 = vadd.f32 %v790, %v864
  %v881 = vadd.f32 %v795, %v865
  %v882 = vadd.f32 %v798, %v866
  %v883 = vadd.f32 %v803, %v867
  %v884 = vadd.f32 %v806, %v868
  %v885 = vadd.f32 %v811, %v869
  %v886 = vadd.f32 %v814, %v870
  %v887 = vadd.f32 %v819, %v871
  %v888 = vadd.f32 %v822, %v872
  %v889 = vmul.f32 %v873, 0.7978846
  %v890 = vmul.f32 %v874, 0.7978846
  %v891 = vmul.f32 %v875, 0.7978846
  %v892 = vmul.f32 %v876, 0.7978846
  %v893 = vmul.f32 %v877, 0.7978846
  %v894 = vmul.f32 %v878, 0.7978846
  %v895 = vmul.f32 %v879, 0.7978846
  %v896 = vmul.f32 %v880, 0.7978846
  %v897 = vmul.f32 %v881, 0.7978846
  %v898 = vmul.f32 %v882, 0.7978846
  %v899 = vmul.f32 %v883, 0.7978846
  %v900 = vmul.f32 %v884, 0.7978846
  %v901 = vmul.f32 %v885, 0.7978846
  %v902 = vmul.f32 %v886, 0.7978846
  %v903 = vmul.f32 %v887, 0.7978846
  %v904 = vmul.f32 %v888, 0.7978846
  %v905 = vtanh.pop %v889
  %v906 = vtanh.pop %v890
  %v907 = vtanh.pop %v891
  %v908 = vtanh.pop %v892
  %v909 = vtanh.pop %v893
  %v910 = vtanh.pop %v894
  %v911 = vtanh.pop %v895
  %v912 = vtanh.pop %v896
  %v913 = vtanh.pop %v897
  %v914 = vtanh.pop %v898
  %v915 = vtanh.pop %v899
  %v916 = vtanh.pop %v900
  %v917 = vtanh.pop %v901
  %v918 = vtanh.pop %v902
  %v919 = vtanh.pop %v903
  %v920 = vtanh.pop %v904
  %v921 = vadd.f32 %v905, 1.0
  %v922 = vadd.f32 %v906, 1.0
  %v923 = vadd.f32 %v907, 1.0
  %v924 = vadd.f32 %v908, 1.0
  %v925 = vadd.f32 %v909, 1.0
  %v926 = vadd.f32 %v910, 1.0
  %v927 = vadd.f32 %v911, 1.0
  %v928 = vadd.f32 %v912, 1.0
  %v929 = vadd.f32 %v913, 1.0
  %v930 = vadd.f32 %v914, 1.0
  %v931 = vadd.f32 %v915, 1.0
  %v932 = vadd.f32 %v916, 1.0
  %v933 = vadd.f32 %v917, 1.0
  %v934 = vadd.f32 %v918, 1.0
  %v935 = vadd.f32 %v919, 1.0
  %v936 = vadd.f32 %v920, 1.0
  %v937 = vmul.f32 %v921, 0.5
  %v938 = vmul.f32 %v922, 0.5
  %v939 = vmul.f32 %v923, 0.5
  %v940 = vmul.f32 %v924, 0.5
  %v941 = vmul.f32 %v925, 0.5
  %v942 = vmul.f32 %v926, 0.5
  %v943 = vmul.f32 %v927, 0.5
  %v944 = vmul.f32 %v928, 0.5
  %v945 = vmul.f32 %v929, 0.5
  %v946 = vmul.f32 %v930, 0.5
  %v947 = vmul.f32 %v931, 0.5
  %v948 = vmul.f32 %v932, 0.5
  %v949 = vmul.f32 %v933, 0.5
  %v950 = vmul.f32 %v934, 0.5
  %v951 = vmul.f32 %v935, 0.5
  %v952 = vmul.f32 %v936, 0.5
  %v953 = vmul.f32 %v763, %v937
  %v954 = vmul.f32 %v766, %v938
  %v955 = vmul.f32 %v771, %v939
  %v956 = vmul.f32 %v774, %v940
  %v957 = vmul.f32 %v779, %v941
  %v958 = vmul.f32 %v782, %v942
  %v959 = vmul.f32 %v787, %v943
  %v960 = vmul.f32 %v790, %v944
  %v961 = vmul.f32 %v795, %v945
  %v962 = vmul.f32 %v798, %v946
  %v963 = vmul.f32 %v803, %v947
  %v964 = vmul.f32 %v806, %v948
  %v965 = vmul.f32 %v811, %v949
  %v966 = vmul.f32 %v814, %v950
  %v967 = vmul.f32 %v819, %v951
  %v968 = vmul.f32 %v822, %v952
  %v969 = vld [vmem:[%s1 + $0x40] sm:$0xf]
  %v970 = vld [vmem:[%s1 + $0x44] sm:$0xf]
  %v971 = vld [vmem:[%s2 + $0x4] sm:$0x1]
  %v972 = vpack.c.bf16 %v954, %v953
  %v973 = vpack.c.bf16 %v956, %v955
  %v974 = vpack.c.bf16 %v958, %v957
  %v975 = vpack.c.bf16 %v960, %v959
  %v976 = vpack.c.bf16 %v962, %v961
  %v977 = vpack.c.bf16 %v964, %v963
  %v978 = vpack.c.bf16 %v966, %v965
  %v979 = vpack.c.bf16 %v968, %v967
  %v980 = vlaneseq
  %v981 = vshrl.u32 %v980, 7
  %v982 = vsub.s32 0, %v981
  %v983 = vrot.slane %v971, %v982
  %v986 = vunpack.c.l.b16 %v969
  %v987 = vunpack.c.l.b16 %v970
  %v988 = vpack.c.b16 %v987, %v986
  %vm990 = vcmask 130048
  %v992 = vsel %vm990, %v972, 0
  %v995 = vsel %vm990, %v973, 0
  %v998 = vsel %vm990, %v974, 0
  %v1001 = vsel %vm990, %v975, 0
  %v1004 = vsel %vm990, %v976, 0
  %v1007 = vsel %vm990, %v977, 0
  %v1010 = vsel %vm990, %v978, 0
  %v1013 = vsel %vm990, %v979, 0
  %1015 = vmatprep.subr.bf16.mxu0 0
  %1016 = vmatpush1.bf16.msra.mxu0 %v988
  %1017 = vmatprep.subr.bf16.mxu0 0
  %1018 = vmatpush1.bf16.msra.mxu0 0
  %1019 = vmatprep.subr.bf16.mxu0 0
  %1020 = vmatpush1.bf16.msra.mxu0 0
  %1021 = vmatprep.subr.bf16.mxu0 0
  %1022 = vmatpush1.bf16.msra.mxu0 0
  %1023 = vmatprep.subr.bf16.mxu0 0
  %1024 = vmatpush1.bf16.msra.mxu0 0
  %1025 = vmatprep.subr.bf16.mxu0 0
  %1026 = vmatpush1.bf16.msra.mxu0 0
  %1027 = vmatprep.subr.bf16.mxu0 0
  %1028 = vmatpush1.bf16.msra.mxu0 0
  %1029 = vmatprep.subr.bf16.mxu0 0
  %1030 = vmatpush1.bf16.msra.mxu0 0
  %1031 = vmatprep.subr.bf16.mxu0 0
  %1032 = vmatpush1.bf16.msra.mxu0 0
  %1033 = vmatprep.subr.bf16.mxu0 0
  %1034 = vmatpush1.bf16.msra.mxu0 0
  %1035 = vmatprep.subr.bf16.mxu0 0
  %1036 = vmatpush1.bf16.msra.mxu0 0
  %1037 = vmatprep.subr.bf16.mxu0 0
  %1038 = vmatpush1.bf16.msra.mxu0 0
  %1039 = vmatprep.subr.bf16.mxu0 0
  %1040 = vmatpush1.bf16.msra.mxu0 0
  %1041 = vmatprep.subr.bf16.mxu0 0
  %1042 = vmatpush1.bf16.msra.mxu0 0
  %1043 = vmatprep.subr.bf16.mxu0 0
  %1044 = vmatpush1.bf16.msra.mxu0 0
  %1045 = vmatprep.subr.bf16.mxu0 0
  %1046 = vmatpush1.bf16.msra.mxu0 0
  %1047 = vmatprep.mubr.bf16.mxu0 0
  %1048 = vmatmul.mubr.bf16.gmra.mrb[0].mxu0 %v992
  %v1049 = vpop.f32.mrb[0].mxu0
  %v1050 = vadd.f32 %v983, %v1049
  %v1051 = vpop.f32.mrb[0].mxu0
  %v1052 = vpop.f32.mrb[0].mxu0
  %v1053 = vadd.f32 %v983, %v1052
  %v1054 = vpop.f32.mrb[0].mxu0
  %1055 = vmatprep.mubr.bf16.mxu0 0
  %1056 = vmatmul.mubr.bf16.gmra.mrb[0].mxu0 %v995
  %v1057 = vpop.f32.mrb[0].mxu0
  %v1058 = vadd.f32 %v983, %v1057
  %v1059 = vpop.f32.mrb[0].mxu0
  %v1060 = vpop.f32.mrb[0].mxu0
  %v1061 = vadd.f32 %v983, %v1060
  %v1062 = vpop.f32.mrb[0].mxu0
  %1063 = vmatprep.mubr.bf16.mxu0 0
  %1064 = vmatmul.mubr.bf16.gmra.mrb[0].mxu0 %v998
  %v1065 = vpop.f32.mrb[0].mxu0
  %v1066 = vadd.f32 %v983, %v1065
  %v1067 = vpop.f32.mrb[0].mxu0
  %v1068 = vpop.f32.mrb[0].mxu0
  %v1069 = vadd.f32 %v983, %v1068
  %v1070 = vpop.f32.mrb[0].mxu0
  %1071 = vmatprep.mubr.bf16.mxu0 0
  %1072 = vmatmul.mubr.bf16.gmra.mrb[0].mxu0 %v1001
  %v1073 = vpop.f32.mrb[0].mxu0
  %v1074 = vadd.f32 %v983, %v1073
  %v1075 = vpop.f32.mrb[0].mxu0
  %v1076 = vpop.f32.mrb[0].mxu0
  %v1077 = vadd.f32 %v983, %v1076
  %v1078 = vpop.f32.mrb[0].mxu0
  %1079 = vmatprep.mubr.bf16.mxu0 0
  %1080 = vmatmul.mubr.bf16.gmra.mrb[0].mxu0 %v1004
  %v1081 = vpop.f32.mrb[0].mxu0
  %v1082 = vadd.f32 %v983, %v1081
  %v1083 = vpop.f32.mrb[0].mxu0
  %v1084 = vpop.f32.mrb[0].mxu0
  %v1085 = vadd.f32 %v983, %v1084
  %v1086 = vpop.f32.mrb[0].mxu0
  %1087 = vmatprep.mubr.bf16.mxu0 0
  %1088 = vmatmul.mubr.bf16.gmra.mrb[0].mxu0 %v1007
  %v1089 = vpop.f32.mrb[0].mxu0
  %v1090 = vadd.f32 %v983, %v1089
  %v1091 = vpop.f32.mrb[0].mxu0
  %v1092 = vpop.f32.mrb[0].mxu0
  %v1093 = vadd.f32 %v983, %v1092
  %v1094 = vpop.f32.mrb[0].mxu0
  %1095 = vmatprep.mubr.bf16.mxu0 0
  %1096 = vmatmul.mubr.bf16.gmra.mrb[0].mxu0 %v1010
  %v1097 = vpop.f32.mrb[0].mxu0
  %v1098 = vadd.f32 %v983, %v1097
  %v1099 = vpop.f32.mrb[0].mxu0
  %v1100 = vpop.f32.mrb[0].mxu0
  %v1101 = vadd.f32 %v983, %v1100
  %v1102 = vpop.f32.mrb[0].mxu0
  %1103 = vmatprep.mubr.bf16.mxu0 0
  %1104 = vmatmul.mubr.bf16.gmra.mrb[0].mxu0 %v1013
  %v1105 = vpop.f32.mrb[0].mxu0
  %v1106 = vadd.f32 %v983, %v1105
  %v1107 = vpop.f32.mrb[0].mxu0
  %v1108 = vpop.f32.mrb[0].mxu0
  %v1109 = vadd.f32 %v983, %v1108
  %v1110 = vpop.f32.mrb[0].mxu0
  %1111 = vdwg.mxu0
  %v1112 = vmul.f32 %v1050, %v1050
  %v1113 = vmul.f32 %v1053, %v1053
  %v1114 = vmul.f32 %v1058, %v1058
  %v1115 = vmul.f32 %v1061, %v1061
  %v1116 = vmul.f32 %v1066, %v1066
  %v1117 = vmul.f32 %v1069, %v1069
  %v1118 = vmul.f32 %v1074, %v1074
  %v1119 = vmul.f32 %v1077, %v1077
  %v1120 = vmul.f32 %v1082, %v1082
  %v1121 = vmul.f32 %v1085, %v1085
  %v1122 = vmul.f32 %v1090, %v1090
  %v1123 = vmul.f32 %v1093, %v1093
  %v1124 = vmul.f32 %v1098, %v1098
  %v1125 = vmul.f32 %v1101, %v1101
  %v1126 = vmul.f32 %v1106, %v1106
  %v1127 = vmul.f32 %v1109, %v1109
  %v1128 = vmul.f32 %v1050, %v1112
  %v1129 = vmul.f32 %v1053, %v1113
  %v1130 = vmul.f32 %v1058, %v1114
  %v1131 = vmul.f32 %v1061, %v1115
  %v1132 = vmul.f32 %v1066, %v1116
  %v1133 = vmul.f32 %v1069, %v1117
  %v1134 = vmul.f32 %v1074, %v1118
  %v1135 = vmul.f32 %v1077, %v1119
  %v1136 = vmul.f32 %v1082, %v1120
  %v1137 = vmul.f32 %v1085, %v1121
  %v1138 = vmul.f32 %v1090, %v1122
  %v1139 = vmul.f32 %v1093, %v1123
  %v1140 = vmul.f32 %v1098, %v1124
  %v1141 = vmul.f32 %v1101, %v1125
  %v1142 = vmul.f32 %v1106, %v1126
  %v1143 = vmul.f32 %v1109, %v1127
  %v1144 = vmul.f32 %v1128, 0.044715
  %v1145 = vmul.f32 %v1129, 0.044715
  %v1146 = vmul.f32 %v1130, 0.044715
  %v1147 = vmul.f32 %v1131, 0.044715
  %v1148 = vmul.f32 %v1132, 0.044715
  %v1149 = vmul.f32 %v1133, 0.044715
  %v1150 = vmul.f32 %v1134, 0.044715
  %v1151 = vmul.f32 %v1135, 0.044715
  %v1152 = vmul.f32 %v1136, 0.044715
  %v1153 = vmul.f32 %v1137, 0.044715
  %v1154 = vmul.f32 %v1138, 0.044715
  %v1155 = vmul.f32 %v1139, 0.044715
  %v1156 = vmul.f32 %v1140, 0.044715
  %v1157 = vmul.f32 %v1141, 0.044715
  %v1158 = vmul.f32 %v1142, 0.044715
  %v1159 = vmul.f32 %v1143, 0.044715
  %v1160 = vadd.f32 %v1050, %v1144
  %v1161 = vadd.f32 %v1053, %v1145
  %v1162 = vadd.f32 %v1058, %v1146
  %v1163 = vadd.f32 %v1061, %v1147
  %v1164 = vadd.f32 %v1066, %v1148
  %v1165 = vadd.f32 %v1069, %v1149
  %v1166 = vadd.f32 %v1074, %v1150
  %v1167 = vadd.f32 %v1077, %v1151
  %v1168 = vadd.f32 %v1082, %v1152
  %v1169 = vadd.f32 %v1085, %v1153
  %v1170 = vadd.f32 %v1090, %v1154
  %v1171 = vadd.f32 %v1093, %v1155
  %v1172 = vadd.f32 %v1098, %v1156
  %v1173 = vadd.f32 %v1101, %v1157
  %v1174 = vadd.f32 %v1106, %v1158
  %v1175 = vadd.f32 %v1109, %v1159
  %v1176 = vmul.f32 %v1160, 0.7978846
  %v1177 = vmul.f32 %v1161, 0.7978846
  %v1178 = vmul.f32 %v1162, 0.7978846
  %v1179 = vmul.f32 %v1163, 0.7978846
  %v1180 = vmul.f32 %v1164, 0.7978846
  %v1181 = vmul.f32 %v1165, 0.7978846
  %v1182 = vmul.f32 %v1166, 0.7978846
  %v1183 = vmul.f32 %v1167, 0.7978846
  %v1184 = vmul.f32 %v1168, 0.7978846
  %v1185 = vmul.f32 %v1169, 0.7978846
  %v1186 = vmul.f32 %v1170, 0.7978846
  %v1187 = vmul.f32 %v1171, 0.7978846
  %v1188 = vmul.f32 %v1172, 0.7978846
  %v1189 = vmul.f32 %v1173, 0.7978846
  %v1190 = vmul.f32 %v1174, 0.7978846
  %v1191 = vmul.f32 %v1175, 0.7978846
  %v1192 = vtanh.pop %v1176
  %v1193 = vtanh.pop %v1177
  %v1194 = vtanh.pop %v1178
  %v1195 = vtanh.pop %v1179
  %v1196 = vtanh.pop %v1180
  %v1197 = vtanh.pop %v1181
  %v1198 = vtanh.pop %v1182
  %v1199 = vtanh.pop %v1183
  %v1200 = vtanh.pop %v1184
  %v1201 = vtanh.pop %v1185
  %v1202 = vtanh.pop %v1186
  %v1203 = vtanh.pop %v1187
  %v1204 = vtanh.pop %v1188
  %v1205 = vtanh.pop %v1189
  %v1206 = vtanh.pop %v1190
  %v1207 = vtanh.pop %v1191
  %v1208 = vadd.f32 %v1192, 1.0
  %v1209 = vadd.f32 %v1193, 1.0
  %v1210 = vadd.f32 %v1194, 1.0
  %v1211 = vadd.f32 %v1195, 1.0
  %v1212 = vadd.f32 %v1196, 1.0
  %v1213 = vadd.f32 %v1197, 1.0
  %v1214 = vadd.f32 %v1198, 1.0
  %v1215 = vadd.f32 %v1199, 1.0
  %v1216 = vadd.f32 %v1200, 1.0
  %v1217 = vadd.f32 %v1201, 1.0
  %v1218 = vadd.f32 %v1202, 1.0
  %v1219 = vadd.f32 %v1203, 1.0
  %v1220 = vadd.f32 %v1204, 1.0
  %v1221 = vadd.f32 %v1205, 1.0
  %v1222 = vadd.f32 %v1206, 1.0
  %v1223 = vadd.f32 %v1207, 1.0
  %v1224 = vmul.f32 %v1208, 0.5
  %v1225 = vmul.f32 %v1209, 0.5
  %v1226 = vmul.f32 %v1210, 0.5
  %v1227 = vmul.f32 %v1211, 0.5
  %v1228 = vmul.f32 %v1212, 0.5
  %v1229 = vmul.f32 %v1213, 0.5
  %v1230 = vmul.f32 %v1214, 0.5
  %v1231 = vmul.f32 %v1215, 0.5
  %v1232 = vmul.f32 %v1216, 0.5
  %v1233 = vmul.f32 %v1217, 0.5
  %v1234 = vmul.f32 %v1218, 0.5
  %v1235 = vmul.f32 %v1219, 0.5
  %v1236 = vmul.f32 %v1220, 0.5
  %v1237 = vmul.f32 %v1221, 0.5
  %v1238 = vmul.f32 %v1222, 0.5
  %v1239 = vmul.f32 %v1223, 0.5
  %v1240 = vmul.f32 %v1050, %v1224
  %v1241 = vmul.f32 %v1053, %v1225
  %v1242 = vmul.f32 %v1058, %v1226
  %v1243 = vmul.f32 %v1061, %v1227
  %v1244 = vmul.f32 %v1066, %v1228
  %v1245 = vmul.f32 %v1069, %v1229
  %v1246 = vmul.f32 %v1074, %v1230
  %v1247 = vmul.f32 %v1077, %v1231
  %v1248 = vmul.f32 %v1082, %v1232
  %v1249 = vmul.f32 %v1085, %v1233
  %v1250 = vmul.f32 %v1090, %v1234
  %v1251 = vmul.f32 %v1093, %v1235
  %v1252 = vmul.f32 %v1098, %v1236
  %v1253 = vmul.f32 %v1101, %v1237
  %v1254 = vmul.f32 %v1106, %v1238
  %v1255 = vmul.f32 %v1109, %v1239
  %v1256 = vld [vmem:[%s1 + $0x48] sm:$0xf]
  %v1257 = vld [vmem:[%s2 + $0x5] sm:$0x1]
  %v1258 = vpack.c.bf16 %v1241, %v1240
  %v1259 = vpack.c.bf16 %v1243, %v1242
  %v1260 = vpack.c.bf16 %v1245, %v1244
  %v1261 = vpack.c.bf16 %v1247, %v1246
  %v1262 = vpack.c.bf16 %v1249, %v1248
  %v1263 = vpack.c.bf16 %v1251, %v1250
  %v1264 = vpack.c.bf16 %v1253, %v1252
  %v1265 = vpack.c.bf16 %v1255, %v1254
  %v1266 = vlaneseq
  %v1267 = vshrl.u32 %v1266, 7
  %v1268 = vsub.s32 0, %v1267
  %v1269 = vrot.slane %v1257, %v1268
  %vm1270 = vcmask 64512
  %v1272 = vsel %vm1270, %v1258, 0
  %v1275 = vsel %vm1270, %v1259, 0
  %v1278 = vsel %vm1270, %v1260, 0
  %v1281 = vsel %vm1270, %v1261, 0
  %v1284 = vsel %vm1270, %v1262, 0
  %v1287 = vsel %vm1270, %v1263, 0
  %v1290 = vsel %vm1270, %v1264, 0
  %v1293 = vsel %vm1270, %v1265, 0
  %v1296 = vsel %vm113, %v1256, 0
  %1298 = vmatprep.subr.bf16.mxu0 0
  %1299 = vmatpush1.bf16.msra.mxu0 %v1296
  %1300 = vmatprep.subr.bf16.mxu0 0
  %1301 = vmatpush1.bf16.msra.mxu0 0
  %1302 = vmatprep.subr.bf16.mxu0 0
  %1303 = vmatpush1.bf16.msra.mxu0 0
  %1304 = vmatprep.subr.bf16.mxu0 0
  %1305 = vmatpush1.bf16.msra.mxu0 0
  %1306 = vmatprep.subr.bf16.mxu0 0
  %1307 = vmatpush1.bf16.msra.mxu0 0
  %1308 = vmatprep.subr.bf16.mxu0 0
  %1309 = vmatpush1.bf16.msra.mxu0 0
  %1310 = vmatprep.subr.bf16.mxu0 0
  %1311 = vmatpush1.bf16.msra.mxu0 0
  %1312 = vmatprep.subr.bf16.mxu0 0
  %1313 = vmatpush1.bf16.msra.mxu0 0
  %1314 = vmatprep.subr.bf16.mxu0 0
  %1315 = vmatpush1.bf16.msra.mxu0 0
  %1316 = vmatprep.subr.bf16.mxu0 0
  %1317 = vmatpush1.bf16.msra.mxu0 0
  %1318 = vmatprep.subr.bf16.mxu0 0
  %1319 = vmatpush1.bf16.msra.mxu0 0
  %1320 = vmatprep.subr.bf16.mxu0 0
  %1321 = vmatpush1.bf16.msra.mxu0 0
  %1322 = vmatprep.subr.bf16.mxu0 0
  %1323 = vmatpush1.bf16.msra.mxu0 0
  %1324 = vmatprep.subr.bf16.mxu0 0
  %1325 = vmatpush1.bf16.msra.mxu0 0
  %1326 = vmatprep.subr.bf16.mxu0 0
  %1327 = vmatpush1.bf16.msra.mxu0 0
  %1328 = vmatprep.subr.bf16.mxu0 0
  %1329 = vmatpush1.bf16.msra.mxu0 0
  %1330 = vmatprep.mubr.bf16.mxu0 0
  %1331 = vmatmul.mubr.bf16.gmra.mrb[0].mxu0 %v1272
  %v1332 = vpop.f32.mrb[0].mxu0
  %v1333 = vadd.f32 %v1269, %v1332
  %v1334 = vpop.f32.mrb[0].mxu0
  %v1335 = vpop.f32.mrb[0].mxu0
  %v1336 = vadd.f32 %v1269, %v1335
  %v1337 = vpop.f32.mrb[0].mxu0
  %1338 = vmatprep.mubr.bf16.mxu0 0
  %1339 = vmatmul.mubr.bf16.gmra.mrb[0].mxu0 %v1275
  %v1340 = vpop.f32.mrb[0].mxu0
  %v1341 = vadd.f32 %v1269, %v1340
  %v1342 = vpop.f32.mrb[0].mxu0
  %v1343 = vpop.f32.mrb[0].mxu0
  %v1344 = vadd.f32 %v1269, %v1343
  %v1345 = vpop.f32.mrb[0].mxu0
  %1346 = vmatprep.mubr.bf16.mxu0 0
  %1347 = vmatmul.mubr.bf16.gmra.mrb[0].mxu0 %v1278
  %v1348 = vpop.f32.mrb[0].mxu0
  %v1349 = vadd.f32 %v1269, %v1348
  %v1350 = vpop.f32.mrb[0].mxu0
  %v1351 = vpop.f32.mrb[0].mxu0
  %v1352 = vadd.f32 %v1269, %v1351
  %v1353 = vpop.f32.mrb[0].mxu0
  %1354 = vmatprep.mubr.bf16.mxu0 0
  %1355 = vmatmul.mubr.bf16.gmra.mrb[0].mxu0 %v1281
  %v1356 = vpop.f32.mrb[0].mxu0
  %v1357 = vadd.f32 %v1269, %v1356
  %v1358 = vpop.f32.mrb[0].mxu0
  %v1359 = vpop.f32.mrb[0].mxu0
  %v1360 = vadd.f32 %v1269, %v1359
  %v1361 = vpop.f32.mrb[0].mxu0
  %1362 = vmatprep.mubr.bf16.mxu0 0
  %1363 = vmatmul.mubr.bf16.gmra.mrb[0].mxu0 %v1284
  %v1364 = vpop.f32.mrb[0].mxu0
  %v1365 = vadd.f32 %v1269, %v1364
  %v1366 = vpop.f32.mrb[0].mxu0
  %v1367 = vpop.f32.mrb[0].mxu0
  %v1368 = vadd.f32 %v1269, %v1367
  %v1369 = vpop.f32.mrb[0].mxu0
  %1370 = vmatprep.mubr.bf16.mxu0 0
  %1371 = vmatmul.mubr.bf16.gmra.mrb[0].mxu0 %v1287
  %v1372 = vpop.f32.mrb[0].mxu0
  %v1373 = vadd.f32 %v1269, %v1372
  %v1374 = vpop.f32.mrb[0].mxu0
  %v1375 = vpop.f32.mrb[0].mxu0
  %v1376 = vadd.f32 %v1269, %v1375
  %v1377 = vpop.f32.mrb[0].mxu0
  %1378 = vmatprep.mubr.bf16.mxu0 0
  %1379 = vmatmul.mubr.bf16.gmra.mrb[0].mxu0 %v1290
  %v1380 = vpop.f32.mrb[0].mxu0
  %v1381 = vadd.f32 %v1269, %v1380
  %v1382 = vpop.f32.mrb[0].mxu0
  %v1383 = vpop.f32.mrb[0].mxu0
  %v1384 = vadd.f32 %v1269, %v1383
  %v1385 = vpop.f32.mrb[0].mxu0
  %1386 = vmatprep.mubr.bf16.mxu0 0
  %1387 = vmatmul.mubr.bf16.gmra.mrb[0].mxu0 %v1293
  %v1388 = vpop.f32.mrb[0].mxu0
  %v1389 = vadd.f32 %v1269, %v1388
  %v1390 = vpop.f32.mrb[0].mxu0
  %v1391 = vpop.f32.mrb[0].mxu0
  %v1392 = vadd.f32 %v1269, %v1391
  %v1393 = vpop.f32.mrb[0].mxu0
  %1394 = vdwg.mxu0
  %v1395 = vmul.f32 %v1333, %v1333
  %v1396 = vmul.f32 %v1336, %v1336
  %v1397 = vmul.f32 %v1341, %v1341
  %v1398 = vmul.f32 %v1344, %v1344
  %v1399 = vmul.f32 %v1349, %v1349
  %v1400 = vmul.f32 %v1352, %v1352
  %v1401 = vmul.f32 %v1357, %v1357
  %v1402 = vmul.f32 %v1360, %v1360
  %v1403 = vmul.f32 %v1365, %v1365
  %v1404 = vmul.f32 %v1368, %v1368
  %v1405 = vmul.f32 %v1373, %v1373
  %v1406 = vmul.f32 %v1376, %v1376
  %v1407 = vmul.f32 %v1381, %v1381
  %v1408 = vmul.f32 %v1384, %v1384
  %v1409 = vmul.f32 %v1389, %v1389
  %v1410 = vmul.f32 %v1392, %v1392
  %v1411 = vmul.f32 %v1333, %v1395
  %v1412 = vmul.f32 %v1336, %v1396
  %v1413 = vmul.f32 %v1341, %v1397
  %v1414 = vmul.f32 %v1344, %v1398
  %v1415 = vmul.f32 %v1349, %v1399
  %v1416 = vmul.f32 %v1352, %v1400
  %v1417 = vmul.f32 %v1357, %v1401
  %v1418 = vmul.f32 %v1360, %v1402
  %v1419 = vmul.f32 %v1365, %v1403
  %v1420 = vmul.f32 %v1368, %v1404
  %v1421 = vmul.f32 %v1373, %v1405
  %v1422 = vmul.f32 %v1376, %v1406
  %v1423 = vmul.f32 %v1381, %v1407
  %v1424 = vmul.f32 %v1384, %v1408
  %v1425 = vmul.f32 %v1389, %v1409
  %v1426 = vmul.f32 %v1392, %v1410
  %v1427 = vmul.f32 %v1411, 0.044715
  %v1428 = vmul.f32 %v1412, 0.044715
  %v1429 = vmul.f32 %v1413, 0.044715
  %v1430 = vmul.f32 %v1414, 0.044715
  %v1431 = vmul.f32 %v1415, 0.044715
  %v1432 = vmul.f32 %v1416, 0.044715
  %v1433 = vmul.f32 %v1417, 0.044715
  %v1434 = vmul.f32 %v1418, 0.044715
  %v1435 = vmul.f32 %v1419, 0.044715
  %v1436 = vmul.f32 %v1420, 0.044715
  %v1437 = vmul.f32 %v1421, 0.044715
  %v1438 = vmul.f32 %v1422, 0.044715
  %v1439 = vmul.f32 %v1423, 0.044715
  %v1440 = vmul.f32 %v1424, 0.044715
  %v1441 = vmul.f32 %v1425, 0.044715
  %v1442 = vmul.f32 %v1426, 0.044715
  %v1443 = vadd.f32 %v1333, %v1427
  %v1444 = vadd.f32 %v1336, %v1428
  %v1445 = vadd.f32 %v1341, %v1429
  %v1446 = vadd.f32 %v1344, %v1430
  %v1447 = vadd.f32 %v1349, %v1431
  %v1448 = vadd.f32 %v1352, %v1432
  %v1449 = vadd.f32 %v1357, %v1433
  %v1450 = vadd.f32 %v1360, %v1434
  %v1451 = vadd.f32 %v1365, %v1435
  %v1452 = vadd.f32 %v1368, %v1436
  %v1453 = vadd.f32 %v1373, %v1437
  %v1454 = vadd.f32 %v1376, %v1438
  %v1455 = vadd.f32 %v1381, %v1439
  %v1456 = vadd.f32 %v1384, %v1440
  %v1457 = vadd.f32 %v1389, %v1441
  %v1458 = vadd.f32 %v1392, %v1442
  %v1459 = vmul.f32 %v1443, 0.7978846
  %v1460 = vmul.f32 %v1444, 0.7978846
  %v1461 = vmul.f32 %v1445, 0.7978846
  %v1462 = vmul.f32 %v1446, 0.7978846
  %v1463 = vmul.f32 %v1447, 0.7978846
  %v1464 = vmul.f32 %v1448, 0.7978846
  %v1465 = vmul.f32 %v1449, 0.7978846
  %v1466 = vmul.f32 %v1450, 0.7978846
  %v1467 = vmul.f32 %v1451, 0.7978846
  %v1468 = vmul.f32 %v1452, 0.7978846
  %v1469 = vmul.f32 %v1453, 0.7978846
  %v1470 = vmul.f32 %v1454, 0.7978846
  %v1471 = vmul.f32 %v1455, 0.7978846
  %v1472 = vmul.f32 %v1456, 0.7978846
  %v1473 = vmul.f32 %v1457, 0.7978846
  %v1474 = vmul.f32 %v1458, 0.7978846
  %v1475 = vtanh.pop %v1459
  %v1476 = vtanh.pop %v1460
  %v1477 = vtanh.pop %v1461
  %v1478 = vtanh.pop %v1462
  %v1479 = vtanh.pop %v1463
  %v1480 = vtanh.pop %v1464
  %v1481 = vtanh.pop %v1465
  %v1482 = vtanh.pop %v1466
  %v1483 = vtanh.pop %v1467
  %v1484 = vtanh.pop %v1468
  %v1485 = vtanh.pop %v1469
  %v1486 = vtanh.pop %v1470
  %v1487 = vtanh.pop %v1471
  %v1488 = vtanh.pop %v1472
  %v1489 = vtanh.pop %v1473
  %v1490 = vtanh.pop %v1474
  %v1491 = vadd.f32 %v1475, 1.0
  %v1492 = vadd.f32 %v1476, 1.0
  %v1493 = vadd.f32 %v1477, 1.0
  %v1494 = vadd.f32 %v1478, 1.0
  %v1495 = vadd.f32 %v1479, 1.0
  %v1496 = vadd.f32 %v1480, 1.0
  %v1497 = vadd.f32 %v1481, 1.0
  %v1498 = vadd.f32 %v1482, 1.0
  %v1499 = vadd.f32 %v1483, 1.0
  %v1500 = vadd.f32 %v1484, 1.0
  %v1501 = vadd.f32 %v1485, 1.0
  %v1502 = vadd.f32 %v1486, 1.0
  %v1503 = vadd.f32 %v1487, 1.0
  %v1504 = vadd.f32 %v1488, 1.0
  %v1505 = vadd.f32 %v1489, 1.0
  %v1506 = vadd.f32 %v1490, 1.0
  %v1507 = vmul.f32 %v1491, 0.5
  %v1508 = vmul.f32 %v1492, 0.5
  %v1509 = vmul.f32 %v1493, 0.5
  %v1510 = vmul.f32 %v1494, 0.5
  %v1511 = vmul.f32 %v1495, 0.5
  %v1512 = vmul.f32 %v1496, 0.5
  %v1513 = vmul.f32 %v1497, 0.5
  %v1514 = vmul.f32 %v1498, 0.5
  %v1515 = vmul.f32 %v1499, 0.5
  %v1516 = vmul.f32 %v1500, 0.5
  %v1517 = vmul.f32 %v1501, 0.5
  %v1518 = vmul.f32 %v1502, 0.5
  %v1519 = vmul.f32 %v1503, 0.5
  %v1520 = vmul.f32 %v1504, 0.5
  %v1521 = vmul.f32 %v1505, 0.5
  %v1522 = vmul.f32 %v1506, 0.5
  %v1523 = vmul.f32 %v1333, %v1507
  %v1524 = vmul.f32 %v1336, %v1508
  %v1525 = vmul.f32 %v1341, %v1509
  %v1526 = vmul.f32 %v1344, %v1510
  %v1527 = vmul.f32 %v1349, %v1511
  %v1528 = vmul.f32 %v1352, %v1512
  %v1529 = vmul.f32 %v1357, %v1513
  %v1530 = vmul.f32 %v1360, %v1514
  %v1531 = vmul.f32 %v1365, %v1515
  %v1532 = vmul.f32 %v1368, %v1516
  %v1533 = vmul.f32 %v1373, %v1517
  %v1534 = vmul.f32 %v1376, %v1518
  %v1535 = vmul.f32 %v1381, %v1519
  %v1536 = vmul.f32 %v1384, %v1520
  %v1537 = vmul.f32 %v1389, %v1521
  %v1538 = vmul.f32 %v1392, %v1522
  %v1539 = vlaneseq
  %v1540 = vshrl.u32 %v1539, 7
  %v1541 = vadd.s32 %v1540, 8
  %v1542 = vadd.s32 %v1540, 16
  %v1543 = vadd.s32 %v1540, 24
  %v1544 = vadd.s32 %v1540, 32
  %v1545 = vadd.s32 %v1540, 40
  %v1546 = vadd.s32 %v1540, 48
  %v1547 = vadd.s32 %v1540, 56
  %v1548 = vadd.s32 %v1540, 64
  %v1549 = vadd.s32 %v1540, 72
  %v1550 = vadd.s32 %v1540, 80
  %v1551 = vadd.s32 %v1540, 88
  %v1552 = vadd.s32 %v1540, 96
  %v1553 = vadd.s32 %v1540, 104
  %v1554 = vadd.s32 %v1540, 112
  %v1555 = vadd.s32 %v1540, 120
  %s1556 = smul.u32 0, 128
  %v1557 = vstv %s1556
  %v1558 = vadd.s32 %v1540, %v1557
  %v1559 = vadd.s32 %v1541, %v1557
  %v1560 = vadd.s32 %v1542, %v1557
  %v1561 = vadd.s32 %v1543, %v1557
  %v1562 = vadd.s32 %v1544, %v1557
  %v1563 = vadd.s32 %v1545, %v1557
  %v1564 = vadd.s32 %v1546, %v1557
  %v1565 = vadd.s32 %v1547, %v1557
  %v1566 = vadd.s32 %v1548, %v1557
  %v1567 = vadd.s32 %v1549, %v1557
  %v1568 = vadd.s32 %v1550, %v1557
  %v1569 = vadd.s32 %v1551, %v1557
  %v1570 = vadd.s32 %v1552, %v1557
  %v1571 = vadd.s32 %v1553, %v1557
  %v1572 = vadd.s32 %v1554, %v1557
  %v1573 = vadd.s32 %v1555, %v1557
  %v1574 = vcvt.s32.f32 %v1558
  %v1575 = vcvt.s32.f32 %v1559
  %v1576 = vcvt.s32.f32 %v1560
  %v1577 = vcvt.s32.f32 %v1561
  %v1578 = vcvt.s32.f32 %v1562
  %v1579 = vcvt.s32.f32 %v1563
  %v1580 = vcvt.s32.f32 %v1564
  %v1581 = vcvt.s32.f32 %v1565
  %v1582 = vcvt.s32.f32 %v1566
  %v1583 = vcvt.s32.f32 %v1567
  %v1584 = vcvt.s32.f32 %v1568
  %v1585 = vcvt.s32.f32 %v1569
  %v1586 = vcvt.s32.f32 %v1570
  %v1587 = vcvt.s32.f32 %v1571
  %v1588 = vcvt.s32.f32 %v1572
  %v1589 = vcvt.s32.f32 %v1573
  %v1590 = vadd.f32 %v1574, 0.5
  %v1591 = vadd.f32 %v1575, 0.5
  %v1592 = vadd.f32 %v1576, 0.5
  %v1593 = vadd.f32 %v1577, 0.5
  %v1594 = vadd.f32 %v1578, 0.5
  %v1595 = vadd.f32 %v1579, 0.5
  %v1596 = vadd.f32 %v1580, 0.5
  %v1597 = vadd.f32 %v1581, 0.5
  %v1598 = vadd.f32 %v1582, 0.5
  %v1599 = vadd.f32 %v1583, 0.5
  %v1600 = vadd.f32 %v1584, 0.5
  %v1601 = vadd.f32 %v1585, 0.5
  %v1602 = vadd.f32 %v1586, 0.5
  %v1603 = vadd.f32 %v1587, 0.5
  %v1604 = vadd.f32 %v1588, 0.5
  %v1605 = vadd.f32 %v1589, 0.5
  %v1606 = vmul.f32 %v1590, 0.015625
  %v1607 = vmul.f32 %v1591, 0.015625
  %v1608 = vmul.f32 %v1592, 0.015625
  %v1609 = vmul.f32 %v1593, 0.015625
  %v1610 = vmul.f32 %v1594, 0.015625
  %v1611 = vmul.f32 %v1595, 0.015625
  %v1612 = vmul.f32 %v1596, 0.015625
  %v1613 = vmul.f32 %v1597, 0.015625
  %v1614 = vmul.f32 %v1598, 0.015625
  %v1615 = vmul.f32 %v1599, 0.015625
  %v1616 = vmul.f32 %v1600, 0.015625
  %v1617 = vmul.f32 %v1601, 0.015625
  %v1618 = vmul.f32 %v1602, 0.015625
  %v1619 = vmul.f32 %v1603, 0.015625
  %v1620 = vmul.f32 %v1604, 0.015625
  %v1621 = vmul.f32 %v1605, 0.015625
  %v1622 = vfloor.f32 %v1606
  %v1623 = vfloor.f32 %v1607
  %v1624 = vfloor.f32 %v1608
  %v1625 = vfloor.f32 %v1609
  %v1626 = vfloor.f32 %v1610
  %v1627 = vfloor.f32 %v1611
  %v1628 = vfloor.f32 %v1612
  %v1629 = vfloor.f32 %v1613
  %v1630 = vfloor.f32 %v1614
  %v1631 = vfloor.f32 %v1615
  %v1632 = vfloor.f32 %v1616
  %v1633 = vfloor.f32 %v1617
  %v1634 = vfloor.f32 %v1618
  %v1635 = vfloor.f32 %v1619
  %v1636 = vfloor.f32 %v1620
  %v1637 = vfloor.f32 %v1621
  %v1638 = vmul.f32 %v1622, 64.0
  %v1639 = vmul.f32 %v1623, 64.0
  %v1640 = vmul.f32 %v1624, 64.0
  %v1641 = vmul.f32 %v1625, 64.0
  %v1642 = vmul.f32 %v1626, 64.0
  %v1643 = vmul.f32 %v1627, 64.0
  %v1644 = vmul.f32 %v1628, 64.0
  %v1645 = vmul.f32 %v1629, 64.0
  %v1646 = vmul.f32 %v1630, 64.0
  %v1647 = vmul.f32 %v1631, 64.0
  %v1648 = vmul.f32 %v1632, 64.0
  %v1649 = vmul.f32 %v1633, 64.0
  %v1650 = vmul.f32 %v1634, 64.0
  %v1651 = vmul.f32 %v1635, 64.0
  %v1652 = vmul.f32 %v1636, 64.0
  %v1653 = vmul.f32 %v1637, 64.0
  %v1654 = vsub.f32 %v1574, %v1638
  %v1655 = vsub.f32 %v1575, %v1639
  %v1656 = vsub.f32 %v1576, %v1640
  %v1657 = vsub.f32 %v1577, %v1641
  %v1658 = vsub.f32 %v1578, %v1642
  %v1659 = vsub.f32 %v1579, %v1643
  %v1660 = vsub.f32 %v1580, %v1644
  %v1661 = vsub.f32 %v1581, %v1645
  %v1662 = vsub.f32 %v1582, %v1646
  %v1663 = vsub.f32 %v1583, %v1647
  %v1664 = vsub.f32 %v1584, %v1648
  %v1665 = vsub.f32 %v1585, %v1649
  %v1666 = vsub.f32 %v1586, %v1650
  %v1667 = vsub.f32 %v1587, %v1651
  %v1668 = vsub.f32 %v1588, %v1652
  %v1669 = vsub.f32 %v1589, %v1653
  %v1670 = vadd.f32 %v1654, 0.5
  %v1671 = vadd.f32 %v1655, 0.5
  %v1672 = vadd.f32 %v1656, 0.5
  %v1673 = vadd.f32 %v1657, 0.5
  %v1674 = vadd.f32 %v1658, 0.5
  %v1675 = vadd.f32 %v1659, 0.5
  %v1676 = vadd.f32 %v1660, 0.5
  %v1677 = vadd.f32 %v1661, 0.5
  %v1678 = vadd.f32 %v1662, 0.5
  %v1679 = vadd.f32 %v1663, 0.5
  %v1680 = vadd.f32 %v1664, 0.5
  %v1681 = vadd.f32 %v1665, 0.5
  %v1682 = vadd.f32 %v1666, 0.5
  %v1683 = vadd.f32 %v1667, 0.5
  %v1684 = vadd.f32 %v1668, 0.5
  %v1685 = vadd.f32 %v1669, 0.5
  %v1686 = vmul.f32 %v1670, 0.125
  %v1687 = vmul.f32 %v1671, 0.125
  %v1688 = vmul.f32 %v1672, 0.125
  %v1689 = vmul.f32 %v1673, 0.125
  %v1690 = vmul.f32 %v1674, 0.125
  %v1691 = vmul.f32 %v1675, 0.125
  %v1692 = vmul.f32 %v1676, 0.125
  %v1693 = vmul.f32 %v1677, 0.125
  %v1694 = vmul.f32 %v1678, 0.125
  %v1695 = vmul.f32 %v1679, 0.125
  %v1696 = vmul.f32 %v1680, 0.125
  %v1697 = vmul.f32 %v1681, 0.125
  %v1698 = vmul.f32 %v1682, 0.125
  %v1699 = vmul.f32 %v1683, 0.125
  %v1700 = vmul.f32 %v1684, 0.125
  %v1701 = vmul.f32 %v1685, 0.125
  %v1702 = vfloor.f32 %v1686
  %v1703 = vfloor.f32 %v1687
  %v1704 = vfloor.f32 %v1688
  %v1705 = vfloor.f32 %v1689
  %v1706 = vfloor.f32 %v1690
  %v1707 = vfloor.f32 %v1691
  %v1708 = vfloor.f32 %v1692
  %v1709 = vfloor.f32 %v1693
  %v1710 = vfloor.f32 %v1694
  %v1711 = vfloor.f32 %v1695
  %v1712 = vfloor.f32 %v1696
  %v1713 = vfloor.f32 %v1697
  %v1714 = vfloor.f32 %v1698
  %v1715 = vfloor.f32 %v1699
  %v1716 = vfloor.f32 %v1700
  %v1717 = vfloor.f32 %v1701
  %v1718 = vmul.f32 %v1702, 8.0
  %v1719 = vmul.f32 %v1703, 8.0
  %v1720 = vmul.f32 %v1704, 8.0
  %v1721 = vmul.f32 %v1705, 8.0
  %v1722 = vmul.f32 %v1706, 8.0
  %v1723 = vmul.f32 %v1707, 8.0
  %v1724 = vmul.f32 %v1708, 8.0
  %v1725 = vmul.f32 %v1709, 8.0
  %v1726 = vmul.f32 %v1710, 8.0
  %v1727 = vmul.f32 %v1711, 8.0
  %v1728 = vmul.f32 %v1712, 8.0
  %v1729 = vmul.f32 %v1713, 8.0
  %v1730 = vmul.f32 %v1714, 8.0
  %v1731 = vmul.f32 %v1715, 8.0
  %v1732 = vmul.f32 %v1716, 8.0
  %v1733 = vmul.f32 %v1717, 8.0
  %v1734 = vsub.f32 %v1654, %v1718
  %v1735 = vsub.f32 %v1655, %v1719
  %v1736 = vsub.f32 %v1656, %v1720
  %v1737 = vsub.f32 %v1657, %v1721
  %v1738 = vsub.f32 %v1658, %v1722
  %v1739 = vsub.f32 %v1659, %v1723
  %v1740 = vsub.f32 %v1660, %v1724
  %v1741 = vsub.f32 %v1661, %v1725
  %v1742 = vsub.f32 %v1662, %v1726
  %v1743 = vsub.f32 %v1663, %v1727
  %v1744 = vsub.f32 %v1664, %v1728
  %v1745 = vsub.f32 %v1665, %v1729
  %v1746 = vsub.f32 %v1666, %v1730
  %v1747 = vsub.f32 %v1667, %v1731
  %v1748 = vsub.f32 %v1668, %v1732
  %v1749 = vsub.f32 %v1669, %v1733
  %v1750 = vadd.f32 %v1734, 0.5
  %v1751 = vadd.f32 %v1735, 0.5
  %v1752 = vadd.f32 %v1736, 0.5
  %v1753 = vadd.f32 %v1737, 0.5
  %v1754 = vadd.f32 %v1738, 0.5
  %v1755 = vadd.f32 %v1739, 0.5
  %v1756 = vadd.f32 %v1740, 0.5
  %v1757 = vadd.f32 %v1741, 0.5
  %v1758 = vadd.f32 %v1742, 0.5
  %v1759 = vadd.f32 %v1743, 0.5
  %v1760 = vadd.f32 %v1744, 0.5
  %v1761 = vadd.f32 %v1745, 0.5
  %v1762 = vadd.f32 %v1746, 0.5
  %v1763 = vadd.f32 %v1747, 0.5
  %v1764 = vadd.f32 %v1748, 0.5
  %v1765 = vadd.f32 %v1749, 0.5
  %v1766 = vmul.f32 %v1750, 0.25
  %v1767 = vmul.f32 %v1751, 0.25
  %v1768 = vmul.f32 %v1752, 0.25
  %v1769 = vmul.f32 %v1753, 0.25
  %v1770 = vmul.f32 %v1754, 0.25
  %v1771 = vmul.f32 %v1755, 0.25
  %v1772 = vmul.f32 %v1756, 0.25
  %v1773 = vmul.f32 %v1757, 0.25
  %v1774 = vmul.f32 %v1758, 0.25
  %v1775 = vmul.f32 %v1759, 0.25
  %v1776 = vmul.f32 %v1760, 0.25
  %v1777 = vmul.f32 %v1761, 0.25
  %v1778 = vmul.f32 %v1762, 0.25
  %v1779 = vmul.f32 %v1763, 0.25
  %v1780 = vmul.f32 %v1764, 0.25
  %v1781 = vmul.f32 %v1765, 0.25
  %v1782 = vsub.f32 %v1766, 1.0
  %v1783 = vsub.f32 %v1767, 1.0
  %v1784 = vsub.f32 %v1768, 1.0
  %v1785 = vsub.f32 %v1769, 1.0
  %v1786 = vsub.f32 %v1770, 1.0
  %v1787 = vsub.f32 %v1771, 1.0
  %v1788 = vsub.f32 %v1772, 1.0
  %v1789 = vsub.f32 %v1773, 1.0
  %v1790 = vsub.f32 %v1774, 1.0
  %v1791 = vsub.f32 %v1775, 1.0
  %v1792 = vsub.f32 %v1776, 1.0
  %v1793 = vsub.f32 %v1777, 1.0
  %v1794 = vsub.f32 %v1778, 1.0
  %v1795 = vsub.f32 %v1779, 1.0
  %v1796 = vsub.f32 %v1780, 1.0
  %v1797 = vsub.f32 %v1781, 1.0
  %v1798 = vadd.f32 %v1702, 0.5
  %v1799 = vadd.f32 %v1703, 0.5
  %v1800 = vadd.f32 %v1704, 0.5
  %v1801 = vadd.f32 %v1705, 0.5
  %v1802 = vadd.f32 %v1706, 0.5
  %v1803 = vadd.f32 %v1707, 0.5
  %v1804 = vadd.f32 %v1708, 0.5
  %v1805 = vadd.f32 %v1709, 0.5
  %v1806 = vadd.f32 %v1710, 0.5
  %v1807 = vadd.f32 %v1711, 0.5
  %v1808 = vadd.f32 %v1712, 0.5
  %v1809 = vadd.f32 %v1713, 0.5
  %v1810 = vadd.f32 %v1714, 0.5
  %v1811 = vadd.f32 %v1715, 0.5
  %v1812 = vadd.f32 %v1716, 0.5
  %v1813 = vadd.f32 %v1717, 0.5
  %v1814 = vmul.f32 %v1798, 0.25
  %v1815 = vmul.f32 %v1799, 0.25
  %v1816 = vmul.f32 %v1800, 0.25
  %v1817 = vmul.f32 %v1801, 0.25
  %v1818 = vmul.f32 %v1802, 0.25
  %v1819 = vmul.f32 %v1803, 0.25
  %v1820 = vmul.f32 %v1804, 0.25
  %v1821 = vmul.f32 %v1805, 0.25
  %v1822 = vmul.f32 %v1806, 0.25
  %v1823 = vmul.f32 %v1807, 0.25
  %v1824 = vmul.f32 %v1808, 0.25
  %v1825 = vmul.f32 %v1809, 0.25
  %v1826 = vmul.f32 %v1810, 0.25
  %v1827 = vmul.f32 %v1811, 0.25
  %v1828 = vmul.f32 %v1812, 0.25
  %v1829 = vmul.f32 %v1813, 0.25
  %v1830 = vsub.f32 %v1814, 1.0
  %v1831 = vsub.f32 %v1815, 1.0
  %v1832 = vsub.f32 %v1816, 1.0
  %v1833 = vsub.f32 %v1817, 1.0
  %v1834 = vsub.f32 %v1818, 1.0
  %v1835 = vsub.f32 %v1819, 1.0
  %v1836 = vsub.f32 %v1820, 1.0
  %v1837 = vsub.f32 %v1821, 1.0
  %v1838 = vsub.f32 %v1822, 1.0
  %v1839 = vsub.f32 %v1823, 1.0
  %v1840 = vsub.f32 %v1824, 1.0
  %v1841 = vsub.f32 %v1825, 1.0
  %v1842 = vsub.f32 %v1826, 1.0
  %v1843 = vsub.f32 %v1827, 1.0
  %v1844 = vsub.f32 %v1828, 1.0
  %v1845 = vsub.f32 %v1829, 1.0
  %v1846 = vlaneseq
  %v1847 = vand.u32 %v1846, 127
  %vm1848 = vcmp.eq.s32.totalorder %v1847, 0
  %vm1849 = vcmp.eq.s32.totalorder %v1847, 1
  %v1850 = vsel %vm1849, %v1830, 0.0
  %v1851 = vsel %vm1849, %v1831, 0.0
  %v1852 = vsel %vm1849, %v1832, 0.0
  %v1853 = vsel %vm1849, %v1833, 0.0
  %v1854 = vsel %vm1849, %v1834, 0.0
  %v1855 = vsel %vm1849, %v1835, 0.0
  %v1856 = vsel %vm1849, %v1836, 0.0
  %v1857 = vsel %vm1849, %v1837, 0.0
  %v1858 = vsel %vm1849, %v1838, 0.0
  %v1859 = vsel %vm1849, %v1839, 0.0
  %v1860 = vsel %vm1849, %v1840, 0.0
  %v1861 = vsel %vm1849, %v1841, 0.0
  %v1862 = vsel %vm1849, %v1842, 0.0
  %v1863 = vsel %vm1849, %v1843, 0.0
  %v1864 = vsel %vm1849, %v1844, 0.0
  %v1865 = vsel %vm1849, %v1845, 0.0
  %v1866 = vsel %vm1848, %v1782, %v1850
  %v1867 = vsel %vm1848, %v1783, %v1851
  %v1868 = vsel %vm1848, %v1784, %v1852
  %v1869 = vsel %vm1848, %v1785, %v1853
  %v1870 = vsel %vm1848, %v1786, %v1854
  %v1871 = vsel %vm1848, %v1787, %v1855
  %v1872 = vsel %vm1848, %v1788, %v1856
  %v1873 = vsel %vm1848, %v1789, %v1857
  %v1874 = vsel %vm1848, %v1790, %v1858
  %v1875 = vsel %vm1848, %v1791, %v1859
  %v1876 = vsel %vm1848, %v1792, %v1860
  %v1877 = vsel %vm1848, %v1793, %v1861
  %v1878 = vsel %vm1848, %v1794, %v1862
  %v1879 = vsel %vm1848, %v1795, %v1863
  %v1880 = vsel %vm1848, %v1796, %v1864
  %v1881 = vsel %vm1848, %v1797, %v1865
  %v1882 = vld [vmem:[%s2 + $0x6] sm:$0x1]
  %v1883 = vlaneseq
  %v1884 = vshrl.u32 %v1883, 7
  %v1885 = vsub.s32 0, %v1884
  %v1886 = vrot.slane %v1882, %v1885
  %v1887 = vadd.f32 %v1866, %v1886
  %v1888 = vadd.f32 %v1867, %v1886
  %v1889 = vadd.f32 %v1868, %v1886
  %v1890 = vadd.f32 %v1869, %v1886
  %v1891 = vadd.f32 %v1870, %v1886
  %v1892 = vadd.f32 %v1871, %v1886
  %v1893 = vadd.f32 %v1872, %v1886
  %v1894 = vadd.f32 %v1873, %v1886
  %v1895 = vadd.f32 %v1874, %v1886
  %v1896 = vadd.f32 %v1875, %v1886
  %v1897 = vadd.f32 %v1876, %v1886
  %v1898 = vadd.f32 %v1877, %v1886
  %v1899 = vadd.f32 %v1878, %v1886
  %v1900 = vadd.f32 %v1879, %v1886
  %v1901 = vadd.f32 %v1880, %v1886
  %v1902 = vadd.f32 %v1881, %v1886
  %v1903 = vld [vmem:[%s2 + $0x7] sm:$0x1]
  %1905 = vset.pattern.permute.xlu0 0
  %1906 = vperm.xlu0 %1905, %v1523
  %v1907 = vpop.permute.xlu0 %1906
  %1910 = vset.pattern.permute.xlu0 0
  %1911 = vperm.xlu0 %1910, %v1524
  %v1912 = vpop.permute.xlu0 %1911
  %1915 = vset.pattern.permute.xlu0 0
  %1916 = vperm.xlu0 %1915, %v1525
  %v1917 = vpop.permute.xlu0 %1916
  %1920 = vset.pattern.permute.xlu0 0
  %1921 = vperm.xlu0 %1920, %v1526
  %v1922 = vpop.permute.xlu0 %1921
  %1925 = vset.pattern.permute.xlu0 0
  %1926 = vperm.xlu0 %1925, %v1527
  %v1927 = vpop.permute.xlu0 %1926
  %1930 = vset.pattern.permute.xlu0 0
  %1931 = vperm.xlu0 %1930, %v1528
  %v1932 = vpop.permute.xlu0 %1931
  %1935 = vset.pattern.permute.xlu0 0
  %1936 = vperm.xlu0 %1935, %v1529
  %v1937 = vpop.permute.xlu0 %1936
  %1940 = vset.pattern.permute.xlu0 0
  %1941 = vperm.xlu0 %1940, %v1530
  %v1942 = vpop.permute.xlu0 %1941
  %1945 = vset.pattern.permute.xlu0 0
  %1946 = vperm.xlu0 %1945, %v1531
  %v1947 = vpop.permute.xlu0 %1946
  %1950 = vset.pattern.permute.xlu0 0
  %1951 = vperm.xlu0 %1950, %v1532
  %v1952 = vpop.permute.xlu0 %1951
  %1955 = vset.pattern.permute.xlu0 0
  %1956 = vperm.xlu0 %1955, %v1533
  %v1957 = vpop.permute.xlu0 %1956
  %1960 = vset.pattern.permute.xlu0 0
  %1961 = vperm.xlu0 %1960, %v1534
  %v1962 = vpop.permute.xlu0 %1961
  %1965 = vset.pattern.permute.xlu0 0
  %1966 = vperm.xlu0 %1965, %v1535
  %v1967 = vpop.permute.xlu0 %1966
  %1970 = vset.pattern.permute.xlu0 0
  %1971 = vperm.xlu0 %1970, %v1536
  %v1972 = vpop.permute.xlu0 %1971
  %1975 = vset.pattern.permute.xlu0 0
  %1976 = vperm.xlu0 %1975, %v1537
  %v1977 = vpop.permute.xlu0 %1976
  %1980 = vset.pattern.permute.xlu0 0
  %1981 = vperm.xlu0 %1980, %v1538
  %v1982 = vpop.permute.xlu0 %1981
  %v1984 = vlaneseq
  %v1985 = vshrl.u32 %v1984, 7
  %v1986 = vsub.s32 0, %v1985
  %v1987 = vrot.slane %v1903, %v1986
  %v1988 = vmul.f32 %v1907, %v1987
  %v1989 = vmul.f32 %v1912, %v1987
  %v1990 = vmul.f32 %v1917, %v1987
  %v1991 = vmul.f32 %v1922, %v1987
  %v1992 = vmul.f32 %v1927, %v1987
  %v1993 = vmul.f32 %v1932, %v1987
  %v1994 = vmul.f32 %v1937, %v1987
  %v1995 = vmul.f32 %v1942, %v1987
  %v1996 = vmul.f32 %v1947, %v1987
  %v1997 = vmul.f32 %v1952, %v1987
  %v1998 = vmul.f32 %v1957, %v1987
  %v1999 = vmul.f32 %v1962, %v1987
  %v2000 = vmul.f32 %v1967, %v1987
  %v2001 = vmul.f32 %v1972, %v1987
  %v2002 = vmul.f32 %v1977, %v1987
  %v2003 = vmul.f32 %v1982, %v1987
  %v2004 = vadd.f32 %v1887, %v1988
  %v2005 = vadd.f32 %v1888, %v1989
  %v2006 = vadd.f32 %v1889, %v1990
  %v2007 = vadd.f32 %v1890, %v1991
  %v2008 = vadd.f32 %v1891, %v1992
  %v2009 = vadd.f32 %v1892, %v1993
  %v2010 = vadd.f32 %v1893, %v1994
  %v2011 = vadd.f32 %v1894, %v1995
  %v2012 = vadd.f32 %v1895, %v1996
  %v2013 = vadd.f32 %v1896, %v1997
  %v2014 = vadd.f32 %v1897, %v1998
  %v2015 = vadd.f32 %v1898, %v1999
  %v2016 = vadd.f32 %v1899, %v2000
  %v2017 = vadd.f32 %v1900, %v2001
  %v2018 = vadd.f32 %v1901, %v2002
  %v2019 = vadd.f32 %v1902, %v2003
  %v2020 = vld [vmem:[%s2 + $0x8] sm:$0x1]
  %2021 = vset.pattern.permute.xlu0 1
  %2022 = vperm.xlu0 %2021, %v1523
  %v2023 = vpop.permute.xlu0 %2022
  %2025 = vset.pattern.permute.xlu0 1
  %2026 = vperm.xlu0 %2025, %v1524
  %v2027 = vpop.permute.xlu0 %2026
  %2029 = vset.pattern.permute.xlu0 1
  %2030 = vperm.xlu0 %2029, %v1525
  %v2031 = vpop.permute.xlu0 %2030
  %2033 = vset.pattern.permute.xlu0 1
  %2034 = vperm.xlu0 %2033, %v1526
  %v2035 = vpop.permute.xlu0 %2034
  %2037 = vset.pattern.permute.xlu0 1
  %2038 = vperm.xlu0 %2037, %v1527
  %v2039 = vpop.permute.xlu0 %2038
  %2041 = vset.pattern.permute.xlu0 1
  %2042 = vperm.xlu0 %2041, %v1528
  %v2043 = vpop.permute.xlu0 %2042
  %2045 = vset.pattern.permute.xlu0 1
  %2046 = vperm.xlu0 %2045, %v1529
  %v2047 = vpop.permute.xlu0 %2046
  %2049 = vset.pattern.permute.xlu0 1
  %2050 = vperm.xlu0 %2049, %v1530
  %v2051 = vpop.permute.xlu0 %2050
  %2053 = vset.pattern.permute.xlu0 1
  %2054 = vperm.xlu0 %2053, %v1531
  %v2055 = vpop.permute.xlu0 %2054
  %2057 = vset.pattern.permute.xlu0 1
  %2058 = vperm.xlu0 %2057, %v1532
  %v2059 = vpop.permute.xlu0 %2058
  %2061 = vset.pattern.permute.xlu0 1
  %2062 = vperm.xlu0 %2061, %v1533
  %v2063 = vpop.permute.xlu0 %2062
  %2065 = vset.pattern.permute.xlu0 1
  %2066 = vperm.xlu0 %2065, %v1534
  %v2067 = vpop.permute.xlu0 %2066
  %2069 = vset.pattern.permute.xlu0 1
  %2070 = vperm.xlu0 %2069, %v1535
  %v2071 = vpop.permute.xlu0 %2070
  %2073 = vset.pattern.permute.xlu0 1
  %2074 = vperm.xlu0 %2073, %v1536
  %v2075 = vpop.permute.xlu0 %2074
  %2077 = vset.pattern.permute.xlu0 1
  %2078 = vperm.xlu0 %2077, %v1537
  %v2079 = vpop.permute.xlu0 %2078
  %2081 = vset.pattern.permute.xlu0 1
  %2082 = vperm.xlu0 %2081, %v1538
  %v2083 = vpop.permute.xlu0 %2082
  %v2085 = vlaneseq
  %v2086 = vshrl.u32 %v2085, 7
  %v2087 = vsub.s32 0, %v2086
  %v2088 = vrot.slane %v2020, %v2087
  %v2089 = vmul.f32 %v2023, %v2088
  %v2090 = vmul.f32 %v2027, %v2088
  %v2091 = vmul.f32 %v2031, %v2088
  %v2092 = vmul.f32 %v2035, %v2088
  %v2093 = vmul.f32 %v2039, %v2088
  %v2094 = vmul.f32 %v2043, %v2088
  %v2095 = vmul.f32 %v2047, %v2088
  %v2096 = vmul.f32 %v2051, %v2088
  %v2097 = vmul.f32 %v2055, %v2088
  %v2098 = vmul.f32 %v2059, %v2088
  %v2099 = vmul.f32 %v2063, %v2088
  %v2100 = vmul.f32 %v2067, %v2088
  %v2101 = vmul.f32 %v2071, %v2088
  %v2102 = vmul.f32 %v2075, %v2088
  %v2103 = vmul.f32 %v2079, %v2088
  %v2104 = vmul.f32 %v2083, %v2088
  %v2105 = vadd.f32 %v2004, %v2089
  %v2106 = vadd.f32 %v2005, %v2090
  %v2107 = vadd.f32 %v2006, %v2091
  %v2108 = vadd.f32 %v2007, %v2092
  %v2109 = vadd.f32 %v2008, %v2093
  %v2110 = vadd.f32 %v2009, %v2094
  %v2111 = vadd.f32 %v2010, %v2095
  %v2112 = vadd.f32 %v2011, %v2096
  %v2113 = vadd.f32 %v2012, %v2097
  %v2114 = vadd.f32 %v2013, %v2098
  %v2115 = vadd.f32 %v2014, %v2099
  %v2116 = vadd.f32 %v2015, %v2100
  %v2117 = vadd.f32 %v2016, %v2101
  %v2118 = vadd.f32 %v2017, %v2102
  %v2119 = vadd.f32 %v2018, %v2103
  %v2120 = vadd.f32 %v2019, %v2104
  %v2121 = vld [vmem:[%s2 + $0x9] sm:$0x1]
  %2122 = vset.pattern.permute.xlu0 2
  %2123 = vperm.xlu0 %2122, %v1523
  %v2124 = vpop.permute.xlu0 %2123
  %2126 = vset.pattern.permute.xlu0 2
  %2127 = vperm.xlu0 %2126, %v1524
  %v2128 = vpop.permute.xlu0 %2127
  %2130 = vset.pattern.permute.xlu0 2
  %2131 = vperm.xlu0 %2130, %v1525
  %v2132 = vpop.permute.xlu0 %2131
  %2134 = vset.pattern.permute.xlu0 2
  %2135 = vperm.xlu0 %2134, %v1526
  %v2136 = vpop.permute.xlu0 %2135
  %2138 = vset.pattern.permute.xlu0 2
  %2139 = vperm.xlu0 %2138, %v1527
  %v2140 = vpop.permute.xlu0 %2139
  %2142 = vset.pattern.permute.xlu0 2
  %2143 = vperm.xlu0 %2142, %v1528
  %v2144 = vpop.permute.xlu0 %2143
  %2146 = vset.pattern.permute.xlu0 2
  %2147 = vperm.xlu0 %2146, %v1529
  %v2148 = vpop.permute.xlu0 %2147
  %2150 = vset.pattern.permute.xlu0 2
  %2151 = vperm.xlu0 %2150, %v1530
  %v2152 = vpop.permute.xlu0 %2151
  %2154 = vset.pattern.permute.xlu0 2
  %2155 = vperm.xlu0 %2154, %v1531
  %v2156 = vpop.permute.xlu0 %2155
  %2158 = vset.pattern.permute.xlu0 2
  %2159 = vperm.xlu0 %2158, %v1532
  %v2160 = vpop.permute.xlu0 %2159
  %2162 = vset.pattern.permute.xlu0 2
  %2163 = vperm.xlu0 %2162, %v1533
  %v2164 = vpop.permute.xlu0 %2163
  %2166 = vset.pattern.permute.xlu0 2
  %2167 = vperm.xlu0 %2166, %v1534
  %v2168 = vpop.permute.xlu0 %2167
  %2170 = vset.pattern.permute.xlu0 2
  %2171 = vperm.xlu0 %2170, %v1535
  %v2172 = vpop.permute.xlu0 %2171
  %2174 = vset.pattern.permute.xlu0 2
  %2175 = vperm.xlu0 %2174, %v1536
  %v2176 = vpop.permute.xlu0 %2175
  %2178 = vset.pattern.permute.xlu0 2
  %2179 = vperm.xlu0 %2178, %v1537
  %v2180 = vpop.permute.xlu0 %2179
  %2182 = vset.pattern.permute.xlu0 2
  %2183 = vperm.xlu0 %2182, %v1538
  %v2184 = vpop.permute.xlu0 %2183
  %v2186 = vlaneseq
  %v2187 = vshrl.u32 %v2186, 7
  %v2188 = vsub.s32 0, %v2187
  %v2189 = vrot.slane %v2121, %v2188
  %v2190 = vmul.f32 %v2124, %v2189
  %v2191 = vmul.f32 %v2128, %v2189
  %v2192 = vmul.f32 %v2132, %v2189
  %v2193 = vmul.f32 %v2136, %v2189
  %v2194 = vmul.f32 %v2140, %v2189
  %v2195 = vmul.f32 %v2144, %v2189
  %v2196 = vmul.f32 %v2148, %v2189
  %v2197 = vmul.f32 %v2152, %v2189
  %v2198 = vmul.f32 %v2156, %v2189
  %v2199 = vmul.f32 %v2160, %v2189
  %v2200 = vmul.f32 %v2164, %v2189
  %v2201 = vmul.f32 %v2168, %v2189
  %v2202 = vmul.f32 %v2172, %v2189
  %v2203 = vmul.f32 %v2176, %v2189
  %v2204 = vmul.f32 %v2180, %v2189
  %v2205 = vmul.f32 %v2184, %v2189
  %v2206 = vadd.f32 %v2105, %v2190
  %v2207 = vadd.f32 %v2106, %v2191
  %v2208 = vadd.f32 %v2107, %v2192
  %v2209 = vadd.f32 %v2108, %v2193
  %v2210 = vadd.f32 %v2109, %v2194
  %v2211 = vadd.f32 %v2110, %v2195
  %v2212 = vadd.f32 %v2111, %v2196
  %v2213 = vadd.f32 %v2112, %v2197
  %v2214 = vadd.f32 %v2113, %v2198
  %v2215 = vadd.f32 %v2114, %v2199
  %v2216 = vadd.f32 %v2115, %v2200
  %v2217 = vadd.f32 %v2116, %v2201
  %v2218 = vadd.f32 %v2117, %v2202
  %v2219 = vadd.f32 %v2118, %v2203
  %v2220 = vadd.f32 %v2119, %v2204
  %v2221 = vadd.f32 %v2120, %v2205
  %v2222 = vld [vmem:[%s2 + $0xa] sm:$0x1]
  %2223 = vset.pattern.permute.xlu0 3
  %2224 = vperm.xlu0 %2223, %v1523
  %v2225 = vpop.permute.xlu0 %2224
  %2227 = vset.pattern.permute.xlu0 3
  %2228 = vperm.xlu0 %2227, %v1524
  %v2229 = vpop.permute.xlu0 %2228
  %2231 = vset.pattern.permute.xlu0 3
  %2232 = vperm.xlu0 %2231, %v1525
  %v2233 = vpop.permute.xlu0 %2232
  %2235 = vset.pattern.permute.xlu0 3
  %2236 = vperm.xlu0 %2235, %v1526
  %v2237 = vpop.permute.xlu0 %2236
  %2239 = vset.pattern.permute.xlu0 3
  %2240 = vperm.xlu0 %2239, %v1527
  %v2241 = vpop.permute.xlu0 %2240
  %2243 = vset.pattern.permute.xlu0 3
  %2244 = vperm.xlu0 %2243, %v1528
  %v2245 = vpop.permute.xlu0 %2244
  %2247 = vset.pattern.permute.xlu0 3
  %2248 = vperm.xlu0 %2247, %v1529
  %v2249 = vpop.permute.xlu0 %2248
  %2251 = vset.pattern.permute.xlu0 3
  %2252 = vperm.xlu0 %2251, %v1530
  %v2253 = vpop.permute.xlu0 %2252
  %2255 = vset.pattern.permute.xlu0 3
  %2256 = vperm.xlu0 %2255, %v1531
  %v2257 = vpop.permute.xlu0 %2256
  %2259 = vset.pattern.permute.xlu0 3
  %2260 = vperm.xlu0 %2259, %v1532
  %v2261 = vpop.permute.xlu0 %2260
  %2263 = vset.pattern.permute.xlu0 3
  %2264 = vperm.xlu0 %2263, %v1533
  %v2265 = vpop.permute.xlu0 %2264
  %2267 = vset.pattern.permute.xlu0 3
  %2268 = vperm.xlu0 %2267, %v1534
  %v2269 = vpop.permute.xlu0 %2268
  %2271 = vset.pattern.permute.xlu0 3
  %2272 = vperm.xlu0 %2271, %v1535
  %v2273 = vpop.permute.xlu0 %2272
  %2275 = vset.pattern.permute.xlu0 3
  %2276 = vperm.xlu0 %2275, %v1536
  %v2277 = vpop.permute.xlu0 %2276
  %2279 = vset.pattern.permute.xlu0 3
  %2280 = vperm.xlu0 %2279, %v1537
  %v2281 = vpop.permute.xlu0 %2280
  %2283 = vset.pattern.permute.xlu0 3
  %2284 = vperm.xlu0 %2283, %v1538
  %v2285 = vpop.permute.xlu0 %2284
  %v2287 = vlaneseq
  %v2288 = vshrl.u32 %v2287, 7
  %v2289 = vsub.s32 0, %v2288
  %v2290 = vrot.slane %v2222, %v2289
  %v2291 = vmul.f32 %v2225, %v2290
  %v2292 = vmul.f32 %v2229, %v2290
  %v2293 = vmul.f32 %v2233, %v2290
  %v2294 = vmul.f32 %v2237, %v2290
  %v2295 = vmul.f32 %v2241, %v2290
  %v2296 = vmul.f32 %v2245, %v2290
  %v2297 = vmul.f32 %v2249, %v2290
  %v2298 = vmul.f32 %v2253, %v2290
  %v2299 = vmul.f32 %v2257, %v2290
  %v2300 = vmul.f32 %v2261, %v2290
  %v2301 = vmul.f32 %v2265, %v2290
  %v2302 = vmul.f32 %v2269, %v2290
  %v2303 = vmul.f32 %v2273, %v2290
  %v2304 = vmul.f32 %v2277, %v2290
  %v2305 = vmul.f32 %v2281, %v2290
  %v2306 = vmul.f32 %v2285, %v2290
  %v2307 = vadd.f32 %v2206, %v2291
  %v2308 = vadd.f32 %v2207, %v2292
  %v2309 = vadd.f32 %v2208, %v2293
  %v2310 = vadd.f32 %v2209, %v2294
  %v2311 = vadd.f32 %v2210, %v2295
  %v2312 = vadd.f32 %v2211, %v2296
  %v2313 = vadd.f32 %v2212, %v2297
  %v2314 = vadd.f32 %v2213, %v2298
  %v2315 = vadd.f32 %v2214, %v2299
  %v2316 = vadd.f32 %v2215, %v2300
  %v2317 = vadd.f32 %v2216, %v2301
  %v2318 = vadd.f32 %v2217, %v2302
  %v2319 = vadd.f32 %v2218, %v2303
  %v2320 = vadd.f32 %v2219, %v2304
  %v2321 = vadd.f32 %v2220, %v2305
  %v2322 = vadd.f32 %v2221, %v2306
  %2323 = vst [vmem:[%s3] sm:$0xff] %v2307
  %2324 = vst [vmem:[%s3 + $0x8] sm:$0xff] %v2308
  %2325 = vst [vmem:[%s3 + $0x10] sm:$0xff] %v2309
  %2326 = vst [vmem:[%s3 + $0x18] sm:$0xff] %v2310
  %2327 = vst [vmem:[%s3 + $0x20] sm:$0xff] %v2311
  %2328 = vst [vmem:[%s3 + $0x28] sm:$0xff] %v2312
  %2329 = vst [vmem:[%s3 + $0x30] sm:$0xff] %v2313
  %2330 = vst [vmem:[%s3 + $0x38] sm:$0xff] %v2314
  %2331 = vst [vmem:[%s3 + $0x40] sm:$0xff] %v2315
  %2332 = vst [vmem:[%s3 + $0x48] sm:$0xff] %v2316
  %2333 = vst [vmem:[%s3 + $0x50] sm:$0xff] %v2317
  %2334 = vst [vmem:[%s3 + $0x58] sm:$0xff] %v2318
  %2335 = vst [vmem:[%s3 + $0x60] sm:$0xff] %v2319
  %2336 = vst [vmem:[%s3 + $0x68] sm:$0xff] %v2320
  %2337 = vst [vmem:[%s3 + $0x70] sm:$0xff] %v2321
  %2338 = vst [vmem:[%s3 + $0x78] sm:$0xff] %v2322
  // Predicated region
  $region14: #{pixelvit_forward.2} parent=0 // pred_check
    _
  $region15: #{pixelvit_forward.2} parent=0 // pred_check_branch
    %2340 = sbr.rel (0) target = $region17
  $region16: #{pixelvit_forward.2} parent=0 // pred_region
    _
  $region17: #{pixelvit_forward.2} parent=0 // pred_fallthru
    _
  // Predicated region
  $region18: #{pixelvit_forward.2} parent=0 // pred_check
    _
  $region19: #{pixelvit_forward.2} parent=0 // pred_check_branch
    %2342 = sbr.rel (0) target = $region21
  $region20: #{pixelvit_forward.2} parent=0 // pred_region
    _
  $region21: #{pixelvit_forward.2} parent=0 // pred_fallthru
    _

// kernel: pixelvit_forward.3
$region0: #{pixelvit_forward.3}
  #allocation0 [shape = 'u32[]', space=smem, size = 0x4, offset = 0x4, fixed_abs, tag = 'smem constant byte address 0x4 - core index']
  #allocation1 [shape = 'u32[144,128]{1,0:T(1,128)}', space=vmem, size = 0x12000, scoped, tag = 'internal scratch']
  %s0 = inlined_call_operand.vmem [shape: bf16[512,24], index: 0, kind: input, shape index: {}]
  %s1 = inlined_call_operand.vmem [shape: bf16[160,128], index: 1, kind: input, shape index: {}]
  %s2 = inlined_call_operand.vmem [shape: f32[16,128], index: 2, kind: input, shape index: {}]
  %s3 = inlined_call_operand.vmem [shape: f32[512,128], index: 3, kind: output, shape index: {}]
  %s4 = sld [smem:[#allocation0]]
  $region22: #{pixelvit_forward.3} parent=0
    _
  %s6 = ssub.s32 1, %s4
  %s7 = scalar_select 0, %s6, %s4
  // Predicated region
  $region2: #{pixelvit_forward.3} parent=0 // pred_check
    _
  $region3: #{pixelvit_forward.3} parent=0 // pred_check_branch
    %9 = sbr.rel (0) target = $region5
  $region4: #{pixelvit_forward.3} parent=0 // pred_region
    _
  $region5: #{pixelvit_forward.3} parent=0 // pred_fallthru
    _
  // Predicated region
  $region6: #{pixelvit_forward.3} parent=0 // pred_check
    _
  $region7: #{pixelvit_forward.3} parent=0 // pred_check_branch
    %11 = sbr.rel (0) target = $region9
  $region8: #{pixelvit_forward.3} parent=0 // pred_region
    _
  $region9: #{pixelvit_forward.3} parent=0 // pred_fallthru
    _
  // Predicated region
  $region10: #{pixelvit_forward.3} parent=0 // pred_check
    _
  $region11: #{pixelvit_forward.3} parent=0 // pred_check_branch
    %13 = sbr.rel (0) target = $region13
  $region12: #{pixelvit_forward.3} parent=0 // pred_region
    _
  $region13: #{pixelvit_forward.3} parent=0 // pred_fallthru
    _
  %v15 = vld [vmem:[%s0] sm:$0xf]
  %v16 = vld [vmem:[%s0 + $0x4] sm:$0xf]
  %v17 = vld [vmem:[%s0 + $0x8] sm:$0xf]
  %v18 = vld [vmem:[%s0 + $0xc] sm:$0xf]
  %v19 = vld [vmem:[%s0 + $0x10] sm:$0xf]
  %v20 = vld [vmem:[%s0 + $0x14] sm:$0xf]
  %v21 = vld [vmem:[%s0 + $0x18] sm:$0xf]
  %v22 = vld [vmem:[%s0 + $0x1c] sm:$0xf]
  %v23 = vld [vmem:[%s0 + $0x20] sm:$0xf]
  %v24 = vld [vmem:[%s0 + $0x24] sm:$0xf]
  %v25 = vld [vmem:[%s0 + $0x28] sm:$0xf]
  %v26 = vld [vmem:[%s0 + $0x2c] sm:$0xf]
  %v27 = vld [vmem:[%s0 + $0x30] sm:$0xf]
  %v28 = vld [vmem:[%s0 + $0x34] sm:$0xf]
  %v29 = vld [vmem:[%s0 + $0x38] sm:$0xf]
  %v30 = vld [vmem:[%s0 + $0x3c] sm:$0xf]
  %v31 = vld [vmem:[%s0 + $0x40] sm:$0xf]
  %v32 = vld [vmem:[%s0 + $0x44] sm:$0xf]
  %v33 = vld [vmem:[%s0 + $0x48] sm:$0xf]
  %v34 = vld [vmem:[%s0 + $0x4c] sm:$0xf]
  %v35 = vld [vmem:[%s0 + $0x50] sm:$0xf]
  %v36 = vld [vmem:[%s0 + $0x54] sm:$0xf]
  %v37 = vld [vmem:[%s0 + $0x58] sm:$0xf]
  %v38 = vld [vmem:[%s0 + $0x5c] sm:$0xf]
  %v39 = vld [vmem:[%s0 + $0x60] sm:$0xf]
  %v40 = vld [vmem:[%s0 + $0x64] sm:$0xf]
  %v41 = vld [vmem:[%s0 + $0x68] sm:$0xf]
  %v42 = vld [vmem:[%s0 + $0x6c] sm:$0xf]
  %v43 = vld [vmem:[%s0 + $0x70] sm:$0xf]
  %v44 = vld [vmem:[%s0 + $0x74] sm:$0xf]
  %v45 = vld [vmem:[%s0 + $0x78] sm:$0xf]
  %v46 = vld [vmem:[%s0 + $0x7c] sm:$0xf]
  %v47 = vld [vmem:[%s0 + $0x80] sm:$0xf]
  %v48 = vld [vmem:[%s0 + $0x84] sm:$0xf]
  %v49 = vld [vmem:[%s0 + $0x88] sm:$0xf]
  %v50 = vld [vmem:[%s0 + $0x8c] sm:$0xf]
  %v51 = vld [vmem:[%s0 + $0x90] sm:$0xf]
  %v52 = vld [vmem:[%s0 + $0x94] sm:$0xf]
  %v53 = vld [vmem:[%s0 + $0x98] sm:$0xf]
  %v54 = vld [vmem:[%s0 + $0x9c] sm:$0xf]
  %v55 = vld [vmem:[%s0 + $0xa0] sm:$0xf]
  %v56 = vld [vmem:[%s0 + $0xa4] sm:$0xf]
  %v57 = vld [vmem:[%s0 + $0xa8] sm:$0xf]
  %v58 = vld [vmem:[%s0 + $0xac] sm:$0xf]
  %v59 = vld [vmem:[%s0 + $0xb0] sm:$0xf]
  %v60 = vld [vmem:[%s0 + $0xb4] sm:$0xf]
  %v61 = vld [vmem:[%s0 + $0xb8] sm:$0xf]
  %v62 = vld [vmem:[%s0 + $0xbc] sm:$0xf]
  %v63 = vld [vmem:[%s0 + $0xc0] sm:$0xf]
  %v64 = vld [vmem:[%s0 + $0xc4] sm:$0xf]
  %v65 = vld [vmem:[%s0 + $0xc8] sm:$0xf]
  %v66 = vld [vmem:[%s0 + $0xcc] sm:$0xf]
  %v67 = vld [vmem:[%s0 + $0xd0] sm:$0xf]
  %v68 = vld [vmem:[%s0 + $0xd4] sm:$0xf]
  %v69 = vld [vmem:[%s0 + $0xd8] sm:$0xf]
  %v70 = vld [vmem:[%s0 + $0xdc] sm:$0xf]
  %v71 = vld [vmem:[%s0 + $0xe0] sm:$0xf]
  %v72 = vld [vmem:[%s0 + $0xe4] sm:$0xf]
  %v73 = vld [vmem:[%s0 + $0xe8] sm:$0xf]
  %v74 = vld [vmem:[%s0 + $0xec] sm:$0xf]
  %v75 = vld [vmem:[%s0 + $0xf0] sm:$0xf]
  %v76 = vld [vmem:[%s0 + $0xf4] sm:$0xf]
  %v77 = vld [vmem:[%s0 + $0xf8] sm:$0xf]
  %v78 = vld [vmem:[%s0 + $0xfc] sm:$0xf]
  %v79 = vld [vmem:[%s1] sm:$0xf]
  %v80 = vld [vmem:[%s1 + $0x4] sm:$0xf]
  %v81 = vld [vmem:[%s1 + $0x8] sm:$0xf]
  %v82 = vld [vmem:[%s2] sm:$0x1]
  %v83 = vlaneseq
  %v84 = vshrl.u32 %v83, 7
  %v85 = vsub.s32 0, %v84
  %v86 = vrot.slane %v82, %v85
  %v151 = vunpack.c.l.b16 %v15
  %v152 = vunpack.c.l.b16 %v16
  %v153 = vunpack.c.l.b16 %v17
  %v154 = vunpack.c.l.b16 %v18
  %v155 = vunpack.c.l.b16 %v19
  %v156 = vunpack.c.l.b16 %v20
  %v157 = vunpack.c.l.b16 %v21
  %v158 = vunpack.c.l.b16 %v22
  %v159 = vunpack.c.l.b16 %v23
  %v160 = vunpack.c.l.b16 %v24
  %v161 = vunpack.c.l.b16 %v25
  %v162 = vunpack.c.l.b16 %v26
  %v163 = vunpack.c.l.b16 %v27
  %v164 = vunpack.c.l.b16 %v28
  %v165 = vunpack.c.l.b16 %v29
  %v166 = vunpack.c.l.b16 %v30
  %v167 = vunpack.c.l.b16 %v31
  %v168 = vunpack.c.l.b16 %v32
  %v169 = vunpack.c.l.b16 %v33
  %v170 = vunpack.c.l.b16 %v34
  %v171 = vunpack.c.l.b16 %v35
  %v172 = vunpack.c.l.b16 %v36
  %v173 = vunpack.c.l.b16 %v37
  %v174 = vunpack.c.l.b16 %v38
  %v175 = vunpack.c.l.b16 %v39
  %v176 = vunpack.c.l.b16 %v40
  %v177 = vunpack.c.l.b16 %v41
  %v178 = vunpack.c.l.b16 %v42
  %v179 = vunpack.c.l.b16 %v43
  %v180 = vunpack.c.l.b16 %v44
  %v181 = vunpack.c.l.b16 %v45
  %v182 = vunpack.c.l.b16 %v46
  %v183 = vunpack.c.l.b16 %v47
  %v184 = vunpack.c.l.b16 %v48
  %v185 = vunpack.c.l.b16 %v49
  %v186 = vunpack.c.l.b16 %v50
  %v187 = vunpack.c.l.b16 %v51
  %v188 = vunpack.c.l.b16 %v52
  %v189 = vunpack.c.l.b16 %v53
  %v190 = vunpack.c.l.b16 %v54
  %v191 = vunpack.c.l.b16 %v55
  %v192 = vunpack.c.l.b16 %v56
  %v193 = vunpack.c.l.b16 %v57
  %v194 = vunpack.c.l.b16 %v58
  %v195 = vunpack.c.l.b16 %v59
  %v196 = vunpack.c.l.b16 %v60
  %v197 = vunpack.c.l.b16 %v61
  %v198 = vunpack.c.l.b16 %v62
  %v199 = vunpack.c.l.b16 %v63
  %v200 = vunpack.c.l.b16 %v64
  %v201 = vunpack.c.l.b16 %v65
  %v202 = vunpack.c.l.b16 %v66
  %v203 = vunpack.c.l.b16 %v67
  %v204 = vunpack.c.l.b16 %v68
  %v205 = vunpack.c.l.b16 %v69
  %v206 = vunpack.c.l.b16 %v70
  %v207 = vunpack.c.l.b16 %v71
  %v208 = vunpack.c.l.b16 %v72
  %v209 = vunpack.c.l.b16 %v73
  %v210 = vunpack.c.l.b16 %v74
  %v211 = vunpack.c.l.b16 %v75
  %v212 = vunpack.c.l.b16 %v76
  %v213 = vunpack.c.l.b16 %v77
  %v214 = vunpack.c.l.b16 %v78
  %v215 = vpack.c.b16 %v152, %v151
  %v216 = vpack.c.b16 %v154, %v153
  %v217 = vpack.c.b16 %v156, %v155
  %v218 = vpack.c.b16 %v158, %v157
  %v219 = vpack.c.b16 %v160, %v159
  %v220 = vpack.c.b16 %v162, %v161
  %v221 = vpack.c.b16 %v164, %v163
  %v222 = vpack.c.b16 %v166, %v165
  %v223 = vpack.c.b16 %v168, %v167
  %v224 = vpack.c.b16 %v170, %v169
  %v225 = vpack.c.b16 %v172, %v171
  %v226 = vpack.c.b16 %v174, %v173
  %v227 = vpack.c.b16 %v176, %v175
  %v228 = vpack.c.b16 %v178, %v177
  %v229 = vpack.c.b16 %v180, %v179
  %v230 = vpack.c.b16 %v182, %v181
  %v231 = vpack.c.b16 %v184, %v183
  %v232 = vpack.c.b16 %v186, %v185
  %v233 = vpack.c.b16 %v188, %v187
  %v234 = vpack.c.b16 %v190, %v189
  %v235 = vpack.c.b16 %v192, %v191
  %v236 = vpack.c.b16 %v194, %v193
  %v237 = vpack.c.b16 %v196, %v195
  %v238 = vpack.c.b16 %v198, %v197
  %v239 = vpack.c.b16 %v200, %v199
  %v240 = vpack.c.b16 %v202, %v201
  %v241 = vpack.c.b16 %v204, %v203
  %v242 = vpack.c.b16 %v206, %v205
  %v243 = vpack.c.b16 %v208, %v207
  %v244 = vpack.c.b16 %v210, %v209
  %v245 = vpack.c.b16 %v212, %v211
  %v246 = vpack.c.b16 %v214, %v213
  %v250 = vunpack.c.l.b16 %v79
  %v251 = vunpack.c.l.b16 %v80
  %v252 = vunpack.c.l.b16 %v81
  %v253 = vpack.c.b16 %v251, %v250
  %v254 = vpack.c.b16 %v252, %v252
  %vm256 = vcmask 195584
  %v258 = vsel %vm256, %v215, 0
  %v261 = vsel %vm256, %v216, 0
  %v264 = vsel %vm256, %v217, 0
  %v267 = vsel %vm256, %v218, 0
  %v270 = vsel %vm256, %v219, 0
  %v273 = vsel %vm256, %v220, 0
  %v276 = vsel %vm256, %v221, 0
  %v279 = vsel %vm256, %v222, 0
  %v282 = vsel %vm256, %v223, 0
  %v285 = vsel %vm256, %v224, 0
  %v288 = vsel %vm256, %v225, 0
  %v291 = vsel %vm256, %v226, 0
  %v294 = vsel %vm256, %v227, 0
  %v297 = vsel %vm256, %v228, 0
  %v300 = vsel %vm256, %v229, 0
  %v303 = vsel %vm256, %v230, 0
  %v306 = vsel %vm256, %v231, 0
  %v309 = vsel %vm256, %v232, 0
  %v312 = vsel %vm256, %v233, 0
  %v315 = vsel %vm256, %v234, 0
  %v318 = vsel %vm256, %v235, 0
  %v321 = vsel %vm256, %v236, 0
  %v324 = vsel %vm256, %v237, 0
  %v327 = vsel %vm256, %v238, 0
  %v330 = vsel %vm256, %v239, 0
  %v333 = vsel %vm256, %v240, 0
  %v336 = vsel %vm256, %v241, 0
  %v339 = vsel %vm256, %v242, 0
  %v342 = vsel %vm256, %v243, 0
  %v345 = vsel %vm256, %v244, 0
  %v348 = vsel %vm256, %v245, 0
  %v351 = vsel %vm256, %v246, 0
  %vm353 = vcmask 1043456
  %v355 = vsel %vm353, %v254, 0
  %357 = vmatprep.subr.bf16.mxu0 0
  %358 = vmatpush1.bf16.msra.mxu0 %v253
  %359 = vmatprep.subr.bf16.mxu0 0
  %360 = vmatpush1.bf16.msra.mxu0 %v355
  %361 = vmatprep.subr.bf16.mxu0 0
  %362 = vmatpush1.bf16.msra.mxu0 0
  %363 = vmatprep.subr.bf16.mxu0 0
  %364 = vmatpush1.bf16.msra.mxu0 0
  %365 = vmatprep.subr.bf16.mxu0 0
  %366 = vmatpush1.bf16.msra.mxu0 0
  %367 = vmatprep.subr.bf16.mxu0 0
  %368 = vmatpush1.bf16.msra.mxu0 0
  %369 = vmatprep.subr.bf16.mxu0 0
  %370 = vmatpush1.bf16.msra.mxu0 0
  %371 = vmatprep.subr.bf16.mxu0 0
  %372 = vmatpush1.bf16.msra.mxu0 0
  %373 = vmatprep.subr.bf16.mxu0 0
  %374 = vmatpush1.bf16.msra.mxu0 0
  %375 = vmatprep.subr.bf16.mxu0 0
  %376 = vmatpush1.bf16.msra.mxu0 0
  %377 = vmatprep.subr.bf16.mxu0 0
  %378 = vmatpush1.bf16.msra.mxu0 0
  %379 = vmatprep.subr.bf16.mxu0 0
  %380 = vmatpush1.bf16.msra.mxu0 0
  %381 = vmatprep.subr.bf16.mxu0 0
  %382 = vmatpush1.bf16.msra.mxu0 0
  %383 = vmatprep.subr.bf16.mxu0 0
  %384 = vmatpush1.bf16.msra.mxu0 0
  %385 = vmatprep.subr.bf16.mxu0 0
  %386 = vmatpush1.bf16.msra.mxu0 0
  %387 = vmatprep.subr.bf16.mxu0 0
  %388 = vmatpush1.bf16.msra.mxu0 0
  %389 = vmatprep.mubr.bf16.mxu0 0
  %390 = vmatmul.mubr.bf16.gmra.mrb[0].mxu0 %v258
  %v391 = vpop.f32.mrb[0].mxu0
  %v392 = vadd.f32 %v86, %v391
  %v393 = vpop.f32.mrb[0].mxu0
  %v394 = vpop.f32.mrb[0].mxu0
  %v395 = vadd.f32 %v86, %v394
  %v396 = vpop.f32.mrb[0].mxu0
  %397 = vmatprep.mubr.bf16.mxu0 0
  %398 = vmatmul.mubr.bf16.gmra.mrb[0].mxu0 %v261
  %v399 = vpop.f32.mrb[0].mxu0
  %v400 = vadd.f32 %v86, %v399
  %v401 = vpop.f32.mrb[0].mxu0
  %v402 = vpop.f32.mrb[0].mxu0
  %v403 = vadd.f32 %v86, %v402
  %v404 = vpop.f32.mrb[0].mxu0
  %405 = vmatprep.mubr.bf16.mxu0 0
  %406 = vmatmul.mubr.bf16.gmra.mrb[0].mxu0 %v264
  %v407 = vpop.f32.mrb[0].mxu0
  %v408 = vadd.f32 %v86, %v407
  %v409 = vpop.f32.mrb[0].mxu0
  %v410 = vpop.f32.mrb[0].mxu0
  %v411 = vadd.f32 %v86, %v410
  %v412 = vpop.f32.mrb[0].mxu0
  %413 = vmatprep.mubr.bf16.mxu0 0
  %414 = vmatmul.mubr.bf16.gmra.mrb[0].mxu0 %v267
  %v415 = vpop.f32.mrb[0].mxu0
  %v416 = vadd.f32 %v86, %v415
  %v417 = vpop.f32.mrb[0].mxu0
  %v418 = vpop.f32.mrb[0].mxu0
  %v419 = vadd.f32 %v86, %v418
  %v420 = vpop.f32.mrb[0].mxu0
  %421 = vmatprep.mubr.bf16.mxu0 0
  %422 = vmatmul.mubr.bf16.gmra.mrb[0].mxu0 %v270
  %v423 = vpop.f32.mrb[0].mxu0
  %v424 = vadd.f32 %v86, %v423
  %v425 = vpop.f32.mrb[0].mxu0
  %v426 = vpop.f32.mrb[0].mxu0
  %v427 = vadd.f32 %v86, %v426
  %v428 = vpop.f32.mrb[0].mxu0
  %429 = vmatprep.mubr.bf16.mxu0 0
  %430 = vmatmul.mubr.bf16.gmra.mrb[0].mxu0 %v273
  %v431 = vpop.f32.mrb[0].mxu0
  %v432 = vadd.f32 %v86, %v431
  %v433 = vpop.f32.mrb[0].mxu0
  %v434 = vpop.f32.mrb[0].mxu0
  %v435 = vadd.f32 %v86, %v434
  %v436 = vpop.f32.mrb[0].mxu0
  %437 = vmatprep.mubr.bf16.mxu0 0
  %438 = vmatmul.mubr.bf16.gmra.mrb[0].mxu0 %v276
  %v439 = vpop.f32.mrb[0].mxu0
  %v440 = vadd.f32 %v86, %v439
  %v441 = vpop.f32.mrb[0].mxu0
  %v442 = vpop.f32.mrb[0].mxu0
  %v443 = vadd.f32 %v86, %v442
  %v444 = vpop.f32.mrb[0].mxu0
  %445 = vmatprep.mubr.bf16.mxu0 0
  %446 = vmatmul.mubr.bf16.gmra.mrb[0].mxu0 %v279
  %v447 = vpop.f32.mrb[0].mxu0
  %v448 = vadd.f32 %v86, %v447
  %v449 = vpop.f32.mrb[0].mxu0
  %v450 = vpop.f32.mrb[0].mxu0
  %v451 = vadd.f32 %v86, %v450
  %v452 = vpop.f32.mrb[0].mxu0
  %453 = vmatprep.mubr.bf16.mxu0 0
  %454 = vmatmul.mubr.bf16.gmra.mrb[0].mxu0 %v282
  %v455 = vpop.f32.mrb[0].mxu0
  %v456 = vadd.f32 %v86, %v455
  %v457 = vpop.f32.mrb[0].mxu0
  %v458 = vpop.f32.mrb[0].mxu0
  %v459 = vadd.f32 %v86, %v458
  %v460 = vpop.f32.mrb[0].mxu0
  %461 = vmatprep.mubr.bf16.mxu0 0
  %462 = vmatmul.mubr.bf16.gmra.mrb[0].mxu0 %v285
  %v463 = vpop.f32.mrb[0].mxu0
  %v464 = vadd.f32 %v86, %v463
  %v465 = vpop.f32.mrb[0].mxu0
  %v466 = vpop.f32.mrb[0].mxu0
  %v467 = vadd.f32 %v86, %v466
  %v468 = vpop.f32.mrb[0].mxu0
  %469 = vmatprep.mubr.bf16.mxu0 0
  %470 = vmatmul.mubr.bf16.gmra.mrb[0].mxu0 %v288
  %v471 = vpop.f32.mrb[0].mxu0
  %v472 = vadd.f32 %v86, %v471
  %v473 = vpop.f32.mrb[0].mxu0
  %v474 = vpop.f32.mrb[0].mxu0
  %v475 = vadd.f32 %v86, %v474
  %v476 = vpop.f32.mrb[0].mxu0
  %477 = vmatprep.mubr.bf16.mxu0 0
  %478 = vmatmul.mubr.bf16.gmra.mrb[0].mxu0 %v291
  %v479 = vpop.f32.mrb[0].mxu0
  %v480 = vadd.f32 %v86, %v479
  %v481 = vpop.f32.mrb[0].mxu0
  %v482 = vpop.f32.mrb[0].mxu0
  %v483 = vadd.f32 %v86, %v482
  %v484 = vpop.f32.mrb[0].mxu0
  %485 = vmatprep.mubr.bf16.mxu0 0
  %486 = vmatmul.mubr.bf16.gmra.mrb[0].mxu0 %v294
  %v487 = vpop.f32.mrb[0].mxu0
  %v488 = vadd.f32 %v86, %v487
  %v489 = vpop.f32.mrb[0].mxu0
  %v490 = vpop.f32.mrb[0].mxu0
  %v491 = vadd.f32 %v86, %v490
  %v492 = vpop.f32.mrb[0].mxu0
  %493 = vmatprep.mubr.bf16.mxu0 0
  %494 = vmatmul.mubr.bf16.gmra.mrb[0].mxu0 %v297
  %v495 = vpop.f32.mrb[0].mxu0
  %v496 = vadd.f32 %v86, %v495
  %v497 = vpop.f32.mrb[0].mxu0
  %v498 = vpop.f32.mrb[0].mxu0
  %v499 = vadd.f32 %v86, %v498
  %v500 = vpop.f32.mrb[0].mxu0
  %501 = vmatprep.mubr.bf16.mxu0 0
  %502 = vmatmul.mubr.bf16.gmra.mrb[0].mxu0 %v300
  %v503 = vpop.f32.mrb[0].mxu0
  %v504 = vadd.f32 %v86, %v503
  %v505 = vpop.f32.mrb[0].mxu0
  %v506 = vpop.f32.mrb[0].mxu0
  %v507 = vadd.f32 %v86, %v506
  %v508 = vpop.f32.mrb[0].mxu0
  %509 = vmatprep.mubr.bf16.mxu0 0
  %510 = vmatmul.mubr.bf16.gmra.mrb[0].mxu0 %v303
  %v511 = vpop.f32.mrb[0].mxu0
  %v512 = vadd.f32 %v86, %v511
  %v513 = vpop.f32.mrb[0].mxu0
  %v514 = vpop.f32.mrb[0].mxu0
  %v515 = vadd.f32 %v86, %v514
  %v516 = vpop.f32.mrb[0].mxu0
  %517 = vmatprep.mubr.bf16.mxu0 0
  %518 = vmatmul.mubr.bf16.gmra.mrb[0].mxu0 %v306
  %v519 = vpop.f32.mrb[0].mxu0
  %v520 = vadd.f32 %v86, %v519
  %v521 = vpop.f32.mrb[0].mxu0
  %v522 = vpop.f32.mrb[0].mxu0
  %v523 = vadd.f32 %v86, %v522
  %v524 = vpop.f32.mrb[0].mxu0
  %525 = vmatprep.mubr.bf16.mxu0 0
  %526 = vmatmul.mubr.bf16.gmra.mrb[0].mxu0 %v309
  %v527 = vpop.f32.mrb[0].mxu0
  %v528 = vadd.f32 %v86, %v527
  %v529 = vpop.f32.mrb[0].mxu0
  %v530 = vpop.f32.mrb[0].mxu0
  %v531 = vadd.f32 %v86, %v530
  %v532 = vpop.f32.mrb[0].mxu0
  %533 = vmatprep.mubr.bf16.mxu0 0
  %534 = vmatmul.mubr.bf16.gmra.mrb[0].mxu0 %v312
  %v535 = vpop.f32.mrb[0].mxu0
  %v536 = vadd.f32 %v86, %v535
  %v537 = vpop.f32.mrb[0].mxu0
  %v538 = vpop.f32.mrb[0].mxu0
  %v539 = vadd.f32 %v86, %v538
  %v540 = vpop.f32.mrb[0].mxu0
  %541 = vmatprep.mubr.bf16.mxu0 0
  %542 = vmatmul.mubr.bf16.gmra.mrb[0].mxu0 %v315
  %v543 = vpop.f32.mrb[0].mxu0
  %v544 = vadd.f32 %v86, %v543
  %v545 = vpop.f32.mrb[0].mxu0
  %v546 = vpop.f32.mrb[0].mxu0
  %v547 = vadd.f32 %v86, %v546
  %v548 = vpop.f32.mrb[0].mxu0
  %549 = vmatprep.mubr.bf16.mxu0 0
  %550 = vmatmul.mubr.bf16.gmra.mrb[0].mxu0 %v318
  %v551 = vpop.f32.mrb[0].mxu0
  %v552 = vadd.f32 %v86, %v551
  %v553 = vpop.f32.mrb[0].mxu0
  %v554 = vpop.f32.mrb[0].mxu0
  %v555 = vadd.f32 %v86, %v554
  %v556 = vpop.f32.mrb[0].mxu0
  %557 = vmatprep.mubr.bf16.mxu0 0
  %558 = vmatmul.mubr.bf16.gmra.mrb[0].mxu0 %v321
  %v559 = vpop.f32.mrb[0].mxu0
  %v560 = vadd.f32 %v86, %v559
  %v561 = vpop.f32.mrb[0].mxu0
  %v562 = vpop.f32.mrb[0].mxu0
  %v563 = vadd.f32 %v86, %v562
  %v564 = vpop.f32.mrb[0].mxu0
  %565 = vmatprep.mubr.bf16.mxu0 0
  %566 = vmatmul.mubr.bf16.gmra.mrb[0].mxu0 %v324
  %v567 = vpop.f32.mrb[0].mxu0
  %v568 = vadd.f32 %v86, %v567
  %v569 = vpop.f32.mrb[0].mxu0
  %v570 = vpop.f32.mrb[0].mxu0
  %v571 = vadd.f32 %v86, %v570
  %v572 = vpop.f32.mrb[0].mxu0
  %573 = vmatprep.mubr.bf16.mxu0 0
  %574 = vmatmul.mubr.bf16.gmra.mrb[0].mxu0 %v327
  %v575 = vpop.f32.mrb[0].mxu0
  %v576 = vadd.f32 %v86, %v575
  %v577 = vpop.f32.mrb[0].mxu0
  %v578 = vpop.f32.mrb[0].mxu0
  %v579 = vadd.f32 %v86, %v578
  %v580 = vpop.f32.mrb[0].mxu0
  %581 = vmatprep.mubr.bf16.mxu0 0
  %582 = vmatmul.mubr.bf16.gmra.mrb[0].mxu0 %v330
  %v583 = vpop.f32.mrb[0].mxu0
  %v584 = vadd.f32 %v86, %v583
  %v585 = vpop.f32.mrb[0].mxu0
  %v586 = vpop.f32.mrb[0].mxu0
  %v587 = vadd.f32 %v86, %v586
  %v588 = vpop.f32.mrb[0].mxu0
  %589 = vmatprep.mubr.bf16.mxu0 0
  %590 = vmatmul.mubr.bf16.gmra.mrb[0].mxu0 %v333
  %v591 = vpop.f32.mrb[0].mxu0
  %v592 = vadd.f32 %v86, %v591
  %v593 = vpop.f32.mrb[0].mxu0
  %v594 = vpop.f32.mrb[0].mxu0
  %v595 = vadd.f32 %v86, %v594
  %v596 = vpop.f32.mrb[0].mxu0
  %597 = vmatprep.mubr.bf16.mxu0 0
  %598 = vmatmul.mubr.bf16.gmra.mrb[0].mxu0 %v336
  %v599 = vpop.f32.mrb[0].mxu0
  %v600 = vadd.f32 %v86, %v599
  %v601 = vpop.f32.mrb[0].mxu0
  %v602 = vpop.f32.mrb[0].mxu0
  %v603 = vadd.f32 %v86, %v602
  %v604 = vpop.f32.mrb[0].mxu0
  %605 = vmatprep.mubr.bf16.mxu0 0
  %606 = vmatmul.mubr.bf16.gmra.mrb[0].mxu0 %v339
  %v607 = vpop.f32.mrb[0].mxu0
  %v608 = vadd.f32 %v86, %v607
  %v609 = vpop.f32.mrb[0].mxu0
  %v610 = vpop.f32.mrb[0].mxu0
  %v611 = vadd.f32 %v86, %v610
  %v612 = vpop.f32.mrb[0].mxu0
  %613 = vmatprep.mubr.bf16.mxu0 0
  %614 = vmatmul.mubr.bf16.gmra.mrb[0].mxu0 %v342
  %v615 = vpop.f32.mrb[0].mxu0
  %v616 = vadd.f32 %v86, %v615
  %v617 = vpop.f32.mrb[0].mxu0
  %v618 = vpop.f32.mrb[0].mxu0
  %v619 = vadd.f32 %v86, %v618
  %v620 = vpop.f32.mrb[0].mxu0
  %621 = vmatprep.mubr.bf16.mxu0 0
  %622 = vmatmul.mubr.bf16.gmra.mrb[0].mxu0 %v345
  %v623 = vpop.f32.mrb[0].mxu0
  %v624 = vadd.f32 %v86, %v623
  %v625 = vpop.f32.mrb[0].mxu0
  %v626 = vpop.f32.mrb[0].mxu0
  %v627 = vadd.f32 %v86, %v626
  %v628 = vpop.f32.mrb[0].mxu0
  %629 = vmatprep.mubr.bf16.mxu0 0
  %630 = vmatmul.mubr.bf16.gmra.mrb[0].mxu0 %v348
  %v631 = vpop.f32.mrb[0].mxu0
  %v632 = vadd.f32 %v86, %v631
  %v633 = vpop.f32.mrb[0].mxu0
  %v634 = vpop.f32.mrb[0].mxu0
  %v635 = vadd.f32 %v86, %v634
  %v636 = vpop.f32.mrb[0].mxu0
  %637 = vmatprep.mubr.bf16.mxu0 0
  %638 = vmatmul.mubr.bf16.gmra.mrb[0].mxu0 %v351
  %v639 = vpop.f32.mrb[0].mxu0
  %v640 = vadd.f32 %v86, %v639
  %v641 = vpop.f32.mrb[0].mxu0
  %v642 = vpop.f32.mrb[0].mxu0
  %v643 = vadd.f32 %v86, %v642
  %v644 = vpop.f32.mrb[0].mxu0
  %645 = vdwg.mxu0
  %v646 = vld [vmem:[%s1 + $0x10] sm:$0xf]
  %v647 = vld [vmem:[%s1 + $0x14] sm:$0xf]
  %v648 = vld [vmem:[%s1 + $0x18] sm:$0xf]
  %v649 = vld [vmem:[%s1 + $0x1c] sm:$0xf]
  %v650 = vld [vmem:[%s2 + $0x1] sm:$0x1]
  %v651 = vpack.c.bf16 %v395, %v392
  %v652 = vpack.c.bf16 %v403, %v400
  %v653 = vpack.c.bf16 %v411, %v408
  %v654 = vpack.c.bf16 %v419, %v416
  %v655 = vpack.c.bf16 %v427, %v424
  %v656 = vpack.c.bf16 %v435, %v432
  %v657 = vpack.c.bf16 %v443, %v440
  %v658 = vpack.c.bf16 %v451, %v448
  %v659 = vpack.c.bf16 %v459, %v456
  %v660 = vpack.c.bf16 %v467, %v464
  %v661 = vpack.c.bf16 %v475, %v472
  %v662 = vpack.c.bf16 %v483, %v480
  %v663 = vpack.c.bf16 %v491, %v488
  %v664 = vpack.c.bf16 %v499, %v496
  %v665 = vpack.c.bf16 %v507, %v504
  %v666 = vpack.c.bf16 %v515, %v512
  %v667 = vpack.c.bf16 %v523, %v520
  %v668 = vpack.c.bf16 %v531, %v528
  %v669 = vpack.c.bf16 %v539, %v536
  %v670 = vpack.c.bf16 %v547, %v544
  %v671 = vpack.c.bf16 %v555, %v552
  %v672 = vpack.c.bf16 %v563, %v560
  %v673 = vpack.c.bf16 %v571, %v568
  %v674 = vpack.c.bf16 %v579, %v576
  %v675 = vpack.c.bf16 %v587, %v584
  %v676 = vpack.c.bf16 %v595, %v592
  %v677 = vpack.c.bf16 %v603, %v600
  %v678 = vpack.c.bf16 %v611, %v608
  %v679 = vpack.c.bf16 %v619, %v616
  %v680 = vpack.c.bf16 %v627, %v624
  %v681 = vpack.c.bf16 %v635, %v632
  %v682 = vpack.c.bf16 %v643, %v640
  %v683 = vlaneseq
  %v684 = vshrl.u32 %v683, 7
  %v685 = vsub.s32 0, %v684
  %v686 = vrot.slane %v650, %v685
  %v691 = vunpack.c.l.b16 %v646
  %v692 = vunpack.c.l.b16 %v647
  %v693 = vunpack.c.l.b16 %v648
  %v694 = vunpack.c.l.b16 %v649
  %v695 = vpack.c.b16 %v692, %v691
  %v696 = vpack.c.b16 %v694, %v693
  %vm699 = vcmask 261120
  %v701 = vsel %vm699, %v651, 0
  %v704 = vsel %vm699, %v652, 0
  %v707 = vsel %vm699, %v653, 0
  %v710 = vsel %vm699, %v654, 0
  %v713 = vsel %vm699, %v655, 0
  %v716 = vsel %vm699, %v656, 0
  %v719 = vsel %vm699, %v657, 0
  %v722 = vsel %vm699, %v658, 0
  %v725 = vsel %vm699, %v659, 0
  %v728 = vsel %vm699, %v660, 0
  %v731 = vsel %vm699, %v661, 0
  %v734 = vsel %vm699, %v662, 0
  %v737 = vsel %vm699, %v663, 0
  %v740 = vsel %vm699, %v664, 0
  %v743 = vsel %vm699, %v665, 0
  %v746 = vsel %vm699, %v666, 0
  %v749 = vsel %vm699, %v667, 0
  %v752 = vsel %vm699, %v668, 0
  %v755 = vsel %vm699, %v669, 0
  %v758 = vsel %vm699, %v670, 0
  %v761 = vsel %vm699, %v671, 0
  %v764 = vsel %vm699, %v672, 0
  %v767 = vsel %vm699, %v673, 0
  %v770 = vsel %vm699, %v674, 0
  %v773 = vsel %vm699, %v675, 0
  %v776 = vsel %vm699, %v676, 0
  %v779 = vsel %vm699, %v677, 0
  %v782 = vsel %vm699, %v678, 0
  %v785 = vsel %vm699, %v679, 0
  %v788 = vsel %vm699, %v680, 0
  %v791 = vsel %vm699, %v681, 0
  %v794 = vsel %vm699, %v682, 0
  %796 = vmatprep.subr.bf16.mxu0 0
  %797 = vmatpush1.bf16.msra.mxu0 %v695
  %798 = vmatprep.subr.bf16.mxu0 0
  %799 = vmatpush1.bf16.msra.mxu0 %v696
  %800 = vmatprep.subr.bf16.mxu0 0
  %801 = vmatpush1.bf16.msra.mxu0 0
  %802 = vmatprep.subr.bf16.mxu0 0
  %803 = vmatpush1.bf16.msra.mxu0 0
  %804 = vmatprep.subr.bf16.mxu0 0
  %805 = vmatpush1.bf16.msra.mxu0 0
  %806 = vmatprep.subr.bf16.mxu0 0
  %807 = vmatpush1.bf16.msra.mxu0 0
  %808 = vmatprep.subr.bf16.mxu0 0
  %809 = vmatpush1.bf16.msra.mxu0 0
  %810 = vmatprep.subr.bf16.mxu0 0
  %811 = vmatpush1.bf16.msra.mxu0 0
  %812 = vmatprep.subr.bf16.mxu0 0
  %813 = vmatpush1.bf16.msra.mxu0 0
  %814 = vmatprep.subr.bf16.mxu0 0
  %815 = vmatpush1.bf16.msra.mxu0 0
  %816 = vmatprep.subr.bf16.mxu0 0
  %817 = vmatpush1.bf16.msra.mxu0 0
  %818 = vmatprep.subr.bf16.mxu0 0
  %819 = vmatpush1.bf16.msra.mxu0 0
  %820 = vmatprep.subr.bf16.mxu0 0
  %821 = vmatpush1.bf16.msra.mxu0 0
  %822 = vmatprep.subr.bf16.mxu0 0
  %823 = vmatpush1.bf16.msra.mxu0 0
  %824 = vmatprep.subr.bf16.mxu0 0
  %825 = vmatpush1.bf16.msra.mxu0 0
  %826 = vmatprep.subr.bf16.mxu0 0
  %827 = vmatpush1.bf16.msra.mxu0 0
  %828 = vmatprep.mubr.bf16.mxu0 0
  %829 = vmatmul.mubr.bf16.gmra.mrb[0].mxu0 %v701
  %v830 = vpop.f32.mrb[0].mxu0
  %v831 = vadd.f32 %v686, %v830
  %v832 = vpop.f32.mrb[0].mxu0
  %v833 = vpop.f32.mrb[0].mxu0
  %v834 = vadd.f32 %v686, %v833
  %v835 = vpop.f32.mrb[0].mxu0
  %836 = vmatprep.mubr.bf16.mxu0 0
  %837 = vmatmul.mubr.bf16.gmra.mrb[0].mxu0 %v704
  %v838 = vpop.f32.mrb[0].mxu0
  %v839 = vadd.f32 %v686, %v838
  %v840 = vpop.f32.mrb[0].mxu0
  %v841 = vpop.f32.mrb[0].mxu0
  %v842 = vadd.f32 %v686, %v841
  %v843 = vpop.f32.mrb[0].mxu0
  %844 = vmatprep.mubr.bf16.mxu0 0
  %845 = vmatmul.mubr.bf16.gmra.mrb[0].mxu0 %v707
  %v846 = vpop.f32.mrb[0].mxu0
  %v847 = vadd.f32 %v686, %v846
  %v848 = vpop.f32.mrb[0].mxu0
  %v849 = vpop.f32.mrb[0].mxu0
  %v850 = vadd.f32 %v686, %v849
  %v851 = vpop.f32.mrb[0].mxu0
  %852 = vmatprep.mubr.bf16.mxu0 0
  %853 = vmatmul.mubr.bf16.gmra.mrb[0].mxu0 %v710
  %v854 = vpop.f32.mrb[0].mxu0
  %v855 = vadd.f32 %v686, %v854
  %v856 = vpop.f32.mrb[0].mxu0
  %v857 = vpop.f32.mrb[0].mxu0
  %v858 = vadd.f32 %v686, %v857
  %v859 = vpop.f32.mrb[0].mxu0
  %860 = vmatprep.mubr.bf16.mxu0 0
  %861 = vmatmul.mubr.bf16.gmra.mrb[0].mxu0 %v713
  %v862 = vpop.f32.mrb[0].mxu0
  %v863 = vadd.f32 %v686, %v862
  %v864 = vpop.f32.mrb[0].mxu0
  %v865 = vpop.f32.mrb[0].mxu0
  %v866 = vadd.f32 %v686, %v865
  %v867 = vpop.f32.mrb[0].mxu0
  %868 = vmatprep.mubr.bf16.mxu0 0
  %869 = vmatmul.mubr.bf16.gmra.mrb[0].mxu0 %v716
  %v870 = vpop.f32.mrb[0].mxu0
  %v871 = vadd.f32 %v686, %v870
  %v872 = vpop.f32.mrb[0].mxu0
  %v873 = vpop.f32.mrb[0].mxu0
  %v874 = vadd.f32 %v686, %v873
  %v875 = vpop.f32.mrb[0].mxu0
  %876 = vmatprep.mubr.bf16.mxu0 0
  %877 = vmatmul.mubr.bf16.gmra.mrb[0].mxu0 %v719
  %v878 = vpop.f32.mrb[0].mxu0
  %v879 = vadd.f32 %v686, %v878
  %v880 = vpop.f32.mrb[0].mxu0
  %v881 = vpop.f32.mrb[0].mxu0
  %v882 = vadd.f32 %v686, %v881
  %v883 = vpop.f32.mrb[0].mxu0
  %884 = vmatprep.mubr.bf16.mxu0 0
  %885 = vmatmul.mubr.bf16.gmra.mrb[0].mxu0 %v722
  %v886 = vpop.f32.mrb[0].mxu0
  %v887 = vadd.f32 %v686, %v886
  %v888 = vpop.f32.mrb[0].mxu0
  %v889 = vpop.f32.mrb[0].mxu0
  %v890 = vadd.f32 %v686, %v889
  %v891 = vpop.f32.mrb[0].mxu0
  %892 = vmatprep.mubr.bf16.mxu0 0
  %893 = vmatmul.mubr.bf16.gmra.mrb[0].mxu0 %v725
  %v894 = vpop.f32.mrb[0].mxu0
  %v895 = vadd.f32 %v686, %v894
  %v896 = vpop.f32.mrb[0].mxu0
  %v897 = vpop.f32.mrb[0].mxu0
  %v898 = vadd.f32 %v686, %v897
  %v899 = vpop.f32.mrb[0].mxu0
  %900 = vmatprep.mubr.bf16.mxu0 0
  %901 = vmatmul.mubr.bf16.gmra.mrb[0].mxu0 %v728
  %v902 = vpop.f32.mrb[0].mxu0
  %v903 = vadd.f32 %v686, %v902
  %v904 = vpop.f32.mrb[0].mxu0
  %v905 = vpop.f32.mrb[0].mxu0
  %v906 = vadd.f32 %v686, %v905
  %v907 = vpop.f32.mrb[0].mxu0
  %908 = vmatprep.mubr.bf16.mxu0 0
  %909 = vmatmul.mubr.bf16.gmra.mrb[0].mxu0 %v731
  %v910 = vpop.f32.mrb[0].mxu0
  %v911 = vadd.f32 %v686, %v910
  %v912 = vpop.f32.mrb[0].mxu0
  %v913 = vpop.f32.mrb[0].mxu0
  %v914 = vadd.f32 %v686, %v913
  %v915 = vpop.f32.mrb[0].mxu0
  %916 = vmatprep.mubr.bf16.mxu0 0
  %917 = vmatmul.mubr.bf16.gmra.mrb[0].mxu0 %v734
  %v918 = vpop.f32.mrb[0].mxu0
  %v919 = vadd.f32 %v686, %v918
  %v920 = vpop.f32.mrb[0].mxu0
  %v921 = vpop.f32.mrb[0].mxu0
  %v922 = vadd.f32 %v686, %v921
  %v923 = vpop.f32.mrb[0].mxu0
  %924 = vmatprep.mubr.bf16.mxu0 0
  %925 = vmatmul.mubr.bf16.gmra.mrb[0].mxu0 %v737
  %v926 = vpop.f32.mrb[0].mxu0
  %v927 = vadd.f32 %v686, %v926
  %v928 = vpop.f32.mrb[0].mxu0
  %v929 = vpop.f32.mrb[0].mxu0
  %v930 = vadd.f32 %v686, %v929
  %v931 = vpop.f32.mrb[0].mxu0
  %932 = vmatprep.mubr.bf16.mxu0 0
  %933 = vmatmul.mubr.bf16.gmra.mrb[0].mxu0 %v740
  %v934 = vpop.f32.mrb[0].mxu0
  %v935 = vadd.f32 %v686, %v934
  %v936 = vpop.f32.mrb[0].mxu0
  %v937 = vpop.f32.mrb[0].mxu0
  %v938 = vadd.f32 %v686, %v937
  %v939 = vpop.f32.mrb[0].mxu0
  %940 = vmatprep.mubr.bf16.mxu0 0
  %941 = vmatmul.mubr.bf16.gmra.mrb[0].mxu0 %v743
  %v942 = vpop.f32.mrb[0].mxu0
  %v943 = vadd.f32 %v686, %v942
  %v944 = vpop.f32.mrb[0].mxu0
  %v945 = vpop.f32.mrb[0].mxu0
  %v946 = vadd.f32 %v686, %v945
  %v947 = vpop.f32.mrb[0].mxu0
  %948 = vmatprep.mubr.bf16.mxu0 0
  %949 = vmatmul.mubr.bf16.gmra.mrb[0].mxu0 %v746
  %v950 = vpop.f32.mrb[0].mxu0
  %v951 = vadd.f32 %v686, %v950
  %v952 = vpop.f32.mrb[0].mxu0
  %v953 = vpop.f32.mrb[0].mxu0
  %v954 = vadd.f32 %v686, %v953
  %v955 = vpop.f32.mrb[0].mxu0
  %956 = vmatprep.mubr.bf16.mxu0 0
  %957 = vmatmul.mubr.bf16.gmra.mrb[0].mxu0 %v749
  %v958 = vpop.f32.mrb[0].mxu0
  %v959 = vadd.f32 %v686, %v958
  %v960 = vpop.f32.mrb[0].mxu0
  %v961 = vpop.f32.mrb[0].mxu0
  %v962 = vadd.f32 %v686, %v961
  %v963 = vpop.f32.mrb[0].mxu0
  %964 = vmatprep.mubr.bf16.mxu0 0
  %965 = vmatmul.mubr.bf16.gmra.mrb[0].mxu0 %v752
  %v966 = vpop.f32.mrb[0].mxu0
  %v967 = vadd.f32 %v686, %v966
  %v968 = vpop.f32.mrb[0].mxu0
  %v969 = vpop.f32.mrb[0].mxu0
  %v970 = vadd.f32 %v686, %v969
  %v971 = vpop.f32.mrb[0].mxu0
  %972 = vmatprep.mubr.bf16.mxu0 0
  %973 = vmatmul.mubr.bf16.gmra.mrb[0].mxu0 %v755
  %v974 = vpop.f32.mrb[0].mxu0
  %v975 = vadd.f32 %v686, %v974
  %v976 = vpop.f32.mrb[0].mxu0
  %v977 = vpop.f32.mrb[0].mxu0
  %v978 = vadd.f32 %v686, %v977
  %v979 = vpop.f32.mrb[0].mxu0
  %980 = vmatprep.mubr.bf16.mxu0 0
  %981 = vmatmul.mubr.bf16.gmra.mrb[0].mxu0 %v758
  %v982 = vpop.f32.mrb[0].mxu0
  %v983 = vadd.f32 %v686, %v982
  %v984 = vpop.f32.mrb[0].mxu0
  %v985 = vpop.f32.mrb[0].mxu0
  %v986 = vadd.f32 %v686, %v985
  %v987 = vpop.f32.mrb[0].mxu0
  %988 = vmatprep.mubr.bf16.mxu0 0
  %989 = vmatmul.mubr.bf16.gmra.mrb[0].mxu0 %v761
  %v990 = vpop.f32.mrb[0].mxu0
  %v991 = vadd.f32 %v686, %v990
  %v992 = vpop.f32.mrb[0].mxu0
  %v993 = vpop.f32.mrb[0].mxu0
  %v994 = vadd.f32 %v686, %v993
  %v995 = vpop.f32.mrb[0].mxu0
  %996 = vmatprep.mubr.bf16.mxu0 0
  %997 = vmatmul.mubr.bf16.gmra.mrb[0].mxu0 %v764
  %v998 = vpop.f32.mrb[0].mxu0
  %v999 = vadd.f32 %v686, %v998
  %v1000 = vpop.f32.mrb[0].mxu0
  %v1001 = vpop.f32.mrb[0].mxu0
  %v1002 = vadd.f32 %v686, %v1001
  %v1003 = vpop.f32.mrb[0].mxu0
  %1004 = vmatprep.mubr.bf16.mxu0 0
  %1005 = vmatmul.mubr.bf16.gmra.mrb[0].mxu0 %v767
  %v1006 = vpop.f32.mrb[0].mxu0
  %v1007 = vadd.f32 %v686, %v1006
  %v1008 = vpop.f32.mrb[0].mxu0
  %v1009 = vpop.f32.mrb[0].mxu0
  %v1010 = vadd.f32 %v686, %v1009
  %v1011 = vpop.f32.mrb[0].mxu0
  %1012 = vmatprep.mubr.bf16.mxu0 0
  %1013 = vmatmul.mubr.bf16.gmra.mrb[0].mxu0 %v770
  %v1014 = vpop.f32.mrb[0].mxu0
  %v1015 = vadd.f32 %v686, %v1014
  %v1016 = vpop.f32.mrb[0].mxu0
  %v1017 = vpop.f32.mrb[0].mxu0
  %v1018 = vadd.f32 %v686, %v1017
  %v1019 = vpop.f32.mrb[0].mxu0
  %1020 = vmatprep.mubr.bf16.mxu0 0
  %1021 = vmatmul.mubr.bf16.gmra.mrb[0].mxu0 %v773
  %v1022 = vpop.f32.mrb[0].mxu0
  %v1023 = vadd.f32 %v686, %v1022
  %v1024 = vpop.f32.mrb[0].mxu0
  %v1025 = vpop.f32.mrb[0].mxu0
  %v1026 = vadd.f32 %v686, %v1025
  %v1027 = vpop.f32.mrb[0].mxu0
  %1028 = vmatprep.mubr.bf16.mxu0 0
  %1029 = vmatmul.mubr.bf16.gmra.mrb[0].mxu0 %v776
  %v1030 = vpop.f32.mrb[0].mxu0
  %v1031 = vadd.f32 %v686, %v1030
  %v1032 = vpop.f32.mrb[0].mxu0
  %v1033 = vpop.f32.mrb[0].mxu0
  %v1034 = vadd.f32 %v686, %v1033
  %v1035 = vpop.f32.mrb[0].mxu0
  %1036 = vmatprep.mubr.bf16.mxu0 0
  %1037 = vmatmul.mubr.bf16.gmra.mrb[0].mxu0 %v779
  %v1038 = vpop.f32.mrb[0].mxu0
  %v1039 = vadd.f32 %v686, %v1038
  %v1040 = vpop.f32.mrb[0].mxu0
  %v1041 = vpop.f32.mrb[0].mxu0
  %v1042 = vadd.f32 %v686, %v1041
  %v1043 = vpop.f32.mrb[0].mxu0
  %1044 = vmatprep.mubr.bf16.mxu0 0
  %1045 = vmatmul.mubr.bf16.gmra.mrb[0].mxu0 %v782
  %v1046 = vpop.f32.mrb[0].mxu0
  %v1047 = vadd.f32 %v686, %v1046
  %v1048 = vpop.f32.mrb[0].mxu0
  %v1049 = vpop.f32.mrb[0].mxu0
  %v1050 = vadd.f32 %v686, %v1049
  %v1051 = vpop.f32.mrb[0].mxu0
  %1052 = vmatprep.mubr.bf16.mxu0 0
  %1053 = vmatmul.mubr.bf16.gmra.mrb[0].mxu0 %v785
  %v1054 = vpop.f32.mrb[0].mxu0
  %v1055 = vadd.f32 %v686, %v1054
  %v1056 = vpop.f32.mrb[0].mxu0
  %v1057 = vpop.f32.mrb[0].mxu0
  %v1058 = vadd.f32 %v686, %v1057
  %v1059 = vpop.f32.mrb[0].mxu0
  %1060 = vmatprep.mubr.bf16.mxu0 0
  %1061 = vmatmul.mubr.bf16.gmra.mrb[0].mxu0 %v788
  %v1062 = vpop.f32.mrb[0].mxu0
  %v1063 = vadd.f32 %v686, %v1062
  %v1064 = vpop.f32.mrb[0].mxu0
  %v1065 = vpop.f32.mrb[0].mxu0
  %v1066 = vadd.f32 %v686, %v1065
  %v1067 = vpop.f32.mrb[0].mxu0
  %1068 = vmatprep.mubr.bf16.mxu0 0
  %1069 = vmatmul.mubr.bf16.gmra.mrb[0].mxu0 %v791
  %v1070 = vpop.f32.mrb[0].mxu0
  %v1071 = vadd.f32 %v686, %v1070
  %v1072 = vpop.f32.mrb[0].mxu0
  %v1073 = vpop.f32.mrb[0].mxu0
  %v1074 = vadd.f32 %v686, %v1073
  %v1075 = vpop.f32.mrb[0].mxu0
  %1076 = vmatprep.mubr.bf16.mxu0 0
  %1077 = vmatmul.mubr.bf16.gmra.mrb[0].mxu0 %v794
  %v1078 = vpop.f32.mrb[0].mxu0
  %v1079 = vadd.f32 %v686, %v1078
  %v1080 = vpop.f32.mrb[0].mxu0
  %v1081 = vpop.f32.mrb[0].mxu0
  %v1082 = vadd.f32 %v686, %v1081
  %v1083 = vpop.f32.mrb[0].mxu0
  %1084 = vdwg.mxu0
  %v1085 = vmul.f32 %v831, %v831
  %v1086 = vmul.f32 %v834, %v834
  %v1087 = vmul.f32 %v839, %v839
  %v1088 = vmul.f32 %v842, %v842
  %v1089 = vmul.f32 %v847, %v847
  %v1090 = vmul.f32 %v850, %v850
  %v1091 = vmul.f32 %v855, %v855
  %v1092 = vmul.f32 %v858, %v858
  %v1093 = vmul.f32 %v863, %v863
  %v1094 = vmul.f32 %v866, %v866
  %v1095 = vmul.f32 %v871, %v871
  %v1096 = vmul.f32 %v874, %v874
  %v1097 = vmul.f32 %v879, %v879
  %v1098 = vmul.f32 %v882, %v882
  %v1099 = vmul.f32 %v887, %v887
  %v1100 = vmul.f32 %v890, %v890
  %v1101 = vmul.f32 %v895, %v895
  %v1102 = vmul.f32 %v898, %v898
  %v1103 = vmul.f32 %v903, %v903
  %v1104 = vmul.f32 %v906, %v906
  %v1105 = vmul.f32 %v911, %v911
  %v1106 = vmul.f32 %v914, %v914
  %v1107 = vmul.f32 %v919, %v919
  %v1108 = vmul.f32 %v922, %v922
  %v1109 = vmul.f32 %v927, %v927
  %v1110 = vmul.f32 %v930, %v930
  %v1111 = vmul.f32 %v935, %v935
  %v1112 = vmul.f32 %v938, %v938
  %v1113 = vmul.f32 %v943, %v943
  %v1114 = vmul.f32 %v946, %v946
  %v1115 = vmul.f32 %v951, %v951
  %v1116 = vmul.f32 %v954, %v954
  %v1117 = vmul.f32 %v959, %v959
  %v1118 = vmul.f32 %v962, %v962
  %v1119 = vmul.f32 %v967, %v967
  %v1120 = vmul.f32 %v970, %v970
  %v1121 = vmul.f32 %v975, %v975
  %v1122 = vmul.f32 %v978, %v978
  %v1123 = vmul.f32 %v983, %v983
  %v1124 = vmul.f32 %v986, %v986
  %v1125 = vmul.f32 %v991, %v991
  %v1126 = vmul.f32 %v994, %v994
  %v1127 = vmul.f32 %v999, %v999
  %v1128 = vmul.f32 %v1002, %v1002
  %v1129 = vmul.f32 %v1007, %v1007
  %v1130 = vmul.f32 %v1010, %v1010
  %v1131 = vmul.f32 %v1015, %v1015
  %v1132 = vmul.f32 %v1018, %v1018
  %v1133 = vmul.f32 %v1023, %v1023
  %v1134 = vmul.f32 %v1026, %v1026
  %v1135 = vmul.f32 %v1031, %v1031
  %v1136 = vmul.f32 %v1034, %v1034
  %v1137 = vmul.f32 %v1039, %v1039
  %v1138 = vmul.f32 %v1042, %v1042
  %v1139 = vmul.f32 %v1047, %v1047
  %v1140 = vmul.f32 %v1050, %v1050
  %v1141 = vmul.f32 %v1055, %v1055
  %v1142 = vmul.f32 %v1058, %v1058
  %v1143 = vmul.f32 %v1063, %v1063
  %v1144 = vmul.f32 %v1066, %v1066
  %v1145 = vmul.f32 %v1071, %v1071
  %v1146 = vmul.f32 %v1074, %v1074
  %v1147 = vmul.f32 %v1079, %v1079
  %v1148 = vmul.f32 %v1082, %v1082
  %v1149 = vmul.f32 %v831, %v1085
  %v1150 = vmul.f32 %v834, %v1086
  %v1151 = vmul.f32 %v839, %v1087
  %v1152 = vmul.f32 %v842, %v1088
  %v1153 = vmul.f32 %v847, %v1089
  %v1154 = vmul.f32 %v850, %v1090
  %v1155 = vmul.f32 %v855, %v1091
  %v1156 = vmul.f32 %v858, %v1092
  %v1157 = vmul.f32 %v863, %v1093
  %v1158 = vmul.f32 %v866, %v1094
  %v1159 = vmul.f32 %v871, %v1095
  %v1160 = vmul.f32 %v874, %v1096
  %v1161 = vmul.f32 %v879, %v1097
  %v1162 = vmul.f32 %v882, %v1098
  %v1163 = vmul.f32 %v887, %v1099
  %v1164 = vmul.f32 %v890, %v1100
  %v1165 = vmul.f32 %v895, %v1101
  %v1166 = vmul.f32 %v898, %v1102
  %v1167 = vmul.f32 %v903, %v1103
  %v1168 = vmul.f32 %v906, %v1104
  %v1169 = vmul.f32 %v911, %v1105
  %v1170 = vmul.f32 %v914, %v1106
  %v1171 = vmul.f32 %v919, %v1107
  %v1172 = vmul.f32 %v922, %v1108
  %v1173 = vmul.f32 %v927, %v1109
  %v1174 = vmul.f32 %v930, %v1110
  %v1175 = vmul.f32 %v935, %v1111
  %v1176 = vmul.f32 %v938, %v1112
  %v1177 = vmul.f32 %v943, %v1113
  %v1178 = vmul.f32 %v946, %v1114
  %v1179 = vmul.f32 %v951, %v1115
  %v1180 = vmul.f32 %v954, %v1116
  %v1181 = vmul.f32 %v959, %v1117
  %v1182 = vmul.f32 %v962, %v1118
  %v1183 = vmul.f32 %v967, %v1119
  %v1184 = vmul.f32 %v970, %v1120
  %v1185 = vmul.f32 %v975, %v1121
  %v1186 = vmul.f32 %v978, %v1122
  %v1187 = vmul.f32 %v983, %v1123
  %v1188 = vmul.f32 %v986, %v1124
  %v1189 = vmul.f32 %v991, %v1125
  %v1190 = vmul.f32 %v994, %v1126
  %v1191 = vmul.f32 %v999, %v1127
  %v1192 = vmul.f32 %v1002, %v1128
  %v1193 = vmul.f32 %v1007, %v1129
  %v1194 = vmul.f32 %v1010, %v1130
  %v1195 = vmul.f32 %v1015, %v1131
  %v1196 = vmul.f32 %v1018, %v1132
  %v1197 = vmul.f32 %v1023, %v1133
  %v1198 = vmul.f32 %v1026, %v1134
  %v1199 = vmul.f32 %v1031, %v1135
  %v1200 = vmul.f32 %v1034, %v1136
  %v1201 = vmul.f32 %v1039, %v1137
  %v1202 = vmul.f32 %v1042, %v1138
  %v1203 = vmul.f32 %v1047, %v1139
  %v1204 = vmul.f32 %v1050, %v1140
  %v1205 = vmul.f32 %v1055, %v1141
  %v1206 = vmul.f32 %v1058, %v1142
  %v1207 = vmul.f32 %v1063, %v1143
  %v1208 = vmul.f32 %v1066, %v1144
  %v1209 = vmul.f32 %v1071, %v1145
  %v1210 = vmul.f32 %v1074, %v1146
  %v1211 = vmul.f32 %v1079, %v1147
  %v1212 = vmul.f32 %v1082, %v1148
  %v1213 = vmul.f32 %v1149, 0.044715
  %v1214 = vmul.f32 %v1150, 0.044715
  %v1215 = vmul.f32 %v1151, 0.044715
  %v1216 = vmul.f32 %v1152, 0.044715
  %v1217 = vmul.f32 %v1153, 0.044715
  %v1218 = vmul.f32 %v1154, 0.044715
  %v1219 = vmul.f32 %v1155, 0.044715
  %v1220 = vmul.f32 %v1156, 0.044715
  %v1221 = vmul.f32 %v1157, 0.044715
  %v1222 = vmul.f32 %v1158, 0.044715
  %v1223 = vmul.f32 %v1159, 0.044715
  %v1224 = vmul.f32 %v1160, 0.044715
  %v1225 = vmul.f32 %v1161, 0.044715
  %v1226 = vmul.f32 %v1162, 0.044715
  %v1227 = vmul.f32 %v1163, 0.044715
  %v1228 = vmul.f32 %v1164, 0.044715
  %v1229 = vmul.f32 %v1165, 0.044715
  %v1230 = vmul.f32 %v1166, 0.044715
  %v1231 = vmul.f32 %v1167, 0.044715
  %v1232 = vmul.f32 %v1168, 0.044715
  %v1233 = vmul.f32 %v1169, 0.044715
  %v1234 = vmul.f32 %v1170, 0.044715
  %v1235 = vmul.f32 %v1171, 0.044715
  %v1236 = vmul.f32 %v1172, 0.044715
  %v1237 = vmul.f32 %v1173, 0.044715
  %v1238 = vmul.f32 %v1174, 0.044715
  %v1239 = vmul.f32 %v1175, 0.044715
  %v1240 = vmul.f32 %v1176, 0.044715
  %v1241 = vmul.f32 %v1177, 0.044715
  %v1242 = vmul.f32 %v1178, 0.044715
  %v1243 = vmul.f32 %v1179, 0.044715
  %v1244 = vmul.f32 %v1180, 0.044715
  %v1245 = vmul.f32 %v1181, 0.044715
  %v1246 = vmul.f32 %v1182, 0.044715
  %v1247 = vmul.f32 %v1183, 0.044715
  %v1248 = vmul.f32 %v1184, 0.044715
  %v1249 = vmul.f32 %v1185, 0.044715
  %v1250 = vmul.f32 %v1186, 0.044715
  %v1251 = vmul.f32 %v1187, 0.044715
  %v1252 = vmul.f32 %v1188, 0.044715
  %v1253 = vmul.f32 %v1189, 0.044715
  %v1254 = vmul.f32 %v1190, 0.044715
  %v1255 = vmul.f32 %v1191, 0.044715
  %v1256 = vmul.f32 %v1192, 0.044715
  %v1257 = vmul.f32 %v1193, 0.044715
  %v1258 = vmul.f32 %v1194, 0.044715
  %v1259 = vmul.f32 %v1195, 0.044715
  %v1260 = vmul.f32 %v1196, 0.044715
  %v1261 = vmul.f32 %v1197, 0.044715
  %v1262 = vmul.f32 %v1198, 0.044715
  %v1263 = vmul.f32 %v1199, 0.044715
  %v1264 = vmul.f32 %v1200, 0.044715
  %v1265 = vmul.f32 %v1201, 0.044715
  %v1266 = vmul.f32 %v1202, 0.044715
  %v1267 = vmul.f32 %v1203, 0.044715
  %v1268 = vmul.f32 %v1204, 0.044715
  %v1269 = vmul.f32 %v1205, 0.044715
  %v1270 = vmul.f32 %v1206, 0.044715
  %v1271 = vmul.f32 %v1207, 0.044715
  %v1272 = vmul.f32 %v1208, 0.044715
  %v1273 = vmul.f32 %v1209, 0.044715
  %v1274 = vmul.f32 %v1210, 0.044715
  %v1275 = vmul.f32 %v1211, 0.044715
  %v1276 = vmul.f32 %v1212, 0.044715
  %v1277 = vadd.f32 %v831, %v1213
  %v1278 = vadd.f32 %v834, %v1214
  %v1279 = vadd.f32 %v839, %v1215
  %v1280 = vadd.f32 %v842, %v1216
  %v1281 = vadd.f32 %v847, %v1217
  %v1282 = vadd.f32 %v850, %v1218
  %v1283 = vadd.f32 %v855, %v1219
  %v1284 = vadd.f32 %v858, %v1220
  %v1285 = vadd.f32 %v863, %v1221
  %v1286 = vadd.f32 %v866, %v1222
  %v1287 = vadd.f32 %v871, %v1223
  %v1288 = vadd.f32 %v874, %v1224
  %v1289 = vadd.f32 %v879, %v1225
  %v1290 = vadd.f32 %v882, %v1226
  %v1291 = vadd.f32 %v887, %v1227
  %v1292 = vadd.f32 %v890, %v1228
  %v1293 = vadd.f32 %v895, %v1229
  %v1294 = vadd.f32 %v898, %v1230
  %v1295 = vadd.f32 %v903, %v1231
  %v1296 = vadd.f32 %v906, %v1232
  %v1297 = vadd.f32 %v911, %v1233
  %v1298 = vadd.f32 %v914, %v1234
  %v1299 = vadd.f32 %v919, %v1235
  %v1300 = vadd.f32 %v922, %v1236
  %v1301 = vadd.f32 %v927, %v1237
  %v1302 = vadd.f32 %v930, %v1238
  %v1303 = vadd.f32 %v935, %v1239
  %v1304 = vadd.f32 %v938, %v1240
  %v1305 = vadd.f32 %v943, %v1241
  %v1306 = vadd.f32 %v946, %v1242
  %v1307 = vadd.f32 %v951, %v1243
  %v1308 = vadd.f32 %v954, %v1244
  %v1309 = vadd.f32 %v959, %v1245
  %v1310 = vadd.f32 %v962, %v1246
  %v1311 = vadd.f32 %v967, %v1247
  %v1312 = vadd.f32 %v970, %v1248
  %v1313 = vadd.f32 %v975, %v1249
  %v1314 = vadd.f32 %v978, %v1250
  %v1315 = vadd.f32 %v983, %v1251
  %v1316 = vadd.f32 %v986, %v1252
  %v1317 = vadd.f32 %v991, %v1253
  %v1318 = vadd.f32 %v994, %v1254
  %v1319 = vadd.f32 %v999, %v1255
  %v1320 = vadd.f32 %v1002, %v1256
  %v1321 = vadd.f32 %v1007, %v1257
  %v1322 = vadd.f32 %v1010, %v1258
  %v1323 = vadd.f32 %v1015, %v1259
  %v1324 = vadd.f32 %v1018, %v1260
  %v1325 = vadd.f32 %v1023, %v1261
  %v1326 = vadd.f32 %v1026, %v1262
  %v1327 = vadd.f32 %v1031, %v1263
  %v1328 = vadd.f32 %v1034, %v1264
  %v1329 = vadd.f32 %v1039, %v1265
  %v1330 = vadd.f32 %v1042, %v1266
  %v1331 = vadd.f32 %v1047, %v1267
  %v1332 = vadd.f32 %v1050, %v1268
  %v1333 = vadd.f32 %v1055, %v1269
  %v1334 = vadd.f32 %v1058, %v1270
  %v1335 = vadd.f32 %v1063, %v1271
  %v1336 = vadd.f32 %v1066, %v1272
  %v1337 = vadd.f32 %v1071, %v1273
  %v1338 = vadd.f32 %v1074, %v1274
  %v1339 = vadd.f32 %v1079, %v1275
  %v1340 = vadd.f32 %v1082, %v1276
  %v1341 = vmul.f32 %v1277, 0.7978846
  %v1342 = vmul.f32 %v1278, 0.7978846
  %v1343 = vmul.f32 %v1279, 0.7978846
  %v1344 = vmul.f32 %v1280, 0.7978846
  %v1345 = vmul.f32 %v1281, 0.7978846
  %v1346 = vmul.f32 %v1282, 0.7978846
  %v1347 = vmul.f32 %v1283, 0.7978846
  %v1348 = vmul.f32 %v1284, 0.7978846
  %v1349 = vmul.f32 %v1285, 0.7978846
  %v1350 = vmul.f32 %v1286, 0.7978846
  %v1351 = vmul.f32 %v1287, 0.7978846
  %v1352 = vmul.f32 %v1288, 0.7978846
  %v1353 = vmul.f32 %v1289, 0.7978846
  %v1354 = vmul.f32 %v1290, 0.7978846
  %v1355 = vmul.f32 %v1291, 0.7978846
  %v1356 = vmul.f32 %v1292, 0.7978846
  %v1357 = vmul.f32 %v1293, 0.7978846
  %v1358 = vmul.f32 %v1294, 0.7978846
  %v1359 = vmul.f32 %v1295, 0.7978846
  %v1360 = vmul.f32 %v1296, 0.7978846
  %v1361 = vmul.f32 %v1297, 0.7978846
  %v1362 = vmul.f32 %v1298, 0.7978846
  %v1363 = vmul.f32 %v1299, 0.7978846
  %v1364 = vmul.f32 %v1300, 0.7978846
  %v1365 = vmul.f32 %v1301, 0.7978846
  %v1366 = vmul.f32 %v1302, 0.7978846
  %v1367 = vmul.f32 %v1303, 0.7978846
  %v1368 = vmul.f32 %v1304, 0.7978846
  %v1369 = vmul.f32 %v1305, 0.7978846
  %v1370 = vmul.f32 %v1306, 0.7978846
  %v1371 = vmul.f32 %v1307, 0.7978846
  %v1372 = vmul.f32 %v1308, 0.7978846
  %v1373 = vmul.f32 %v1309, 0.7978846
  %v1374 = vmul.f32 %v1310, 0.7978846
  %v1375 = vmul.f32 %v1311, 0.7978846
  %v1376 = vmul.f32 %v1312, 0.7978846
  %v1377 = vmul.f32 %v1313, 0.7978846
  %v1378 = vmul.f32 %v1314, 0.7978846
  %v1379 = vmul.f32 %v1315, 0.7978846
  %v1380 = vmul.f32 %v1316, 0.7978846
  %v1381 = vmul.f32 %v1317, 0.7978846
  %v1382 = vmul.f32 %v1318, 0.7978846
  %v1383 = vmul.f32 %v1319, 0.7978846
  %v1384 = vmul.f32 %v1320, 0.7978846
  %v1385 = vmul.f32 %v1321, 0.7978846
  %v1386 = vmul.f32 %v1322, 0.7978846
  %v1387 = vmul.f32 %v1323, 0.7978846
  %v1388 = vmul.f32 %v1324, 0.7978846
  %v1389 = vmul.f32 %v1325, 0.7978846
  %v1390 = vmul.f32 %v1326, 0.7978846
  %v1391 = vmul.f32 %v1327, 0.7978846
  %v1392 = vmul.f32 %v1328, 0.7978846
  %v1393 = vmul.f32 %v1329, 0.7978846
  %v1394 = vmul.f32 %v1330, 0.7978846
  %v1395 = vmul.f32 %v1331, 0.7978846
  %v1396 = vmul.f32 %v1332, 0.7978846
  %v1397 = vmul.f32 %v1333, 0.7978846
  %v1398 = vmul.f32 %v1334, 0.7978846
  %v1399 = vmul.f32 %v1335, 0.7978846
  %v1400 = vmul.f32 %v1336, 0.7978846
  %v1401 = vmul.f32 %v1337, 0.7978846
  %v1402 = vmul.f32 %v1338, 0.7978846
  %v1403 = vmul.f32 %v1339, 0.7978846
  %v1404 = vmul.f32 %v1340, 0.7978846
  %v1405 = vtanh.pop %v1341
  %v1406 = vtanh.pop %v1342
  %v1407 = vtanh.pop %v1343
  %v1408 = vtanh.pop %v1344
  %v1409 = vtanh.pop %v1345
  %v1410 = vtanh.pop %v1346
  %v1411 = vtanh.pop %v1347
  %v1412 = vtanh.pop %v1348
  %v1413 = vtanh.pop %v1349
  %v1414 = vtanh.pop %v1350
  %v1415 = vtanh.pop %v1351
  %v1416 = vtanh.pop %v1352
  %v1417 = vtanh.pop %v1353
  %v1418 = vtanh.pop %v1354
  %v1419 = vtanh.pop %v1355
  %v1420 = vtanh.pop %v1356
  %v1421 = vtanh.pop %v1357
  %v1422 = vtanh.pop %v1358
  %v1423 = vtanh.pop %v1359
  %v1424 = vtanh.pop %v1360
  %v1425 = vtanh.pop %v1361
  %v1426 = vtanh.pop %v1362
  %v1427 = vtanh.pop %v1363
  %v1428 = vtanh.pop %v1364
  %v1429 = vtanh.pop %v1365
  %v1430 = vtanh.pop %v1366
  %v1431 = vtanh.pop %v1367
  %v1432 = vtanh.pop %v1368
  %v1433 = vtanh.pop %v1369
  %v1434 = vtanh.pop %v1370
  %v1435 = vtanh.pop %v1371
  %v1436 = vtanh.pop %v1372
  %v1437 = vtanh.pop %v1373
  %v1438 = vtanh.pop %v1374
  %v1439 = vtanh.pop %v1375
  %v1440 = vtanh.pop %v1376
  %v1441 = vtanh.pop %v1377
  %v1442 = vtanh.pop %v1378
  %v1443 = vtanh.pop %v1379
  %v1444 = vtanh.pop %v1380
  %v1445 = vtanh.pop %v1381
  %v1446 = vtanh.pop %v1382
  %v1447 = vtanh.pop %v1383
  %v1448 = vtanh.pop %v1384
  %v1449 = vtanh.pop %v1385
  %v1450 = vtanh.pop %v1386
  %v1451 = vtanh.pop %v1387
  %v1452 = vtanh.pop %v1388
  %v1453 = vtanh.pop %v1389
  %v1454 = vtanh.pop %v1390
  %v1455 = vtanh.pop %v1391
  %v1456 = vtanh.pop %v1392
  %v1457 = vtanh.pop %v1393
  %v1458 = vtanh.pop %v1394
  %v1459 = vtanh.pop %v1395
  %v1460 = vtanh.pop %v1396
  %v1461 = vtanh.pop %v1397
  %v1462 = vtanh.pop %v1398
  %v1463 = vtanh.pop %v1399
  %v1464 = vtanh.pop %v1400
  %v1465 = vtanh.pop %v1401
  %v1466 = vtanh.pop %v1402
  %v1467 = vtanh.pop %v1403
  %v1468 = vtanh.pop %v1404
  %v1469 = vadd.f32 %v1405, 1.0
  %v1470 = vadd.f32 %v1406, 1.0
  %v1471 = vadd.f32 %v1407, 1.0
  %v1472 = vadd.f32 %v1408, 1.0
  %v1473 = vadd.f32 %v1409, 1.0
  %v1474 = vadd.f32 %v1410, 1.0
  %v1475 = vadd.f32 %v1411, 1.0
  %v1476 = vadd.f32 %v1412, 1.0
  %v1477 = vadd.f32 %v1413, 1.0
  %v1478 = vadd.f32 %v1414, 1.0
  %v1479 = vadd.f32 %v1415, 1.0
  %v1480 = vadd.f32 %v1416, 1.0
  %v1481 = vadd.f32 %v1417, 1.0
  %v1482 = vadd.f32 %v1418, 1.0
  %v1483 = vadd.f32 %v1419, 1.0
  %v1484 = vadd.f32 %v1420, 1.0
  %v1485 = vadd.f32 %v1421, 1.0
  %v1486 = vadd.f32 %v1422, 1.0
  %v1487 = vadd.f32 %v1423, 1.0
  %v1488 = vadd.f32 %v1424, 1.0
  %v1489 = vadd.f32 %v1425, 1.0
  %v1490 = vadd.f32 %v1426, 1.0
  %v1491 = vadd.f32 %v1427, 1.0
  %v1492 = vadd.f32 %v1428, 1.0
  %v1493 = vadd.f32 %v1429, 1.0
  %v1494 = vadd.f32 %v1430, 1.0
  %v1495 = vadd.f32 %v1431, 1.0
  %v1496 = vadd.f32 %v1432, 1.0
  %v1497 = vadd.f32 %v1433, 1.0
  %v1498 = vadd.f32 %v1434, 1.0
  %v1499 = vadd.f32 %v1435, 1.0
  %v1500 = vadd.f32 %v1436, 1.0
  %v1501 = vadd.f32 %v1437, 1.0
  %v1502 = vadd.f32 %v1438, 1.0
  %v1503 = vadd.f32 %v1439, 1.0
  %v1504 = vadd.f32 %v1440, 1.0
  %v1505 = vadd.f32 %v1441, 1.0
  %v1506 = vadd.f32 %v1442, 1.0
  %v1507 = vadd.f32 %v1443, 1.0
  %v1508 = vadd.f32 %v1444, 1.0
  %v1509 = vadd.f32 %v1445, 1.0
  %v1510 = vadd.f32 %v1446, 1.0
  %v1511 = vadd.f32 %v1447, 1.0
  %v1512 = vadd.f32 %v1448, 1.0
  %v1513 = vadd.f32 %v1449, 1.0
  %v1514 = vadd.f32 %v1450, 1.0
  %v1515 = vadd.f32 %v1451, 1.0
  %v1516 = vadd.f32 %v1452, 1.0
  %v1517 = vadd.f32 %v1453, 1.0
  %v1518 = vadd.f32 %v1454, 1.0
  %v1519 = vadd.f32 %v1455, 1.0
  %v1520 = vadd.f32 %v1456, 1.0
  %v1521 = vadd.f32 %v1457, 1.0
  %v1522 = vadd.f32 %v1458, 1.0
  %v1523 = vadd.f32 %v1459, 1.0
  %v1524 = vadd.f32 %v1460, 1.0
  %v1525 = vadd.f32 %v1461, 1.0
  %v1526 = vadd.f32 %v1462, 1.0
  %v1527 = vadd.f32 %v1463, 1.0
  %v1528 = vadd.f32 %v1464, 1.0
  %v1529 = vadd.f32 %v1465, 1.0
  %v1530 = vadd.f32 %v1466, 1.0
  %v1531 = vadd.f32 %v1467, 1.0
  %v1532 = vadd.f32 %v1468, 1.0
  %v1533 = vmul.f32 %v1469, 0.5
  %v1534 = vmul.f32 %v1470, 0.5
  %v1535 = vmul.f32 %v1471, 0.5
  %v1536 = vmul.f32 %v1472, 0.5
  %v1537 = vmul.f32 %v1473, 0.5
  %v1538 = vmul.f32 %v1474, 0.5
  %v1539 = vmul.f32 %v1475, 0.5
  %v1540 = vmul.f32 %v1476, 0.5
  %v1541 = vmul.f32 %v1477, 0.5
  %v1542 = vmul.f32 %v1478, 0.5
  %v1543 = vmul.f32 %v1479, 0.5
  %v1544 = vmul.f32 %v1480, 0.5
  %v1545 = vmul.f32 %v1481, 0.5
  %v1546 = vmul.f32 %v1482, 0.5
  %v1547 = vmul.f32 %v1483, 0.5
  %v1548 = vmul.f32 %v1484, 0.5
  %v1549 = vmul.f32 %v1485, 0.5
  %v1550 = vmul.f32 %v1486, 0.5
  %v1551 = vmul.f32 %v1487, 0.5
  %v1552 = vmul.f32 %v1488, 0.5
  %v1553 = vmul.f32 %v1489, 0.5
  %v1554 = vmul.f32 %v1490, 0.5
  %v1555 = vmul.f32 %v1491, 0.5
  %v1556 = vmul.f32 %v1492, 0.5
  %v1557 = vmul.f32 %v1493, 0.5
  %v1558 = vmul.f32 %v1494, 0.5
  %v1559 = vmul.f32 %v1495, 0.5
  %v1560 = vmul.f32 %v1496, 0.5
  %v1561 = vmul.f32 %v1497, 0.5
  %v1562 = vmul.f32 %v1498, 0.5
  %v1563 = vmul.f32 %v1499, 0.5
  %v1564 = vmul.f32 %v1500, 0.5
  %v1565 = vmul.f32 %v1501, 0.5
  %v1566 = vmul.f32 %v1502, 0.5
  %v1567 = vmul.f32 %v1503, 0.5
  %v1568 = vmul.f32 %v1504, 0.5
  %v1569 = vmul.f32 %v1505, 0.5
  %v1570 = vmul.f32 %v1506, 0.5
  %v1571 = vmul.f32 %v1507, 0.5
  %v1572 = vmul.f32 %v1508, 0.5
  %v1573 = vmul.f32 %v1509, 0.5
  %v1574 = vmul.f32 %v1510, 0.5
  %v1575 = vmul.f32 %v1511, 0.5
  %v1576 = vmul.f32 %v1512, 0.5
  %v1577 = vmul.f32 %v1513, 0.5
  %v1578 = vmul.f32 %v1514, 0.5
  %v1579 = vmul.f32 %v1515, 0.5
  %v1580 = vmul.f32 %v1516, 0.5
  %v1581 = vmul.f32 %v1517, 0.5
  %v1582 = vmul.f32 %v1518, 0.5
  %v1583 = vmul.f32 %v1519, 0.5
  %v1584 = vmul.f32 %v1520, 0.5
  %v1585 = vmul.f32 %v1521, 0.5
  %v1586 = vmul.f32 %v1522, 0.5
  %v1587 = vmul.f32 %v1523, 0.5
  %v1588 = vmul.f32 %v1524, 0.5
  %v1589 = vmul.f32 %v1525, 0.5
  %v1590 = vmul.f32 %v1526, 0.5
  %v1591 = vmul.f32 %v1527, 0.5
  %v1592 = vmul.f32 %v1528, 0.5
  %v1593 = vmul.f32 %v1529, 0.5
  %v1594 = vmul.f32 %v1530, 0.5
  %v1595 = vmul.f32 %v1531, 0.5
  %v1596 = vmul.f32 %v1532, 0.5
  %v1597 = vmul.f32 %v831, %v1533
  %v1598 = vmul.f32 %v834, %v1534
  %v1599 = vmul.f32 %v839, %v1535
  %v1600 = vmul.f32 %v842, %v1536
  %v1601 = vmul.f32 %v847, %v1537
  %v1602 = vmul.f32 %v850, %v1538
  %v1603 = vmul.f32 %v855, %v1539
  %v1604 = vmul.f32 %v858, %v1540
  %v1605 = vmul.f32 %v863, %v1541
  %v1606 = vmul.f32 %v866, %v1542
  %v1607 = vmul.f32 %v871, %v1543
  %v1608 = vmul.f32 %v874, %v1544
  %v1609 = vmul.f32 %v879, %v1545
  %v1610 = vmul.f32 %v882, %v1546
  %v1611 = vmul.f32 %v887, %v1547
  %v1612 = vmul.f32 %v890, %v1548
  %v1613 = vmul.f32 %v895, %v1549
  %v1614 = vmul.f32 %v898, %v1550
  %v1615 = vmul.f32 %v903, %v1551
  %v1616 = vmul.f32 %v906, %v1552
  %v1617 = vmul.f32 %v911, %v1553
  %v1618 = vmul.f32 %v914, %v1554
  %v1619 = vmul.f32 %v919, %v1555
  %v1620 = vmul.f32 %v922, %v1556
  %v1621 = vmul.f32 %v927, %v1557
  %v1622 = vmul.f32 %v930, %v1558
  %v1623 = vmul.f32 %v935, %v1559
  %v1624 = vmul.f32 %v938, %v1560
  %v1625 = vmul.f32 %v943, %v1561
  %v1626 = vmul.f32 %v946, %v1562
  %v1627 = vmul.f32 %v951, %v1563
  %v1628 = vmul.f32 %v954, %v1564
  %v1629 = vmul.f32 %v959, %v1565
  %v1630 = vmul.f32 %v962, %v1566
  %v1631 = vmul.f32 %v967, %v1567
  %v1632 = vmul.f32 %v970, %v1568
  %v1633 = vmul.f32 %v975, %v1569
  %v1634 = vmul.f32 %v978, %v1570
  %v1635 = vmul.f32 %v983, %v1571
  %v1636 = vmul.f32 %v986, %v1572
  %v1637 = vmul.f32 %v991, %v1573
  %v1638 = vmul.f32 %v994, %v1574
  %v1639 = vmul.f32 %v999, %v1575
  %v1640 = vmul.f32 %v1002, %v1576
  %v1641 = vmul.f32 %v1007, %v1577
  %v1642 = vmul.f32 %v1010, %v1578
  %v1643 = vmul.f32 %v1015, %v1579
  %v1644 = vmul.f32 %v1018, %v1580
  %v1645 = vmul.f32 %v1023, %v1581
  %v1646 = vmul.f32 %v1026, %v1582
  %v1647 = vmul.f32 %v1031, %v1583
  %v1648 = vmul.f32 %v1034, %v1584
  %v1649 = vmul.f32 %v1039, %v1585
  %v1650 = vmul.f32 %v1042, %v1586
  %v1651 = vmul.f32 %v1047, %v1587
  %v1652 = vmul.f32 %v1050, %v1588
  %v1653 = vmul.f32 %v1055, %v1589
  %v1654 = vmul.f32 %v1058, %v1590
  %v1655 = vmul.f32 %v1063, %v1591
  %v1656 = vmul.f32 %v1066, %v1592
  %v1657 = vmul.f32 %v1071, %v1593
  %v1658 = vmul.f32 %v1074, %v1594
  %v1659 = vmul.f32 %v1079, %v1595
  %v1660 = vmul.f32 %v1082, %v1596
  %v1661 = vld [vmem:[%s1 + $0x20] sm:$0xf]
  %v1662 = vld [vmem:[%s1 + $0x24] sm:$0xf]
  %v1663 = vld [vmem:[%s1 + $0x28] sm:$0xf]
  %v1664 = vld [vmem:[%s1 + $0x2c] sm:$0xf]
  %v1665 = vld [vmem:[%s2 + $0x2] sm:$0x1]
  %v1666 = vpack.c.bf16 %v1598, %v1597
  %v1667 = vpack.c.bf16 %v1600, %v1599
  %v1668 = vpack.c.bf16 %v1602, %v1601
  %v1669 = vpack.c.bf16 %v1604, %v1603
  %v1670 = vpack.c.bf16 %v1606, %v1605
  %v1671 = vpack.c.bf16 %v1608, %v1607
  %v1672 = vpack.c.bf16 %v1610, %v1609
  %v1673 = vpack.c.bf16 %v1612, %v1611
  %v1674 = vpack.c.bf16 %v1614, %v1613
  %v1675 = vpack.c.bf16 %v1616, %v1615
  %v1676 = vpack.c.bf16 %v1618, %v1617
  %v1677 = vpack.c.bf16 %v1620, %v1619
  %v1678 = vpack.c.bf16 %v1622, %v1621
  %v1679 = vpack.c.bf16 %v1624, %v1623
  %v1680 = vpack.c.bf16 %v1626, %v1625
  %v1681 = vpack.c.bf16 %v1628, %v1627
  %v1682 = vpack.c.bf16 %v1630, %v1629
  %v1683 = vpack.c.bf16 %v1632, %v1631
  %v1684 = vpack.c.bf16 %v1634, %v1633
  %v1685 = vpack.c.bf16 %v1636, %v1635
  %v1686 = vpack.c.bf16 %v1638, %v1637
  %v1687 = vpack.c.bf16 %v1640, %v1639
  %v1688 = vpack.c.bf16 %v1642, %v1641
  %v1689 = vpack.c.bf16 %v1644, %v1643
  %v1690 = vpack.c.bf16 %v1646, %v1645
  %v1691 = vpack.c.bf16 %v1648, %v1647
  %v1692 = vpack.c.bf16 %v1650, %v1649
  %v1693 = vpack.c.bf16 %v1652, %v1651
  %v1694 = vpack.c.bf16 %v1654, %v1653
  %v1695 = vpack.c.bf16 %v1656, %v1655
  %v1696 = vpack.c.bf16 %v1658, %v1657
  %v1697 = vpack.c.bf16 %v1660, %v1659
  %v1698 = vlaneseq
  %v1699 = vshrl.u32 %v1698, 7
  %v1700 = vsub.s32 0, %v1699
  %v1701 = vrot.slane %v1665, %v1700
  %v1706 = vunpack.c.l.b16 %v1661
  %v1707 = vunpack.c.l.b16 %v1662
  %v1708 = vunpack.c.l.b16 %v1663
  %v1709 = vunpack.c.l.b16 %v1664
  %v1710 = vpack.c.b16 %v1707, %v1706
  %v1711 = vpack.c.b16 %v1709, %v1708
  %v1715 = vsel %vm699, %v1666, 0
  %v1718 = vsel %vm699, %v1667, 0
  %v1721 = vsel %vm699, %v1668, 0
  %v1724 = vsel %vm699, %v1669, 0
  %v1727 = vsel %vm699, %v1670, 0
  %v1730 = vsel %vm699, %v1671, 0
  %v1733 = vsel %vm699, %v1672, 0
  %v1736 = vsel %vm699, %v1673, 0
  %v1739 = vsel %vm699, %v1674, 0
  %v1742 = vsel %vm699, %v1675, 0
  %v1745 = vsel %vm699, %v1676, 0
  %v1748 = vsel %vm699, %v1677, 0
  %v1751 = vsel %vm699, %v1678, 0
  %v1754 = vsel %vm699, %v1679, 0
  %v1757 = vsel %vm699, %v1680, 0
  %v1760 = vsel %vm699, %v1681, 0
  %v1763 = vsel %vm699, %v1682, 0
  %v1766 = vsel %vm699, %v1683, 0
  %v1769 = vsel %vm699, %v1684, 0
  %v1772 = vsel %vm699, %v1685, 0
  %v1775 = vsel %vm699, %v1686, 0
  %v1778 = vsel %vm699, %v1687, 0
  %v1781 = vsel %vm699, %v1688, 0
  %v1784 = vsel %vm699, %v1689, 0
  %v1787 = vsel %vm699, %v1690, 0
  %v1790 = vsel %vm699, %v1691, 0
  %v1793 = vsel %vm699, %v1692, 0
  %v1796 = vsel %vm699, %v1693, 0
  %v1799 = vsel %vm699, %v1694, 0
  %v1802 = vsel %vm699, %v1695, 0
  %v1805 = vsel %vm699, %v1696, 0
  %v1808 = vsel %vm699, %v1697, 0
  %1810 = vmatprep.subr.bf16.mxu0 0
  %1811 = vmatpush1.bf16.msra.mxu0 %v1710
  %1812 = vmatprep.subr.bf16.mxu0 0
  %1813 = vmatpush1.bf16.msra.mxu0 %v1711
  %1814 = vmatprep.subr.bf16.mxu0 0
  %1815 = vmatpush1.bf16.msra.mxu0 0
  %1816 = vmatprep.subr.bf16.mxu0 0
  %1817 = vmatpush1.bf16.msra.mxu0 0
  %1818 = vmatprep.subr.bf16.mxu0 0
  %1819 = vmatpush1.bf16.msra.mxu0 0
  %1820 = vmatprep.subr.bf16.mxu0 0
  %1821 = vmatpush1.bf16.msra.mxu0 0
  %1822 = vmatprep.subr.bf16.mxu0 0
  %1823 = vmatpush1.bf16.msra.mxu0 0
  %1824 = vmatprep.subr.bf16.mxu0 0
  %1825 = vmatpush1.bf16.msra.mxu0 0
  %1826 = vmatprep.subr.bf16.mxu0 0
  %1827 = vmatpush1.bf16.msra.mxu0 0
  %1828 = vmatprep.subr.bf16.mxu0 0
  %1829 = vmatpush1.bf16.msra.mxu0 0
  %1830 = vmatprep.subr.bf16.mxu0 0
  %1831 = vmatpush1.bf16.msra.mxu0 0
  %1832 = vmatprep.subr.bf16.mxu0 0
  %1833 = vmatpush1.bf16.msra.mxu0 0
  %1834 = vmatprep.subr.bf16.mxu0 0
  %1835 = vmatpush1.bf16.msra.mxu0 0
  %1836 = vmatprep.subr.bf16.mxu0 0
  %1837 = vmatpush1.bf16.msra.mxu0 0
  %1838 = vmatprep.subr.bf16.mxu0 0
  %1839 = vmatpush1.bf16.msra.mxu0 0
  %1840 = vmatprep.subr.bf16.mxu0 0
  %1841 = vmatpush1.bf16.msra.mxu0 0
  %1842 = vmatprep.mubr.bf16.mxu0 0
  %1843 = vmatmul.mubr.bf16.gmra.mrb[0].mxu0 %v1715
  %v1844 = vpop.f32.mrb[0].mxu0
  %v1845 = vadd.f32 %v1701, %v1844
  %v1846 = vpop.f32.mrb[0].mxu0
  %v1847 = vpop.f32.mrb[0].mxu0
  %v1848 = vadd.f32 %v1701, %v1847
  %v1849 = vpop.f32.mrb[0].mxu0
  %1850 = vmatprep.mubr.bf16.mxu0 0
  %1851 = vmatmul.mubr.bf16.gmra.mrb[0].mxu0 %v1718
  %v1852 = vpop.f32.mrb[0].mxu0
  %v1853 = vadd.f32 %v1701, %v1852
  %v1854 = vpop.f32.mrb[0].mxu0
  %v1855 = vpop.f32.mrb[0].mxu0
  %v1856 = vadd.f32 %v1701, %v1855
  %v1857 = vpop.f32.mrb[0].mxu0
  %1858 = vmatprep.mubr.bf16.mxu0 0
  %1859 = vmatmul.mubr.bf16.gmra.mrb[0].mxu0 %v1721
  %v1860 = vpop.f32.mrb[0].mxu0
  %v1861 = vadd.f32 %v1701, %v1860
  %v1862 = vpop.f32.mrb[0].mxu0
  %v1863 = vpop.f32.mrb[0].mxu0
  %v1864 = vadd.f32 %v1701, %v1863
  %v1865 = vpop.f32.mrb[0].mxu0
  %1866 = vmatprep.mubr.bf16.mxu0 0
  %1867 = vmatmul.mubr.bf16.gmra.mrb[0].mxu0 %v1724
  %v1868 = vpop.f32.mrb[0].mxu0
  %v1869 = vadd.f32 %v1701, %v1868
  %v1870 = vpop.f32.mrb[0].mxu0
  %v1871 = vpop.f32.mrb[0].mxu0
  %v1872 = vadd.f32 %v1701, %v1871
  %v1873 = vpop.f32.mrb[0].mxu0
  %1874 = vmatprep.mubr.bf16.mxu0 0
  %1875 = vmatmul.mubr.bf16.gmra.mrb[0].mxu0 %v1727
  %v1876 = vpop.f32.mrb[0].mxu0
  %v1877 = vadd.f32 %v1701, %v1876
  %v1878 = vpop.f32.mrb[0].mxu0
  %v1879 = vpop.f32.mrb[0].mxu0
  %v1880 = vadd.f32 %v1701, %v1879
  %v1881 = vpop.f32.mrb[0].mxu0
  %1882 = vmatprep.mubr.bf16.mxu0 0
  %1883 = vmatmul.mubr.bf16.gmra.mrb[0].mxu0 %v1730
  %v1884 = vpop.f32.mrb[0].mxu0
  %v1885 = vadd.f32 %v1701, %v1884
  %v1886 = vpop.f32.mrb[0].mxu0
  %v1887 = vpop.f32.mrb[0].mxu0
  %v1888 = vadd.f32 %v1701, %v1887
  %v1889 = vpop.f32.mrb[0].mxu0
  %1890 = vmatprep.mubr.bf16.mxu0 0
  %1891 = vmatmul.mubr.bf16.gmra.mrb[0].mxu0 %v1733
  %v1892 = vpop.f32.mrb[0].mxu0
  %v1893 = vadd.f32 %v1701, %v1892
  %v1894 = vpop.f32.mrb[0].mxu0
  %v1895 = vpop.f32.mrb[0].mxu0
  %v1896 = vadd.f32 %v1701, %v1895
  %v1897 = vpop.f32.mrb[0].mxu0
  %1898 = vmatprep.mubr.bf16.mxu0 0
  %1899 = vmatmul.mubr.bf16.gmra.mrb[0].mxu0 %v1736
  %v1900 = vpop.f32.mrb[0].mxu0
  %v1901 = vadd.f32 %v1701, %v1900
  %v1902 = vpop.f32.mrb[0].mxu0
  %v1903 = vpop.f32.mrb[0].mxu0
  %v1904 = vadd.f32 %v1701, %v1903
  %v1905 = vpop.f32.mrb[0].mxu0
  %1906 = vmatprep.mubr.bf16.mxu0 0
  %1907 = vmatmul.mubr.bf16.gmra.mrb[0].mxu0 %v1739
  %v1908 = vpop.f32.mrb[0].mxu0
  %v1909 = vadd.f32 %v1701, %v1908
  %v1910 = vpop.f32.mrb[0].mxu0
  %v1911 = vpop.f32.mrb[0].mxu0
  %v1912 = vadd.f32 %v1701, %v1911
  %v1913 = vpop.f32.mrb[0].mxu0
  %1914 = vmatprep.mubr.bf16.mxu0 0
  %1915 = vmatmul.mubr.bf16.gmra.mrb[0].mxu0 %v1742
  %v1916 = vpop.f32.mrb[0].mxu0
  %v1917 = vadd.f32 %v1701, %v1916
  %v1918 = vpop.f32.mrb[0].mxu0
  %v1919 = vpop.f32.mrb[0].mxu0
  %v1920 = vadd.f32 %v1701, %v1919
  %v1921 = vpop.f32.mrb[0].mxu0
  %1922 = vmatprep.mubr.bf16.mxu0 0
  %1923 = vmatmul.mubr.bf16.gmra.mrb[0].mxu0 %v1745
  %v1924 = vpop.f32.mrb[0].mxu0
  %v1925 = vadd.f32 %v1701, %v1924
  %v1926 = vpop.f32.mrb[0].mxu0
  %v1927 = vpop.f32.mrb[0].mxu0
  %v1928 = vadd.f32 %v1701, %v1927
  %v1929 = vpop.f32.mrb[0].mxu0
  %1930 = vmatprep.mubr.bf16.mxu0 0
  %1931 = vmatmul.mubr.bf16.gmra.mrb[0].mxu0 %v1748
  %v1932 = vpop.f32.mrb[0].mxu0
  %v1933 = vadd.f32 %v1701, %v1932
  %v1934 = vpop.f32.mrb[0].mxu0
  %v1935 = vpop.f32.mrb[0].mxu0
  %v1936 = vadd.f32 %v1701, %v1935
  %v1937 = vpop.f32.mrb[0].mxu0
  %1938 = vmatprep.mubr.bf16.mxu0 0
  %1939 = vmatmul.mubr.bf16.gmra.mrb[0].mxu0 %v1751
  %v1940 = vpop.f32.mrb[0].mxu0
  %v1941 = vadd.f32 %v1701, %v1940
  %v1942 = vpop.f32.mrb[0].mxu0
  %v1943 = vpop.f32.mrb[0].mxu0
  %v1944 = vadd.f32 %v1701, %v1943
  %v1945 = vpop.f32.mrb[0].mxu0
  %1946 = vmatprep.mubr.bf16.mxu0 0
  %1947 = vmatmul.mubr.bf16.gmra.mrb[0].mxu0 %v1754
  %v1948 = vpop.f32.mrb[0].mxu0
  %v1949 = vadd.f32 %v1701, %v1948
  %v1950 = vpop.f32.mrb[0].mxu0
  %v1951 = vpop.f32.mrb[0].mxu0
  %v1952 = vadd.f32 %v1701, %v1951
  %v1953 = vpop.f32.mrb[0].mxu0
  %1954 = vmatprep.mubr.bf16.mxu0 0
  %1955 = vmatmul.mubr.bf16.gmra.mrb[0].mxu0 %v1757
  %v1956 = vpop.f32.mrb[0].mxu0
  %v1957 = vadd.f32 %v1701, %v1956
  %v1958 = vpop.f32.mrb[0].mxu0
  %v1959 = vpop.f32.mrb[0].mxu0
  %v1960 = vadd.f32 %v1701, %v1959
  %v1961 = vpop.f32.mrb[0].mxu0
  %1962 = vmatprep.mubr.bf16.mxu0 0
  %1963 = vmatmul.mubr.bf16.gmra.mrb[0].mxu0 %v1760
  %v1964 = vpop.f32.mrb[0].mxu0
  %v1965 = vadd.f32 %v1701, %v1964
  %v1966 = vpop.f32.mrb[0].mxu0
  %v1967 = vpop.f32.mrb[0].mxu0
  %v1968 = vadd.f32 %v1701, %v1967
  %v1969 = vpop.f32.mrb[0].mxu0
  %1970 = vmatprep.mubr.bf16.mxu0 0
  %1971 = vmatmul.mubr.bf16.gmra.mrb[0].mxu0 %v1763
  %v1972 = vpop.f32.mrb[0].mxu0
  %v1973 = vadd.f32 %v1701, %v1972
  %v1974 = vpop.f32.mrb[0].mxu0
  %v1975 = vpop.f32.mrb[0].mxu0
  %v1976 = vadd.f32 %v1701, %v1975
  %v1977 = vpop.f32.mrb[0].mxu0
  %1978 = vmatprep.mubr.bf16.mxu0 0
  %1979 = vmatmul.mubr.bf16.gmra.mrb[0].mxu0 %v1766
  %v1980 = vpop.f32.mrb[0].mxu0
  %v1981 = vadd.f32 %v1701, %v1980
  %v1982 = vpop.f32.mrb[0].mxu0
  %v1983 = vpop.f32.mrb[0].mxu0
  %v1984 = vadd.f32 %v1701, %v1983
  %v1985 = vpop.f32.mrb[0].mxu0
  %1986 = vmatprep.mubr.bf16.mxu0 0
  %1987 = vmatmul.mubr.bf16.gmra.mrb[0].mxu0 %v1769
  %v1988 = vpop.f32.mrb[0].mxu0
  %v1989 = vadd.f32 %v1701, %v1988
  %v1990 = vpop.f32.mrb[0].mxu0
  %v1991 = vpop.f32.mrb[0].mxu0
  %v1992 = vadd.f32 %v1701, %v1991
  %v1993 = vpop.f32.mrb[0].mxu0
  %1994 = vmatprep.mubr.bf16.mxu0 0
  %1995 = vmatmul.mubr.bf16.gmra.mrb[0].mxu0 %v1772
  %v1996 = vpop.f32.mrb[0].mxu0
  %v1997 = vadd.f32 %v1701, %v1996
  %v1998 = vpop.f32.mrb[0].mxu0
  %v1999 = vpop.f32.mrb[0].mxu0
  %v2000 = vadd.f32 %v1701, %v1999
  %v2001 = vpop.f32.mrb[0].mxu0
  %2002 = vmatprep.mubr.bf16.mxu0 0
  %2003 = vmatmul.mubr.bf16.gmra.mrb[0].mxu0 %v1775
  %v2004 = vpop.f32.mrb[0].mxu0
  %v2005 = vadd.f32 %v1701, %v2004
  %v2006 = vpop.f32.mrb[0].mxu0
  %v2007 = vpop.f32.mrb[0].mxu0
  %v2008 = vadd.f32 %v1701, %v2007
  %v2009 = vpop.f32.mrb[0].mxu0
  %2010 = vmatprep.mubr.bf16.mxu0 0
  %2011 = vmatmul.mubr.bf16.gmra.mrb[0].mxu0 %v1778
  %v2012 = vpop.f32.mrb[0].mxu0
  %v2013 = vadd.f32 %v1701, %v2012
  %v2014 = vpop.f32.mrb[0].mxu0
  %v2015 = vpop.f32.mrb[0].mxu0
  %v2016 = vadd.f32 %v1701, %v2015
  %v2017 = vpop.f32.mrb[0].mxu0
  %2018 = vmatprep.mubr.bf16.mxu0 0
  %2019 = vmatmul.mubr.bf16.gmra.mrb[0].mxu0 %v1781
  %v2020 = vpop.f32.mrb[0].mxu0
  %v2021 = vadd.f32 %v1701, %v2020
  %v2022 = vpop.f32.mrb[0].mxu0
  %v2023 = vpop.f32.mrb[0].mxu0
  %v2024 = vadd.f32 %v1701, %v2023
  %v2025 = vpop.f32.mrb[0].mxu0
  %2026 = vmatprep.mubr.bf16.mxu0 0
  %2027 = vmatmul.mubr.bf16.gmra.mrb[0].mxu0 %v1784
  %v2028 = vpop.f32.mrb[0].mxu0
  %v2029 = vadd.f32 %v1701, %v2028
  %v2030 = vpop.f32.mrb[0].mxu0
  %v2031 = vpop.f32.mrb[0].mxu0
  %v2032 = vadd.f32 %v1701, %v2031
  %v2033 = vpop.f32.mrb[0].mxu0
  %2034 = vmatprep.mubr.bf16.mxu0 0
  %2035 = vmatmul.mubr.bf16.gmra.mrb[0].mxu0 %v1787
  %v2036 = vpop.f32.mrb[0].mxu0
  %v2037 = vadd.f32 %v1701, %v2036
  %v2038 = vpop.f32.mrb[0].mxu0
  %v2039 = vpop.f32.mrb[0].mxu0
  %v2040 = vadd.f32 %v1701, %v2039
  %v2041 = vpop.f32.mrb[0].mxu0
  %2042 = vmatprep.mubr.bf16.mxu0 0
  %2043 = vmatmul.mubr.bf16.gmra.mrb[0].mxu0 %v1790
  %v2044 = vpop.f32.mrb[0].mxu0
  %v2045 = vadd.f32 %v1701, %v2044
  %v2046 = vpop.f32.mrb[0].mxu0
  %v2047 = vpop.f32.mrb[0].mxu0
  %v2048 = vadd.f32 %v1701, %v2047
  %v2049 = vpop.f32.mrb[0].mxu0
  %2050 = vmatprep.mubr.bf16.mxu0 0
  %2051 = vmatmul.mubr.bf16.gmra.mrb[0].mxu0 %v1793
  %v2052 = vpop.f32.mrb[0].mxu0
  %v2053 = vadd.f32 %v1701, %v2052
  %v2054 = vpop.f32.mrb[0].mxu0
  %v2055 = vpop.f32.mrb[0].mxu0
  %v2056 = vadd.f32 %v1701, %v2055
  %v2057 = vpop.f32.mrb[0].mxu0
  %2058 = vmatprep.mubr.bf16.mxu0 0
  %2059 = vmatmul.mubr.bf16.gmra.mrb[0].mxu0 %v1796
  %v2060 = vpop.f32.mrb[0].mxu0
  %v2061 = vadd.f32 %v1701, %v2060
  %v2062 = vpop.f32.mrb[0].mxu0
  %v2063 = vpop.f32.mrb[0].mxu0
  %v2064 = vadd.f32 %v1701, %v2063
  %v2065 = vpop.f32.mrb[0].mxu0
  %2066 = vmatprep.mubr.bf16.mxu0 0
  %2067 = vmatmul.mubr.bf16.gmra.mrb[0].mxu0 %v1799
  %v2068 = vpop.f32.mrb[0].mxu0
  %v2069 = vadd.f32 %v1701, %v2068
  %v2070 = vpop.f32.mrb[0].mxu0
  %v2071 = vpop.f32.mrb[0].mxu0
  %v2072 = vadd.f32 %v1701, %v2071
  %v2073 = vpop.f32.mrb[0].mxu0
  %2074 = vmatprep.mubr.bf16.mxu0 0
  %2075 = vmatmul.mubr.bf16.gmra.mrb[0].mxu0 %v1802
  %v2076 = vpop.f32.mrb[0].mxu0
  %v2077 = vadd.f32 %v1701, %v2076
  %v2078 = vpop.f32.mrb[0].mxu0
  %v2079 = vpop.f32.mrb[0].mxu0
  %v2080 = vadd.f32 %v1701, %v2079
  %v2081 = vpop.f32.mrb[0].mxu0
  %2082 = vmatprep.mubr.bf16.mxu0 0
  %2083 = vmatmul.mubr.bf16.gmra.mrb[0].mxu0 %v1805
  %v2084 = vpop.f32.mrb[0].mxu0
  %v2085 = vadd.f32 %v1701, %v2084
  %v2086 = vpop.f32.mrb[0].mxu0
  %v2087 = vpop.f32.mrb[0].mxu0
  %v2088 = vadd.f32 %v1701, %v2087
  %v2089 = vpop.f32.mrb[0].mxu0
  %2090 = vmatprep.mubr.bf16.mxu0 0
  %2091 = vmatmul.mubr.bf16.gmra.mrb[0].mxu0 %v1808
  %v2092 = vpop.f32.mrb[0].mxu0
  %v2093 = vadd.f32 %v1701, %v2092
  %v2094 = vpop.f32.mrb[0].mxu0
  %v2095 = vpop.f32.mrb[0].mxu0
  %v2096 = vadd.f32 %v1701, %v2095
  %v2097 = vpop.f32.mrb[0].mxu0
  %2098 = vdwg.mxu0
  %v2099 = vadd.f32 %v392, %v1845
  %v2100 = vadd.f32 %v395, %v1848
  %v2101 = vadd.f32 %v400, %v1853
  %v2102 = vadd.f32 %v403, %v1856
  %v2103 = vadd.f32 %v408, %v1861
  %v2104 = vadd.f32 %v411, %v1864
  %v2105 = vadd.f32 %v416, %v1869
  %v2106 = vadd.f32 %v419, %v1872
  %v2107 = vadd.f32 %v424, %v1877
  %v2108 = vadd.f32 %v427, %v1880
  %v2109 = vadd.f32 %v432, %v1885
  %v2110 = vadd.f32 %v435, %v1888
  %v2111 = vadd.f32 %v440, %v1893
  %v2112 = vadd.f32 %v443, %v1896
  %v2113 = vadd.f32 %v448, %v1901
  %v2114 = vadd.f32 %v451, %v1904
  %v2115 = vadd.f32 %v456, %v1909
  %v2116 = vadd.f32 %v459, %v1912
  %v2117 = vadd.f32 %v464, %v1917
  %v2118 = vadd.f32 %v467, %v1920
  %v2119 = vadd.f32 %v472, %v1925
  %v2120 = vadd.f32 %v475, %v1928
  %v2121 = vadd.f32 %v480, %v1933
  %v2122 = vadd.f32 %v483, %v1936
  %v2123 = vadd.f32 %v488, %v1941
  %v2124 = vadd.f32 %v491, %v1944
  %v2125 = vadd.f32 %v496, %v1949
  %v2126 = vadd.f32 %v499, %v1952
  %v2127 = vadd.f32 %v504, %v1957
  %v2128 = vadd.f32 %v507, %v1960
  %v2129 = vadd.f32 %v512, %v1965
  %v2130 = vadd.f32 %v515, %v1968
  %v2131 = vadd.f32 %v520, %v1973
  %v2132 = vadd.f32 %v523, %v1976
  %v2133 = vadd.f32 %v528, %v1981
  %v2134 = vadd.f32 %v531, %v1984
  %v2135 = vadd.f32 %v536, %v1989
  %v2136 = vadd.f32 %v539, %v1992
  %v2137 = vadd.f32 %v544, %v1997
  %v2138 = vadd.f32 %v547, %v2000
  %v2139 = vadd.f32 %v552, %v2005
  %v2140 = vadd.f32 %v555, %v2008
  %v2141 = vadd.f32 %v560, %v2013
  %v2142 = vadd.f32 %v563, %v2016
  %v2143 = vadd.f32 %v568, %v2021
  %v2144 = vadd.f32 %v571, %v2024
  %v2145 = vadd.f32 %v576, %v2029
  %v2146 = vadd.f32 %v579, %v2032
  %v2147 = vadd.f32 %v584, %v2037
  %v2148 = vadd.f32 %v587, %v2040
  %v2149 = vadd.f32 %v592, %v2045
  %v2150 = vadd.f32 %v595, %v2048
  %v2151 = vadd.f32 %v600, %v2053
  %v2152 = vadd.f32 %v603, %v2056
  %v2153 = vadd.f32 %v608, %v2061
  %v2154 = vadd.f32 %v611, %v2064
  %v2155 = vadd.f32 %v616, %v2069
  %v2156 = vadd.f32 %v619, %v2072
  %v2157 = vadd.f32 %v624, %v2077
  %v2158 = vadd.f32 %v627, %v2080
  %v2159 = vadd.f32 %v632, %v2085
  %v2160 = vadd.f32 %v635, %v2088
  %v2161 = vadd.f32 %v640, %v2093
  %v2162 = vadd.f32 %v643, %v2096
  %v2163 = vld [vmem:[%s1 + $0x30] sm:$0xf]
  %v2164 = vld [vmem:[%s1 + $0x34] sm:$0xf]
  %v2165 = vld [vmem:[%s1 + $0x38] sm:$0xf]
  %v2166 = vld [vmem:[%s1 + $0x3c] sm:$0xf]
  %v2167 = vld [vmem:[%s2 + $0x3] sm:$0x1]
  %v2168 = vpack.c.bf16 %v2100, %v2099
  %v2169 = vpack.c.bf16 %v2102, %v2101
  %v2170 = vpack.c.bf16 %v2104, %v2103
  %v2171 = vpack.c.bf16 %v2106, %v2105
  %v2172 = vpack.c.bf16 %v2108, %v2107
  %v2173 = vpack.c.bf16 %v2110, %v2109
  %v2174 = vpack.c.bf16 %v2112, %v2111
  %v2175 = vpack.c.bf16 %v2114, %v2113
  %v2176 = vpack.c.bf16 %v2116, %v2115
  %v2177 = vpack.c.bf16 %v2118, %v2117
  %v2178 = vpack.c.bf16 %v2120, %v2119
  %v2179 = vpack.c.bf16 %v2122, %v2121
  %v2180 = vpack.c.bf16 %v2124, %v2123
  %v2181 = vpack.c.bf16 %v2126, %v2125
  %v2182 = vpack.c.bf16 %v2128, %v2127
  %v2183 = vpack.c.bf16 %v2130, %v2129
  %v2184 = vpack.c.bf16 %v2132, %v2131
  %v2185 = vpack.c.bf16 %v2134, %v2133
  %v2186 = vpack.c.bf16 %v2136, %v2135
  %v2187 = vpack.c.bf16 %v2138, %v2137
  %v2188 = vpack.c.bf16 %v2140, %v2139
  %v2189 = vpack.c.bf16 %v2142, %v2141
  %v2190 = vpack.c.bf16 %v2144, %v2143
  %v2191 = vpack.c.bf16 %v2146, %v2145
  %v2192 = vpack.c.bf16 %v2148, %v2147
  %v2193 = vpack.c.bf16 %v2150, %v2149
  %v2194 = vpack.c.bf16 %v2152, %v2151
  %v2195 = vpack.c.bf16 %v2154, %v2153
  %v2196 = vpack.c.bf16 %v2156, %v2155
  %v2197 = vpack.c.bf16 %v2158, %v2157
  %v2198 = vpack.c.bf16 %v2160, %v2159
  %v2199 = vpack.c.bf16 %v2162, %v2161
  %v2200 = vlaneseq
  %v2201 = vshrl.u32 %v2200, 7
  %v2202 = vsub.s32 0, %v2201
  %v2203 = vrot.slane %v2167, %v2202
  %v2208 = vunpack.c.l.b16 %v2163
  %v2209 = vunpack.c.l.b16 %v2164
  %v2210 = vunpack.c.l.b16 %v2165
  %v2211 = vunpack.c.l.b16 %v2166
  %v2212 = vpack.c.b16 %v2209, %v2208
  %v2213 = vpack.c.b16 %v2211, %v2210
  %v2217 = vsel %vm699, %v2168, 0
  %v2220 = vsel %vm699, %v2169, 0
  %v2223 = vsel %vm699, %v2170, 0
  %v2226 = vsel %vm699, %v2171, 0
  %v2229 = vsel %vm699, %v2172, 0
  %v2232 = vsel %vm699, %v2173, 0
  %v2235 = vsel %vm699, %v2174, 0
  %v2238 = vsel %vm699, %v2175, 0
  %v2241 = vsel %vm699, %v2176, 0
  %v2244 = vsel %vm699, %v2177, 0
  %v2247 = vsel %vm699, %v2178, 0
  %v2250 = vsel %vm699, %v2179, 0
  %v2253 = vsel %vm699, %v2180, 0
  %v2256 = vsel %vm699, %v2181, 0
  %v2259 = vsel %vm699, %v2182, 0
  %v2262 = vsel %vm699, %v2183, 0
  %v2265 = vsel %vm699, %v2184, 0
  %v2268 = vsel %vm699, %v2185, 0
  %v2271 = vsel %vm699, %v2186, 0
  %v2274 = vsel %vm699, %v2187, 0
  %v2277 = vsel %vm699, %v2188, 0
  %v2280 = vsel %vm699, %v2189, 0
  %v2283 = vsel %vm699, %v2190, 0
  %v2286 = vsel %vm699, %v2191, 0
  %v2289 = vsel %vm699, %v2192, 0
  %v2292 = vsel %vm699, %v2193, 0
  %v2295 = vsel %vm699, %v2194, 0
  %v2298 = vsel %vm699, %v2195, 0
  %v2301 = vsel %vm699, %v2196, 0
  %v2304 = vsel %vm699, %v2197, 0
  %v2307 = vsel %vm699, %v2198, 0
  %v2310 = vsel %vm699, %v2199, 0
  %2312 = vmatprep.subr.bf16.mxu0 0
  %2313 = vmatpush1.bf16.msra.mxu0 %v2212
  %2314 = vmatprep.subr.bf16.mxu0 0
  %2315 = vmatpush1.bf16.msra.mxu0 %v2213
  %2316 = vmatprep.subr.bf16.mxu0 0
  %2317 = vmatpush1.bf16.msra.mxu0 0
  %2318 = vmatprep.subr.bf16.mxu0 0
  %2319 = vmatpush1.bf16.msra.mxu0 0
  %2320 = vmatprep.subr.bf16.mxu0 0
  %2321 = vmatpush1.bf16.msra.mxu0 0
  %2322 = vmatprep.subr.bf16.mxu0 0
  %2323 = vmatpush1.bf16.msra.mxu0 0
  %2324 = vmatprep.subr.bf16.mxu0 0
  %2325 = vmatpush1.bf16.msra.mxu0 0
  %2326 = vmatprep.subr.bf16.mxu0 0
  %2327 = vmatpush1.bf16.msra.mxu0 0
  %2328 = vmatprep.subr.bf16.mxu0 0
  %2329 = vmatpush1.bf16.msra.mxu0 0
  %2330 = vmatprep.subr.bf16.mxu0 0
  %2331 = vmatpush1.bf16.msra.mxu0 0
  %2332 = vmatprep.subr.bf16.mxu0 0
  %2333 = vmatpush1.bf16.msra.mxu0 0
  %2334 = vmatprep.subr.bf16.mxu0 0
  %2335 = vmatpush1.bf16.msra.mxu0 0
  %2336 = vmatprep.subr.bf16.mxu0 0
  %2337 = vmatpush1.bf16.msra.mxu0 0
  %2338 = vmatprep.subr.bf16.mxu0 0
  %2339 = vmatpush1.bf16.msra.mxu0 0
  %2340 = vmatprep.subr.bf16.mxu0 0
  %2341 = vmatpush1.bf16.msra.mxu0 0
  %2342 = vmatprep.subr.bf16.mxu0 0
  %2343 = vmatpush1.bf16.msra.mxu0 0
  %2344 = vmatprep.mubr.bf16.mxu0 0
  %2345 = vmatmul.mubr.bf16.gmra.mrb[0].mxu0 %v2217
  %v2346 = vpop.f32.mrb[0].mxu0
  %v2347 = vadd.f32 %v2203, %v2346
  %v2348 = vpop.f32.mrb[0].mxu0
  %v2349 = vpop.f32.mrb[0].mxu0
  %v2350 = vadd.f32 %v2203, %v2349
  %v2351 = vpop.f32.mrb[0].mxu0
  %2352 = vmatprep.mubr.bf16.mxu0 0
  %2353 = vmatmul.mubr.bf16.gmra.mrb[0].mxu0 %v2220
  %v2354 = vpop.f32.mrb[0].mxu0
  %v2355 = vadd.f32 %v2203, %v2354
  %v2356 = vpop.f32.mrb[0].mxu0
  %v2357 = vpop.f32.mrb[0].mxu0
  %v2358 = vadd.f32 %v2203, %v2357
  %v2359 = vpop.f32.mrb[0].mxu0
  %2360 = vmatprep.mubr.bf16.mxu0 0
  %2361 = vmatmul.mubr.bf16.gmra.mrb[0].mxu0 %v2223
  %v2362 = vpop.f32.mrb[0].mxu0
  %v2363 = vadd.f32 %v2203, %v2362
  %v2364 = vpop.f32.mrb[0].mxu0
  %v2365 = vpop.f32.mrb[0].mxu0
  %v2366 = vadd.f32 %v2203, %v2365
  %v2367 = vpop.f32.mrb[0].mxu0
  %2368 = vmatprep.mubr.bf16.mxu0 0
  %2369 = vmatmul.mubr.bf16.gmra.mrb[0].mxu0 %v2226
  %v2370 = vpop.f32.mrb[0].mxu0
  %v2371 = vadd.f32 %v2203, %v2370
  %v2372 = vpop.f32.mrb[0].mxu0
  %v2373 = vpop.f32.mrb[0].mxu0
  %v2374 = vadd.f32 %v2203, %v2373
  %v2375 = vpop.f32.mrb[0].mxu0
  %2376 = vmatprep.mubr.bf16.mxu0 0
  %2377 = vmatmul.mubr.bf16.gmra.mrb[0].mxu0 %v2229
  %v2378 = vpop.f32.mrb[0].mxu0
  %v2379 = vadd.f32 %v2203, %v2378
  %v2380 = vpop.f32.mrb[0].mxu0
  %v2381 = vpop.f32.mrb[0].mxu0
  %v2382 = vadd.f32 %v2203, %v2381
  %v2383 = vpop.f32.mrb[0].mxu0
  %2384 = vmatprep.mubr.bf16.mxu0 0
  %2385 = vmatmul.mubr.bf16.gmra.mrb[0].mxu0 %v2232
  %v2386 = vpop.f32.mrb[0].mxu0
  %v2387 = vadd.f32 %v2203, %v2386
  %v2388 = vpop.f32.mrb[0].mxu0
  %v2389 = vpop.f32.mrb[0].mxu0
  %v2390 = vadd.f32 %v2203, %v2389
  %v2391 = vpop.f32.mrb[0].mxu0
  %2392 = vmatprep.mubr.bf16.mxu0 0
  %2393 = vmatmul.mubr.bf16.gmra.mrb[0].mxu0 %v2235
  %v2394 = vpop.f32.mrb[0].mxu0
  %v2395 = vadd.f32 %v2203, %v2394
  %v2396 = vpop.f32.mrb[0].mxu0
  %v2397 = vpop.f32.mrb[0].mxu0
  %v2398 = vadd.f32 %v2203, %v2397
  %v2399 = vpop.f32.mrb[0].mxu0
  %2400 = vmatprep.mubr.bf16.mxu0 0
  %2401 = vmatmul.mubr.bf16.gmra.mrb[0].mxu0 %v2238
  %v2402 = vpop.f32.mrb[0].mxu0
  %v2403 = vadd.f32 %v2203, %v2402
  %v2404 = vpop.f32.mrb[0].mxu0
  %v2405 = vpop.f32.mrb[0].mxu0
  %v2406 = vadd.f32 %v2203, %v2405
  %v2407 = vpop.f32.mrb[0].mxu0
  %2408 = vmatprep.mubr.bf16.mxu0 0
  %2409 = vmatmul.mubr.bf16.gmra.mrb[0].mxu0 %v2241
  %v2410 = vpop.f32.mrb[0].mxu0
  %v2411 = vadd.f32 %v2203, %v2410
  %v2412 = vpop.f32.mrb[0].mxu0
  %v2413 = vpop.f32.mrb[0].mxu0
  %v2414 = vadd.f32 %v2203, %v2413
  %v2415 = vpop.f32.mrb[0].mxu0
  %2416 = vmatprep.mubr.bf16.mxu0 0
  %2417 = vmatmul.mubr.bf16.gmra.mrb[0].mxu0 %v2244
  %v2418 = vpop.f32.mrb[0].mxu0
  %v2419 = vadd.f32 %v2203, %v2418
  %v2420 = vpop.f32.mrb[0].mxu0
  %v2421 = vpop.f32.mrb[0].mxu0
  %v2422 = vadd.f32 %v2203, %v2421
  %v2423 = vpop.f32.mrb[0].mxu0
  %2424 = vmatprep.mubr.bf16.mxu0 0
  %2425 = vmatmul.mubr.bf16.gmra.mrb[0].mxu0 %v2247
  %v2426 = vpop.f32.mrb[0].mxu0
  %v2427 = vadd.f32 %v2203, %v2426
  %v2428 = vpop.f32.mrb[0].mxu0
  %v2429 = vpop.f32.mrb[0].mxu0
  %v2430 = vadd.f32 %v2203, %v2429
  %v2431 = vpop.f32.mrb[0].mxu0
  %2432 = vmatprep.mubr.bf16.mxu0 0
  %2433 = vmatmul.mubr.bf16.gmra.mrb[0].mxu0 %v2250
  %v2434 = vpop.f32.mrb[0].mxu0
  %v2435 = vadd.f32 %v2203, %v2434
  %v2436 = vpop.f32.mrb[0].mxu0
  %v2437 = vpop.f32.mrb[0].mxu0
  %v2438 = vadd.f32 %v2203, %v2437
  %v2439 = vpop.f32.mrb[0].mxu0
  %2440 = vmatprep.mubr.bf16.mxu0 0
  %2441 = vmatmul.mubr.bf16.gmra.mrb[0].mxu0 %v2253
  %v2442 = vpop.f32.mrb[0].mxu0
  %v2443 = vadd.f32 %v2203, %v2442
  %v2444 = vpop.f32.mrb[0].mxu0
  %v2445 = vpop.f32.mrb[0].mxu0
  %v2446 = vadd.f32 %v2203, %v2445
  %v2447 = vpop.f32.mrb[0].mxu0
  %2448 = vmatprep.mubr.bf16.mxu0 0
  %2449 = vmatmul.mubr.bf16.gmra.mrb[0].mxu0 %v2256
  %v2450 = vpop.f32.mrb[0].mxu0
  %v2451 = vadd.f32 %v2203, %v2450
  %v2452 = vpop.f32.mrb[0].mxu0
  %v2453 = vpop.f32.mrb[0].mxu0
  %v2454 = vadd.f32 %v2203, %v2453
  %v2455 = vpop.f32.mrb[0].mxu0
  %2456 = vmatprep.mubr.bf16.mxu0 0
  %2457 = vmatmul.mubr.bf16.gmra.mrb[0].mxu0 %v2259
  %v2458 = vpop.f32.mrb[0].mxu0
  %v2459 = vadd.f32 %v2203, %v2458
  %v2460 = vpop.f32.mrb[0].mxu0
  %v2461 = vpop.f32.mrb[0].mxu0
  %v2462 = vadd.f32 %v2203, %v2461
  %v2463 = vpop.f32.mrb[0].mxu0
  %2464 = vmatprep.mubr.bf16.mxu0 0
  %2465 = vmatmul.mubr.bf16.gmra.mrb[0].mxu0 %v2262
  %v2466 = vpop.f32.mrb[0].mxu0
  %v2467 = vadd.f32 %v2203, %v2466
  %v2468 = vpop.f32.mrb[0].mxu0
  %v2469 = vpop.f32.mrb[0].mxu0
  %v2470 = vadd.f32 %v2203, %v2469
  %v2471 = vpop.f32.mrb[0].mxu0
  %2472 = vmatprep.mubr.bf16.mxu0 0
  %2473 = vmatmul.mubr.bf16.gmra.mrb[0].mxu0 %v2265
  %v2474 = vpop.f32.mrb[0].mxu0
  %v2475 = vadd.f32 %v2203, %v2474
  %v2476 = vpop.f32.mrb[0].mxu0
  %v2477 = vpop.f32.mrb[0].mxu0
  %v2478 = vadd.f32 %v2203, %v2477
  %v2479 = vpop.f32.mrb[0].mxu0
  %2480 = vmatprep.mubr.bf16.mxu0 0
  %2481 = vmatmul.mubr.bf16.gmra.mrb[0].mxu0 %v2268
  %v2482 = vpop.f32.mrb[0].mxu0
  %v2483 = vadd.f32 %v2203, %v2482
  %v2484 = vpop.f32.mrb[0].mxu0
  %v2485 = vpop.f32.mrb[0].mxu0
  %v2486 = vadd.f32 %v2203, %v2485
  %v2487 = vpop.f32.mrb[0].mxu0
  %2488 = vmatprep.mubr.bf16.mxu0 0
  %2489 = vmatmul.mubr.bf16.gmra.mrb[0].mxu0 %v2271
  %v2490 = vpop.f32.mrb[0].mxu0
  %v2491 = vadd.f32 %v2203, %v2490
  %v2492 = vpop.f32.mrb[0].mxu0
  %v2493 = vpop.f32.mrb[0].mxu0
  %v2494 = vadd.f32 %v2203, %v2493
  %v2495 = vpop.f32.mrb[0].mxu0
  %2496 = vmatprep.mubr.bf16.mxu0 0
  %2497 = vmatmul.mubr.bf16.gmra.mrb[0].mxu0 %v2274
  %v2498 = vpop.f32.mrb[0].mxu0
  %v2499 = vadd.f32 %v2203, %v2498
  %v2500 = vpop.f32.mrb[0].mxu0
  %v2501 = vpop.f32.mrb[0].mxu0
  %v2502 = vadd.f32 %v2203, %v2501
  %v2503 = vpop.f32.mrb[0].mxu0
  %2504 = vmatprep.mubr.bf16.mxu0 0
  %2505 = vmatmul.mubr.bf16.gmra.mrb[0].mxu0 %v2277
  %v2506 = vpop.f32.mrb[0].mxu0
  %v2507 = vadd.f32 %v2203, %v2506
  %v2508 = vpop.f32.mrb[0].mxu0
  %v2509 = vpop.f32.mrb[0].mxu0
  %v2510 = vadd.f32 %v2203, %v2509
  %v2511 = vpop.f32.mrb[0].mxu0
  %2512 = vmatprep.mubr.bf16.mxu0 0
  %2513 = vmatmul.mubr.bf16.gmra.mrb[0].mxu0 %v2280
  %v2514 = vpop.f32.mrb[0].mxu0
  %v2515 = vadd.f32 %v2203, %v2514
  %v2516 = vpop.f32.mrb[0].mxu0
  %v2517 = vpop.f32.mrb[0].mxu0
  %v2518 = vadd.f32 %v2203, %v2517
  %v2519 = vpop.f32.mrb[0].mxu0
  %2520 = vmatprep.mubr.bf16.mxu0 0
  %2521 = vmatmul.mubr.bf16.gmra.mrb[0].mxu0 %v2283
  %v2522 = vpop.f32.mrb[0].mxu0
  %v2523 = vadd.f32 %v2203, %v2522
  %v2524 = vpop.f32.mrb[0].mxu0
  %v2525 = vpop.f32.mrb[0].mxu0
  %v2526 = vadd.f32 %v2203, %v2525
  %v2527 = vpop.f32.mrb[0].mxu0
  %2528 = vmatprep.mubr.bf16.mxu0 0
  %2529 = vmatmul.mubr.bf16.gmra.mrb[0].mxu0 %v2286
  %v2530 = vpop.f32.mrb[0].mxu0
  %v2531 = vadd.f32 %v2203, %v2530
  %v2532 = vpop.f32.mrb[0].mxu0
  %v2533 = vpop.f32.mrb[0].mxu0
  %v2534 = vadd.f32 %v2203, %v2533
  %v2535 = vpop.f32.mrb[0].mxu0
  %2536 = vmatprep.mubr.bf16.mxu0 0
  %2537 = vmatmul.mubr.bf16.gmra.mrb[0].mxu0 %v2289
  %v2538 = vpop.f32.mrb[0].mxu0
  %v2539 = vadd.f32 %v2203, %v2538
  %v2540 = vpop.f32.mrb[0].mxu0
  %v2541 = vpop.f32.mrb[0].mxu0
  %v2542 = vadd.f32 %v2203, %v2541
  %v2543 = vpop.f32.mrb[0].mxu0
  %2544 = vmatprep.mubr.bf16.mxu0 0
  %2545 = vmatmul.mubr.bf16.gmra.mrb[0].mxu0 %v2292
  %v2546 = vpop.f32.mrb[0].mxu0
  %v2547 = vadd.f32 %v2203, %v2546
  %v2548 = vpop.f32.mrb[0].mxu0
  %v2549 = vpop.f32.mrb[0].mxu0
  %v2550 = vadd.f32 %v2203, %v2549
  %v2551 = vpop.f32.mrb[0].mxu0
  %2552 = vmatprep.mubr.bf16.mxu0 0
  %2553 = vmatmul.mubr.bf16.gmra.mrb[0].mxu0 %v2295
  %v2554 = vpop.f32.mrb[0].mxu0
  %v2555 = vadd.f32 %v2203, %v2554
  %v2556 = vpop.f32.mrb[0].mxu0
  %v2557 = vpop.f32.mrb[0].mxu0
  %v2558 = vadd.f32 %v2203, %v2557
  %v2559 = vpop.f32.mrb[0].mxu0
  %2560 = vmatprep.mubr.bf16.mxu0 0
  %2561 = vmatmul.mubr.bf16.gmra.mrb[0].mxu0 %v2298
  %v2562 = vpop.f32.mrb[0].mxu0
  %v2563 = vadd.f32 %v2203, %v2562
  %v2564 = vpop.f32.mrb[0].mxu0
  %v2565 = vpop.f32.mrb[0].mxu0
  %v2566 = vadd.f32 %v2203, %v2565
  %v2567 = vpop.f32.mrb[0].mxu0
  %2568 = vmatprep.mubr.bf16.mxu0 0
  %2569 = vmatmul.mubr.bf16.gmra.mrb[0].mxu0 %v2301
  %v2570 = vpop.f32.mrb[0].mxu0
  %v2571 = vadd.f32 %v2203, %v2570
  %v2572 = vpop.f32.mrb[0].mxu0
  %v2573 = vpop.f32.mrb[0].mxu0
  %v2574 = vadd.f32 %v2203, %v2573
  %v2575 = vpop.f32.mrb[0].mxu0
  %2576 = vmatprep.mubr.bf16.mxu0 0
  %2577 = vmatmul.mubr.bf16.gmra.mrb[0].mxu0 %v2304
  %v2578 = vpop.f32.mrb[0].mxu0
  %v2579 = vadd.f32 %v2203, %v2578
  %v2580 = vpop.f32.mrb[0].mxu0
  %v2581 = vpop.f32.mrb[0].mxu0
  %v2582 = vadd.f32 %v2203, %v2581
  %v2583 = vpop.f32.mrb[0].mxu0
  %2584 = vmatprep.mubr.bf16.mxu0 0
  %2585 = vmatmul.mubr.bf16.gmra.mrb[0].mxu0 %v2307
  %v2586 = vpop.f32.mrb[0].mxu0
  %v2587 = vadd.f32 %v2203, %v2586
  %v2588 = vpop.f32.mrb[0].mxu0
  %v2589 = vpop.f32.mrb[0].mxu0
  %v2590 = vadd.f32 %v2203, %v2589
  %v2591 = vpop.f32.mrb[0].mxu0
  %2592 = vmatprep.mubr.bf16.mxu0 0
  %2593 = vmatmul.mubr.bf16.gmra.mrb[0].mxu0 %v2310
  %v2594 = vpop.f32.mrb[0].mxu0
  %v2595 = vadd.f32 %v2203, %v2594
  %v2596 = vpop.f32.mrb[0].mxu0
  %v2597 = vpop.f32.mrb[0].mxu0
  %v2598 = vadd.f32 %v2203, %v2597
  %v2599 = vpop.f32.mrb[0].mxu0
  %2600 = vdwg.mxu0
  %v2601 = vmul.f32 %v2347, %v2347
  %v2602 = vmul.f32 %v2350, %v2350
  %v2603 = vmul.f32 %v2355, %v2355
  %v2604 = vmul.f32 %v2358, %v2358
  %v2605 = vmul.f32 %v2363, %v2363
  %v2606 = vmul.f32 %v2366, %v2366
  %v2607 = vmul.f32 %v2371, %v2371
  %v2608 = vmul.f32 %v2374, %v2374
  %v2609 = vmul.f32 %v2379, %v2379
  %v2610 = vmul.f32 %v2382, %v2382
  %v2611 = vmul.f32 %v2387, %v2387
  %v2612 = vmul.f32 %v2390, %v2390
  %v2613 = vmul.f32 %v2395, %v2395
  %v2614 = vmul.f32 %v2398, %v2398
  %v2615 = vmul.f32 %v2403, %v2403
  %v2616 = vmul.f32 %v2406, %v2406
  %v2617 = vmul.f32 %v2411, %v2411
  %v2618 = vmul.f32 %v2414, %v2414
  %v2619 = vmul.f32 %v2419, %v2419
  %v2620 = vmul.f32 %v2422, %v2422
  %v2621 = vmul.f32 %v2427, %v2427
  %v2622 = vmul.f32 %v2430, %v2430
  %v2623 = vmul.f32 %v2435, %v2435
  %v2624 = vmul.f32 %v2438, %v2438
  %v2625 = vmul.f32 %v2443, %v2443
  %v2626 = vmul.f32 %v2446, %v2446
  %v2627 = vmul.f32 %v2451, %v2451
  %v2628 = vmul.f32 %v2454, %v2454
  %v2629 = vmul.f32 %v2459, %v2459
  %v2630 = vmul.f32 %v2462, %v2462
  %v2631 = vmul.f32 %v2467, %v2467
  %v2632 = vmul.f32 %v2470, %v2470
  %v2633 = vmul.f32 %v2475, %v2475
  %v2634 = vmul.f32 %v2478, %v2478
  %v2635 = vmul.f32 %v2483, %v2483
  %v2636 = vmul.f32 %v2486, %v2486
  %v2637 = vmul.f32 %v2491, %v2491
  %v2638 = vmul.f32 %v2494, %v2494
  %v2639 = vmul.f32 %v2499, %v2499
  %v2640 = vmul.f32 %v2502, %v2502
  %v2641 = vmul.f32 %v2507, %v2507
  %v2642 = vmul.f32 %v2510, %v2510
  %v2643 = vmul.f32 %v2515, %v2515
  %v2644 = vmul.f32 %v2518, %v2518
  %v2645 = vmul.f32 %v2523, %v2523
  %v2646 = vmul.f32 %v2526, %v2526
  %v2647 = vmul.f32 %v2531, %v2531
  %v2648 = vmul.f32 %v2534, %v2534
  %v2649 = vmul.f32 %v2539, %v2539
  %v2650 = vmul.f32 %v2542, %v2542
  %v2651 = vmul.f32 %v2547, %v2547
  %v2652 = vmul.f32 %v2550, %v2550
  %v2653 = vmul.f32 %v2555, %v2555
  %v2654 = vmul.f32 %v2558, %v2558
  %v2655 = vmul.f32 %v2563, %v2563
  %v2656 = vmul.f32 %v2566, %v2566
  %v2657 = vmul.f32 %v2571, %v2571
  %v2658 = vmul.f32 %v2574, %v2574
  %v2659 = vmul.f32 %v2579, %v2579
  %v2660 = vmul.f32 %v2582, %v2582
  %v2661 = vmul.f32 %v2587, %v2587
  %v2662 = vmul.f32 %v2590, %v2590
  %v2663 = vmul.f32 %v2595, %v2595
  %v2664 = vmul.f32 %v2598, %v2598
  %v2665 = vmul.f32 %v2347, %v2601
  %v2666 = vmul.f32 %v2350, %v2602
  %v2667 = vmul.f32 %v2355, %v2603
  %v2668 = vmul.f32 %v2358, %v2604
  %v2669 = vmul.f32 %v2363, %v2605
  %v2670 = vmul.f32 %v2366, %v2606
  %v2671 = vmul.f32 %v2371, %v2607
  %v2672 = vmul.f32 %v2374, %v2608
  %v2673 = vmul.f32 %v2379, %v2609
  %v2674 = vmul.f32 %v2382, %v2610
  %v2675 = vmul.f32 %v2387, %v2611
  %v2676 = vmul.f32 %v2390, %v2612
  %v2677 = vmul.f32 %v2395, %v2613
  %v2678 = vmul.f32 %v2398, %v2614
  %v2679 = vmul.f32 %v2403, %v2615
  %v2680 = vmul.f32 %v2406, %v2616
  %v2681 = vmul.f32 %v2411, %v2617
  %v2682 = vmul.f32 %v2414, %v2618
  %v2683 = vmul.f32 %v2419, %v2619
  %v2684 = vmul.f32 %v2422, %v2620
  %v2685 = vmul.f32 %v2427, %v2621
  %v2686 = vmul.f32 %v2430, %v2622
  %v2687 = vmul.f32 %v2435, %v2623
  %v2688 = vmul.f32 %v2438, %v2624
  %v2689 = vmul.f32 %v2443, %v2625
  %v2690 = vmul.f32 %v2446, %v2626
  %v2691 = vmul.f32 %v2451, %v2627
  %v2692 = vmul.f32 %v2454, %v2628
  %v2693 = vmul.f32 %v2459, %v2629
  %v2694 = vmul.f32 %v2462, %v2630
  %v2695 = vmul.f32 %v2467, %v2631
  %v2696 = vmul.f32 %v2470, %v2632
  %v2697 = vmul.f32 %v2475, %v2633
  %v2698 = vmul.f32 %v2478, %v2634
  %v2699 = vmul.f32 %v2483, %v2635
  %v2700 = vmul.f32 %v2486, %v2636
  %v2701 = vmul.f32 %v2491, %v2637
  %v2702 = vmul.f32 %v2494, %v2638
  %v2703 = vmul.f32 %v2499, %v2639
  %v2704 = vmul.f32 %v2502, %v2640
  %v2705 = vmul.f32 %v2507, %v2641
  %v2706 = vmul.f32 %v2510, %v2642
  %v2707 = vmul.f32 %v2515, %v2643
  %v2708 = vmul.f32 %v2518, %v2644
  %v2709 = vmul.f32 %v2523, %v2645
  %v2710 = vmul.f32 %v2526, %v2646
  %v2711 = vmul.f32 %v2531, %v2647
  %v2712 = vmul.f32 %v2534, %v2648
  %v2713 = vmul.f32 %v2539, %v2649
  %v2714 = vmul.f32 %v2542, %v2650
  %v2715 = vmul.f32 %v2547, %v2651
  %v2716 = vmul.f32 %v2550, %v2652
  %v2717 = vmul.f32 %v2555, %v2653
  %v2718 = vmul.f32 %v2558, %v2654
  %v2719 = vmul.f32 %v2563, %v2655
  %v2720 = vmul.f32 %v2566, %v2656
  %v2721 = vmul.f32 %v2571, %v2657
  %v2722 = vmul.f32 %v2574, %v2658
  %v2723 = vmul.f32 %v2579, %v2659
  %v2724 = vmul.f32 %v2582, %v2660
  %v2725 = vmul.f32 %v2587, %v2661
  %v2726 = vmul.f32 %v2590, %v2662
  %v2727 = vmul.f32 %v2595, %v2663
  %v2728 = vmul.f32 %v2598, %v2664
  %v2729 = vmul.f32 %v2665, 0.044715
  %v2730 = vmul.f32 %v2666, 0.044715
  %v2731 = vmul.f32 %v2667, 0.044715
  %v2732 = vmul.f32 %v2668, 0.044715
  %v2733 = vmul.f32 %v2669, 0.044715
  %v2734 = vmul.f32 %v2670, 0.044715
  %v2735 = vmul.f32 %v2671, 0.044715
  %v2736 = vmul.f32 %v2672, 0.044715
  %v2737 = vmul.f32 %v2673, 0.044715
  %v2738 = vmul.f32 %v2674, 0.044715
  %v2739 = vmul.f32 %v2675, 0.044715
  %v2740 = vmul.f32 %v2676, 0.044715
  %v2741 = vmul.f32 %v2677, 0.044715
  %v2742 = vmul.f32 %v2678, 0.044715
  %v2743 = vmul.f32 %v2679, 0.044715
  %v2744 = vmul.f32 %v2680, 0.044715
  %v2745 = vmul.f32 %v2681, 0.044715
  %v2746 = vmul.f32 %v2682, 0.044715
  %v2747 = vmul.f32 %v2683, 0.044715
  %v2748 = vmul.f32 %v2684, 0.044715
  %v2749 = vmul.f32 %v2685, 0.044715
  %v2750 = vmul.f32 %v2686, 0.044715
  %v2751 = vmul.f32 %v2687, 0.044715
  %v2752 = vmul.f32 %v2688, 0.044715
  %v2753 = vmul.f32 %v2689, 0.044715
  %v2754 = vmul.f32 %v2690, 0.044715
  %v2755 = vmul.f32 %v2691, 0.044715
  %v2756 = vmul.f32 %v2692, 0.044715
  %v2757 = vmul.f32 %v2693, 0.044715
  %v2758 = vmul.f32 %v2694, 0.044715
  %v2759 = vmul.f32 %v2695, 0.044715
  %v2760 = vmul.f32 %v2696, 0.044715
  %v2761 = vmul.f32 %v2697, 0.044715
  %v2762 = vmul.f32 %v2698, 0.044715
  %v2763 = vmul.f32 %v2699, 0.044715
  %v2764 = vmul.f32 %v2700, 0.044715
  %v2765 = vmul.f32 %v2701, 0.044715
  %v2766 = vmul.f32 %v2702, 0.044715
  %v2767 = vmul.f32 %v2703, 0.044715
  %v2768 = vmul.f32 %v2704, 0.044715
  %v2769 = vmul.f32 %v2705, 0.044715
  %v2770 = vmul.f32 %v2706, 0.044715
  %v2771 = vmul.f32 %v2707, 0.044715
  %v2772 = vmul.f32 %v2708, 0.044715
  %v2773 = vmul.f32 %v2709, 0.044715
  %v2774 = vmul.f32 %v2710, 0.044715
  %v2775 = vmul.f32 %v2711, 0.044715
  %v2776 = vmul.f32 %v2712, 0.044715
  %v2777 = vmul.f32 %v2713, 0.044715
  %v2778 = vmul.f32 %v2714, 0.044715
  %v2779 = vmul.f32 %v2715, 0.044715
  %v2780 = vmul.f32 %v2716, 0.044715
  %v2781 = vmul.f32 %v2717, 0.044715
  %v2782 = vmul.f32 %v2718, 0.044715
  %v2783 = vmul.f32 %v2719, 0.044715
  %v2784 = vmul.f32 %v2720, 0.044715
  %v2785 = vmul.f32 %v2721, 0.044715
  %v2786 = vmul.f32 %v2722, 0.044715
  %v2787 = vmul.f32 %v2723, 0.044715
  %v2788 = vmul.f32 %v2724, 0.044715
  %v2789 = vmul.f32 %v2725, 0.044715
  %v2790 = vmul.f32 %v2726, 0.044715
  %v2791 = vmul.f32 %v2727, 0.044715
  %v2792 = vmul.f32 %v2728, 0.044715
  %v2793 = vadd.f32 %v2347, %v2729
  %v2794 = vadd.f32 %v2350, %v2730
  %v2795 = vadd.f32 %v2355, %v2731
  %v2796 = vadd.f32 %v2358, %v2732
  %v2797 = vadd.f32 %v2363, %v2733
  %v2798 = vadd.f32 %v2366, %v2734
  %v2799 = vadd.f32 %v2371, %v2735
  %v2800 = vadd.f32 %v2374, %v2736
  %v2801 = vadd.f32 %v2379, %v2737
  %v2802 = vadd.f32 %v2382, %v2738
  %v2803 = vadd.f32 %v2387, %v2739
  %v2804 = vadd.f32 %v2390, %v2740
  %v2805 = vadd.f32 %v2395, %v2741
  %v2806 = vadd.f32 %v2398, %v2742
  %v2807 = vadd.f32 %v2403, %v2743
  %v2808 = vadd.f32 %v2406, %v2744
  %v2809 = vadd.f32 %v2411, %v2745
  %v2810 = vadd.f32 %v2414, %v2746
  %v2811 = vadd.f32 %v2419, %v2747
  %v2812 = vadd.f32 %v2422, %v2748
  %v2813 = vadd.f32 %v2427, %v2749
  %v2814 = vadd.f32 %v2430, %v2750
  %v2815 = vadd.f32 %v2435, %v2751
  %v2816 = vadd.f32 %v2438, %v2752
  %v2817 = vadd.f32 %v2443, %v2753
  %v2818 = vadd.f32 %v2446, %v2754
  %v2819 = vadd.f32 %v2451, %v2755
  %v2820 = vadd.f32 %v2454, %v2756
  %v2821 = vadd.f32 %v2459, %v2757
  %v2822 = vadd.f32 %v2462, %v2758
  %v2823 = vadd.f32 %v2467, %v2759
  %v2824 = vadd.f32 %v2470, %v2760
  %v2825 = vadd.f32 %v2475, %v2761
  %v2826 = vadd.f32 %v2478, %v2762
  %v2827 = vadd.f32 %v2483, %v2763
  %v2828 = vadd.f32 %v2486, %v2764
  %v2829 = vadd.f32 %v2491, %v2765
  %v2830 = vadd.f32 %v2494, %v2766
  %v2831 = vadd.f32 %v2499, %v2767
  %v2832 = vadd.f32 %v2502, %v2768
  %v2833 = vadd.f32 %v2507, %v2769
  %v2834 = vadd.f32 %v2510, %v2770
  %v2835 = vadd.f32 %v2515, %v2771
  %v2836 = vadd.f32 %v2518, %v2772
  %v2837 = vadd.f32 %v2523, %v2773
  %v2838 = vadd.f32 %v2526, %v2774
  %v2839 = vadd.f32 %v2531, %v2775
  %v2840 = vadd.f32 %v2534, %v2776
  %v2841 = vadd.f32 %v2539, %v2777
  %v2842 = vadd.f32 %v2542, %v2778
  %v2843 = vadd.f32 %v2547, %v2779
  %v2844 = vadd.f32 %v2550, %v2780
  %v2845 = vadd.f32 %v2555, %v2781
  %v2846 = vadd.f32 %v2558, %v2782
  %v2847 = vadd.f32 %v2563, %v2783
  %v2848 = vadd.f32 %v2566, %v2784
  %v2849 = vadd.f32 %v2571, %v2785
  %v2850 = vadd.f32 %v2574, %v2786
  %v2851 = vadd.f32 %v2579, %v2787
  %v2852 = vadd.f32 %v2582, %v2788
  %v2853 = vadd.f32 %v2587, %v2789
  %v2854 = vadd.f32 %v2590, %v2790
  %v2855 = vadd.f32 %v2595, %v2791
  %v2856 = vadd.f32 %v2598, %v2792
  %v2857 = vmul.f32 %v2793, 0.7978846
  %v2858 = vmul.f32 %v2794, 0.7978846
  %v2859 = vmul.f32 %v2795, 0.7978846
  %v2860 = vmul.f32 %v2796, 0.7978846
  %v2861 = vmul.f32 %v2797, 0.7978846
  %v2862 = vmul.f32 %v2798, 0.7978846
  %v2863 = vmul.f32 %v2799, 0.7978846
  %v2864 = vmul.f32 %v2800, 0.7978846
  %v2865 = vmul.f32 %v2801, 0.7978846
  %v2866 = vmul.f32 %v2802, 0.7978846
  %v2867 = vmul.f32 %v2803, 0.7978846
  %v2868 = vmul.f32 %v2804, 0.7978846
  %v2869 = vmul.f32 %v2805, 0.7978846
  %v2870 = vmul.f32 %v2806, 0.7978846
  %v2871 = vmul.f32 %v2807, 0.7978846
  %v2872 = vmul.f32 %v2808, 0.7978846
  %v2873 = vmul.f32 %v2809, 0.7978846
  %v2874 = vmul.f32 %v2810, 0.7978846
  %v2875 = vmul.f32 %v2811, 0.7978846
  %v2876 = vmul.f32 %v2812, 0.7978846
  %v2877 = vmul.f32 %v2813, 0.7978846
  %v2878 = vmul.f32 %v2814, 0.7978846
  %v2879 = vmul.f32 %v2815, 0.7978846
  %v2880 = vmul.f32 %v2816, 0.7978846
  %v2881 = vmul.f32 %v2817, 0.7978846
  %v2882 = vmul.f32 %v2818, 0.7978846
  %v2883 = vmul.f32 %v2819, 0.7978846
  %v2884 = vmul.f32 %v2820, 0.7978846
  %v2885 = vmul.f32 %v2821, 0.7978846
  %v2886 = vmul.f32 %v2822, 0.7978846
  %v2887 = vmul.f32 %v2823, 0.7978846
  %v2888 = vmul.f32 %v2824, 0.7978846
  %v2889 = vmul.f32 %v2825, 0.7978846
  %v2890 = vmul.f32 %v2826, 0.7978846
  %v2891 = vmul.f32 %v2827, 0.7978846
  %v2892 = vmul.f32 %v2828, 0.7978846
  %v2893 = vmul.f32 %v2829, 0.7978846
  %v2894 = vmul.f32 %v2830, 0.7978846
  %v2895 = vmul.f32 %v2831, 0.7978846
  %v2896 = vmul.f32 %v2832, 0.7978846
  %v2897 = vmul.f32 %v2833, 0.7978846
  %v2898 = vmul.f32 %v2834, 0.7978846
  %v2899 = vmul.f32 %v2835, 0.7978846
  %v2900 = vmul.f32 %v2836, 0.7978846
  %v2901 = vmul.f32 %v2837, 0.7978846
  %v2902 = vmul.f32 %v2838, 0.7978846
  %v2903 = vmul.f32 %v2839, 0.7978846
  %v2904 = vmul.f32 %v2840, 0.7978846
  %v2905 = vmul.f32 %v2841, 0.7978846
  %v2906 = vmul.f32 %v2842, 0.7978846
  %v2907 = vmul.f32 %v2843, 0.7978846
  %v2908 = vmul.f32 %v2844, 0.7978846
  %v2909 = vmul.f32 %v2845, 0.7978846
  %v2910 = vmul.f32 %v2846, 0.7978846
  %v2911 = vmul.f32 %v2847, 0.7978846
  %v2912 = vmul.f32 %v2848, 0.7978846
  %v2913 = vmul.f32 %v2849, 0.7978846
  %v2914 = vmul.f32 %v2850, 0.7978846
  %v2915 = vmul.f32 %v2851, 0.7978846
  %v2916 = vmul.f32 %v2852, 0.7978846
  %v2917 = vmul.f32 %v2853, 0.7978846
  %v2918 = vmul.f32 %v2854, 0.7978846
  %v2919 = vmul.f32 %v2855, 0.7978846
  %v2920 = vmul.f32 %v2856, 0.7978846
  %v2921 = vtanh.pop %v2857
  %v2922 = vtanh.pop %v2858
  %v2923 = vtanh.pop %v2859
  %v2924 = vtanh.pop %v2860
  %v2925 = vtanh.pop %v2861
  %v2926 = vtanh.pop %v2862
  %v2927 = vtanh.pop %v2863
  %v2928 = vtanh.pop %v2864
  %v2929 = vtanh.pop %v2865
  %v2930 = vtanh.pop %v2866
  %v2931 = vtanh.pop %v2867
  %v2932 = vtanh.pop %v2868
  %v2933 = vtanh.pop %v2869
  %v2934 = vtanh.pop %v2870
  %v2935 = vtanh.pop %v2871
  %v2936 = vtanh.pop %v2872
  %v2937 = vtanh.pop %v2873
  %v2938 = vtanh.pop %v2874
  %v2939 = vtanh.pop %v2875
  %v2940 = vtanh.pop %v2876
  %v2941 = vtanh.pop %v2877
  %v2942 = vtanh.pop %v2878
  %v2943 = vtanh.pop %v2879
  %v2944 = vtanh.pop %v2880
  %v2945 = vtanh.pop %v2881
  %v2946 = vtanh.pop %v2882
  %v2947 = vtanh.pop %v2883
  %v2948 = vtanh.pop %v2884
  %v2949 = vtanh.pop %v2885
  %v2950 = vtanh.pop %v2886
  %v2951 = vtanh.pop %v2887
  %v2952 = vtanh.pop %v2888
  %v2953 = vtanh.pop %v2889
  %v2954 = vtanh.pop %v2890
  %v2955 = vtanh.pop %v2891
  %v2956 = vtanh.pop %v2892
  %v2957 = vtanh.pop %v2893
  %v2958 = vtanh.pop %v2894
  %v2959 = vtanh.pop %v2895
  %v2960 = vtanh.pop %v2896
  %v2961 = vtanh.pop %v2897
  %v2962 = vtanh.pop %v2898
  %v2963 = vtanh.pop %v2899
  %v2964 = vtanh.pop %v2900
  %v2965 = vtanh.pop %v2901
  %v2966 = vtanh.pop %v2902
  %v2967 = vtanh.pop %v2903
  %v2968 = vtanh.pop %v2904
  %v2969 = vtanh.pop %v2905
  %v2970 = vtanh.pop %v2906
  %v2971 = vtanh.pop %v2907
  %v2972 = vtanh.pop %v2908
  %v2973 = vtanh.pop %v2909
  %v2974 = vtanh.pop %v2910
  %v2975 = vtanh.pop %v2911
  %v2976 = vtanh.pop %v2912
  %v2977 = vtanh.pop %v2913
  %v2978 = vtanh.pop %v2914
  %v2979 = vtanh.pop %v2915
  %v2980 = vtanh.pop %v2916
  %v2981 = vtanh.pop %v2917
  %v2982 = vtanh.pop %v2918
  %v2983 = vtanh.pop %v2919
  %v2984 = vtanh.pop %v2920
  %v2985 = vadd.f32 %v2921, 1.0
  %v2986 = vadd.f32 %v2922, 1.0
  %v2987 = vadd.f32 %v2923, 1.0
  %v2988 = vadd.f32 %v2924, 1.0
  %v2989 = vadd.f32 %v2925, 1.0
  %v2990 = vadd.f32 %v2926, 1.0
  %v2991 = vadd.f32 %v2927, 1.0
  %v2992 = vadd.f32 %v2928, 1.0
  %v2993 = vadd.f32 %v2929, 1.0
  %v2994 = vadd.f32 %v2930, 1.0
  %v2995 = vadd.f32 %v2931, 1.0
  %v2996 = vadd.f32 %v2932, 1.0
  %v2997 = vadd.f32 %v2933, 1.0
  %v2998 = vadd.f32 %v2934, 1.0
  %v2999 = vadd.f32 %v2935, 1.0
  %v3000 = vadd.f32 %v2936, 1.0
  %v3001 = vadd.f32 %v2937, 1.0
  %v3002 = vadd.f32 %v2938, 1.0
  %v3003 = vadd.f32 %v2939, 1.0
  %v3004 = vadd.f32 %v2940, 1.0
  %v3005 = vadd.f32 %v2941, 1.0
  %v3006 = vadd.f32 %v2942, 1.0
  %v3007 = vadd.f32 %v2943, 1.0
  %v3008 = vadd.f32 %v2944, 1.0
  %v3009 = vadd.f32 %v2945, 1.0
  %v3010 = vadd.f32 %v2946, 1.0
  %v3011 = vadd.f32 %v2947, 1.0
  %v3012 = vadd.f32 %v2948, 1.0
  %v3013 = vadd.f32 %v2949, 1.0
  %v3014 = vadd.f32 %v2950, 1.0
  %v3015 = vadd.f32 %v2951, 1.0
  %v3016 = vadd.f32 %v2952, 1.0
  %v3017 = vadd.f32 %v2953, 1.0
  %v3018 = vadd.f32 %v2954, 1.0
  %v3019 = vadd.f32 %v2955, 1.0
  %v3020 = vadd.f32 %v2956, 1.0
  %v3021 = vadd.f32 %v2957, 1.0
  %v3022 = vadd.f32 %v2958, 1.0
  %v3023 = vadd.f32 %v2959, 1.0
  %v3024 = vadd.f32 %v2960, 1.0
  %v3025 = vadd.f32 %v2961, 1.0
  %v3026 = vadd.f32 %v2962, 1.0
  %v3027 = vadd.f32 %v2963, 1.0
  %v3028 = vadd.f32 %v2964, 1.0
  %v3029 = vadd.f32 %v2965, 1.0
  %v3030 = vadd.f32 %v2966, 1.0
  %v3031 = vadd.f32 %v2967, 1.0
  %v3032 = vadd.f32 %v2968, 1.0
  %v3033 = vadd.f32 %v2969, 1.0
  %v3034 = vadd.f32 %v2970, 1.0
  %v3035 = vadd.f32 %v2971, 1.0
  %v3036 = vadd.f32 %v2972, 1.0
  %v3037 = vadd.f32 %v2973, 1.0
  %v3038 = vadd.f32 %v2974, 1.0
  %v3039 = vadd.f32 %v2975, 1.0
  %v3040 = vadd.f32 %v2976, 1.0
  %v3041 = vadd.f32 %v2977, 1.0
  %v3042 = vadd.f32 %v2978, 1.0
  %v3043 = vadd.f32 %v2979, 1.0
  %v3044 = vadd.f32 %v2980, 1.0
  %v3045 = vadd.f32 %v2981, 1.0
  %v3046 = vadd.f32 %v2982, 1.0
  %v3047 = vadd.f32 %v2983, 1.0
  %v3048 = vadd.f32 %v2984, 1.0
  %v3049 = vmul.f32 %v2985, 0.5
  %v3050 = vmul.f32 %v2986, 0.5
  %v3051 = vmul.f32 %v2987, 0.5
  %v3052 = vmul.f32 %v2988, 0.5
  %v3053 = vmul.f32 %v2989, 0.5
  %v3054 = vmul.f32 %v2990, 0.5
  %v3055 = vmul.f32 %v2991, 0.5
  %v3056 = vmul.f32 %v2992, 0.5
  %v3057 = vmul.f32 %v2993, 0.5
  %v3058 = vmul.f32 %v2994, 0.5
  %v3059 = vmul.f32 %v2995, 0.5
  %v3060 = vmul.f32 %v2996, 0.5
  %v3061 = vmul.f32 %v2997, 0.5
  %v3062 = vmul.f32 %v2998, 0.5
  %v3063 = vmul.f32 %v2999, 0.5
  %v3064 = vmul.f32 %v3000, 0.5
  %v3065 = vmul.f32 %v3001, 0.5
  %v3066 = vmul.f32 %v3002, 0.5
  %v3067 = vmul.f32 %v3003, 0.5
  %v3068 = vmul.f32 %v3004, 0.5
  %v3069 = vmul.f32 %v3005, 0.5
  %v3070 = vmul.f32 %v3006, 0.5
  %v3071 = vmul.f32 %v3007, 0.5
  %v3072 = vmul.f32 %v3008, 0.5
  %v3073 = vmul.f32 %v3009, 0.5
  %v3074 = vmul.f32 %v3010, 0.5
  %v3075 = vmul.f32 %v3011, 0.5
  %v3076 = vmul.f32 %v3012, 0.5
  %v3077 = vmul.f32 %v3013, 0.5
  %v3078 = vmul.f32 %v3014, 0.5
  %v3079 = vmul.f32 %v3015, 0.5
  %v3080 = vmul.f32 %v3016, 0.5
  %v3081 = vmul.f32 %v3017, 0.5
  %v3082 = vmul.f32 %v3018, 0.5
  %v3083 = vmul.f32 %v3019, 0.5
  %v3084 = vmul.f32 %v3020, 0.5
  %v3085 = vmul.f32 %v3021, 0.5
  %v3086 = vmul.f32 %v3022, 0.5
  %v3087 = vmul.f32 %v3023, 0.5
  %v3088 = vmul.f32 %v3024, 0.5
  %v3089 = vmul.f32 %v3025, 0.5
  %v3090 = vmul.f32 %v3026, 0.5
  %v3091 = vmul.f32 %v3027, 0.5
  %v3092 = vmul.f32 %v3028, 0.5
  %v3093 = vmul.f32 %v3029, 0.5
  %v3094 = vmul.f32 %v3030, 0.5
  %v3095 = vmul.f32 %v3031, 0.5
  %v3096 = vmul.f32 %v3032, 0.5
  %v3097 = vmul.f32 %v3033, 0.5
  %v3098 = vmul.f32 %v3034, 0.5
  %v3099 = vmul.f32 %v3035, 0.5
  %v3100 = vmul.f32 %v3036, 0.5
  %v3101 = vmul.f32 %v3037, 0.5
  %v3102 = vmul.f32 %v3038, 0.5
  %v3103 = vmul.f32 %v3039, 0.5
  %v3104 = vmul.f32 %v3040, 0.5
  %v3105 = vmul.f32 %v3041, 0.5
  %v3106 = vmul.f32 %v3042, 0.5
  %v3107 = vmul.f32 %v3043, 0.5
  %v3108 = vmul.f32 %v3044, 0.5
  %v3109 = vmul.f32 %v3045, 0.5
  %v3110 = vmul.f32 %v3046, 0.5
  %v3111 = vmul.f32 %v3047, 0.5
  %v3112 = vmul.f32 %v3048, 0.5
  %v3113 = vmul.f32 %v2347, %v3049
  %v3114 = vmul.f32 %v2350, %v3050
  %v3115 = vmul.f32 %v2355, %v3051
  %v3116 = vmul.f32 %v2358, %v3052
  %v3117 = vmul.f32 %v2363, %v3053
  %v3118 = vmul.f32 %v2366, %v3054
  %v3119 = vmul.f32 %v2371, %v3055
  %v3120 = vmul.f32 %v2374, %v3056
  %v3121 = vmul.f32 %v2379, %v3057
  %v3122 = vmul.f32 %v2382, %v3058
  %v3123 = vmul.f32 %v2387, %v3059
  %v3124 = vmul.f32 %v2390, %v3060
  %v3125 = vmul.f32 %v2395, %v3061
  %v3126 = vmul.f32 %v2398, %v3062
  %v3127 = vmul.f32 %v2403, %v3063
  %v3128 = vmul.f32 %v2406, %v3064
  %v3129 = vmul.f32 %v2411, %v3065
  %v3130 = vmul.f32 %v2414, %v3066
  %v3131 = vmul.f32 %v2419, %v3067
  %v3132 = vmul.f32 %v2422, %v3068
  %v3133 = vmul.f32 %v2427, %v3069
  %v3134 = vmul.f32 %v2430, %v3070
  %v3135 = vmul.f32 %v2435, %v3071
  %v3136 = vmul.f32 %v2438, %v3072
  %v3137 = vmul.f32 %v2443, %v3073
  %v3138 = vmul.f32 %v2446, %v3074
  %v3139 = vmul.f32 %v2451, %v3075
  %v3140 = vmul.f32 %v2454, %v3076
  %v3141 = vmul.f32 %v2459, %v3077
  %v3142 = vmul.f32 %v2462, %v3078
  %v3143 = vmul.f32 %v2467, %v3079
  %v3144 = vmul.f32 %v2470, %v3080
  %v3145 = vmul.f32 %v2475, %v3081
  %v3146 = vmul.f32 %v2478, %v3082
  %v3147 = vmul.f32 %v2483, %v3083
  %v3148 = vmul.f32 %v2486, %v3084
  %v3149 = vmul.f32 %v2491, %v3085
  %v3150 = vmul.f32 %v2494, %v3086
  %v3151 = vmul.f32 %v2499, %v3087
  %v3152 = vmul.f32 %v2502, %v3088
  %v3153 = vmul.f32 %v2507, %v3089
  %v3154 = vmul.f32 %v2510, %v3090
  %v3155 = vmul.f32 %v2515, %v3091
  %v3156 = vmul.f32 %v2518, %v3092
  %v3157 = vmul.f32 %v2523, %v3093
  %v3158 = vmul.f32 %v2526, %v3094
  %v3159 = vmul.f32 %v2531, %v3095
  %v3160 = vmul.f32 %v2534, %v3096
  %v3161 = vmul.f32 %v2539, %v3097
  %v3162 = vmul.f32 %v2542, %v3098
  %v3163 = vmul.f32 %v2547, %v3099
  %v3164 = vmul.f32 %v2550, %v3100
  %v3165 = vmul.f32 %v2555, %v3101
  %v3166 = vmul.f32 %v2558, %v3102
  %v3167 = vmul.f32 %v2563, %v3103
  %v3168 = vmul.f32 %v2566, %v3104
  %v3169 = vmul.f32 %v2571, %v3105
  %v3170 = vmul.f32 %v2574, %v3106
  %v3171 = vmul.f32 %v2579, %v3107
  %v3172 = vmul.f32 %v2582, %v3108
  %v3173 = vmul.f32 %v2587, %v3109
  %v3174 = vmul.f32 %v2590, %v3110
  %v3175 = vmul.f32 %v2595, %v3111
  %v3176 = vmul.f32 %v2598, %v3112
  %v3177 = vld [vmem:[%s1 + $0x40] sm:$0xf]
  %v3178 = vld [vmem:[%s1 + $0x44] sm:$0xf]
  %v3179 = vld [vmem:[%s2 + $0x4] sm:$0x1]
  %v3180 = vpack.c.bf16 %v3114, %v3113
  %v3181 = vpack.c.bf16 %v3116, %v3115
  %v3182 = vpack.c.bf16 %v3118, %v3117
  %v3183 = vpack.c.bf16 %v3120, %v3119
  %v3184 = vpack.c.bf16 %v3122, %v3121
  %v3185 = vpack.c.bf16 %v3124, %v3123
  %v3186 = vpack.c.bf16 %v3126, %v3125
  %v3187 = vpack.c.bf16 %v3128, %v3127
  %v3188 = vpack.c.bf16 %v3130, %v3129
  %v3189 = vpack.c.bf16 %v3132, %v3131
  %v3190 = vpack.c.bf16 %v3134, %v3133
  %v3191 = vpack.c.bf16 %v3136, %v3135
  %v3192 = vpack.c.bf16 %v3138, %v3137
  %v3193 = vpack.c.bf16 %v3140, %v3139
  %v3194 = vpack.c.bf16 %v3142, %v3141
  %v3195 = vpack.c.bf16 %v3144, %v3143
  %v3196 = vpack.c.bf16 %v3146, %v3145
  %v3197 = vpack.c.bf16 %v3148, %v3147
  %v3198 = vpack.c.bf16 %v3150, %v3149
  %v3199 = vpack.c.bf16 %v3152, %v3151
  %v3200 = vpack.c.bf16 %v3154, %v3153
  %v3201 = vpack.c.bf16 %v3156, %v3155
  %v3202 = vpack.c.bf16 %v3158, %v3157
  %v3203 = vpack.c.bf16 %v3160, %v3159
  %v3204 = vpack.c.bf16 %v3162, %v3161
  %v3205 = vpack.c.bf16 %v3164, %v3163
  %v3206 = vpack.c.bf16 %v3166, %v3165
  %v3207 = vpack.c.bf16 %v3168, %v3167
  %v3208 = vpack.c.bf16 %v3170, %v3169
  %v3209 = vpack.c.bf16 %v3172, %v3171
  %v3210 = vpack.c.bf16 %v3174, %v3173
  %v3211 = vpack.c.bf16 %v3176, %v3175
  %v3212 = vlaneseq
  %v3213 = vshrl.u32 %v3212, 7
  %v3214 = vsub.s32 0, %v3213
  %v3215 = vrot.slane %v3179, %v3214
  %v3218 = vunpack.c.l.b16 %v3177
  %v3219 = vunpack.c.l.b16 %v3178
  %v3220 = vpack.c.b16 %v3219, %v3218
  %vm3222 = vcmask 130048
  %v3224 = vsel %vm3222, %v3180, 0
  %v3227 = vsel %vm3222, %v3181, 0
  %v3230 = vsel %vm3222, %v3182, 0
  %v3233 = vsel %vm3222, %v3183, 0
  %v3236 = vsel %vm3222, %v3184, 0
  %v3239 = vsel %vm3222, %v3185, 0
  %v3242 = vsel %vm3222, %v3186, 0
  %v3245 = vsel %vm3222, %v3187, 0
  %v3248 = vsel %vm3222, %v3188, 0
  %v3251 = vsel %vm3222, %v3189, 0
  %v3254 = vsel %vm3222, %v3190, 0
  %v3257 = vsel %vm3222, %v3191, 0
  %v3260 = vsel %vm3222, %v3192, 0
  %v3263 = vsel %vm3222, %v3193, 0
  %v3266 = vsel %vm3222, %v3194, 0
  %v3269 = vsel %vm3222, %v3195, 0
  %v3272 = vsel %vm3222, %v3196, 0
  %v3275 = vsel %vm3222, %v3197, 0
  %v3278 = vsel %vm3222, %v3198, 0
  %v3281 = vsel %vm3222, %v3199, 0
  %v3284 = vsel %vm3222, %v3200, 0
  %v3287 = vsel %vm3222, %v3201, 0
  %v3290 = vsel %vm3222, %v3202, 0
  %v3293 = vsel %vm3222, %v3203, 0
  %v3296 = vsel %vm3222, %v3204, 0
  %v3299 = vsel %vm3222, %v3205, 0
  %v3302 = vsel %vm3222, %v3206, 0
  %v3305 = vsel %vm3222, %v3207, 0
  %v3308 = vsel %vm3222, %v3208, 0
  %v3311 = vsel %vm3222, %v3209, 0
  %v3314 = vsel %vm3222, %v3210, 0
  %v3317 = vsel %vm3222, %v3211, 0
  %3319 = vmatprep.subr.bf16.mxu0 0
  %3320 = vmatpush1.bf16.msra.mxu0 %v3220
  %3321 = vmatprep.subr.bf16.mxu0 0
  %3322 = vmatpush1.bf16.msra.mxu0 0
  %3323 = vmatprep.subr.bf16.mxu0 0
  %3324 = vmatpush1.bf16.msra.mxu0 0
  %3325 = vmatprep.subr.bf16.mxu0 0
  %3326 = vmatpush1.bf16.msra.mxu0 0
  %3327 = vmatprep.subr.bf16.mxu0 0
  %3328 = vmatpush1.bf16.msra.mxu0 0
  %3329 = vmatprep.subr.bf16.mxu0 0
  %3330 = vmatpush1.bf16.msra.mxu0 0
  %3331 = vmatprep.subr.bf16.mxu0 0
  %3332 = vmatpush1.bf16.msra.mxu0 0
  %3333 = vmatprep.subr.bf16.mxu0 0
  %3334 = vmatpush1.bf16.msra.mxu0 0
  %3335 = vmatprep.subr.bf16.mxu0 0
  %3336 = vmatpush1.bf16.msra.mxu0 0
  %3337 = vmatprep.subr.bf16.mxu0 0
  %3338 = vmatpush1.bf16.msra.mxu0 0
  %3339 = vmatprep.subr.bf16.mxu0 0
  %3340 = vmatpush1.bf16.msra.mxu0 0
  %3341 = vmatprep.subr.bf16.mxu0 0
  %3342 = vmatpush1.bf16.msra.mxu0 0
  %3343 = vmatprep.subr.bf16.mxu0 0
  %3344 = vmatpush1.bf16.msra.mxu0 0
  %3345 = vmatprep.subr.bf16.mxu0 0
  %3346 = vmatpush1.bf16.msra.mxu0 0
  %3347 = vmatprep.subr.bf16.mxu0 0
  %3348 = vmatpush1.bf16.msra.mxu0 0
  %3349 = vmatprep.subr.bf16.mxu0 0
  %3350 = vmatpush1.bf16.msra.mxu0 0
  %3351 = vmatprep.mubr.bf16.mxu0 0
  %3352 = vmatmul.mubr.bf16.gmra.mrb[0].mxu0 %v3224
  %v3353 = vpop.f32.mrb[0].mxu0
  %v3354 = vadd.f32 %v3215, %v3353
  %v3355 = vpop.f32.mrb[0].mxu0
  %v3356 = vpop.f32.mrb[0].mxu0
  %v3357 = vadd.f32 %v3215, %v3356
  %v3358 = vpop.f32.mrb[0].mxu0
  %3359 = vmatprep.mubr.bf16.mxu0 0
  %3360 = vmatmul.mubr.bf16.gmra.mrb[0].mxu0 %v3227
  %v3361 = vpop.f32.mrb[0].mxu0
  %v3362 = vadd.f32 %v3215, %v3361
  %v3363 = vpop.f32.mrb[0].mxu0
  %v3364 = vpop.f32.mrb[0].mxu0
  %v3365 = vadd.f32 %v3215, %v3364
  %v3366 = vpop.f32.mrb[0].mxu0
  %3367 = vmatprep.mubr.bf16.mxu0 0
  %3368 = vmatmul.mubr.bf16.gmra.mrb[0].mxu0 %v3230
  %v3369 = vpop.f32.mrb[0].mxu0
  %v3370 = vadd.f32 %v3215, %v3369
  %v3371 = vpop.f32.mrb[0].mxu0
  %v3372 = vpop.f32.mrb[0].mxu0
  %v3373 = vadd.f32 %v3215, %v3372
  %v3374 = vpop.f32.mrb[0].mxu0
  %3375 = vmatprep.mubr.bf16.mxu0 0
  %3376 = vmatmul.mubr.bf16.gmra.mrb[0].mxu0 %v3233
  %v3377 = vpop.f32.mrb[0].mxu0
  %v3378 = vadd.f32 %v3215, %v3377
  %v3379 = vpop.f32.mrb[0].mxu0
  %v3380 = vpop.f32.mrb[0].mxu0
  %v3381 = vadd.f32 %v3215, %v3380
  %v3382 = vpop.f32.mrb[0].mxu0
  %3383 = vmatprep.mubr.bf16.mxu0 0
  %3384 = vmatmul.mubr.bf16.gmra.mrb[0].mxu0 %v3236
  %v3385 = vpop.f32.mrb[0].mxu0
  %v3386 = vadd.f32 %v3215, %v3385
  %v3387 = vpop.f32.mrb[0].mxu0
  %v3388 = vpop.f32.mrb[0].mxu0
  %v3389 = vadd.f32 %v3215, %v3388
  %v3390 = vpop.f32.mrb[0].mxu0
  %3391 = vmatprep.mubr.bf16.mxu0 0
  %3392 = vmatmul.mubr.bf16.gmra.mrb[0].mxu0 %v3239
  %v3393 = vpop.f32.mrb[0].mxu0
  %v3394 = vadd.f32 %v3215, %v3393
  %v3395 = vpop.f32.mrb[0].mxu0
  %v3396 = vpop.f32.mrb[0].mxu0
  %v3397 = vadd.f32 %v3215, %v3396
  %v3398 = vpop.f32.mrb[0].mxu0
  %3399 = vmatprep.mubr.bf16.mxu0 0
  %3400 = vmatmul.mubr.bf16.gmra.mrb[0].mxu0 %v3242
  %v3401 = vpop.f32.mrb[0].mxu0
  %v3402 = vadd.f32 %v3215, %v3401
  %v3403 = vpop.f32.mrb[0].mxu0
  %v3404 = vpop.f32.mrb[0].mxu0
  %v3405 = vadd.f32 %v3215, %v3404
  %v3406 = vpop.f32.mrb[0].mxu0
  %3407 = vmatprep.mubr.bf16.mxu0 0
  %3408 = vmatmul.mubr.bf16.gmra.mrb[0].mxu0 %v3245
  %v3409 = vpop.f32.mrb[0].mxu0
  %v3410 = vadd.f32 %v3215, %v3409
  %v3411 = vpop.f32.mrb[0].mxu0
  %v3412 = vpop.f32.mrb[0].mxu0
  %v3413 = vadd.f32 %v3215, %v3412
  %v3414 = vpop.f32.mrb[0].mxu0
  %3415 = vmatprep.mubr.bf16.mxu0 0
  %3416 = vmatmul.mubr.bf16.gmra.mrb[0].mxu0 %v3248
  %v3417 = vpop.f32.mrb[0].mxu0
  %v3418 = vadd.f32 %v3215, %v3417
  %v3419 = vpop.f32.mrb[0].mxu0
  %v3420 = vpop.f32.mrb[0].mxu0
  %v3421 = vadd.f32 %v3215, %v3420
  %v3422 = vpop.f32.mrb[0].mxu0
  %3423 = vmatprep.mubr.bf16.mxu0 0
  %3424 = vmatmul.mubr.bf16.gmra.mrb[0].mxu0 %v3251
  %v3425 = vpop.f32.mrb[0].mxu0
  %v3426 = vadd.f32 %v3215, %v3425
  %v3427 = vpop.f32.mrb[0].mxu0
  %v3428 = vpop.f32.mrb[0].mxu0
  %v3429 = vadd.f32 %v3215, %v3428
  %v3430 = vpop.f32.mrb[0].mxu0
  %3431 = vmatprep.mubr.bf16.mxu0 0
  %3432 = vmatmul.mubr.bf16.gmra.mrb[0].mxu0 %v3254
  %v3433 = vpop.f32.mrb[0].mxu0
  %v3434 = vadd.f32 %v3215, %v3433
  %v3435 = vpop.f32.mrb[0].mxu0
  %v3436 = vpop.f32.mrb[0].mxu0
  %v3437 = vadd.f32 %v3215, %v3436
  %v3438 = vpop.f32.mrb[0].mxu0
  %3439 = vmatprep.mubr.bf16.mxu0 0
  %3440 = vmatmul.mubr.bf16.gmra.mrb[0].mxu0 %v3257
  %v3441 = vpop.f32.mrb[0].mxu0
  %v3442 = vadd.f32 %v3215, %v3441
  %v3443 = vpop.f32.mrb[0].mxu0
  %v3444 = vpop.f32.mrb[0].mxu0
  %v3445 = vadd.f32 %v3215, %v3444
  %v3446 = vpop.f32.mrb[0].mxu0
  %3447 = vmatprep.mubr.bf16.mxu0 0
  %3448 = vmatmul.mubr.bf16.gmra.mrb[0].mxu0 %v3260
  %v3449 = vpop.f32.mrb[0].mxu0
  %v3450 = vadd.f32 %v3215, %v3449
  %v3451 = vpop.f32.mrb[0].mxu0
  %v3452 = vpop.f32.mrb[0].mxu0
  %v3453 = vadd.f32 %v3215, %v3452
  %v3454 = vpop.f32.mrb[0].mxu0
  %3455 = vmatprep.mubr.bf16.mxu0 0
  %3456 = vmatmul.mubr.bf16.gmra.mrb[0].mxu0 %v3263
  %v3457 = vpop.f32.mrb[0].mxu0
  %v3458 = vadd.f32 %v3215, %v3457
  %v3459 = vpop.f32.mrb[0].mxu0
  %v3460 = vpop.f32.mrb[0].mxu0
  %v3461 = vadd.f32 %v3215, %v3460
  %v3462 = vpop.f32.mrb[0].mxu0
  %3463 = vmatprep.mubr.bf16.mxu0 0
  %3464 = vmatmul.mubr.bf16.gmra.mrb[0].mxu0 %v3266
  %v3465 = vpop.f32.mrb[0].mxu0
  %v3466 = vadd.f32 %v3215, %v3465
  %v3467 = vpop.f32.mrb[0].mxu0
  %v3468 = vpop.f32.mrb[0].mxu0
  %v3469 = vadd.f32 %v3215, %v3468
  %v3470 = vpop.f32.mrb[0].mxu0
  %3471 = vmatprep.mubr.bf16.mxu0 0
  %3472 = vmatmul.mubr.bf16.gmra.mrb[0].mxu0 %v3269
  %v3473 = vpop.f32.mrb[0].mxu0
  %v3474 = vadd.f32 %v3215, %v3473
  %v3475 = vpop.f32.mrb[0].mxu0
  %v3476 = vpop.f32.mrb[0].mxu0
  %v3477 = vadd.f32 %v3215, %v3476
  %v3478 = vpop.f32.mrb[0].mxu0
  %3479 = vmatprep.mubr.bf16.mxu0 0
  %3480 = vmatmul.mubr.bf16.gmra.mrb[0].mxu0 %v3272
  %v3481 = vpop.f32.mrb[0].mxu0
  %v3482 = vadd.f32 %v3215, %v3481
  %v3483 = vpop.f32.mrb[0].mxu0
  %v3484 = vpop.f32.mrb[0].mxu0
  %v3485 = vadd.f32 %v3215, %v3484
  %v3486 = vpop.f32.mrb[0].mxu0
  %3487 = vmatprep.mubr.bf16.mxu0 0
  %3488 = vmatmul.mubr.bf16.gmra.mrb[0].mxu0 %v3275
  %v3489 = vpop.f32.mrb[0].mxu0
  %v3490 = vadd.f32 %v3215, %v3489
  %v3491 = vpop.f32.mrb[0].mxu0
  %v3492 = vpop.f32.mrb[0].mxu0
  %v3493 = vadd.f32 %v3215, %v3492
  %v3494 = vpop.f32.mrb[0].mxu0
  %3495 = vmatprep.mubr.bf16.mxu0 0
  %3496 = vmatmul.mubr.bf16.gmra.mrb[0].mxu0 %v3278
  %v3497 = vpop.f32.mrb[0].mxu0
  %v3498 = vadd.f32 %v3215, %v3497
  %v3499 = vpop.f32.mrb[0].mxu0
  %v3500 = vpop.f32.mrb[0].mxu0
  %v3501 = vadd.f32 %v3215, %v3500
  %v3502 = vpop.f32.mrb[0].mxu0
  %3503 = vmatprep.mubr.bf16.mxu0 0
  %3504 = vmatmul.mubr.bf16.gmra.mrb[0].mxu0 %v3281
  %v3505 = vpop.f32.mrb[0].mxu0
  %v3506 = vadd.f32 %v3215, %v3505
  %v3507 = vpop.f32.mrb[0].mxu0
  %v3508 = vpop.f32.mrb[0].mxu0
  %v3509 = vadd.f32 %v3215, %v3508
  %v3510 = vpop.f32.mrb[0].mxu0
  %3511 = vmatprep.mubr.bf16.mxu0 0
  %3512 = vmatmul.mubr.bf16.gmra.mrb[0].mxu0 %v3284
  %v3513 = vpop.f32.mrb[0].mxu0
  %v3514 = vadd.f32 %v3215, %v3513
  %v3515 = vpop.f32.mrb[0].mxu0
  %v3516 = vpop.f32.mrb[0].mxu0
  %v3517 = vadd.f32 %v3215, %v3516
  %v3518 = vpop.f32.mrb[0].mxu0
  %3519 = vmatprep.mubr.bf16.mxu0 0
  %3520 = vmatmul.mubr.bf16.gmra.mrb[0].mxu0 %v3287
  %v3521 = vpop.f32.mrb[0].mxu0
  %v3522 = vadd.f32 %v3215, %v3521
  %v3523 = vpop.f32.mrb[0].mxu0
  %v3524 = vpop.f32.mrb[0].mxu0
  %v3525 = vadd.f32 %v3215, %v3524
  %v3526 = vpop.f32.mrb[0].mxu0
  %3527 = vmatprep.mubr.bf16.mxu0 0
  %3528 = vmatmul.mubr.bf16.gmra.mrb[0].mxu0 %v3290
  %v3529 = vpop.f32.mrb[0].mxu0
  %v3530 = vadd.f32 %v3215, %v3529
  %v3531 = vpop.f32.mrb[0].mxu0
  %v3532 = vpop.f32.mrb[0].mxu0
  %v3533 = vadd.f32 %v3215, %v3532
  %v3534 = vpop.f32.mrb[0].mxu0
  %3535 = vmatprep.mubr.bf16.mxu0 0
  %3536 = vmatmul.mubr.bf16.gmra.mrb[0].mxu0 %v3293
  %v3537 = vpop.f32.mrb[0].mxu0
  %v3538 = vadd.f32 %v3215, %v3537
  %v3539 = vpop.f32.mrb[0].mxu0
  %v3540 = vpop.f32.mrb[0].mxu0
  %v3541 = vadd.f32 %v3215, %v3540
  %v3542 = vpop.f32.mrb[0].mxu0
  %3543 = vmatprep.mubr.bf16.mxu0 0
  %3544 = vmatmul.mubr.bf16.gmra.mrb[0].mxu0 %v3296
  %v3545 = vpop.f32.mrb[0].mxu0
  %v3546 = vadd.f32 %v3215, %v3545
  %v3547 = vpop.f32.mrb[0].mxu0
  %v3548 = vpop.f32.mrb[0].mxu0
  %v3549 = vadd.f32 %v3215, %v3548
  %v3550 = vpop.f32.mrb[0].mxu0
  %3551 = vmatprep.mubr.bf16.mxu0 0
  %3552 = vmatmul.mubr.bf16.gmra.mrb[0].mxu0 %v3299
  %v3553 = vpop.f32.mrb[0].mxu0
  %v3554 = vadd.f32 %v3215, %v3553
  %v3555 = vpop.f32.mrb[0].mxu0
  %v3556 = vpop.f32.mrb[0].mxu0
  %v3557 = vadd.f32 %v3215, %v3556
  %v3558 = vpop.f32.mrb[0].mxu0
  %3559 = vmatprep.mubr.bf16.mxu0 0
  %3560 = vmatmul.mubr.bf16.gmra.mrb[0].mxu0 %v3302
  %v3561 = vpop.f32.mrb[0].mxu0
  %v3562 = vadd.f32 %v3215, %v3561
  %v3563 = vpop.f32.mrb[0].mxu0
  %v3564 = vpop.f32.mrb[0].mxu0
  %v3565 = vadd.f32 %v3215, %v3564
  %v3566 = vpop.f32.mrb[0].mxu0
  %3567 = vmatprep.mubr.bf16.mxu0 0
  %3568 = vmatmul.mubr.bf16.gmra.mrb[0].mxu0 %v3305
  %v3569 = vpop.f32.mrb[0].mxu0
  %v3570 = vadd.f32 %v3215, %v3569
  %v3571 = vpop.f32.mrb[0].mxu0
  %v3572 = vpop.f32.mrb[0].mxu0
  %v3573 = vadd.f32 %v3215, %v3572
  %v3574 = vpop.f32.mrb[0].mxu0
  %3575 = vmatprep.mubr.bf16.mxu0 0
  %3576 = vmatmul.mubr.bf16.gmra.mrb[0].mxu0 %v3308
  %v3577 = vpop.f32.mrb[0].mxu0
  %v3578 = vadd.f32 %v3215, %v3577
  %v3579 = vpop.f32.mrb[0].mxu0
  %v3580 = vpop.f32.mrb[0].mxu0
  %v3581 = vadd.f32 %v3215, %v3580
  %v3582 = vpop.f32.mrb[0].mxu0
  %3583 = vmatprep.mubr.bf16.mxu0 0
  %3584 = vmatmul.mubr.bf16.gmra.mrb[0].mxu0 %v3311
  %v3585 = vpop.f32.mrb[0].mxu0
  %v3586 = vadd.f32 %v3215, %v3585
  %v3587 = vpop.f32.mrb[0].mxu0
  %v3588 = vpop.f32.mrb[0].mxu0
  %v3589 = vadd.f32 %v3215, %v3588
  %v3590 = vpop.f32.mrb[0].mxu0
  %3591 = vmatprep.mubr.bf16.mxu0 0
  %3592 = vmatmul.mubr.bf16.gmra.mrb[0].mxu0 %v3314
  %v3593 = vpop.f32.mrb[0].mxu0
  %v3594 = vadd.f32 %v3215, %v3593
  %v3595 = vpop.f32.mrb[0].mxu0
  %v3596 = vpop.f32.mrb[0].mxu0
  %v3597 = vadd.f32 %v3215, %v3596
  %v3598 = vpop.f32.mrb[0].mxu0
  %3599 = vmatprep.mubr.bf16.mxu0 0
  %3600 = vmatmul.mubr.bf16.gmra.mrb[0].mxu0 %v3317
  %v3601 = vpop.f32.mrb[0].mxu0
  %v3602 = vadd.f32 %v3215, %v3601
  %v3603 = vpop.f32.mrb[0].mxu0
  %v3604 = vpop.f32.mrb[0].mxu0
  %v3605 = vadd.f32 %v3215, %v3604
  %v3606 = vpop.f32.mrb[0].mxu0
  %3607 = vdwg.mxu0
  %v3608 = vmul.f32 %v3354, %v3354
  %v3609 = vmul.f32 %v3357, %v3357
  %v3610 = vmul.f32 %v3362, %v3362
  %v3611 = vmul.f32 %v3365, %v3365
  %v3612 = vmul.f32 %v3370, %v3370
  %v3613 = vmul.f32 %v3373, %v3373
  %v3614 = vmul.f32 %v3378, %v3378
  %v3615 = vmul.f32 %v3381, %v3381
  %v3616 = vmul.f32 %v3386, %v3386
  %v3617 = vmul.f32 %v3389, %v3389
  %v3618 = vmul.f32 %v3394, %v3394
  %v3619 = vmul.f32 %v3397, %v3397
  %v3620 = vmul.f32 %v3402, %v3402
  %v3621 = vmul.f32 %v3405, %v3405
  %v3622 = vmul.f32 %v3410, %v3410
  %v3623 = vmul.f32 %v3413, %v3413
  %v3624 = vmul.f32 %v3418, %v3418
  %v3625 = vmul.f32 %v3421, %v3421
  %v3626 = vmul.f32 %v3426, %v3426
  %v3627 = vmul.f32 %v3429, %v3429
  %v3628 = vmul.f32 %v3434, %v3434
  %v3629 = vmul.f32 %v3437, %v3437
  %v3630 = vmul.f32 %v3442, %v3442
  %v3631 = vmul.f32 %v3445, %v3445
  %v3632 = vmul.f32 %v3450, %v3450
  %v3633 = vmul.f32 %v3453, %v3453
  %v3634 = vmul.f32 %v3458, %v3458
  %v3635 = vmul.f32 %v3461, %v3461
  %v3636 = vmul.f32 %v3466, %v3466
  %v3637 = vmul.f32 %v3469, %v3469
  %v3638 = vmul.f32 %v3474, %v3474
  %v3639 = vmul.f32 %v3477, %v3477
  %v3640 = vmul.f32 %v3482, %v3482
  %v3641 = vmul.f32 %v3485, %v3485
  %v3642 = vmul.f32 %v3490, %v3490
  %v3643 = vmul.f32 %v3493, %v3493
  %v3644 = vmul.f32 %v3498, %v3498
  %v3645 = vmul.f32 %v3501, %v3501
  %v3646 = vmul.f32 %v3506, %v3506
  %v3647 = vmul.f32 %v3509, %v3509
  %v3648 = vmul.f32 %v3514, %v3514
  %v3649 = vmul.f32 %v3517, %v3517
  %v3650 = vmul.f32 %v3522, %v3522
  %v3651 = vmul.f32 %v3525, %v3525
  %v3652 = vmul.f32 %v3530, %v3530
  %v3653 = vmul.f32 %v3533, %v3533
  %v3654 = vmul.f32 %v3538, %v3538
  %v3655 = vmul.f32 %v3541, %v3541
  %v3656 = vmul.f32 %v3546, %v3546
  %v3657 = vmul.f32 %v3549, %v3549
  %v3658 = vmul.f32 %v3554, %v3554
  %v3659 = vmul.f32 %v3557, %v3557
  %v3660 = vmul.f32 %v3562, %v3562
  %v3661 = vmul.f32 %v3565, %v3565
  %v3662 = vmul.f32 %v3570, %v3570
  %v3663 = vmul.f32 %v3573, %v3573
  %v3664 = vmul.f32 %v3578, %v3578
  %v3665 = vmul.f32 %v3581, %v3581
  %v3666 = vmul.f32 %v3586, %v3586
  %v3667 = vmul.f32 %v3589, %v3589
  %v3668 = vmul.f32 %v3594, %v3594
  %v3669 = vmul.f32 %v3597, %v3597
  %v3670 = vmul.f32 %v3602, %v3602
  %v3671 = vmul.f32 %v3605, %v3605
  %v3672 = vmul.f32 %v3354, %v3608
  %v3673 = vmul.f32 %v3357, %v3609
  %v3674 = vmul.f32 %v3362, %v3610
  %v3675 = vmul.f32 %v3365, %v3611
  %v3676 = vmul.f32 %v3370, %v3612
  %v3677 = vmul.f32 %v3373, %v3613
  %v3678 = vmul.f32 %v3378, %v3614
  %v3679 = vmul.f32 %v3381, %v3615
  %v3680 = vmul.f32 %v3386, %v3616
  %v3681 = vmul.f32 %v3389, %v3617
  %v3682 = vmul.f32 %v3394, %v3618
  %v3683 = vmul.f32 %v3397, %v3619
  %v3684 = vmul.f32 %v3402, %v3620
  %v3685 = vmul.f32 %v3405, %v3621
  %v3686 = vmul.f32 %v3410, %v3622
  %v3687 = vmul.f32 %v3413, %v3623
  %v3688 = vmul.f32 %v3418, %v3624
  %v3689 = vmul.f32 %v3421, %v3625
  %v3690 = vmul.f32 %v3426, %v3626
  %v3691 = vmul.f32 %v3429, %v3627
  %v3692 = vmul.f32 %v3434, %v3628
  %v3693 = vmul.f32 %v3437, %v3629
  %v3694 = vmul.f32 %v3442, %v3630
  %v3695 = vmul.f32 %v3445, %v3631
  %v3696 = vmul.f32 %v3450, %v3632
  %v3697 = vmul.f32 %v3453, %v3633
  %v3698 = vmul.f32 %v3458, %v3634
  %v3699 = vmul.f32 %v3461, %v3635
  %v3700 = vmul.f32 %v3466, %v3636
  %v3701 = vmul.f32 %v3469, %v3637
  %v3702 = vmul.f32 %v3474, %v3638
  %v3703 = vmul.f32 %v3477, %v3639
  %v3704 = vmul.f32 %v3482, %v3640
  %v3705 = vmul.f32 %v3485, %v3641
  %v3706 = vmul.f32 %v3490, %v3642
  %v3707 = vmul.f32 %v3493, %v3643
  %v3708 = vmul.f32 %v3498, %v3644
  %v3709 = vmul.f32 %v3501, %v3645
  %v3710 = vmul.f32 %v3506, %v3646
  %v3711 = vmul.f32 %v3509, %v3647
  %v3712 = vmul.f32 %v3514, %v3648
  %v3713 = vmul.f32 %v3517, %v3649
  %v3714 = vmul.f32 %v3522, %v3650
  %v3715 = vmul.f32 %v3525, %v3651
  %v3716 = vmul.f32 %v3530, %v3652
  %v3717 = vmul.f32 %v3533, %v3653
  %v3718 = vmul.f32 %v3538, %v3654
  %v3719 = vmul.f32 %v3541, %v3655
  %v3720 = vmul.f32 %v3546, %v3656
  %v3721 = vmul.f32 %v3549, %v3657
  %v3722 = vmul.f32 %v3554, %v3658
  %v3723 = vmul.f32 %v3557, %v3659
  %v3724 = vmul.f32 %v3562, %v3660
  %v3725 = vmul.f32 %v3565, %v3661
  %v3726 = vmul.f32 %v3570, %v3662
  %v3727 = vmul.f32 %v3573, %v3663
  %v3728 = vmul.f32 %v3578, %v3664
  %v3729 = vmul.f32 %v3581, %v3665
  %v3730 = vmul.f32 %v3586, %v3666
  %v3731 = vmul.f32 %v3589, %v3667
  %v3732 = vmul.f32 %v3594, %v3668
  %v3733 = vmul.f32 %v3597, %v3669
  %v3734 = vmul.f32 %v3602, %v3670
  %v3735 = vmul.f32 %v3605, %v3671
  %v3736 = vmul.f32 %v3672, 0.044715
  %v3737 = vmul.f32 %v3673, 0.044715
  %v3738 = vmul.f32 %v3674, 0.044715
  %v3739 = vmul.f32 %v3675, 0.044715
  %v3740 = vmul.f32 %v3676, 0.044715
  %v3741 = vmul.f32 %v3677, 0.044715
  %v3742 = vmul.f32 %v3678, 0.044715
  %v3743 = vmul.f32 %v3679, 0.044715
  %v3744 = vmul.f32 %v3680, 0.044715
  %v3745 = vmul.f32 %v3681, 0.044715
  %v3746 = vmul.f32 %v3682, 0.044715
  %v3747 = vmul.f32 %v3683, 0.044715
  %v3748 = vmul.f32 %v3684, 0.044715
  %v3749 = vmul.f32 %v3685, 0.044715
  %v3750 = vmul.f32 %v3686, 0.044715
  %v3751 = vmul.f32 %v3687, 0.044715
  %v3752 = vmul.f32 %v3688, 0.044715
  %v3753 = vmul.f32 %v3689, 0.044715
  %v3754 = vmul.f32 %v3690, 0.044715
  %v3755 = vmul.f32 %v3691, 0.044715
  %v3756 = vmul.f32 %v3692, 0.044715
  %v3757 = vmul.f32 %v3693, 0.044715
  %v3758 = vmul.f32 %v3694, 0.044715
  %v3759 = vmul.f32 %v3695, 0.044715
  %v3760 = vmul.f32 %v3696, 0.044715
  %v3761 = vmul.f32 %v3697, 0.044715
  %v3762 = vmul.f32 %v3698, 0.044715
  %v3763 = vmul.f32 %v3699, 0.044715
  %v3764 = vmul.f32 %v3700, 0.044715
  %v3765 = vmul.f32 %v3701, 0.044715
  %v3766 = vmul.f32 %v3702, 0.044715
  %v3767 = vmul.f32 %v3703, 0.044715
  %v3768 = vmul.f32 %v3704, 0.044715
  %v3769 = vmul.f32 %v3705, 0.044715
  %v3770 = vmul.f32 %v3706, 0.044715
  %v3771 = vmul.f32 %v3707, 0.044715
  %v3772 = vmul.f32 %v3708, 0.044715
  %v3773 = vmul.f32 %v3709, 0.044715
  %v3774 = vmul.f32 %v3710, 0.044715
  %v3775 = vmul.f32 %v3711, 0.044715
  %v3776 = vmul.f32 %v3712, 0.044715
  %v3777 = vmul.f32 %v3713, 0.044715
  %v3778 = vmul.f32 %v3714, 0.044715
  %v3779 = vmul.f32 %v3715, 0.044715
  %v3780 = vmul.f32 %v3716, 0.044715
  %v3781 = vmul.f32 %v3717, 0.044715
  %v3782 = vmul.f32 %v3718, 0.044715
  %v3783 = vmul.f32 %v3719, 0.044715
  %v3784 = vmul.f32 %v3720, 0.044715
  %v3785 = vmul.f32 %v3721, 0.044715
  %v3786 = vmul.f32 %v3722, 0.044715
  %v3787 = vmul.f32 %v3723, 0.044715
  %v3788 = vmul.f32 %v3724, 0.044715
  %v3789 = vmul.f32 %v3725, 0.044715
  %v3790 = vmul.f32 %v3726, 0.044715
  %v3791 = vmul.f32 %v3727, 0.044715
  %v3792 = vmul.f32 %v3728, 0.044715
  %v3793 = vmul.f32 %v3729, 0.044715
  %v3794 = vmul.f32 %v3730, 0.044715
  %v3795 = vmul.f32 %v3731, 0.044715
  %v3796 = vmul.f32 %v3732, 0.044715
  %v3797 = vmul.f32 %v3733, 0.044715
  %v3798 = vmul.f32 %v3734, 0.044715
  %v3799 = vmul.f32 %v3735, 0.044715
  %v3800 = vadd.f32 %v3354, %v3736
  %v3801 = vadd.f32 %v3357, %v3737
  %v3802 = vadd.f32 %v3362, %v3738
  %v3803 = vadd.f32 %v3365, %v3739
  %v3804 = vadd.f32 %v3370, %v3740
  %v3805 = vadd.f32 %v3373, %v3741
  %v3806 = vadd.f32 %v3378, %v3742
  %v3807 = vadd.f32 %v3381, %v3743
  %v3808 = vadd.f32 %v3386, %v3744
  %v3809 = vadd.f32 %v3389, %v3745
  %v3810 = vadd.f32 %v3394, %v3746
  %v3811 = vadd.f32 %v3397, %v3747
  %v3812 = vadd.f32 %v3402, %v3748
  %v3813 = vadd.f32 %v3405, %v3749
  %v3814 = vadd.f32 %v3410, %v3750
  %v3815 = vadd.f32 %v3413, %v3751
  %v3816 = vadd.f32 %v3418, %v3752
  %v3817 = vadd.f32 %v3421, %v3753
  %v3818 = vadd.f32 %v3426, %v3754
  %v3819 = vadd.f32 %v3429, %v3755
  %v3820 = vadd.f32 %v3434, %v3756
  %v3821 = vadd.f32 %v3437, %v3757
  %v3822 = vadd.f32 %v3442, %v3758
  %v3823 = vadd.f32 %v3445, %v3759
  %v3824 = vadd.f32 %v3450, %v3760
  %v3825 = vadd.f32 %v3453, %v3761
  %v3826 = vadd.f32 %v3458, %v3762
  %v3827 = vadd.f32 %v3461, %v3763
  %v3828 = vadd.f32 %v3466, %v3764
  %v3829 = vadd.f32 %v3469, %v3765
  %v3830 = vadd.f32 %v3474, %v3766
  %v3831 = vadd.f32 %v3477, %v3767
  %v3832 = vadd.f32 %v3482, %v3768
  %v3833 = vadd.f32 %v3485, %v3769
  %v3834 = vadd.f32 %v3490, %v3770
  %v3835 = vadd.f32 %v3493, %v3771
  %v3836 = vadd.f32 %v3498, %v3772
  %v3837 = vadd.f32 %v3501, %v3773
  %v3838 = vadd.f32 %v3506, %v3774
  %v3839 = vadd.f32 %v3509, %v3775
  %v3840 = vadd.f32 %v3514, %v3776
  %v3841 = vadd.f32 %v3517, %v3777
  %v3842 = vadd.f32 %v3522, %v3778
  %v3843 = vadd.f32 %v3525, %v3779
  %v3844 = vadd.f32 %v3530, %v3780
  %v3845 = vadd.f32 %v3533, %v3781
  %v3846 = vadd.f32 %v3538, %v3782
  %v3847 = vadd.f32 %v3541, %v3783
  %v3848 = vadd.f32 %v3546, %v3784
  %v3849 = vadd.f32 %v3549, %v3785
  %v3850 = vadd.f32 %v3554, %v3786
  %v3851 = vadd.f32 %v3557, %v3787
  %v3852 = vadd.f32 %v3562, %v3788
  %v3853 = vadd.f32 %v3565, %v3789
  %v3854 = vadd.f32 %v3570, %v3790
  %v3855 = vadd.f32 %v3573, %v3791
  %v3856 = vadd.f32 %v3578, %v3792
  %v3857 = vadd.f32 %v3581, %v3793
  %v3858 = vadd.f32 %v3586, %v3794
  %v3859 = vadd.f32 %v3589, %v3795
  %v3860 = vadd.f32 %v3594, %v3796
  %v3861 = vadd.f32 %v3597, %v3797
  %v3862 = vadd.f32 %v3602, %v3798
  %v3863 = vadd.f32 %v3605, %v3799
  %v3864 = vmul.f32 %v3800, 0.7978846
  %v3865 = vmul.f32 %v3801, 0.7978846
  %v3866 = vmul.f32 %v3802, 0.7978846
  %v3867 = vmul.f32 %v3803, 0.7978846
  %v3868 = vmul.f32 %v3804, 0.7978846
  %v3869 = vmul.f32 %v3805, 0.7978846
  %v3870 = vmul.f32 %v3806, 0.7978846
  %v3871 = vmul.f32 %v3807, 0.7978846
  %v3872 = vmul.f32 %v3808, 0.7978846
  %v3873 = vmul.f32 %v3809, 0.7978846
  %v3874 = vmul.f32 %v3810, 0.7978846
  %v3875 = vmul.f32 %v3811, 0.7978846
  %v3876 = vmul.f32 %v3812, 0.7978846
  %v3877 = vmul.f32 %v3813, 0.7978846
  %v3878 = vmul.f32 %v3814, 0.7978846
  %v3879 = vmul.f32 %v3815, 0.7978846
  %v3880 = vmul.f32 %v3816, 0.7978846
  %v3881 = vmul.f32 %v3817, 0.7978846
  %v3882 = vmul.f32 %v3818, 0.7978846
  %v3883 = vmul.f32 %v3819, 0.7978846
  %v3884 = vmul.f32 %v3820, 0.7978846
  %v3885 = vmul.f32 %v3821, 0.7978846
  %v3886 = vmul.f32 %v3822, 0.7978846
  %v3887 = vmul.f32 %v3823, 0.7978846
  %v3888 = vmul.f32 %v3824, 0.7978846
  %v3889 = vmul.f32 %v3825, 0.7978846
  %v3890 = vmul.f32 %v3826, 0.7978846
  %v3891 = vmul.f32 %v3827, 0.7978846
  %v3892 = vmul.f32 %v3828, 0.7978846
  %v3893 = vmul.f32 %v3829, 0.7978846
  %v3894 = vmul.f32 %v3830, 0.7978846
  %v3895 = vmul.f32 %v3831, 0.7978846
  %v3896 = vmul.f32 %v3832, 0.7978846
  %v3897 = vmul.f32 %v3833, 0.7978846
  %v3898 = vmul.f32 %v3834, 0.7978846
  %v3899 = vmul.f32 %v3835, 0.7978846
  %v3900 = vmul.f32 %v3836, 0.7978846
  %v3901 = vmul.f32 %v3837, 0.7978846
  %v3902 = vmul.f32 %v3838, 0.7978846
  %v3903 = vmul.f32 %v3839, 0.7978846
  %v3904 = vmul.f32 %v3840, 0.7978846
  %v3905 = vmul.f32 %v3841, 0.7978846
  %v3906 = vmul.f32 %v3842, 0.7978846
  %v3907 = vmul.f32 %v3843, 0.7978846
  %v3908 = vmul.f32 %v3844, 0.7978846
  %v3909 = vmul.f32 %v3845, 0.7978846
  %v3910 = vmul.f32 %v3846, 0.7978846
  %v3911 = vmul.f32 %v3847, 0.7978846
  %v3912 = vmul.f32 %v3848, 0.7978846
  %v3913 = vmul.f32 %v3849, 0.7978846
  %v3914 = vmul.f32 %v3850, 0.7978846
  %v3915 = vmul.f32 %v3851, 0.7978846
  %v3916 = vmul.f32 %v3852, 0.7978846
  %v3917 = vmul.f32 %v3853, 0.7978846
  %v3918 = vmul.f32 %v3854, 0.7978846
  %v3919 = vmul.f32 %v3855, 0.7978846
  %v3920 = vmul.f32 %v3856, 0.7978846
  %v3921 = vmul.f32 %v3857, 0.7978846
  %v3922 = vmul.f32 %v3858, 0.7978846
  %v3923 = vmul.f32 %v3859, 0.7978846
  %v3924 = vmul.f32 %v3860, 0.7978846
  %v3925 = vmul.f32 %v3861, 0.7978846
  %v3926 = vmul.f32 %v3862, 0.7978846
  %v3927 = vmul.f32 %v3863, 0.7978846
  %v3928 = vtanh.pop %v3864
  %v3929 = vtanh.pop %v3865
  %v3930 = vtanh.pop %v3866
  %v3931 = vtanh.pop %v3867
  %v3932 = vtanh.pop %v3868
  %v3933 = vtanh.pop %v3869
  %v3934 = vtanh.pop %v3870
  %v3935 = vtanh.pop %v3871
  %v3936 = vtanh.pop %v3872
  %v3937 = vtanh.pop %v3873
  %v3938 = vtanh.pop %v3874
  %v3939 = vtanh.pop %v3875
  %v3940 = vtanh.pop %v3876
  %v3941 = vtanh.pop %v3877
  %v3942 = vtanh.pop %v3878
  %v3943 = vtanh.pop %v3879
  %v3944 = vtanh.pop %v3880
  %v3945 = vtanh.pop %v3881
  %v3946 = vtanh.pop %v3882
  %v3947 = vtanh.pop %v3883
  %v3948 = vtanh.pop %v3884
  %v3949 = vtanh.pop %v3885
  %v3950 = vtanh.pop %v3886
  %v3951 = vtanh.pop %v3887
  %v3952 = vtanh.pop %v3888
  %v3953 = vtanh.pop %v3889
  %v3954 = vtanh.pop %v3890
  %v3955 = vtanh.pop %v3891
  %v3956 = vtanh.pop %v3892
  %v3957 = vtanh.pop %v3893
  %v3958 = vtanh.pop %v3894
  %v3959 = vtanh.pop %v3895
  %v3960 = vtanh.pop %v3896
  %v3961 = vtanh.pop %v3897
  %v3962 = vtanh.pop %v3898
  %v3963 = vtanh.pop %v3899
  %v3964 = vtanh.pop %v3900
  %v3965 = vtanh.pop %v3901
  %v3966 = vtanh.pop %v3902
  %v3967 = vtanh.pop %v3903
  %v3968 = vtanh.pop %v3904
  %v3969 = vtanh.pop %v3905
  %v3970 = vtanh.pop %v3906
  %v3971 = vtanh.pop %v3907
  %v3972 = vtanh.pop %v3908
  %v3973 = vtanh.pop %v3909
  %v3974 = vtanh.pop %v3910
  %v3975 = vtanh.pop %v3911
  %v3976 = vtanh.pop %v3912
  %v3977 = vtanh.pop %v3913
  %v3978 = vtanh.pop %v3914
  %v3979 = vtanh.pop %v3915
  %v3980 = vtanh.pop %v3916
  %v3981 = vtanh.pop %v3917
  %v3982 = vtanh.pop %v3918
  %v3983 = vtanh.pop %v3919
  %v3984 = vtanh.pop %v3920
  %v3985 = vtanh.pop %v3921
  %v3986 = vtanh.pop %v3922
  %v3987 = vtanh.pop %v3923
  %v3988 = vtanh.pop %v3924
  %v3989 = vtanh.pop %v3925
  %v3990 = vtanh.pop %v3926
  %v3991 = vtanh.pop %v3927
  %v3992 = vadd.f32 %v3928, 1.0
  %v3993 = vadd.f32 %v3929, 1.0
  %v3994 = vadd.f32 %v3930, 1.0
  %v3995 = vadd.f32 %v3931, 1.0
  %v3996 = vadd.f32 %v3932, 1.0
  %v3997 = vadd.f32 %v3933, 1.0
  %v3998 = vadd.f32 %v3934, 1.0
  %v3999 = vadd.f32 %v3935, 1.0
  %v4000 = vadd.f32 %v3936, 1.0
  %v4001 = vadd.f32 %v3937, 1.0
  %v4002 = vadd.f32 %v3938, 1.0
  %v4003 = vadd.f32 %v3939, 1.0
  %v4004 = vadd.f32 %v3940, 1.0
  %v4005 = vadd.f32 %v3941, 1.0
  %v4006 = vadd.f32 %v3942, 1.0
  %v4007 = vadd.f32 %v3943, 1.0
  %v4008 = vadd.f32 %v3944, 1.0
  %v4009 = vadd.f32 %v3945, 1.0
  %v4010 = vadd.f32 %v3946, 1.0
  %v4011 = vadd.f32 %v3947, 1.0
  %v4012 = vadd.f32 %v3948, 1.0
  %v4013 = vadd.f32 %v3949, 1.0
  %v4014 = vadd.f32 %v3950, 1.0
  %v4015 = vadd.f32 %v3951, 1.0
  %v4016 = vadd.f32 %v3952, 1.0
  %v4017 = vadd.f32 %v3953, 1.0
  %v4018 = vadd.f32 %v3954, 1.0
  %v4019 = vadd.f32 %v3955, 1.0
  %v4020 = vadd.f32 %v3956, 1.0
  %v4021 = vadd.f32 %v3957, 1.0
  %v4022 = vadd.f32 %v3958, 1.0
  %v4023 = vadd.f32 %v3959, 1.0
  %v4024 = vadd.f32 %v3960, 1.0
  %v4025 = vadd.f32 %v3961, 1.0
  %v4026 = vadd.f32 %v3962, 1.0
  %v4027 = vadd.f32 %v3963, 1.0
  %v4028 = vadd.f32 %v3964, 1.0
  %v4029 = vadd.f32 %v3965, 1.0
  %v4030 = vadd.f32 %v3966, 1.0
  %v4031 = vadd.f32 %v3967, 1.0
  %v4032 = vadd.f32 %v3968, 1.0
  %v4033 = vadd.f32 %v3969, 1.0
  %v4034 = vadd.f32 %v3970, 1.0
  %v4035 = vadd.f32 %v3971, 1.0
  %v4036 = vadd.f32 %v3972, 1.0
  %v4037 = vadd.f32 %v3973, 1.0
  %v4038 = vadd.f32 %v3974, 1.0
  %v4039 = vadd.f32 %v3975, 1.0
  %v4040 = vadd.f32 %v3976, 1.0
  %v4041 = vadd.f32 %v3977, 1.0
  %v4042 = vadd.f32 %v3978, 1.0
  %v4043 = vadd.f32 %v3979, 1.0
  %v4044 = vadd.f32 %v3980, 1.0
  %v4045 = vadd.f32 %v3981, 1.0
  %v4046 = vadd.f32 %v3982, 1.0
  %v4047 = vadd.f32 %v3983, 1.0
  %v4048 = vadd.f32 %v3984, 1.0
  %v4049 = vadd.f32 %v3985, 1.0
  %v4050 = vadd.f32 %v3986, 1.0
  %v4051 = vadd.f32 %v3987, 1.0
  %v4052 = vadd.f32 %v3988, 1.0
  %v4053 = vadd.f32 %v3989, 1.0
  %v4054 = vadd.f32 %v3990, 1.0
  %v4055 = vadd.f32 %v3991, 1.0
  %v4056 = vmul.f32 %v3992, 0.5
  %v4057 = vmul.f32 %v3993, 0.5
  %v4058 = vmul.f32 %v3994, 0.5
  %v4059 = vmul.f32 %v3995, 0.5
  %v4060 = vmul.f32 %v3996, 0.5
  %v4061 = vmul.f32 %v3997, 0.5
  %v4062 = vmul.f32 %v3998, 0.5
  %v4063 = vmul.f32 %v3999, 0.5
  %v4064 = vmul.f32 %v4000, 0.5
  %v4065 = vmul.f32 %v4001, 0.5
  %v4066 = vmul.f32 %v4002, 0.5
  %v4067 = vmul.f32 %v4003, 0.5
  %v4068 = vmul.f32 %v4004, 0.5
  %v4069 = vmul.f32 %v4005, 0.5
  %v4070 = vmul.f32 %v4006, 0.5
  %v4071 = vmul.f32 %v4007, 0.5
  %v4072 = vmul.f32 %v4008, 0.5
  %v4073 = vmul.f32 %v4009, 0.5
  %v4074 = vmul.f32 %v4010, 0.5
  %v4075 = vmul.f32 %v4011, 0.5
  %v4076 = vmul.f32 %v4012, 0.5
  %v4077 = vmul.f32 %v4013, 0.5
  %v4078 = vmul.f32 %v4014, 0.5
  %v4079 = vmul.f32 %v4015, 0.5
  %v4080 = vmul.f32 %v4016, 0.5
  %v4081 = vmul.f32 %v4017, 0.5
  %v4082 = vmul.f32 %v4018, 0.5
  %v4083 = vmul.f32 %v4019, 0.5
  %v4084 = vmul.f32 %v4020, 0.5
  %v4085 = vmul.f32 %v4021, 0.5
  %v4086 = vmul.f32 %v4022, 0.5
  %v4087 = vmul.f32 %v4023, 0.5
  %v4088 = vmul.f32 %v4024, 0.5
  %v4089 = vmul.f32 %v4025, 0.5
  %v4090 = vmul.f32 %v4026, 0.5
  %v4091 = vmul.f32 %v4027, 0.5
  %v4092 = vmul.f32 %v4028, 0.5
  %v4093 = vmul.f32 %v4029, 0.5
  %v4094 = vmul.f32 %v4030, 0.5
  %v4095 = vmul.f32 %v4031, 0.5
  %v4096 = vmul.f32 %v4032, 0.5
  %v4097 = vmul.f32 %v4033, 0.5
  %v4098 = vmul.f32 %v4034, 0.5
  %v4099 = vmul.f32 %v4035, 0.5
  %v4100 = vmul.f32 %v4036, 0.5
  %v4101 = vmul.f32 %v4037, 0.5
  %v4102 = vmul.f32 %v4038, 0.5
  %v4103 = vmul.f32 %v4039, 0.5
  %v4104 = vmul.f32 %v4040, 0.5
  %v4105 = vmul.f32 %v4041, 0.5
  %v4106 = vmul.f32 %v4042, 0.5
  %v4107 = vmul.f32 %v4043, 0.5
  %v4108 = vmul.f32 %v4044, 0.5
  %v4109 = vmul.f32 %v4045, 0.5
  %v4110 = vmul.f32 %v4046, 0.5
  %v4111 = vmul.f32 %v4047, 0.5
  %v4112 = vmul.f32 %v4048, 0.5
  %v4113 = vmul.f32 %v4049, 0.5
  %v4114 = vmul.f32 %v4050, 0.5
  %v4115 = vmul.f32 %v4051, 0.5
  %v4116 = vmul.f32 %v4052, 0.5
  %v4117 = vmul.f32 %v4053, 0.5
  %v4118 = vmul.f32 %v4054, 0.5
  %v4119 = vmul.f32 %v4055, 0.5
  %v4120 = vmul.f32 %v3354, %v4056
  %v4121 = vmul.f32 %v3357, %v4057
  %v4122 = vmul.f32 %v3362, %v4058
  %v4123 = vmul.f32 %v3365, %v4059
  %v4124 = vmul.f32 %v3370, %v4060
  %v4125 = vmul.f32 %v3373, %v4061
  %v4126 = vmul.f32 %v3378, %v4062
  %v4127 = vmul.f32 %v3381, %v4063
  %v4128 = vmul.f32 %v3386, %v4064
  %v4129 = vmul.f32 %v3389, %v4065
  %v4130 = vmul.f32 %v3394, %v4066
  %v4131 = vmul.f32 %v3397, %v4067
  %v4132 = vmul.f32 %v3402, %v4068
  %v4133 = vmul.f32 %v3405, %v4069
  %v4134 = vmul.f32 %v3410, %v4070
  %v4135 = vmul.f32 %v3413, %v4071
  %v4136 = vmul.f32 %v3418, %v4072
  %v4137 = vmul.f32 %v3421, %v4073
  %v4138 = vmul.f32 %v3426, %v4074
  %v4139 = vmul.f32 %v3429, %v4075
  %v4140 = vmul.f32 %v3434, %v4076
  %v4141 = vmul.f32 %v3437, %v4077
  %v4142 = vmul.f32 %v3442, %v4078
  %v4143 = vmul.f32 %v3445, %v4079
  %v4144 = vmul.f32 %v3450, %v4080
  %v4145 = vmul.f32 %v3453, %v4081
  %v4146 = vmul.f32 %v3458, %v4082
  %v4147 = vmul.f32 %v3461, %v4083
  %v4148 = vmul.f32 %v3466, %v4084
  %v4149 = vmul.f32 %v3469, %v4085
  %v4150 = vmul.f32 %v3474, %v4086
  %v4151 = vmul.f32 %v3477, %v4087
  %v4152 = vmul.f32 %v3482, %v4088
  %v4153 = vmul.f32 %v3485, %v4089
  %v4154 = vmul.f32 %v3490, %v4090
  %v4155 = vmul.f32 %v3493, %v4091
  %v4156 = vmul.f32 %v3498, %v4092
  %v4157 = vmul.f32 %v3501, %v4093
  %v4158 = vmul.f32 %v3506, %v4094
  %v4159 = vmul.f32 %v3509, %v4095
  %v4160 = vmul.f32 %v3514, %v4096
  %v4161 = vmul.f32 %v3517, %v4097
  %v4162 = vmul.f32 %v3522, %v4098
  %v4163 = vmul.f32 %v3525, %v4099
  %v4164 = vmul.f32 %v3530, %v4100
  %v4165 = vmul.f32 %v3533, %v4101
  %v4166 = vmul.f32 %v3538, %v4102
  %v4167 = vmul.f32 %v3541, %v4103
  %v4168 = vmul.f32 %v3546, %v4104
  %v4169 = vmul.f32 %v3549, %v4105
  %v4170 = vmul.f32 %v3554, %v4106
  %v4171 = vmul.f32 %v3557, %v4107
  %v4172 = vmul.f32 %v3562, %v4108
  %v4173 = vmul.f32 %v3565, %v4109
  %v4174 = vmul.f32 %v3570, %v4110
  %v4175 = vmul.f32 %v3573, %v4111
  %v4176 = vmul.f32 %v3578, %v4112
  %v4177 = vmul.f32 %v3581, %v4113
  %v4178 = vmul.f32 %v3586, %v4114
  %v4179 = vmul.f32 %v3589, %v4115
  %v4180 = vmul.f32 %v3594, %v4116
  %v4181 = vmul.f32 %v3597, %v4117
  %v4182 = vmul.f32 %v3602, %v4118
  %v4183 = vmul.f32 %v3605, %v4119
  %v4184 = vld [vmem:[%s1 + $0x48] sm:$0xf]
  %v4185 = vld [vmem:[%s2 + $0x5] sm:$0x1]
  %v4186 = vpack.c.bf16 %v4121, %v4120
  %v4187 = vpack.c.bf16 %v4123, %v4122
  %v4188 = vpack.c.bf16 %v4125, %v4124
  %v4189 = vpack.c.bf16 %v4127, %v4126
  %v4190 = vpack.c.bf16 %v4129, %v4128
  %v4191 = vpack.c.bf16 %v4131, %v4130
  %v4192 = vpack.c.bf16 %v4133, %v4132
  %v4193 = vpack.c.bf16 %v4135, %v4134
  %v4194 = vpack.c.bf16 %v4137, %v4136
  %v4195 = vpack.c.bf16 %v4139, %v4138
  %v4196 = vpack.c.bf16 %v4141, %v4140
  %v4197 = vpack.c.bf16 %v4143, %v4142
  %v4198 = vpack.c.bf16 %v4145, %v4144
  %v4199 = vpack.c.bf16 %v4147, %v4146
  %v4200 = vpack.c.bf16 %v4149, %v4148
  %v4201 = vpack.c.bf16 %v4151, %v4150
  %v4202 = vpack.c.bf16 %v4153, %v4152
  %v4203 = vpack.c.bf16 %v4155, %v4154
  %v4204 = vpack.c.bf16 %v4157, %v4156
  %v4205 = vpack.c.bf16 %v4159, %v4158
  %v4206 = vpack.c.bf16 %v4161, %v4160
  %v4207 = vpack.c.bf16 %v4163, %v4162
  %v4208 = vpack.c.bf16 %v4165, %v4164
  %v4209 = vpack.c.bf16 %v4167, %v4166
  %v4210 = vpack.c.bf16 %v4169, %v4168
  %v4211 = vpack.c.bf16 %v4171, %v4170
  %v4212 = vpack.c.bf16 %v4173, %v4172
  %v4213 = vpack.c.bf16 %v4175, %v4174
  %v4214 = vpack.c.bf16 %v4177, %v4176
  %v4215 = vpack.c.bf16 %v4179, %v4178
  %v4216 = vpack.c.bf16 %v4181, %v4180
  %v4217 = vpack.c.bf16 %v4183, %v4182
  %v4218 = vlaneseq
  %v4219 = vshrl.u32 %v4218, 7
  %v4220 = vsub.s32 0, %v4219
  %v4221 = vrot.slane %v4185, %v4220
  %vm4222 = vcmask 64512
  %v4224 = vsel %vm4222, %v4186, 0
  %v4227 = vsel %vm4222, %v4187, 0
  %v4230 = vsel %vm4222, %v4188, 0
  %v4233 = vsel %vm4222, %v4189, 0
  %v4236 = vsel %vm4222, %v4190, 0
  %v4239 = vsel %vm4222, %v4191, 0
  %v4242 = vsel %vm4222, %v4192, 0
  %v4245 = vsel %vm4222, %v4193, 0
  %v4248 = vsel %vm4222, %v4194, 0
  %v4251 = vsel %vm4222, %v4195, 0
  %v4254 = vsel %vm4222, %v4196, 0
  %v4257 = vsel %vm4222, %v4197, 0
  %v4260 = vsel %vm4222, %v4198, 0
  %v4263 = vsel %vm4222, %v4199, 0
  %v4266 = vsel %vm4222, %v4200, 0
  %v4269 = vsel %vm4222, %v4201, 0
  %v4272 = vsel %vm4222, %v4202, 0
  %v4275 = vsel %vm4222, %v4203, 0
  %v4278 = vsel %vm4222, %v4204, 0
  %v4281 = vsel %vm4222, %v4205, 0
  %v4284 = vsel %vm4222, %v4206, 0
  %v4287 = vsel %vm4222, %v4207, 0
  %v4290 = vsel %vm4222, %v4208, 0
  %v4293 = vsel %vm4222, %v4209, 0
  %v4296 = vsel %vm4222, %v4210, 0
  %v4299 = vsel %vm4222, %v4211, 0
  %v4302 = vsel %vm4222, %v4212, 0
  %v4305 = vsel %vm4222, %v4213, 0
  %v4308 = vsel %vm4222, %v4214, 0
  %v4311 = vsel %vm4222, %v4215, 0
  %v4314 = vsel %vm4222, %v4216, 0
  %v4317 = vsel %vm4222, %v4217, 0
  %v4320 = vsel %vm353, %v4184, 0
  %4322 = vmatprep.subr.bf16.mxu0 0
  %4323 = vmatpush1.bf16.msra.mxu0 %v4320
  %4324 = vmatprep.subr.bf16.mxu0 0
  %4325 = vmatpush1.bf16.msra.mxu0 0
  %4326 = vmatprep.subr.bf16.mxu0 0
  %4327 = vmatpush1.bf16.msra.mxu0 0
  %4328 = vmatprep.subr.bf16.mxu0 0
  %4329 = vmatpush1.bf16.msra.mxu0 0
  %4330 = vmatprep.subr.bf16.mxu0 0
  %4331 = vmatpush1.bf16.msra.mxu0 0
  %4332 = vmatprep.subr.bf16.mxu0 0
  %4333 = vmatpush1.bf16.msra.mxu0 0
  %4334 = vmatprep.subr.bf16.mxu0 0
  %4335 = vmatpush1.bf16.msra.mxu0 0
  %4336 = vmatprep.subr.bf16.mxu0 0
  %4337 = vmatpush1.bf16.msra.mxu0 0
  %4338 = vmatprep.subr.bf16.mxu0 0
  %4339 = vmatpush1.bf16.msra.mxu0 0
  %4340 = vmatprep.subr.bf16.mxu0 0
  %4341 = vmatpush1.bf16.msra.mxu0 0
  %4342 = vmatprep.subr.bf16.mxu0 0
  %4343 = vmatpush1.bf16.msra.mxu0 0
  %4344 = vmatprep.subr.bf16.mxu0 0
  %4345 = vmatpush1.bf16.msra.mxu0 0
  %4346 = vmatprep.subr.bf16.mxu0 0
  %4347 = vmatpush1.bf16.msra.mxu0 0
  %4348 = vmatprep.subr.bf16.mxu0 0
  %4349 = vmatpush1.bf16.msra.mxu0 0
  %4350 = vmatprep.subr.bf16.mxu0 0
  %4351 = vmatpush1.bf16.msra.mxu0 0
  %4352 = vmatprep.subr.bf16.mxu0 0
  %4353 = vmatpush1.bf16.msra.mxu0 0
  %4354 = vmatprep.mubr.bf16.mxu0 0
  %4355 = vmatmul.mubr.bf16.gmra.mrb[0].mxu0 %v4224
  %v4356 = vpop.f32.mrb[0].mxu0
  %v4357 = vadd.f32 %v4221, %v4356
  %v4358 = vpop.f32.mrb[0].mxu0
  %v4359 = vpop.f32.mrb[0].mxu0
  %v4360 = vadd.f32 %v4221, %v4359
  %v4361 = vpop.f32.mrb[0].mxu0
  %4362 = vmatprep.mubr.bf16.mxu0 0
  %4363 = vmatmul.mubr.bf16.gmra.mrb[0].mxu0 %v4227
  %v4364 = vpop.f32.mrb[0].mxu0
  %v4365 = vadd.f32 %v4221, %v4364
  %v4366 = vpop.f32.mrb[0].mxu0
  %v4367 = vpop.f32.mrb[0].mxu0
  %v4368 = vadd.f32 %v4221, %v4367
  %v4369 = vpop.f32.mrb[0].mxu0
  %4370 = vmatprep.mubr.bf16.mxu0 0
  %4371 = vmatmul.mubr.bf16.gmra.mrb[0].mxu0 %v4230
  %v4372 = vpop.f32.mrb[0].mxu0
  %v4373 = vadd.f32 %v4221, %v4372
  %v4374 = vpop.f32.mrb[0].mxu0
  %v4375 = vpop.f32.mrb[0].mxu0
  %v4376 = vadd.f32 %v4221, %v4375
  %v4377 = vpop.f32.mrb[0].mxu0
  %4378 = vmatprep.mubr.bf16.mxu0 0
  %4379 = vmatmul.mubr.bf16.gmra.mrb[0].mxu0 %v4233
  %v4380 = vpop.f32.mrb[0].mxu0
  %v4381 = vadd.f32 %v4221, %v4380
  %v4382 = vpop.f32.mrb[0].mxu0
  %v4383 = vpop.f32.mrb[0].mxu0
  %v4384 = vadd.f32 %v4221, %v4383
  %v4385 = vpop.f32.mrb[0].mxu0
  %4386 = vmatprep.mubr.bf16.mxu0 0
  %4387 = vmatmul.mubr.bf16.gmra.mrb[0].mxu0 %v4236
  %v4388 = vpop.f32.mrb[0].mxu0
  %v4389 = vadd.f32 %v4221, %v4388
  %v4390 = vpop.f32.mrb[0].mxu0
  %v4391 = vpop.f32.mrb[0].mxu0
  %v4392 = vadd.f32 %v4221, %v4391
  %v4393 = vpop.f32.mrb[0].mxu0
  %4394 = vmatprep.mubr.bf16.mxu0 0
  %4395 = vmatmul.mubr.bf16.gmra.mrb[0].mxu0 %v4239
  %v4396 = vpop.f32.mrb[0].mxu0
  %v4397 = vadd.f32 %v4221, %v4396
  %v4398 = vpop.f32.mrb[0].mxu0
  %v4399 = vpop.f32.mrb[0].mxu0
  %v4400 = vadd.f32 %v4221, %v4399
  %v4401 = vpop.f32.mrb[0].mxu0
  %4402 = vmatprep.mubr.bf16.mxu0 0
  %4403 = vmatmul.mubr.bf16.gmra.mrb[0].mxu0 %v4242
  %v4404 = vpop.f32.mrb[0].mxu0
  %v4405 = vadd.f32 %v4221, %v4404
  %v4406 = vpop.f32.mrb[0].mxu0
  %v4407 = vpop.f32.mrb[0].mxu0
  %v4408 = vadd.f32 %v4221, %v4407
  %v4409 = vpop.f32.mrb[0].mxu0
  %4410 = vmatprep.mubr.bf16.mxu0 0
  %4411 = vmatmul.mubr.bf16.gmra.mrb[0].mxu0 %v4245
  %v4412 = vpop.f32.mrb[0].mxu0
  %v4413 = vadd.f32 %v4221, %v4412
  %v4414 = vpop.f32.mrb[0].mxu0
  %v4415 = vpop.f32.mrb[0].mxu0
  %v4416 = vadd.f32 %v4221, %v4415
  %v4417 = vpop.f32.mrb[0].mxu0
  %4418 = vmatprep.mubr.bf16.mxu0 0
  %4419 = vmatmul.mubr.bf16.gmra.mrb[0].mxu0 %v4248
  %v4420 = vpop.f32.mrb[0].mxu0
  %v4421 = vadd.f32 %v4221, %v4420
  %v4422 = vpop.f32.mrb[0].mxu0
  %v4423 = vpop.f32.mrb[0].mxu0
  %v4424 = vadd.f32 %v4221, %v4423
  %v4425 = vpop.f32.mrb[0].mxu0
  %4426 = vmatprep.mubr.bf16.mxu0 0
  %4427 = vmatmul.mubr.bf16.gmra.mrb[0].mxu0 %v4251
  %v4428 = vpop.f32.mrb[0].mxu0
  %v4429 = vadd.f32 %v4221, %v4428
  %v4430 = vpop.f32.mrb[0].mxu0
  %v4431 = vpop.f32.mrb[0].mxu0
  %v4432 = vadd.f32 %v4221, %v4431
  %v4433 = vpop.f32.mrb[0].mxu0
  %4434 = vmatprep.mubr.bf16.mxu0 0
  %4435 = vmatmul.mubr.bf16.gmra.mrb[0].mxu0 %v4254
  %v4436 = vpop.f32.mrb[0].mxu0
  %v4437 = vadd.f32 %v4221, %v4436
  %v4438 = vpop.f32.mrb[0].mxu0
  %v4439 = vpop.f32.mrb[0].mxu0
  %v4440 = vadd.f32 %v4221, %v4439
  %v4441 = vpop.f32.mrb[0].mxu0
  %4442 = vmatprep.mubr.bf16.mxu0 0
  %4443 = vmatmul.mubr.bf16.gmra.mrb[0].mxu0 %v4257
  %v4444 = vpop.f32.mrb[0].mxu0
  %v4445 = vadd.f32 %v4221, %v4444
  %v4446 = vpop.f32.mrb[0].mxu0
  %v4447 = vpop.f32.mrb[0].mxu0
  %v4448 = vadd.f32 %v4221, %v4447
  %v4449 = vpop.f32.mrb[0].mxu0
  %4450 = vmatprep.mubr.bf16.mxu0 0
  %4451 = vmatmul.mubr.bf16.gmra.mrb[0].mxu0 %v4260
  %v4452 = vpop.f32.mrb[0].mxu0
  %v4453 = vadd.f32 %v4221, %v4452
  %v4454 = vpop.f32.mrb[0].mxu0
  %v4455 = vpop.f32.mrb[0].mxu0
  %v4456 = vadd.f32 %v4221, %v4455
  %v4457 = vpop.f32.mrb[0].mxu0
  %4458 = vmatprep.mubr.bf16.mxu0 0
  %4459 = vmatmul.mubr.bf16.gmra.mrb[0].mxu0 %v4263
  %v4460 = vpop.f32.mrb[0].mxu0
  %v4461 = vadd.f32 %v4221, %v4460
  %v4462 = vpop.f32.mrb[0].mxu0
  %v4463 = vpop.f32.mrb[0].mxu0
  %v4464 = vadd.f32 %v4221, %v4463
  %v4465 = vpop.f32.mrb[0].mxu0
  %4466 = vmatprep.mubr.bf16.mxu0 0
  %4467 = vmatmul.mubr.bf16.gmra.mrb[0].mxu0 %v4266
  %v4468 = vpop.f32.mrb[0].mxu0
  %v4469 = vadd.f32 %v4221, %v4468
  %v4470 = vpop.f32.mrb[0].mxu0
  %v4471 = vpop.f32.mrb[0].mxu0
  %v4472 = vadd.f32 %v4221, %v4471
  %v4473 = vpop.f32.mrb[0].mxu0
  %4474 = vmatprep.mubr.bf16.mxu0 0
  %4475 = vmatmul.mubr.bf16.gmra.mrb[0].mxu0 %v4269
  %v4476 = vpop.f32.mrb[0].mxu0
  %v4477 = vadd.f32 %v4221, %v4476
  %v4478 = vpop.f32.mrb[0].mxu0
  %v4479 = vpop.f32.mrb[0].mxu0
  %v4480 = vadd.f32 %v4221, %v4479
  %v4481 = vpop.f32.mrb[0].mxu0
  %4482 = vmatprep.mubr.bf16.mxu0 0
  %4483 = vmatmul.mubr.bf16.gmra.mrb[0].mxu0 %v4272
  %v4484 = vpop.f32.mrb[0].mxu0
  %v4485 = vadd.f32 %v4221, %v4484
  %v4486 = vpop.f32.mrb[0].mxu0
  %v4487 = vpop.f32.mrb[0].mxu0
  %v4488 = vadd.f32 %v4221, %v4487
  %v4489 = vpop.f32.mrb[0].mxu0
  %4490 = vmatprep.mubr.bf16.mxu0 0
  %4491 = vmatmul.mubr.bf16.gmra.mrb[0].mxu0 %v4275
  %v4492 = vpop.f32.mrb[0].mxu0
  %v4493 = vadd.f32 %v4221, %v4492
  %v4494 = vpop.f32.mrb[0].mxu0
  %v4495 = vpop.f32.mrb[0].mxu0
  %v4496 = vadd.f32 %v4221, %v4495
  %v4497 = vpop.f32.mrb[0].mxu0
  %4498 = vmatprep.mubr.bf16.mxu0 0
  %4499 = vmatmul.mubr.bf16.gmra.mrb[0].mxu0 %v4278
  %v4500 = vpop.f32.mrb[0].mxu0
  %v4501 = vadd.f32 %v4221, %v4500
  %v4502 = vpop.f32.mrb[0].mxu0
  %v4503 = vpop.f32.mrb[0].mxu0
  %v4504 = vadd.f32 %v4221, %v4503
  %v4505 = vpop.f32.mrb[0].mxu0
  %4506 = vmatprep.mubr.bf16.mxu0 0
  %4507 = vmatmul.mubr.bf16.gmra.mrb[0].mxu0 %v4281
  %v4508 = vpop.f32.mrb[0].mxu0
  %v4509 = vadd.f32 %v4221, %v4508
  %v4510 = vpop.f32.mrb[0].mxu0
  %v4511 = vpop.f32.mrb[0].mxu0
  %v4512 = vadd.f32 %v4221, %v4511
  %v4513 = vpop.f32.mrb[0].mxu0
  %4514 = vmatprep.mubr.bf16.mxu0 0
  %4515 = vmatmul.mubr.bf16.gmra.mrb[0].mxu0 %v4284
  %v4516 = vpop.f32.mrb[0].mxu0
  %v4517 = vadd.f32 %v4221, %v4516
  %v4518 = vpop.f32.mrb[0].mxu0
  %v4519 = vpop.f32.mrb[0].mxu0
  %v4520 = vadd.f32 %v4221, %v4519
  %v4521 = vpop.f32.mrb[0].mxu0
  %4522 = vmatprep.mubr.bf16.mxu0 0
  %4523 = vmatmul.mubr.bf16.gmra.mrb[0].mxu0 %v4287
  %v4524 = vpop.f32.mrb[0].mxu0
  %v4525 = vadd.f32 %v4221, %v4524
  %v4526 = vpop.f32.mrb[0].mxu0
  %v4527 = vpop.f32.mrb[0].mxu0
  %v4528 = vadd.f32 %v4221, %v4527
  %v4529 = vpop.f32.mrb[0].mxu0
  %4530 = vmatprep.mubr.bf16.mxu0 0
  %4531 = vmatmul.mubr.bf16.gmra.mrb[0].mxu0 %v4290
  %v4532 = vpop.f32.mrb[0].mxu0
  %v4533 = vadd.f32 %v4221, %v4532
  %v4534 = vpop.f32.mrb[0].mxu0
  %v4535 = vpop.f32.mrb[0].mxu0
  %v4536 = vadd.f32 %v4221, %v4535
  %v4537 = vpop.f32.mrb[0].mxu0
  %4538 = vmatprep.mubr.bf16.mxu0 0
  %4539 = vmatmul.mubr.bf16.gmra.mrb[0].mxu0 %v4293
  %v4540 = vpop.f32.mrb[0].mxu0
  %v4541 = vadd.f32 %v4221, %v4540
  %v4542 = vpop.f32.mrb[0].mxu0
  %v4543 = vpop.f32.mrb[0].mxu0
  %v4544 = vadd.f32 %v4221, %v4543
  %v4545 = vpop.f32.mrb[0].mxu0
  %4546 = vmatprep.mubr.bf16.mxu0 0
  %4547 = vmatmul.mubr.bf16.gmra.mrb[0].mxu0 %v4296
  %v4548 = vpop.f32.mrb[0].mxu0
  %v4549 = vadd.f32 %v4221, %v4548
  %v4550 = vpop.f32.mrb[0].mxu0
  %v4551 = vpop.f32.mrb[0].mxu0
  %v4552 = vadd.f32 %v4221, %v4551
  %v4553 = vpop.f32.mrb[0].mxu0
  %4554 = vmatprep.mubr.bf16.mxu0 0
  %4555 = vmatmul.mubr.bf16.gmra.mrb[0].mxu0 %v4299
  %v4556 = vpop.f32.mrb[0].mxu0
  %v4557 = vadd.f32 %v4221, %v4556
  %v4558 = vpop.f32.mrb[0].mxu0
  %v4559 = vpop.f32.mrb[0].mxu0
  %v4560 = vadd.f32 %v4221, %v4559
  %v4561 = vpop.f32.mrb[0].mxu0
  %4562 = vmatprep.mubr.bf16.mxu0 0
  %4563 = vmatmul.mubr.bf16.gmra.mrb[0].mxu0 %v4302
  %v4564 = vpop.f32.mrb[0].mxu0
  %v4565 = vadd.f32 %v4221, %v4564
  %v4566 = vpop.f32.mrb[0].mxu0
  %v4567 = vpop.f32.mrb[0].mxu0
  %v4568 = vadd.f32 %v4221, %v4567
  %v4569 = vpop.f32.mrb[0].mxu0
  %4570 = vmatprep.mubr.bf16.mxu0 0
  %4571 = vmatmul.mubr.bf16.gmra.mrb[0].mxu0 %v4305
  %v4572 = vpop.f32.mrb[0].mxu0
  %v4573 = vadd.f32 %v4221, %v4572
  %v4574 = vpop.f32.mrb[0].mxu0
  %v4575 = vpop.f32.mrb[0].mxu0
  %v4576 = vadd.f32 %v4221, %v4575
  %v4577 = vpop.f32.mrb[0].mxu0
  %4578 = vmatprep.mubr.bf16.mxu0 0
  %4579 = vmatmul.mubr.bf16.gmra.mrb[0].mxu0 %v4308
  %v4580 = vpop.f32.mrb[0].mxu0
  %v4581 = vadd.f32 %v4221, %v4580
  %v4582 = vpop.f32.mrb[0].mxu0
  %v4583 = vpop.f32.mrb[0].mxu0
  %v4584 = vadd.f32 %v4221, %v4583
  %v4585 = vpop.f32.mrb[0].mxu0
  %4586 = vmatprep.mubr.bf16.mxu0 0
  %4587 = vmatmul.mubr.bf16.gmra.mrb[0].mxu0 %v4311
  %v4588 = vpop.f32.mrb[0].mxu0
  %v4589 = vadd.f32 %v4221, %v4588
  %v4590 = vpop.f32.mrb[0].mxu0
  %v4591 = vpop.f32.mrb[0].mxu0
  %v4592 = vadd.f32 %v4221, %v4591
  %v4593 = vpop.f32.mrb[0].mxu0
  %4594 = vmatprep.mubr.bf16.mxu0 0
  %4595 = vmatmul.mubr.bf16.gmra.mrb[0].mxu0 %v4314
  %v4596 = vpop.f32.mrb[0].mxu0
  %v4597 = vadd.f32 %v4221, %v4596
  %v4598 = vpop.f32.mrb[0].mxu0
  %v4599 = vpop.f32.mrb[0].mxu0
  %v4600 = vadd.f32 %v4221, %v4599
  %v4601 = vpop.f32.mrb[0].mxu0
  %4602 = vmatprep.mubr.bf16.mxu0 0
  %4603 = vmatmul.mubr.bf16.gmra.mrb[0].mxu0 %v4317
  %v4604 = vpop.f32.mrb[0].mxu0
  %v4605 = vadd.f32 %v4221, %v4604
  %v4606 = vpop.f32.mrb[0].mxu0
  %v4607 = vpop.f32.mrb[0].mxu0
  %v4608 = vadd.f32 %v4221, %v4607
  %v4609 = vpop.f32.mrb[0].mxu0
  %4610 = vdwg.mxu0
  %v4611 = vmul.f32 %v4357, %v4357
  %v4612 = vmul.f32 %v4360, %v4360
  %v4613 = vmul.f32 %v4365, %v4365
  %v4614 = vmul.f32 %v4368, %v4368
  %v4615 = vmul.f32 %v4373, %v4373
  %v4616 = vmul.f32 %v4376, %v4376
  %v4617 = vmul.f32 %v4381, %v4381
  %v4618 = vmul.f32 %v4384, %v4384
  %v4619 = vmul.f32 %v4389, %v4389
  %v4620 = vmul.f32 %v4392, %v4392
  %v4621 = vmul.f32 %v4397, %v4397
  %v4622 = vmul.f32 %v4400, %v4400
  %v4623 = vmul.f32 %v4405, %v4405
  %v4624 = vmul.f32 %v4408, %v4408
  %v4625 = vmul.f32 %v4413, %v4413
  %v4626 = vmul.f32 %v4416, %v4416
  %v4627 = vmul.f32 %v4421, %v4421
  %v4628 = vmul.f32 %v4424, %v4424
  %v4629 = vmul.f32 %v4429, %v4429
  %v4630 = vmul.f32 %v4432, %v4432
  %v4631 = vmul.f32 %v4437, %v4437
  %v4632 = vmul.f32 %v4440, %v4440
  %v4633 = vmul.f32 %v4445, %v4445
  %v4634 = vmul.f32 %v4448, %v4448
  %v4635 = vmul.f32 %v4453, %v4453
  %v4636 = vmul.f32 %v4456, %v4456
  %v4637 = vmul.f32 %v4461, %v4461
  %v4638 = vmul.f32 %v4464, %v4464
  %v4639 = vmul.f32 %v4469, %v4469
  %v4640 = vmul.f32 %v4472, %v4472
  %v4641 = vmul.f32 %v4477, %v4477
  %v4642 = vmul.f32 %v4480, %v4480
  %v4643 = vmul.f32 %v4485, %v4485
  %v4644 = vmul.f32 %v4488, %v4488
  %v4645 = vmul.f32 %v4493, %v4493
  %v4646 = vmul.f32 %v4496, %v4496
  %v4647 = vmul.f32 %v4501, %v4501
  %v4648 = vmul.f32 %v4504, %v4504
  %v4649 = vmul.f32 %v4509, %v4509
  %v4650 = vmul.f32 %v4512, %v4512
  %v4651 = vmul.f32 %v4517, %v4517
  %v4652 = vmul.f32 %v4520, %v4520
  %v4653 = vmul.f32 %v4525, %v4525
  %v4654 = vmul.f32 %v4528, %v4528
  %v4655 = vmul.f32 %v4533, %v4533
  %v4656 = vmul.f32 %v4536, %v4536
  %v4657 = vmul.f32 %v4541, %v4541
  %v4658 = vmul.f32 %v4544, %v4544
  %v4659 = vmul.f32 %v4549, %v4549
  %v4660 = vmul.f32 %v4552, %v4552
  %v4661 = vmul.f32 %v4557, %v4557
  %v4662 = vmul.f32 %v4560, %v4560
  %v4663 = vmul.f32 %v4565, %v4565
  %v4664 = vmul.f32 %v4568, %v4568
  %v4665 = vmul.f32 %v4573, %v4573
  %v4666 = vmul.f32 %v4576, %v4576
  %v4667 = vmul.f32 %v4581, %v4581
  %v4668 = vmul.f32 %v4584, %v4584
  %v4669 = vmul.f32 %v4589, %v4589
  %v4670 = vmul.f32 %v4592, %v4592
  %v4671 = vmul.f32 %v4597, %v4597
  %v4672 = vmul.f32 %v4600, %v4600
  %v4673 = vmul.f32 %v4605, %v4605
  %v4674 = vmul.f32 %v4608, %v4608
  %v4675 = vmul.f32 %v4357, %v4611
  %v4676 = vmul.f32 %v4360, %v4612
  %v4677 = vmul.f32 %v4365, %v4613
  %v4678 = vmul.f32 %v4368, %v4614
  %v4679 = vmul.f32 %v4373, %v4615
  %v4680 = vmul.f32 %v4376, %v4616
  %v4681 = vmul.f32 %v4381, %v4617
  %v4682 = vmul.f32 %v4384, %v4618
  %v4683 = vmul.f32 %v4389, %v4619
  %v4684 = vmul.f32 %v4392, %v4620
  %v4685 = vmul.f32 %v4397, %v4621
  %v4686 = vmul.f32 %v4400, %v4622
  %v4687 = vmul.f32 %v4405, %v4623
  %v4688 = vmul.f32 %v4408, %v4624
  %v4689 = vmul.f32 %v4413, %v4625
  %v4690 = vmul.f32 %v4416, %v4626
  %v4691 = vmul.f32 %v4421, %v4627
  %v4692 = vmul.f32 %v4424, %v4628
  %v4693 = vmul.f32 %v4429, %v4629
  %v4694 = vmul.f32 %v4432, %v4630
  %v4695 = vmul.f32 %v4437, %v4631
  %v4696 = vmul.f32 %v4440, %v4632
  %v4697 = vmul.f32 %v4445, %v4633
  %v4698 = vmul.f32 %v4448, %v4634
  %v4699 = vmul.f32 %v4453, %v4635
  %v4700 = vmul.f32 %v4456, %v4636
  %v4701 = vmul.f32 %v4461, %v4637
  %v4702 = vmul.f32 %v4464, %v4638
  %v4703 = vmul.f32 %v4469, %v4639
  %v4704 = vmul.f32 %v4472, %v4640
  %v4705 = vmul.f32 %v4477, %v4641
  %v4706 = vmul.f32 %v4480, %v4642
  %v4707 = vmul.f32 %v4485, %v4643
  %v4708 = vmul.f32 %v4488, %v4644
  %v4709 = vmul.f32 %v4493, %v4645
  %v4710 = vmul.f32 %v4496, %v4646
  %v4711 = vmul.f32 %v4501, %v4647
  %v4712 = vmul.f32 %v4504, %v4648
  %v4713 = vmul.f32 %v4509, %v4649
  %v4714 = vmul.f32 %v4512, %v4650
  %v4715 = vmul.f32 %v4517, %v4651
  %v4716 = vmul.f32 %v4520, %v4652
  %v4717 = vmul.f32 %v4525, %v4653
  %v4718 = vmul.f32 %v4528, %v4654
  %v4719 = vmul.f32 %v4533, %v4655
  %v4720 = vmul.f32 %v4536, %v4656
  %v4721 = vmul.f32 %v4541, %v4657
  %v4722 = vmul.f32 %v4544, %v4658
  %v4723 = vmul.f32 %v4549, %v4659
  %v4724 = vmul.f32 %v4552, %v4660
  %v4725 = vmul.f32 %v4557, %v4661
  %v4726 = vmul.f32 %v4560, %v4662
  %v4727 = vmul.f32 %v4565, %v4663
  %v4728 = vmul.f32 %v4568, %v4664
  %v4729 = vmul.f32 %v4573, %v4665
  %v4730 = vmul.f32 %v4576, %v4666
  %v4731 = vmul.f32 %v4581, %v4667
  %v4732 = vmul.f32 %v4584, %v4668
  %v4733 = vmul.f32 %v4589, %v4669
  %v4734 = vmul.f32 %v4592, %v4670
  %v4735 = vmul.f32 %v4597, %v4671
  %v4736 = vmul.f32 %v4600, %v4672
  %v4737 = vmul.f32 %v4605, %v4673
  %v4738 = vmul.f32 %v4608, %v4674
  %v4739 = vmul.f32 %v4675, 0.044715
  %v4740 = vmul.f32 %v4676, 0.044715
  %v4741 = vmul.f32 %v4677, 0.044715
  %v4742 = vmul.f32 %v4678, 0.044715
  %v4743 = vmul.f32 %v4679, 0.044715
  %v4744 = vmul.f32 %v4680, 0.044715
  %v4745 = vmul.f32 %v4681, 0.044715
  %v4746 = vmul.f32 %v4682, 0.044715
  %v4747 = vmul.f32 %v4683, 0.044715
  %v4748 = vmul.f32 %v4684, 0.044715
  %v4749 = vmul.f32 %v4685, 0.044715
  %v4750 = vmul.f32 %v4686, 0.044715
  %v4751 = vmul.f32 %v4687, 0.044715
  %v4752 = vmul.f32 %v4688, 0.044715
  %v4753 = vmul.f32 %v4689, 0.044715
  %v4754 = vmul.f32 %v4690, 0.044715
  %v4755 = vmul.f32 %v4691, 0.044715
  %v4756 = vmul.f32 %v4692, 0.044715
  %v4757 = vmul.f32 %v4693, 0.044715
  %v4758 = vmul.f32 %v4694, 0.044715
  %v4759 = vmul.f32 %v4695, 0.044715
  %v4760 = vmul.f32 %v4696, 0.044715
  %v4761 = vmul.f32 %v4697, 0.044715
  %v4762 = vmul.f32 %v4698, 0.044715
  %v4763 = vmul.f32 %v4699, 0.044715
  %v4764 = vmul.f32 %v4700, 0.044715
  %v4765 = vmul.f32 %v4701, 0.044715
  %v4766 = vmul.f32 %v4702, 0.044715
  %v4767 = vmul.f32 %v4703, 0.044715
  %v4768 = vmul.f32 %v4704, 0.044715
  %v4769 = vmul.f32 %v4705, 0.044715
  %v4770 = vmul.f32 %v4706, 0.044715
  %v4771 = vmul.f32 %v4707, 0.044715
  %v4772 = vmul.f32 %v4708, 0.044715
  %v4773 = vmul.f32 %v4709, 0.044715
  %v4774 = vmul.f32 %v4710, 0.044715
  %v4775 = vmul.f32 %v4711, 0.044715
  %v4776 = vmul.f32 %v4712, 0.044715
  %v4777 = vmul.f32 %v4713, 0.044715
  %v4778 = vmul.f32 %v4714, 0.044715
  %v4779 = vmul.f32 %v4715, 0.044715
  %v4780 = vmul.f32 %v4716, 0.044715
  %v4781 = vmul.f32 %v4717, 0.044715
  %v4782 = vmul.f32 %v4718, 0.044715
  %v4783 = vmul.f32 %v4719, 0.044715
  %v4784 = vmul.f32 %v4720, 0.044715
  %v4785 = vmul.f32 %v4721, 0.044715
  %v4786 = vmul.f32 %v4722, 0.044715
  %v4787 = vmul.f32 %v4723, 0.044715
  %v4788 = vmul.f32 %v4724, 0.044715
  %v4789 = vmul.f32 %v4725, 0.044715
  %v4790 = vmul.f32 %v4726, 0.044715
  %v4791 = vmul.f32 %v4727, 0.044715
  %v4792 = vmul.f32 %v4728, 0.044715
  %v4793 = vmul.f32 %v4729, 0.044715
  %v4794 = vmul.f32 %v4730, 0.044715
  %v4795 = vmul.f32 %v4731, 0.044715
  %v4796 = vmul.f32 %v4732, 0.044715
  %v4797 = vmul.f32 %v4733, 0.044715
  %v4798 = vmul.f32 %v4734, 0.044715
  %v4799 = vmul.f32 %v4735, 0.044715
  %v4800 = vmul.f32 %v4736, 0.044715
  %v4801 = vmul.f32 %v4737, 0.044715
  %v4802 = vmul.f32 %v4738, 0.044715
  %v4803 = vadd.f32 %v4357, %v4739
  %v4804 = vadd.f32 %v4360, %v4740
  %v4805 = vadd.f32 %v4365, %v4741
  %v4806 = vadd.f32 %v4368, %v4742
  %v4807 = vadd.f32 %v4373, %v4743
  %v4808 = vadd.f32 %v4376, %v4744
  %v4809 = vadd.f32 %v4381, %v4745
  %v4810 = vadd.f32 %v4384, %v4746
  %v4811 = vadd.f32 %v4389, %v4747
  %v4812 = vadd.f32 %v4392, %v4748
  %v4813 = vadd.f32 %v4397, %v4749
  %v4814 = vadd.f32 %v4400, %v4750
  %v4815 = vadd.f32 %v4405, %v4751
  %v4816 = vadd.f32 %v4408, %v4752
  %v4817 = vadd.f32 %v4413, %v4753
  %v4818 = vadd.f32 %v4416, %v4754
  %v4819 = vadd.f32 %v4421, %v4755
  %v4820 = vadd.f32 %v4424, %v4756
  %v4821 = vadd.f32 %v4429, %v4757
  %v4822 = vadd.f32 %v4432, %v4758
  %v4823 = vadd.f32 %v4437, %v4759
  %v4824 = vadd.f32 %v4440, %v4760
  %v4825 = vadd.f32 %v4445, %v4761
  %v4826 = vadd.f32 %v4448, %v4762
  %v4827 = vadd.f32 %v4453, %v4763
  %v4828 = vadd.f32 %v4456, %v4764
  %v4829 = vadd.f32 %v4461, %v4765
  %v4830 = vadd.f32 %v4464, %v4766
  %v4831 = vadd.f32 %v4469, %v4767
  %v4832 = vadd.f32 %v4472, %v4768
  %v4833 = vadd.f32 %v4477, %v4769
  %v4834 = vadd.f32 %v4480, %v4770
  %v4835 = vadd.f32 %v4485, %v4771
  %v4836 = vadd.f32 %v4488, %v4772
  %v4837 = vadd.f32 %v4493, %v4773
  %v4838 = vadd.f32 %v4496, %v4774
  %v4839 = vadd.f32 %v4501, %v4775
  %v4840 = vadd.f32 %v4504, %v4776
  %v4841 = vadd.f32 %v4509, %v4777
  %v4842 = vadd.f32 %v4512, %v4778
  %v4843 = vadd.f32 %v4517, %v4779
  %v4844 = vadd.f32 %v4520, %v4780
  %v4845 = vadd.f32 %v4525, %v4781
  %v4846 = vadd.f32 %v4528, %v4782
  %v4847 = vadd.f32 %v4533, %v4783
  %v4848 = vadd.f32 %v4536, %v4784
  %v4849 = vadd.f32 %v4541, %v4785
  %v4850 = vadd.f32 %v4544, %v4786
  %v4851 = vadd.f32 %v4549, %v4787
  %v4852 = vadd.f32 %v4552, %v4788
  %v4853 = vadd.f32 %v4557, %v4789
  %v4854 = vadd.f32 %v4560, %v4790
  %v4855 = vadd.f32 %v4565, %v4791
  %v4856 = vadd.f32 %v4568, %v4792
  %v4857 = vadd.f32 %v4573, %v4793
  %v4858 = vadd.f32 %v4576, %v4794
  %v4859 = vadd.f32 %v4581, %v4795
  %v4860 = vadd.f32 %v4584, %v4796
  %v4861 = vadd.f32 %v4589, %v4797
  %v4862 = vadd.f32 %v4592, %v4798
  %v4863 = vadd.f32 %v4597, %v4799
  %v4864 = vadd.f32 %v4600, %v4800
  %v4865 = vadd.f32 %v4605, %v4801
  %v4866 = vadd.f32 %v4608, %v4802
  %v4867 = vmul.f32 %v4803, 0.7978846
  %v4868 = vmul.f32 %v4804, 0.7978846
  %v4869 = vmul.f32 %v4805, 0.7978846
  %v4870 = vmul.f32 %v4806, 0.7978846
  %v4871 = vmul.f32 %v4807, 0.7978846
  %v4872 = vmul.f32 %v4808, 0.7978846
  %v4873 = vmul.f32 %v4809, 0.7978846
  %v4874 = vmul.f32 %v4810, 0.7978846
  %v4875 = vmul.f32 %v4811, 0.7978846
  %v4876 = vmul.f32 %v4812, 0.7978846
  %v4877 = vmul.f32 %v4813, 0.7978846
  %v4878 = vmul.f32 %v4814, 0.7978846
  %v4879 = vmul.f32 %v4815, 0.7978846
  %v4880 = vmul.f32 %v4816, 0.7978846
  %v4881 = vmul.f32 %v4817, 0.7978846
  %v4882 = vmul.f32 %v4818, 0.7978846
  %v4883 = vmul.f32 %v4819, 0.7978846
  %v4884 = vmul.f32 %v4820, 0.7978846
  %v4885 = vmul.f32 %v4821, 0.7978846
  %v4886 = vmul.f32 %v4822, 0.7978846
  %v4887 = vmul.f32 %v4823, 0.7978846
  %v4888 = vmul.f32 %v4824, 0.7978846
  %v4889 = vmul.f32 %v4825, 0.7978846
  %v4890 = vmul.f32 %v4826, 0.7978846
  %v4891 = vmul.f32 %v4827, 0.7978846
  %v4892 = vmul.f32 %v4828, 0.7978846
  %v4893 = vmul.f32 %v4829, 0.7978846
  %v4894 = vmul.f32 %v4830, 0.7978846
  %v4895 = vmul.f32 %v4831, 0.7978846
  %v4896 = vmul.f32 %v4832, 0.7978846
  %v4897 = vmul.f32 %v4833, 0.7978846
  %v4898 = vmul.f32 %v4834, 0.7978846
  %v4899 = vmul.f32 %v4835, 0.7978846
  %v4900 = vmul.f32 %v4836, 0.7978846
  %v4901 = vmul.f32 %v4837, 0.7978846
  %v4902 = vmul.f32 %v4838, 0.7978846
  %v4903 = vmul.f32 %v4839, 0.7978846
  %v4904 = vmul.f32 %v4840, 0.7978846
  %v4905 = vmul.f32 %v4841, 0.7978846
  %v4906 = vmul.f32 %v4842, 0.7978846
  %v4907 = vmul.f32 %v4843, 0.7978846
  %v4908 = vmul.f32 %v4844, 0.7978846
  %v4909 = vmul.f32 %v4845, 0.7978846
  %v4910 = vmul.f32 %v4846, 0.7978846
  %v4911 = vmul.f32 %v4847, 0.7978846
  %v4912 = vmul.f32 %v4848, 0.7978846
  %v4913 = vmul.f32 %v4849, 0.7978846
  %v4914 = vmul.f32 %v4850, 0.7978846
  %v4915 = vmul.f32 %v4851, 0.7978846
  %v4916 = vmul.f32 %v4852, 0.7978846
  %v4917 = vmul.f32 %v4853, 0.7978846
  %v4918 = vmul.f32 %v4854, 0.7978846
  %v4919 = vmul.f32 %v4855, 0.7978846
  %v4920 = vmul.f32 %v4856, 0.7978846
  %v4921 = vmul.f32 %v4857, 0.7978846
  %v4922 = vmul.f32 %v4858, 0.7978846
  %v4923 = vmul.f32 %v4859, 0.7978846
  %v4924 = vmul.f32 %v4860, 0.7978846
  %v4925 = vmul.f32 %v4861, 0.7978846
  %v4926 = vmul.f32 %v4862, 0.7978846
  %v4927 = vmul.f32 %v4863, 0.7978846
  %v4928 = vmul.f32 %v4864, 0.7978846
  %v4929 = vmul.f32 %v4865, 0.7978846
  %v4930 = vmul.f32 %v4866, 0.7978846
  %v4931 = vtanh.pop %v4867
  %v4932 = vtanh.pop %v4868
  %v4933 = vtanh.pop %v4869
  %v4934 = vtanh.pop %v4870
  %v4935 = vtanh.pop %v4871
  %v4936 = vtanh.pop %v4872
  %v4937 = vtanh.pop %v4873
  %v4938 = vtanh.pop %v4874
  %v4939 = vtanh.pop %v4875
  %v4940 = vtanh.pop %v4876
  %v4941 = vtanh.pop %v4877
  %v4942 = vtanh.pop %v4878
  %v4943 = vtanh.pop %v4879
  %v4944 = vtanh.pop %v4880
  %v4945 = vtanh.pop %v4881
  %v4946 = vtanh.pop %v4882
  %v4947 = vtanh.pop %v4883
  %v4948 = vtanh.pop %v4884
  %v4949 = vtanh.pop %v4885
  %v4950 = vtanh.pop %v4886
  %v4951 = vtanh.pop %v4887
  %v4952 = vtanh.pop %v4888
  %v4953 = vtanh.pop %v4889
  %v4954 = vtanh.pop %v4890
  %v4955 = vtanh.pop %v4891
  %v4956 = vtanh.pop %v4892
  %v4957 = vtanh.pop %v4893
  %v4958 = vtanh.pop %v4894
  %v4959 = vtanh.pop %v4895
  %v4960 = vtanh.pop %v4896
  %v4961 = vtanh.pop %v4897
  %v4962 = vtanh.pop %v4898
  %v4963 = vtanh.pop %v4899
  %v4964 = vtanh.pop %v4900
  %v4965 = vtanh.pop %v4901
  %v4966 = vtanh.pop %v4902
  %v4967 = vtanh.pop %v4903
  %v4968 = vtanh.pop %v4904
  %v4969 = vtanh.pop %v4905
  %v4970 = vtanh.pop %v4906
  %v4971 = vtanh.pop %v4907
  %v4972 = vtanh.pop %v4908
  %v4973 = vtanh.pop %v4909
  %v4974 = vtanh.pop %v4910
  %v4975 = vtanh.pop %v4911
  %v4976 = vtanh.pop %v4912
  %v4977 = vtanh.pop %v4913
  %v4978 = vtanh.pop %v4914
  %v4979 = vtanh.pop %v4915
  %v4980 = vtanh.pop %v4916
  %v4981 = vtanh.pop %v4917
  %v4982 = vtanh.pop %v4918
  %v4983 = vtanh.pop %v4919
  %v4984 = vtanh.pop %v4920
  %v4985 = vtanh.pop %v4921
  %v4986 = vtanh.pop %v4922
  %v4987 = vtanh.pop %v4923
  %v4988 = vtanh.pop %v4924
  %v4989 = vtanh.pop %v4925
  %v4990 = vtanh.pop %v4926
  %v4991 = vtanh.pop %v4927
  %v4992 = vtanh.pop %v4928
  %v4993 = vtanh.pop %v4929
  %v4994 = vtanh.pop %v4930
  %v4995 = vadd.f32 %v4931, 1.0
  %v4996 = vadd.f32 %v4932, 1.0
  %v4997 = vadd.f32 %v4933, 1.0
  %v4998 = vadd.f32 %v4934, 1.0
  %v4999 = vadd.f32 %v4935, 1.0
  %v5000 = vadd.f32 %v4936, 1.0
  %v5001 = vadd.f32 %v4937, 1.0
  %v5002 = vadd.f32 %v4938, 1.0
  %v5003 = vadd.f32 %v4939, 1.0
  %v5004 = vadd.f32 %v4940, 1.0
  %v5005 = vadd.f32 %v4941, 1.0
  %v5006 = vadd.f32 %v4942, 1.0
  %v5007 = vadd.f32 %v4943, 1.0
  %v5008 = vadd.f32 %v4944, 1.0
  %v5009 = vadd.f32 %v4945, 1.0
  %v5010 = vadd.f32 %v4946, 1.0
  %v5011 = vadd.f32 %v4947, 1.0
  %v5012 = vadd.f32 %v4948, 1.0
  %v5013 = vadd.f32 %v4949, 1.0
  %v5014 = vadd.f32 %v4950, 1.0
  %v5015 = vadd.f32 %v4951, 1.0
  %v5016 = vadd.f32 %v4952, 1.0
  %v5017 = vadd.f32 %v4953, 1.0
  %v5018 = vadd.f32 %v4954, 1.0
  %v5019 = vadd.f32 %v4955, 1.0
  %v5020 = vadd.f32 %v4956, 1.0
  %v5021 = vadd.f32 %v4957, 1.0
  %v5022 = vadd.f32 %v4958, 1.0
  %v5023 = vadd.f32 %v4959, 1.0
  %v5024 = vadd.f32 %v4960, 1.0
  %v5025 = vadd.f32 %v4961, 1.0
  %v5026 = vadd.f32 %v4962, 1.0
  %v5027 = vadd.f32 %v4963, 1.0
  %v5028 = vadd.f32 %v4964, 1.0
  %v5029 = vadd.f32 %v4965, 1.0
  %v5030 = vadd.f32 %v4966, 1.0
  %v5031 = vadd.f32 %v4967, 1.0
  %v5032 = vadd.f32 %v4968, 1.0
  %v5033 = vadd.f32 %v4969, 1.0
  %v5034 = vadd.f32 %v4970, 1.0
  %v5035 = vadd.f32 %v4971, 1.0
  %v5036 = vadd.f32 %v4972, 1.0
  %v5037 = vadd.f32 %v4973, 1.0
  %v5038 = vadd.f32 %v4974, 1.0
  %v5039 = vadd.f32 %v4975, 1.0
  %v5040 = vadd.f32 %v4976, 1.0
  %v5041 = vadd.f32 %v4977, 1.0
  %v5042 = vadd.f32 %v4978, 1.0
  %v5043 = vadd.f32 %v4979, 1.0
  %v5044 = vadd.f32 %v4980, 1.0
  %v5045 = vadd.f32 %v4981, 1.0
  %v5046 = vadd.f32 %v4982, 1.0
  %v5047 = vadd.f32 %v4983, 1.0
  %v5048 = vadd.f32 %v4984, 1.0
  %v5049 = vadd.f32 %v4985, 1.0
  %v5050 = vadd.f32 %v4986, 1.0
  %v5051 = vadd.f32 %v4987, 1.0
  %v5052 = vadd.f32 %v4988, 1.0
  %v5053 = vadd.f32 %v4989, 1.0
  %v5054 = vadd.f32 %v4990, 1.0
  %v5055 = vadd.f32 %v4991, 1.0
  %v5056 = vadd.f32 %v4992, 1.0
  %v5057 = vadd.f32 %v4993, 1.0
  %v5058 = vadd.f32 %v4994, 1.0
  %v5059 = vmul.f32 %v4995, 0.5
  %v5060 = vmul.f32 %v4996, 0.5
  %v5061 = vmul.f32 %v4997, 0.5
  %v5062 = vmul.f32 %v4998, 0.5
  %v5063 = vmul.f32 %v4999, 0.5
  %v5064 = vmul.f32 %v5000, 0.5
  %v5065 = vmul.f32 %v5001, 0.5
  %v5066 = vmul.f32 %v5002, 0.5
  %v5067 = vmul.f32 %v5003, 0.5
  %v5068 = vmul.f32 %v5004, 0.5
  %v5069 = vmul.f32 %v5005, 0.5
  %v5070 = vmul.f32 %v5006, 0.5
  %v5071 = vmul.f32 %v5007, 0.5
  %v5072 = vmul.f32 %v5008, 0.5
  %v5073 = vmul.f32 %v5009, 0.5
  %v5074 = vmul.f32 %v5010, 0.5
  %v5075 = vmul.f32 %v5011, 0.5
  %v5076 = vmul.f32 %v5012, 0.5
  %v5077 = vmul.f32 %v5013, 0.5
  %v5078 = vmul.f32 %v5014, 0.5
  %v5079 = vmul.f32 %v5015, 0.5
  %v5080 = vmul.f32 %v5016, 0.5
  %v5081 = vmul.f32 %v5017, 0.5
  %v5082 = vmul.f32 %v5018, 0.5
  %v5083 = vmul.f32 %v5019, 0.5
  %v5084 = vmul.f32 %v5020, 0.5
  %v5085 = vmul.f32 %v5021, 0.5
  %v5086 = vmul.f32 %v5022, 0.5
  %v5087 = vmul.f32 %v5023, 0.5
  %v5088 = vmul.f32 %v5024, 0.5
  %v5089 = vmul.f32 %v5025, 0.5
  %v5090 = vmul.f32 %v5026, 0.5
  %v5091 = vmul.f32 %v5027, 0.5
  %v5092 = vmul.f32 %v5028, 0.5
  %v5093 = vmul.f32 %v5029, 0.5
  %v5094 = vmul.f32 %v5030, 0.5
  %v5095 = vmul.f32 %v5031, 0.5
  %v5096 = vmul.f32 %v5032, 0.5
  %v5097 = vmul.f32 %v5033, 0.5
  %v5098 = vmul.f32 %v5034, 0.5
  %v5099 = vmul.f32 %v5035, 0.5
  %v5100 = vmul.f32 %v5036, 0.5
  %v5101 = vmul.f32 %v5037, 0.5
  %v5102 = vmul.f32 %v5038, 0.5
  %v5103 = vmul.f32 %v5039, 0.5
  %v5104 = vmul.f32 %v5040, 0.5
  %v5105 = vmul.f32 %v5041, 0.5
  %v5106 = vmul.f32 %v5042, 0.5
  %v5107 = vmul.f32 %v5043, 0.5
  %v5108 = vmul.f32 %v5044, 0.5
  %v5109 = vmul.f32 %v5045, 0.5
  %v5110 = vmul.f32 %v5046, 0.5
  %v5111 = vmul.f32 %v5047, 0.5
  %v5112 = vmul.f32 %v5048, 0.5
  %v5113 = vmul.f32 %v5049, 0.5
  %v5114 = vmul.f32 %v5050, 0.5
  %v5115 = vmul.f32 %v5051, 0.5
  %v5116 = vmul.f32 %v5052, 0.5
  %v5117 = vmul.f32 %v5053, 0.5
  %v5118 = vmul.f32 %v5054, 0.5
  %v5119 = vmul.f32 %v5055, 0.5
  %v5120 = vmul.f32 %v5056, 0.5
  %v5121 = vmul.f32 %v5057, 0.5
  %v5122 = vmul.f32 %v5058, 0.5
  %v5123 = vmul.f32 %v4357, %v5059
  %v5124 = vmul.f32 %v4360, %v5060
  %v5125 = vmul.f32 %v4365, %v5061
  %v5126 = vmul.f32 %v4368, %v5062
  %v5127 = vmul.f32 %v4373, %v5063
  %v5128 = vmul.f32 %v4376, %v5064
  %v5129 = vmul.f32 %v4381, %v5065
  %v5130 = vmul.f32 %v4384, %v5066
  %v5131 = vmul.f32 %v4389, %v5067
  %v5132 = vmul.f32 %v4392, %v5068
  %v5133 = vmul.f32 %v4397, %v5069
  %v5134 = vmul.f32 %v4400, %v5070
  %v5135 = vmul.f32 %v4405, %v5071
  %v5136 = vmul.f32 %v4408, %v5072
  %v5137 = vmul.f32 %v4413, %v5073
  %v5138 = vmul.f32 %v4416, %v5074
  %v5139 = vmul.f32 %v4421, %v5075
  %v5140 = vmul.f32 %v4424, %v5076
  %v5141 = vmul.f32 %v4429, %v5077
  %v5142 = vmul.f32 %v4432, %v5078
  %v5143 = vmul.f32 %v4437, %v5079
  %v5144 = vmul.f32 %v4440, %v5080
  %v5145 = vmul.f32 %v4445, %v5081
  %v5146 = vmul.f32 %v4448, %v5082
  %v5147 = vmul.f32 %v4453, %v5083
  %v5148 = vmul.f32 %v4456, %v5084
  %v5149 = vmul.f32 %v4461, %v5085
  %v5150 = vmul.f32 %v4464, %v5086
  %v5151 = vmul.f32 %v4469, %v5087
  %v5152 = vmul.f32 %v4472, %v5088
  %v5153 = vmul.f32 %v4477, %v5089
  %v5154 = vmul.f32 %v4480, %v5090
  %v5155 = vmul.f32 %v4485, %v5091
  %v5156 = vmul.f32 %v4488, %v5092
  %v5157 = vmul.f32 %v4493, %v5093
  %v5158 = vmul.f32 %v4496, %v5094
  %v5159 = vmul.f32 %v4501, %v5095
  %v5160 = vmul.f32 %v4504, %v5096
  %v5161 = vmul.f32 %v4509, %v5097
  %v5162 = vmul.f32 %v4512, %v5098
  %v5163 = vmul.f32 %v4517, %v5099
  %v5164 = vmul.f32 %v4520, %v5100
  %v5165 = vmul.f32 %v4525, %v5101
  %v5166 = vmul.f32 %v4528, %v5102
  %v5167 = vmul.f32 %v4533, %v5103
  %v5168 = vmul.f32 %v4536, %v5104
  %v5169 = vmul.f32 %v4541, %v5105
  %v5170 = vmul.f32 %v4544, %v5106
  %v5171 = vmul.f32 %v4549, %v5107
  %v5172 = vmul.f32 %v4552, %v5108
  %v5173 = vmul.f32 %v4557, %v5109
  %v5174 = vmul.f32 %v4560, %v5110
  %v5175 = vmul.f32 %v4565, %v5111
  %v5176 = vmul.f32 %v4568, %v5112
  %v5177 = vmul.f32 %v4573, %v5113
  %v5178 = vmul.f32 %v4576, %v5114
  %v5179 = vmul.f32 %v4581, %v5115
  %v5180 = vmul.f32 %v4584, %v5116
  %v5181 = vmul.f32 %v4589, %v5117
  %v5182 = vmul.f32 %v4592, %v5118
  %v5183 = vmul.f32 %v4597, %v5119
  %v5184 = vmul.f32 %v4600, %v5120
  %v5185 = vmul.f32 %v4605, %v5121
  %v5186 = vmul.f32 %v4608, %v5122
  %v5187 = vlaneseq
  %v5188 = vshrl.u32 %v5187, 7
  %v5189 = vadd.s32 %v5188, 8
  %v5190 = vadd.s32 %v5188, 16
  %v5191 = vadd.s32 %v5188, 24
  %v5192 = vadd.s32 %v5188, 32
  %v5193 = vadd.s32 %v5188, 40
  %v5194 = vadd.s32 %v5188, 48
  %v5195 = vadd.s32 %v5188, 56
  %v5196 = vadd.s32 %v5188, 64
  %v5197 = vadd.s32 %v5188, 72
  %v5198 = vadd.s32 %v5188, 80
  %v5199 = vadd.s32 %v5188, 88
  %v5200 = vadd.s32 %v5188, 96
  %v5201 = vadd.s32 %v5188, 104
  %v5202 = vadd.s32 %v5188, 112
  %v5203 = vadd.s32 %v5188, 120
  %v5204 = vadd.s32 %v5188, 128
  %v5205 = vadd.s32 %v5188, 136
  %v5206 = vadd.s32 %v5188, 144
  %v5207 = vadd.s32 %v5188, 152
  %v5208 = vadd.s32 %v5188, 160
  %v5209 = vadd.s32 %v5188, 168
  %v5210 = vadd.s32 %v5188, 176
  %v5211 = vadd.s32 %v5188, 184
  %v5212 = vadd.s32 %v5188, 192
  %v5213 = vadd.s32 %v5188, 200
  %v5214 = vadd.s32 %v5188, 208
  %v5215 = vadd.s32 %v5188, 216
  %v5216 = vadd.s32 %v5188, 224
  %v5217 = vadd.s32 %v5188, 232
  %v5218 = vadd.s32 %v5188, 240
  %v5219 = vadd.s32 %v5188, 248
  %v5220 = vadd.s32 %v5188, 256
  %v5221 = vadd.s32 %v5188, 264
  %v5222 = vadd.s32 %v5188, 272
  %v5223 = vadd.s32 %v5188, 280
  %v5224 = vadd.s32 %v5188, 288
  %v5225 = vadd.s32 %v5188, 296
  %v5226 = vadd.s32 %v5188, 304
  %v5227 = vadd.s32 %v5188, 312
  %v5228 = vadd.s32 %v5188, 320
  %v5229 = vadd.s32 %v5188, 328
  %v5230 = vadd.s32 %v5188, 336
  %v5231 = vadd.s32 %v5188, 344
  %v5232 = vadd.s32 %v5188, 352
  %v5233 = vadd.s32 %v5188, 360
  %v5234 = vadd.s32 %v5188, 368
  %v5235 = vadd.s32 %v5188, 376
  %v5236 = vadd.s32 %v5188, 384
  %v5237 = vadd.s32 %v5188, 392
  %v5238 = vadd.s32 %v5188, 400
  %v5239 = vadd.s32 %v5188, 408
  %v5240 = vadd.s32 %v5188, 416
  %v5241 = vadd.s32 %v5188, 424
  %v5242 = vadd.s32 %v5188, 432
  %v5243 = vadd.s32 %v5188, 440
  %v5244 = vadd.s32 %v5188, 448
  %v5245 = vadd.s32 %v5188, 456
  %v5246 = vadd.s32 %v5188, 464
  %v5247 = vadd.s32 %v5188, 472
  %v5248 = vadd.s32 %v5188, 480
  %v5249 = vadd.s32 %v5188, 488
  %v5250 = vadd.s32 %v5188, 496
  %v5251 = vadd.s32 %v5188, 504
  %s5252 = smul.u32 0, 512
  %v5253 = vstv %s5252
  %v5254 = vadd.s32 %v5188, %v5253
  %v5255 = vadd.s32 %v5189, %v5253
  %v5256 = vadd.s32 %v5190, %v5253
  %v5257 = vadd.s32 %v5191, %v5253
  %v5258 = vadd.s32 %v5192, %v5253
  %v5259 = vadd.s32 %v5193, %v5253
  %v5260 = vadd.s32 %v5194, %v5253
  %v5261 = vadd.s32 %v5195, %v5253
  %v5262 = vadd.s32 %v5196, %v5253
  %v5263 = vadd.s32 %v5197, %v5253
  %v5264 = vadd.s32 %v5198, %v5253
  %v5265 = vadd.s32 %v5199, %v5253
  %v5266 = vadd.s32 %v5200, %v5253
  %v5267 = vadd.s32 %v5201, %v5253
  %v5268 = vadd.s32 %v5202, %v5253
  %v5269 = vadd.s32 %v5203, %v5253
  %v5270 = vadd.s32 %v5204, %v5253
  %v5271 = vadd.s32 %v5205, %v5253
  %v5272 = vadd.s32 %v5206, %v5253
  %v5273 = vadd.s32 %v5207, %v5253
  %v5274 = vadd.s32 %v5208, %v5253
  %v5275 = vadd.s32 %v5209, %v5253
  %v5276 = vadd.s32 %v5210, %v5253
  %v5277 = vadd.s32 %v5211, %v5253
  %v5278 = vadd.s32 %v5212, %v5253
  %v5279 = vadd.s32 %v5213, %v5253
  %v5280 = vadd.s32 %v5214, %v5253
  %v5281 = vadd.s32 %v5215, %v5253
  %v5282 = vadd.s32 %v5216, %v5253
  %v5283 = vadd.s32 %v5217, %v5253
  %v5284 = vadd.s32 %v5218, %v5253
  %v5285 = vadd.s32 %v5219, %v5253
  %v5286 = vadd.s32 %v5220, %v5253
  %v5287 = vadd.s32 %v5221, %v5253
  %v5288 = vadd.s32 %v5222, %v5253
  %v5289 = vadd.s32 %v5223, %v5253
  %v5290 = vadd.s32 %v5224, %v5253
  %v5291 = vadd.s32 %v5225, %v5253
  %v5292 = vadd.s32 %v5226, %v5253
  %v5293 = vadd.s32 %v5227, %v5253
  %v5294 = vadd.s32 %v5228, %v5253
  %v5295 = vadd.s32 %v5229, %v5253
  %v5296 = vadd.s32 %v5230, %v5253
  %v5297 = vadd.s32 %v5231, %v5253
  %v5298 = vadd.s32 %v5232, %v5253
  %v5299 = vadd.s32 %v5233, %v5253
  %v5300 = vadd.s32 %v5234, %v5253
  %v5301 = vadd.s32 %v5235, %v5253
  %v5302 = vadd.s32 %v5236, %v5253
  %v5303 = vadd.s32 %v5237, %v5253
  %v5304 = vadd.s32 %v5238, %v5253
  %v5305 = vadd.s32 %v5239, %v5253
  %v5306 = vadd.s32 %v5240, %v5253
  %v5307 = vadd.s32 %v5241, %v5253
  %v5308 = vadd.s32 %v5242, %v5253
  %v5309 = vadd.s32 %v5243, %v5253
  %v5310 = vadd.s32 %v5244, %v5253
  %v5311 = vadd.s32 %v5245, %v5253
  %v5312 = vadd.s32 %v5246, %v5253
  %v5313 = vadd.s32 %v5247, %v5253
  %v5314 = vadd.s32 %v5248, %v5253
  %v5315 = vadd.s32 %v5249, %v5253
  %v5316 = vadd.s32 %v5250, %v5253
  %v5317 = vadd.s32 %v5251, %v5253
  %v5318 = vcvt.s32.f32 %v5254
  %v5319 = vcvt.s32.f32 %v5255
  %v5320 = vcvt.s32.f32 %v5256
  %v5321 = vcvt.s32.f32 %v5257
  %v5322 = vcvt.s32.f32 %v5258
  %v5323 = vcvt.s32.f32 %v5259
  %v5324 = vcvt.s32.f32 %v5260
  %v5325 = vcvt.s32.f32 %v5261
  %v5326 = vcvt.s32.f32 %v5262
  %v5327 = vcvt.s32.f32 %v5263
  %v5328 = vcvt.s32.f32 %v5264
  %v5329 = vcvt.s32.f32 %v5265
  %v5330 = vcvt.s32.f32 %v5266
  %v5331 = vcvt.s32.f32 %v5267
  %v5332 = vcvt.s32.f32 %v5268
  %v5333 = vcvt.s32.f32 %v5269
  %v5334 = vcvt.s32.f32 %v5270
  %v5335 = vcvt.s32.f32 %v5271
  %v5336 = vcvt.s32.f32 %v5272
  %v5337 = vcvt.s32.f32 %v5273
  %v5338 = vcvt.s32.f32 %v5274
  %v5339 = vcvt.s32.f32 %v5275
  %v5340 = vcvt.s32.f32 %v5276
  %v5341 = vcvt.s32.f32 %v5277
  %v5342 = vcvt.s32.f32 %v5278
  %v5343 = vcvt.s32.f32 %v5279
  %v5344 = vcvt.s32.f32 %v5280
  %v5345 = vcvt.s32.f32 %v5281
  %v5346 = vcvt.s32.f32 %v5282
  %v5347 = vcvt.s32.f32 %v5283
  %v5348 = vcvt.s32.f32 %v5284
  %v5349 = vcvt.s32.f32 %v5285
  %v5350 = vcvt.s32.f32 %v5286
  %v5351 = vcvt.s32.f32 %v5287
  %v5352 = vcvt.s32.f32 %v5288
  %v5353 = vcvt.s32.f32 %v5289
  %v5354 = vcvt.s32.f32 %v5290
  %v5355 = vcvt.s32.f32 %v5291
  %v5356 = vcvt.s32.f32 %v5292
  %v5357 = vcvt.s32.f32 %v5293
  %v5358 = vcvt.s32.f32 %v5294
  %v5359 = vcvt.s32.f32 %v5295
  %v5360 = vcvt.s32.f32 %v5296
  %v5361 = vcvt.s32.f32 %v5297
  %v5362 = vcvt.s32.f32 %v5298
  %v5363 = vcvt.s32.f32 %v5299
  %v5364 = vcvt.s32.f32 %v5300
  %v5365 = vcvt.s32.f32 %v5301
  %v5366 = vcvt.s32.f32 %v5302
  %v5367 = vcvt.s32.f32 %v5303
  %v5368 = vcvt.s32.f32 %v5304
  %v5369 = vcvt.s32.f32 %v5305
  %v5370 = vcvt.s32.f32 %v5306
  %v5371 = vcvt.s32.f32 %v5307
  %v5372 = vcvt.s32.f32 %v5308
  %v5373 = vcvt.s32.f32 %v5309
  %v5374 = vcvt.s32.f32 %v5310
  %v5375 = vcvt.s32.f32 %v5311
  %v5376 = vcvt.s32.f32 %v5312
  %v5377 = vcvt.s32.f32 %v5313
  %v5378 = vcvt.s32.f32 %v5314
  %v5379 = vcvt.s32.f32 %v5315
  %v5380 = vcvt.s32.f32 %v5316
  %v5381 = vcvt.s32.f32 %v5317
  %v5382 = vadd.f32 %v5318, 0.5
  %v5383 = vadd.f32 %v5319, 0.5
  %v5384 = vadd.f32 %v5320, 0.5
  %v5385 = vadd.f32 %v5321, 0.5
  %v5386 = vadd.f32 %v5322, 0.5
  %v5387 = vadd.f32 %v5323, 0.5
  %v5388 = vadd.f32 %v5324, 0.5
  %v5389 = vadd.f32 %v5325, 0.5
  %v5390 = vadd.f32 %v5326, 0.5
  %v5391 = vadd.f32 %v5327, 0.5
  %v5392 = vadd.f32 %v5328, 0.5
  %v5393 = vadd.f32 %v5329, 0.5
  %v5394 = vadd.f32 %v5330, 0.5
  %v5395 = vadd.f32 %v5331, 0.5
  %v5396 = vadd.f32 %v5332, 0.5
  %v5397 = vadd.f32 %v5333, 0.5
  %v5398 = vadd.f32 %v5334, 0.5
  %v5399 = vadd.f32 %v5335, 0.5
  %v5400 = vadd.f32 %v5336, 0.5
  %v5401 = vadd.f32 %v5337, 0.5
  %v5402 = vadd.f32 %v5338, 0.5
  %v5403 = vadd.f32 %v5339, 0.5
  %v5404 = vadd.f32 %v5340, 0.5
  %v5405 = vadd.f32 %v5341, 0.5
  %v5406 = vadd.f32 %v5342, 0.5
  %v5407 = vadd.f32 %v5343, 0.5
  %v5408 = vadd.f32 %v5344, 0.5
  %v5409 = vadd.f32 %v5345, 0.5
  %v5410 = vadd.f32 %v5346, 0.5
  %v5411 = vadd.f32 %v5347, 0.5
  %v5412 = vadd.f32 %v5348, 0.5
  %v5413 = vadd.f32 %v5349, 0.5
  %v5414 = vadd.f32 %v5350, 0.5
  %v5415 = vadd.f32 %v5351, 0.5
  %v5416 = vadd.f32 %v5352, 0.5
  %v5417 = vadd.f32 %v5353, 0.5
  %v5418 = vadd.f32 %v5354, 0.5
  %v5419 = vadd.f32 %v5355, 0.5
  %v5420 = vadd.f32 %v5356, 0.5
  %v5421 = vadd.f32 %v5357, 0.5
  %v5422 = vadd.f32 %v5358, 0.5
  %v5423 = vadd.f32 %v5359, 0.5
  %v5424 = vadd.f32 %v5360, 0.5
  %v5425 = vadd.f32 %v5361, 0.5
  %v5426 = vadd.f32 %v5362, 0.5
  %v5427 = vadd.f32 %v5363, 0.5
  %v5428 = vadd.f32 %v5364, 0.5
  %v5429 = vadd.f32 %v5365, 0.5
  %v5430 = vadd.f32 %v5366, 0.5
  %v5431 = vadd.f32 %v5367, 0.5
  %v5432 = vadd.f32 %v5368, 0.5
  %v5433 = vadd.f32 %v5369, 0.5
  %v5434 = vadd.f32 %v5370, 0.5
  %v5435 = vadd.f32 %v5371, 0.5
  %v5436 = vadd.f32 %v5372, 0.5
  %v5437 = vadd.f32 %v5373, 0.5
  %v5438 = vadd.f32 %v5374, 0.5
  %v5439 = vadd.f32 %v5375, 0.5
  %v5440 = vadd.f32 %v5376, 0.5
  %v5441 = vadd.f32 %v5377, 0.5
  %v5442 = vadd.f32 %v5378, 0.5
  %v5443 = vadd.f32 %v5379, 0.5
  %v5444 = vadd.f32 %v5380, 0.5
  %v5445 = vadd.f32 %v5381, 0.5
  %v5446 = vmul.f32 %v5382, 0.00390625
  %v5447 = vmul.f32 %v5383, 0.00390625
  %v5448 = vmul.f32 %v5384, 0.00390625
  %v5449 = vmul.f32 %v5385, 0.00390625
  %v5450 = vmul.f32 %v5386, 0.00390625
  %v5451 = vmul.f32 %v5387, 0.00390625
  %v5452 = vmul.f32 %v5388, 0.00390625
  %v5453 = vmul.f32 %v5389, 0.00390625
  %v5454 = vmul.f32 %v5390, 0.00390625
  %v5455 = vmul.f32 %v5391, 0.00390625
  %v5456 = vmul.f32 %v5392, 0.00390625
  %v5457 = vmul.f32 %v5393, 0.00390625
  %v5458 = vmul.f32 %v5394, 0.00390625
  %v5459 = vmul.f32 %v5395, 0.00390625
  %v5460 = vmul.f32 %v5396, 0.00390625
  %v5461 = vmul.f32 %v5397, 0.00390625
  %v5462 = vmul.f32 %v5398, 0.00390625
  %v5463 = vmul.f32 %v5399, 0.00390625
  %v5464 = vmul.f32 %v5400, 0.00390625
  %v5465 = vmul.f32 %v5401, 0.00390625
  %v5466 = vmul.f32 %v5402, 0.00390625
  %v5467 = vmul.f32 %v5403, 0.00390625
  %v5468 = vmul.f32 %v5404, 0.00390625
  %v5469 = vmul.f32 %v5405, 0.00390625
  %v5470 = vmul.f32 %v5406, 0.00390625
  %v5471 = vmul.f32 %v5407, 0.00390625
  %v5472 = vmul.f32 %v5408, 0.00390625
  %v5473 = vmul.f32 %v5409, 0.00390625
  %v5474 = vmul.f32 %v5410, 0.00390625
  %v5475 = vmul.f32 %v5411, 0.00390625
  %v5476 = vmul.f32 %v5412, 0.00390625
  %v5477 = vmul.f32 %v5413, 0.00390625
  %v5478 = vmul.f32 %v5414, 0.00390625
  %v5479 = vmul.f32 %v5415, 0.00390625
  %v5480 = vmul.f32 %v5416, 0.00390625
  %v5481 = vmul.f32 %v5417, 0.00390625
  %v5482 = vmul.f32 %v5418, 0.00390625
  %v5483 = vmul.f32 %v5419, 0.00390625
  %v5484 = vmul.f32 %v5420, 0.00390625
  %v5485 = vmul.f32 %v5421, 0.00390625
  %v5486 = vmul.f32 %v5422, 0.00390625
  %v5487 = vmul.f32 %v5423, 0.00390625
  %v5488 = vmul.f32 %v5424, 0.00390625
  %v5489 = vmul.f32 %v5425, 0.00390625
  %v5490 = vmul.f32 %v5426, 0.00390625
  %v5491 = vmul.f32 %v5427, 0.00390625
  %v5492 = vmul.f32 %v5428, 0.00390625
  %v5493 = vmul.f32 %v5429, 0.00390625
  %v5494 = vmul.f32 %v5430, 0.00390625
  %v5495 = vmul.f32 %v5431, 0.00390625
  %v5496 = vmul.f32 %v5432, 0.00390625
  %v5497 = vmul.f32 %v5433, 0.00390625
  %v5498 = vmul.f32 %v5434, 0.00390625
  %v5499 = vmul.f32 %v5435, 0.00390625
  %v5500 = vmul.f32 %v5436, 0.00390625
  %v5501 = vmul.f32 %v5437, 0.00390625
  %v5502 = vmul.f32 %v5438, 0.00390625
  %v5503 = vmul.f32 %v5439, 0.00390625
  %v5504 = vmul.f32 %v5440, 0.00390625
  %v5505 = vmul.f32 %v5441, 0.00390625
  %v5506 = vmul.f32 %v5442, 0.00390625
  %v5507 = vmul.f32 %v5443, 0.00390625
  %v5508 = vmul.f32 %v5444, 0.00390625
  %v5509 = vmul.f32 %v5445, 0.00390625
  %v5510 = vfloor.f32 %v5446
  %v5511 = vfloor.f32 %v5447
  %v5512 = vfloor.f32 %v5448
  %v5513 = vfloor.f32 %v5449
  %v5514 = vfloor.f32 %v5450
  %v5515 = vfloor.f32 %v5451
  %v5516 = vfloor.f32 %v5452
  %v5517 = vfloor.f32 %v5453
  %v5518 = vfloor.f32 %v5454
  %v5519 = vfloor.f32 %v5455
  %v5520 = vfloor.f32 %v5456
  %v5521 = vfloor.f32 %v5457
  %v5522 = vfloor.f32 %v5458
  %v5523 = vfloor.f32 %v5459
  %v5524 = vfloor.f32 %v5460
  %v5525 = vfloor.f32 %v5461
  %v5526 = vfloor.f32 %v5462
  %v5527 = vfloor.f32 %v5463
  %v5528 = vfloor.f32 %v5464
  %v5529 = vfloor.f32 %v5465
  %v5530 = vfloor.f32 %v5466
  %v5531 = vfloor.f32 %v5467
  %v5532 = vfloor.f32 %v5468
  %v5533 = vfloor.f32 %v5469
  %v5534 = vfloor.f32 %v5470
  %v5535 = vfloor.f32 %v5471
  %v5536 = vfloor.f32 %v5472
  %v5537 = vfloor.f32 %v5473
  %v5538 = vfloor.f32 %v5474
  %v5539 = vfloor.f32 %v5475
  %v5540 = vfloor.f32 %v5476
  %v5541 = vfloor.f32 %v5477
  %v5542 = vfloor.f32 %v5478
  %v5543 = vfloor.f32 %v5479
  %v5544 = vfloor.f32 %v5480
  %v5545 = vfloor.f32 %v5481
  %v5546 = vfloor.f32 %v5482
  %v5547 = vfloor.f32 %v5483
  %v5548 = vfloor.f32 %v5484
  %v5549 = vfloor.f32 %v5485
  %v5550 = vfloor.f32 %v5486
  %v5551 = vfloor.f32 %v5487
  %v5552 = vfloor.f32 %v5488
  %v5553 = vfloor.f32 %v5489
  %v5554 = vfloor.f32 %v5490
  %v5555 = vfloor.f32 %v5491
  %v5556 = vfloor.f32 %v5492
  %v5557 = vfloor.f32 %v5493
  %v5558 = vfloor.f32 %v5494
  %v5559 = vfloor.f32 %v5495
  %v5560 = vfloor.f32 %v5496
  %v5561 = vfloor.f32 %v5497
  %v5562 = vfloor.f32 %v5498
  %v5563 = vfloor.f32 %v5499
  %v5564 = vfloor.f32 %v5500
  %v5565 = vfloor.f32 %v5501
  %v5566 = vfloor.f32 %v5502
  %v5567 = vfloor.f32 %v5503
  %v5568 = vfloor.f32 %v5504
  %v5569 = vfloor.f32 %v5505
  %v5570 = vfloor.f32 %v5506
  %v5571 = vfloor.f32 %v5507
  %v5572 = vfloor.f32 %v5508
  %v5573 = vfloor.f32 %v5509
  %v5574 = vmul.f32 %v5510, 256.0
  %v5575 = vmul.f32 %v5511, 256.0
  %v5576 = vmul.f32 %v5512, 256.0
  %v5577 = vmul.f32 %v5513, 256.0
  %v5578 = vmul.f32 %v5514, 256.0
  %v5579 = vmul.f32 %v5515, 256.0
  %v5580 = vmul.f32 %v5516, 256.0
  %v5581 = vmul.f32 %v5517, 256.0
  %v5582 = vmul.f32 %v5518, 256.0
  %v5583 = vmul.f32 %v5519, 256.0
  %v5584 = vmul.f32 %v5520, 256.0
  %v5585 = vmul.f32 %v5521, 256.0
  %v5586 = vmul.f32 %v5522, 256.0
  %v5587 = vmul.f32 %v5523, 256.0
  %v5588 = vmul.f32 %v5524, 256.0
  %v5589 = vmul.f32 %v5525, 256.0
  %v5590 = vmul.f32 %v5526, 256.0
  %v5591 = vmul.f32 %v5527, 256.0
  %v5592 = vmul.f32 %v5528, 256.0
  %v5593 = vmul.f32 %v5529, 256.0
  %v5594 = vmul.f32 %v5530, 256.0
  %v5595 = vmul.f32 %v5531, 256.0
  %v5596 = vmul.f32 %v5532, 256.0
  %v5597 = vmul.f32 %v5533, 256.0
  %v5598 = vmul.f32 %v5534, 256.0
  %v5599 = vmul.f32 %v5535, 256.0
  %v5600 = vmul.f32 %v5536, 256.0
  %v5601 = vmul.f32 %v5537, 256.0
  %v5602 = vmul.f32 %v5538, 256.0
  %v5603 = vmul.f32 %v5539, 256.0
  %v5604 = vmul.f32 %v5540, 256.0
  %v5605 = vmul.f32 %v5541, 256.0
  %v5606 = vmul.f32 %v5542, 256.0
  %v5607 = vmul.f32 %v5543, 256.0
  %v5608 = vmul.f32 %v5544, 256.0
  %v5609 = vmul.f32 %v5545, 256.0
  %v5610 = vmul.f32 %v5546, 256.0
  %v5611 = vmul.f32 %v5547, 256.0
  %v5612 = vmul.f32 %v5548, 256.0
  %v5613 = vmul.f32 %v5549, 256.0
  %v5614 = vmul.f32 %v5550, 256.0
  %v5615 = vmul.f32 %v5551, 256.0
  %v5616 = vmul.f32 %v5552, 256.0
  %v5617 = vmul.f32 %v5553, 256.0
  %v5618 = vmul.f32 %v5554, 256.0
  %v5619 = vmul.f32 %v5555, 256.0
  %v5620 = vmul.f32 %v5556, 256.0
  %v5621 = vmul.f32 %v5557, 256.0
  %v5622 = vmul.f32 %v5558, 256.0
  %v5623 = vmul.f32 %v5559, 256.0
  %v5624 = vmul.f32 %v5560, 256.0
  %v5625 = vmul.f32 %v5561, 256.0
  %v5626 = vmul.f32 %v5562, 256.0
  %v5627 = vmul.f32 %v5563, 256.0
  %v5628 = vmul.f32 %v5564, 256.0
  %v5629 = vmul.f32 %v5565, 256.0
  %v5630 = vmul.f32 %v5566, 256.0
  %v5631 = vmul.f32 %v5567, 256.0
  %v5632 = vmul.f32 %v5568, 256.0
  %v5633 = vmul.f32 %v5569, 256.0
  %v5634 = vmul.f32 %v5570, 256.0
  %v5635 = vmul.f32 %v5571, 256.0
  %v5636 = vmul.f32 %v5572, 256.0
  %v5637 = vmul.f32 %v5573, 256.0
  %v5638 = vsub.f32 %v5318, %v5574
  %v5639 = vsub.f32 %v5319, %v5575
  %v5640 = vsub.f32 %v5320, %v5576
  %v5641 = vsub.f32 %v5321, %v5577
  %v5642 = vsub.f32 %v5322, %v5578
  %v5643 = vsub.f32 %v5323, %v5579
  %v5644 = vsub.f32 %v5324, %v5580
  %v5645 = vsub.f32 %v5325, %v5581
  %v5646 = vsub.f32 %v5326, %v5582
  %v5647 = vsub.f32 %v5327, %v5583
  %v5648 = vsub.f32 %v5328, %v5584
  %v5649 = vsub.f32 %v5329, %v5585
  %v5650 = vsub.f32 %v5330, %v5586
  %v5651 = vsub.f32 %v5331, %v5587
  %v5652 = vsub.f32 %v5332, %v5588
  %v5653 = vsub.f32 %v5333, %v5589
  %v5654 = vsub.f32 %v5334, %v5590
  %v5655 = vsub.f32 %v5335, %v5591
  %v5656 = vsub.f32 %v5336, %v5592
  %v5657 = vsub.f32 %v5337, %v5593
  %v5658 = vsub.f32 %v5338, %v5594
  %v5659 = vsub.f32 %v5339, %v5595
  %v5660 = vsub.f32 %v5340, %v5596
  %v5661 = vsub.f32 %v5341, %v5597
  %v5662 = vsub.f32 %v5342, %v5598
  %v5663 = vsub.f32 %v5343, %v5599
  %v5664 = vsub.f32 %v5344, %v5600
  %v5665 = vsub.f32 %v5345, %v5601
  %v5666 = vsub.f32 %v5346, %v5602
  %v5667 = vsub.f32 %v5347, %v5603
  %v5668 = vsub.f32 %v5348, %v5604
  %v5669 = vsub.f32 %v5349, %v5605
  %v5670 = vsub.f32 %v5350, %v5606
  %v5671 = vsub.f32 %v5351, %v5607
  %v5672 = vsub.f32 %v5352, %v5608
  %v5673 = vsub.f32 %v5353, %v5609
  %v5674 = vsub.f32 %v5354, %v5610
  %v5675 = vsub.f32 %v5355, %v5611
  %v5676 = vsub.f32 %v5356, %v5612
  %v5677 = vsub.f32 %v5357, %v5613
  %v5678 = vsub.f32 %v5358, %v5614
  %v5679 = vsub.f32 %v5359, %v5615
  %v5680 = vsub.f32 %v5360, %v5616
  %v5681 = vsub.f32 %v5361, %v5617
  %v5682 = vsub.f32 %v5362, %v5618
  %v5683 = vsub.f32 %v5363, %v5619
  %v5684 = vsub.f32 %v5364, %v5620
  %v5685 = vsub.f32 %v5365, %v5621
  %v5686 = vsub.f32 %v5366, %v5622
  %v5687 = vsub.f32 %v5367, %v5623
  %v5688 = vsub.f32 %v5368, %v5624
  %v5689 = vsub.f32 %v5369, %v5625
  %v5690 = vsub.f32 %v5370, %v5626
  %v5691 = vsub.f32 %v5371, %v5627
  %v5692 = vsub.f32 %v5372, %v5628
  %v5693 = vsub.f32 %v5373, %v5629
  %v5694 = vsub.f32 %v5374, %v5630
  %v5695 = vsub.f32 %v5375, %v5631
  %v5696 = vsub.f32 %v5376, %v5632
  %v5697 = vsub.f32 %v5377, %v5633
  %v5698 = vsub.f32 %v5378, %v5634
  %v5699 = vsub.f32 %v5379, %v5635
  %v5700 = vsub.f32 %v5380, %v5636
  %v5701 = vsub.f32 %v5381, %v5637
  %v5702 = vadd.f32 %v5638, 0.5
  %v5703 = vadd.f32 %v5639, 0.5
  %v5704 = vadd.f32 %v5640, 0.5
  %v5705 = vadd.f32 %v5641, 0.5
  %v5706 = vadd.f32 %v5642, 0.5
  %v5707 = vadd.f32 %v5643, 0.5
  %v5708 = vadd.f32 %v5644, 0.5
  %v5709 = vadd.f32 %v5645, 0.5
  %v5710 = vadd.f32 %v5646, 0.5
  %v5711 = vadd.f32 %v5647, 0.5
  %v5712 = vadd.f32 %v5648, 0.5
  %v5713 = vadd.f32 %v5649, 0.5
  %v5714 = vadd.f32 %v5650, 0.5
  %v5715 = vadd.f32 %v5651, 0.5
  %v5716 = vadd.f32 %v5652, 0.5
  %v5717 = vadd.f32 %v5653, 0.5
  %v5718 = vadd.f32 %v5654, 0.5
  %v5719 = vadd.f32 %v5655, 0.5
  %v5720 = vadd.f32 %v5656, 0.5
  %v5721 = vadd.f32 %v5657, 0.5
  %v5722 = vadd.f32 %v5658, 0.5
  %v5723 = vadd.f32 %v5659, 0.5
  %v5724 = vadd.f32 %v5660, 0.5
  %v5725 = vadd.f32 %v5661, 0.5
  %v5726 = vadd.f32 %v5662, 0.5
  %v5727 = vadd.f32 %v5663, 0.5
  %v5728 = vadd.f32 %v5664, 0.5
  %v5729 = vadd.f32 %v5665, 0.5
  %v5730 = vadd.f32 %v5666, 0.5
  %v5731 = vadd.f32 %v5667, 0.5
  %v5732 = vadd.f32 %v5668, 0.5
  %v5733 = vadd.f32 %v5669, 0.5
  %v5734 = vadd.f32 %v5670, 0.5
  %v5735 = vadd.f32 %v5671, 0.5
  %v5736 = vadd.f32 %v5672, 0.5
  %v5737 = vadd.f32 %v5673, 0.5
  %v5738 = vadd.f32 %v5674, 0.5
  %v5739 = vadd.f32 %v5675, 0.5
  %v5740 = vadd.f32 %v5676, 0.5
  %v5741 = vadd.f32 %v5677, 0.5
  %v5742 = vadd.f32 %v5678, 0.5
  %v5743 = vadd.f32 %v5679, 0.5
  %v5744 = vadd.f32 %v5680, 0.5
  %v5745 = vadd.f32 %v5681, 0.5
  %v5746 = vadd.f32 %v5682, 0.5
  %v5747 = vadd.f32 %v5683, 0.5
  %v5748 = vadd.f32 %v5684, 0.5
  %v5749 = vadd.f32 %v5685, 0.5
  %v5750 = vadd.f32 %v5686, 0.5
  %v5751 = vadd.f32 %v5687, 0.5
  %v5752 = vadd.f32 %v5688, 0.5
  %v5753 = vadd.f32 %v5689, 0.5
  %v5754 = vadd.f32 %v5690, 0.5
  %v5755 = vadd.f32 %v5691, 0.5
  %v5756 = vadd.f32 %v5692, 0.5
  %v5757 = vadd.f32 %v5693, 0.5
  %v5758 = vadd.f32 %v5694, 0.5
  %v5759 = vadd.f32 %v5695, 0.5
  %v5760 = vadd.f32 %v5696, 0.5
  %v5761 = vadd.f32 %v5697, 0.5
  %v5762 = vadd.f32 %v5698, 0.5
  %v5763 = vadd.f32 %v5699, 0.5
  %v5764 = vadd.f32 %v5700, 0.5
  %v5765 = vadd.f32 %v5701, 0.5
  %v5766 = vmul.f32 %v5702, 0.0625
  %v5767 = vmul.f32 %v5703, 0.0625
  %v5768 = vmul.f32 %v5704, 0.0625
  %v5769 = vmul.f32 %v5705, 0.0625
  %v5770 = vmul.f32 %v5706, 0.0625
  %v5771 = vmul.f32 %v5707, 0.0625
  %v5772 = vmul.f32 %v5708, 0.0625
  %v5773 = vmul.f32 %v5709, 0.0625
  %v5774 = vmul.f32 %v5710, 0.0625
  %v5775 = vmul.f32 %v5711, 0.0625
  %v5776 = vmul.f32 %v5712, 0.0625
  %v5777 = vmul.f32 %v5713, 0.0625
  %v5778 = vmul.f32 %v5714, 0.0625
  %v5779 = vmul.f32 %v5715, 0.0625
  %v5780 = vmul.f32 %v5716, 0.0625
  %v5781 = vmul.f32 %v5717, 0.0625
  %v5782 = vmul.f32 %v5718, 0.0625
  %v5783 = vmul.f32 %v5719, 0.0625
  %v5784 = vmul.f32 %v5720, 0.0625
  %v5785 = vmul.f32 %v5721, 0.0625
  %v5786 = vmul.f32 %v5722, 0.0625
  %v5787 = vmul.f32 %v5723, 0.0625
  %v5788 = vmul.f32 %v5724, 0.0625
  %v5789 = vmul.f32 %v5725, 0.0625
  %v5790 = vmul.f32 %v5726, 0.0625
  %v5791 = vmul.f32 %v5727, 0.0625
  %v5792 = vmul.f32 %v5728, 0.0625
  %v5793 = vmul.f32 %v5729, 0.0625
  %v5794 = vmul.f32 %v5730, 0.0625
  %v5795 = vmul.f32 %v5731, 0.0625
  %v5796 = vmul.f32 %v5732, 0.0625
  %v5797 = vmul.f32 %v5733, 0.0625
  %v5798 = vmul.f32 %v5734, 0.0625
  %v5799 = vmul.f32 %v5735, 0.0625
  %v5800 = vmul.f32 %v5736, 0.0625
  %v5801 = vmul.f32 %v5737, 0.0625
  %v5802 = vmul.f32 %v5738, 0.0625
  %v5803 = vmul.f32 %v5739, 0.0625
  %v5804 = vmul.f32 %v5740, 0.0625
  %v5805 = vmul.f32 %v5741, 0.0625
  %v5806 = vmul.f32 %v5742, 0.0625
  %v5807 = vmul.f32 %v5743, 0.0625
  %v5808 = vmul.f32 %v5744, 0.0625
  %v5809 = vmul.f32 %v5745, 0.0625
  %v5810 = vmul.f32 %v5746, 0.0625
  %v5811 = vmul.f32 %v5747, 0.0625
  %v5812 = vmul.f32 %v5748, 0.0625
  %v5813 = vmul.f32 %v5749, 0.0625
  %v5814 = vmul.f32 %v5750, 0.0625
  %v5815 = vmul.f32 %v5751, 0.0625
  %v5816 = vmul.f32 %v5752, 0.0625
  %v5817 = vmul.f32 %v5753, 0.0625
  %v5818 = vmul.f32 %v5754, 0.0625
  %v5819 = vmul.f32 %v5755, 0.0625
  %v5820 = vmul.f32 %v5756, 0.0625
  %v5821 = vmul.f32 %v5757, 0.0625
  %v5822 = vmul.f32 %v5758, 0.0625
  %v5823 = vmul.f32 %v5759, 0.0625
  %v5824 = vmul.f32 %v5760, 0.0625
  %v5825 = vmul.f32 %v5761, 0.0625
  %v5826 = vmul.f32 %v5762, 0.0625
  %v5827 = vmul.f32 %v5763, 0.0625
  %v5828 = vmul.f32 %v5764, 0.0625
  %v5829 = vmul.f32 %v5765, 0.0625
  %v5830 = vfloor.f32 %v5766
  %v5831 = vfloor.f32 %v5767
  %v5832 = vfloor.f32 %v5768
  %v5833 = vfloor.f32 %v5769
  %v5834 = vfloor.f32 %v5770
  %v5835 = vfloor.f32 %v5771
  %v5836 = vfloor.f32 %v5772
  %v5837 = vfloor.f32 %v5773
  %v5838 = vfloor.f32 %v5774
  %v5839 = vfloor.f32 %v5775
  %v5840 = vfloor.f32 %v5776
  %v5841 = vfloor.f32 %v5777
  %v5842 = vfloor.f32 %v5778
  %v5843 = vfloor.f32 %v5779
  %v5844 = vfloor.f32 %v5780
  %v5845 = vfloor.f32 %v5781
  %v5846 = vfloor.f32 %v5782
  %v5847 = vfloor.f32 %v5783
  %v5848 = vfloor.f32 %v5784
  %v5849 = vfloor.f32 %v5785
  %v5850 = vfloor.f32 %v5786
  %v5851 = vfloor.f32 %v5787
  %v5852 = vfloor.f32 %v5788
  %v5853 = vfloor.f32 %v5789
  %v5854 = vfloor.f32 %v5790
  %v5855 = vfloor.f32 %v5791
  %v5856 = vfloor.f32 %v5792
  %v5857 = vfloor.f32 %v5793
  %v5858 = vfloor.f32 %v5794
  %v5859 = vfloor.f32 %v5795
  %v5860 = vfloor.f32 %v5796
  %v5861 = vfloor.f32 %v5797
  %v5862 = vfloor.f32 %v5798
  %v5863 = vfloor.f32 %v5799
  %v5864 = vfloor.f32 %v5800
  %v5865 = vfloor.f32 %v5801
  %v5866 = vfloor.f32 %v5802
  %v5867 = vfloor.f32 %v5803
  %v5868 = vfloor.f32 %v5804
  %v5869 = vfloor.f32 %v5805
  %v5870 = vfloor.f32 %v5806
  %v5871 = vfloor.f32 %v5807
  %v5872 = vfloor.f32 %v5808
  %v5873 = vfloor.f32 %v5809
  %v5874 = vfloor.f32 %v5810
  %v5875 = vfloor.f32 %v5811
  %v5876 = vfloor.f32 %v5812
  %v5877 = vfloor.f32 %v5813
  %v5878 = vfloor.f32 %v5814
  %v5879 = vfloor.f32 %v5815
  %v5880 = vfloor.f32 %v5816
  %v5881 = vfloor.f32 %v5817
  %v5882 = vfloor.f32 %v5818
  %v5883 = vfloor.f32 %v5819
  %v5884 = vfloor.f32 %v5820
  %v5885 = vfloor.f32 %v5821
  %v5886 = vfloor.f32 %v5822
  %v5887 = vfloor.f32 %v5823
  %v5888 = vfloor.f32 %v5824
  %v5889 = vfloor.f32 %v5825
  %v5890 = vfloor.f32 %v5826
  %v5891 = vfloor.f32 %v5827
  %v5892 = vfloor.f32 %v5828
  %v5893 = vfloor.f32 %v5829
  %v5894 = vmul.f32 %v5830, 16.0
  %v5895 = vmul.f32 %v5831, 16.0
  %v5896 = vmul.f32 %v5832, 16.0
  %v5897 = vmul.f32 %v5833, 16.0
  %v5898 = vmul.f32 %v5834, 16.0
  %v5899 = vmul.f32 %v5835, 16.0
  %v5900 = vmul.f32 %v5836, 16.0
  %v5901 = vmul.f32 %v5837, 16.0
  %v5902 = vmul.f32 %v5838, 16.0
  %v5903 = vmul.f32 %v5839, 16.0
  %v5904 = vmul.f32 %v5840, 16.0
  %v5905 = vmul.f32 %v5841, 16.0
  %v5906 = vmul.f32 %v5842, 16.0
  %v5907 = vmul.f32 %v5843, 16.0
  %v5908 = vmul.f32 %v5844, 16.0
  %v5909 = vmul.f32 %v5845, 16.0
  %v5910 = vmul.f32 %v5846, 16.0
  %v5911 = vmul.f32 %v5847, 16.0
  %v5912 = vmul.f32 %v5848, 16.0
  %v5913 = vmul.f32 %v5849, 16.0
  %v5914 = vmul.f32 %v5850, 16.0
  %v5915 = vmul.f32 %v5851, 16.0
  %v5916 = vmul.f32 %v5852, 16.0
  %v5917 = vmul.f32 %v5853, 16.0
  %v5918 = vmul.f32 %v5854, 16.0
  %v5919 = vmul.f32 %v5855, 16.0
  %v5920 = vmul.f32 %v5856, 16.0
  %v5921 = vmul.f32 %v5857, 16.0
  %v5922 = vmul.f32 %v5858, 16.0
  %v5923 = vmul.f32 %v5859, 16.0
  %v5924 = vmul.f32 %v5860, 16.0
  %v5925 = vmul.f32 %v5861, 16.0
  %v5926 = vmul.f32 %v5862, 16.0
  %v5927 = vmul.f32 %v5863, 16.0
  %v5928 = vmul.f32 %v5864, 16.0
  %v5929 = vmul.f32 %v5865, 16.0
  %v5930 = vmul.f32 %v5866, 16.0
  %v5931 = vmul.f32 %v5867, 16.0
  %v5932 = vmul.f32 %v5868, 16.0
  %v5933 = vmul.f32 %v5869, 16.0
  %v5934 = vmul.f32 %v5870, 16.0
  %v5935 = vmul.f32 %v5871, 16.0
  %v5936 = vmul.f32 %v5872, 16.0
  %v5937 = vmul.f32 %v5873, 16.0
  %v5938 = vmul.f32 %v5874, 16.0
  %v5939 = vmul.f32 %v5875, 16.0
  %v5940 = vmul.f32 %v5876, 16.0
  %v5941 = vmul.f32 %v5877, 16.0
  %v5942 = vmul.f32 %v5878, 16.0
  %v5943 = vmul.f32 %v5879, 16.0
  %v5944 = vmul.f32 %v5880, 16.0
  %v5945 = vmul.f32 %v5881, 16.0
  %v5946 = vmul.f32 %v5882, 16.0
  %v5947 = vmul.f32 %v5883, 16.0
  %v5948 = vmul.f32 %v5884, 16.0
  %v5949 = vmul.f32 %v5885, 16.0
  %v5950 = vmul.f32 %v5886, 16.0
  %v5951 = vmul.f32 %v5887, 16.0
  %v5952 = vmul.f32 %v5888, 16.0
  %v5953 = vmul.f32 %v5889, 16.0
  %v5954 = vmul.f32 %v5890, 16.0
  %v5955 = vmul.f32 %v5891, 16.0
  %v5956 = vmul.f32 %v5892, 16.0
  %v5957 = vmul.f32 %v5893, 16.0
  %v5958 = vsub.f32 %v5638, %v5894
  %v5959 = vsub.f32 %v5639, %v5895
  %v5960 = vsub.f32 %v5640, %v5896
  %v5961 = vsub.f32 %v5641, %v5897
  %v5962 = vsub.f32 %v5642, %v5898
  %v5963 = vsub.f32 %v5643, %v5899
  %v5964 = vsub.f32 %v5644, %v5900
  %v5965 = vsub.f32 %v5645, %v5901
  %v5966 = vsub.f32 %v5646, %v5902
  %v5967 = vsub.f32 %v5647, %v5903
  %v5968 = vsub.f32 %v5648, %v5904
  %v5969 = vsub.f32 %v5649, %v5905
  %v5970 = vsub.f32 %v5650, %v5906
  %v5971 = vsub.f32 %v5651, %v5907
  %v5972 = vsub.f32 %v5652, %v5908
  %v5973 = vsub.f32 %v5653, %v5909
  %v5974 = vsub.f32 %v5654, %v5910
  %v5975 = vsub.f32 %v5655, %v5911
  %v5976 = vsub.f32 %v5656, %v5912
  %v5977 = vsub.f32 %v5657, %v5913
  %v5978 = vsub.f32 %v5658, %v5914
  %v5979 = vsub.f32 %v5659, %v5915
  %v5980 = vsub.f32 %v5660, %v5916
  %v5981 = vsub.f32 %v5661, %v5917
  %v5982 = vsub.f32 %v5662, %v5918
  %v5983 = vsub.f32 %v5663, %v5919
  %v5984 = vsub.f32 %v5664, %v5920
  %v5985 = vsub.f32 %v5665, %v5921
  %v5986 = vsub.f32 %v5666, %v5922
  %v5987 = vsub.f32 %v5667, %v5923
  %v5988 = vsub.f32 %v5668, %v5924
  %v5989 = vsub.f32 %v5669, %v5925
  %v5990 = vsub.f32 %v5670, %v5926
  %v5991 = vsub.f32 %v5671, %v5927
  %v5992 = vsub.f32 %v5672, %v5928
  %v5993 = vsub.f32 %v5673, %v5929
  %v5994 = vsub.f32 %v5674, %v5930
  %v5995 = vsub.f32 %v5675, %v5931
  %v5996 = vsub.f32 %v5676, %v5932
  %v5997 = vsub.f32 %v5677, %v5933
  %v5998 = vsub.f32 %v5678, %v5934
  %v5999 = vsub.f32 %v5679, %v5935
  %v6000 = vsub.f32 %v5680, %v5936
  %v6001 = vsub.f32 %v5681, %v5937
  %v6002 = vsub.f32 %v5682, %v5938
  %v6003 = vsub.f32 %v5683, %v5939
  %v6004 = vsub.f32 %v5684, %v5940
  %v6005 = vsub.f32 %v5685, %v5941
  %v6006 = vsub.f32 %v5686, %v5942
  %v6007 = vsub.f32 %v5687, %v5943
  %v6008 = vsub.f32 %v5688, %v5944
  %v6009 = vsub.f32 %v5689, %v5945
  %v6010 = vsub.f32 %v5690, %v5946
  %v6011 = vsub.f32 %v5691, %v5947
  %v6012 = vsub.f32 %v5692, %v5948
  %v6013 = vsub.f32 %v5693, %v5949
  %v6014 = vsub.f32 %v5694, %v5950
  %v6015 = vsub.f32 %v5695, %v5951
  %v6016 = vsub.f32 %v5696, %v5952
  %v6017 = vsub.f32 %v5697, %v5953
  %v6018 = vsub.f32 %v5698, %v5954
  %v6019 = vsub.f32 %v5699, %v5955
  %v6020 = vsub.f32 %v5700, %v5956
  %v6021 = vsub.f32 %v5701, %v5957
  %v6022 = vadd.f32 %v5958, 0.5
  %v6023 = vadd.f32 %v5959, 0.5
  %v6024 = vadd.f32 %v5960, 0.5
  %v6025 = vadd.f32 %v5961, 0.5
  %v6026 = vadd.f32 %v5962, 0.5
  %v6027 = vadd.f32 %v5963, 0.5
  %v6028 = vadd.f32 %v5964, 0.5
  %v6029 = vadd.f32 %v5965, 0.5
  %v6030 = vadd.f32 %v5966, 0.5
  %v6031 = vadd.f32 %v5967, 0.5
  %v6032 = vadd.f32 %v5968, 0.5
  %v6033 = vadd.f32 %v5969, 0.5
  %v6034 = vadd.f32 %v5970, 0.5
  %v6035 = vadd.f32 %v5971, 0.5
  %v6036 = vadd.f32 %v5972, 0.5
  %v6037 = vadd.f32 %v5973, 0.5
  %v6038 = vadd.f32 %v5974, 0.5
  %v6039 = vadd.f32 %v5975, 0.5
  %v6040 = vadd.f32 %v5976, 0.5
  %v6041 = vadd.f32 %v5977, 0.5
  %v6042 = vadd.f32 %v5978, 0.5
  %v6043 = vadd.f32 %v5979, 0.5
  %v6044 = vadd.f32 %v5980, 0.5
  %v6045 = vadd.f32 %v5981, 0.5
  %v6046 = vadd.f32 %v5982, 0.5
  %v6047 = vadd.f32 %v5983, 0.5
  %v6048 = vadd.f32 %v5984, 0.5
  %v6049 = vadd.f32 %v5985, 0.5
  %v6050 = vadd.f32 %v5986, 0.5
  %v6051 = vadd.f32 %v5987, 0.5
  %v6052 = vadd.f32 %v5988, 0.5
  %v6053 = vadd.f32 %v5989, 0.5
  %v6054 = vadd.f32 %v5990, 0.5
  %v6055 = vadd.f32 %v5991, 0.5
  %v6056 = vadd.f32 %v5992, 0.5
  %v6057 = vadd.f32 %v5993, 0.5
  %v6058 = vadd.f32 %v5994, 0.5
  %v6059 = vadd.f32 %v5995, 0.5
  %v6060 = vadd.f32 %v5996, 0.5
  %v6061 = vadd.f32 %v5997, 0.5
  %v6062 = vadd.f32 %v5998, 0.5
  %v6063 = vadd.f32 %v5999, 0.5
  %v6064 = vadd.f32 %v6000, 0.5
  %v6065 = vadd.f32 %v6001, 0.5
  %v6066 = vadd.f32 %v6002, 0.5
  %v6067 = vadd.f32 %v6003, 0.5
  %v6068 = vadd.f32 %v6004, 0.5
  %v6069 = vadd.f32 %v6005, 0.5
  %v6070 = vadd.f32 %v6006, 0.5
  %v6071 = vadd.f32 %v6007, 0.5
  %v6072 = vadd.f32 %v6008, 0.5
  %v6073 = vadd.f32 %v6009, 0.5
  %v6074 = vadd.f32 %v6010, 0.5
  %v6075 = vadd.f32 %v6011, 0.5
  %v6076 = vadd.f32 %v6012, 0.5
  %v6077 = vadd.f32 %v6013, 0.5
  %v6078 = vadd.f32 %v6014, 0.5
  %v6079 = vadd.f32 %v6015, 0.5
  %v6080 = vadd.f32 %v6016, 0.5
  %v6081 = vadd.f32 %v6017, 0.5
  %v6082 = vadd.f32 %v6018, 0.5
  %v6083 = vadd.f32 %v6019, 0.5
  %v6084 = vadd.f32 %v6020, 0.5
  %v6085 = vadd.f32 %v6021, 0.5
  %v6086 = vmul.f32 %v6022, 0.125
  %v6087 = vmul.f32 %v6023, 0.125
  %v6088 = vmul.f32 %v6024, 0.125
  %v6089 = vmul.f32 %v6025, 0.125
  %v6090 = vmul.f32 %v6026, 0.125
  %v6091 = vmul.f32 %v6027, 0.125
  %v6092 = vmul.f32 %v6028, 0.125
  %v6093 = vmul.f32 %v6029, 0.125
  %v6094 = vmul.f32 %v6030, 0.125
  %v6095 = vmul.f32 %v6031, 0.125
  %v6096 = vmul.f32 %v6032, 0.125
  %v6097 = vmul.f32 %v6033, 0.125
  %v6098 = vmul.f32 %v6034, 0.125
  %v6099 = vmul.f32 %v6035, 0.125
  %v6100 = vmul.f32 %v6036, 0.125
  %v6101 = vmul.f32 %v6037, 0.125
  %v6102 = vmul.f32 %v6038, 0.125
  %v6103 = vmul.f32 %v6039, 0.125
  %v6104 = vmul.f32 %v6040, 0.125
  %v6105 = vmul.f32 %v6041, 0.125
  %v6106 = vmul.f32 %v6042, 0.125
  %v6107 = vmul.f32 %v6043, 0.125
  %v6108 = vmul.f32 %v6044, 0.125
  %v6109 = vmul.f32 %v6045, 0.125
  %v6110 = vmul.f32 %v6046, 0.125
  %v6111 = vmul.f32 %v6047, 0.125
  %v6112 = vmul.f32 %v6048, 0.125
  %v6113 = vmul.f32 %v6049, 0.125
  %v6114 = vmul.f32 %v6050, 0.125
  %v6115 = vmul.f32 %v6051, 0.125
  %v6116 = vmul.f32 %v6052, 0.125
  %v6117 = vmul.f32 %v6053, 0.125
  %v6118 = vmul.f32 %v6054, 0.125
  %v6119 = vmul.f32 %v6055, 0.125
  %v6120 = vmul.f32 %v6056, 0.125
  %v6121 = vmul.f32 %v6057, 0.125
  %v6122 = vmul.f32 %v6058, 0.125
  %v6123 = vmul.f32 %v6059, 0.125
  %v6124 = vmul.f32 %v6060, 0.125
  %v6125 = vmul.f32 %v6061, 0.125
  %v6126 = vmul.f32 %v6062, 0.125
  %v6127 = vmul.f32 %v6063, 0.125
  %v6128 = vmul.f32 %v6064, 0.125
  %v6129 = vmul.f32 %v6065, 0.125
  %v6130 = vmul.f32 %v6066, 0.125
  %v6131 = vmul.f32 %v6067, 0.125
  %v6132 = vmul.f32 %v6068, 0.125
  %v6133 = vmul.f32 %v6069, 0.125
  %v6134 = vmul.f32 %v6070, 0.125
  %v6135 = vmul.f32 %v6071, 0.125
  %v6136 = vmul.f32 %v6072, 0.125
  %v6137 = vmul.f32 %v6073, 0.125
  %v6138 = vmul.f32 %v6074, 0.125
  %v6139 = vmul.f32 %v6075, 0.125
  %v6140 = vmul.f32 %v6076, 0.125
  %v6141 = vmul.f32 %v6077, 0.125
  %v6142 = vmul.f32 %v6078, 0.125
  %v6143 = vmul.f32 %v6079, 0.125
  %v6144 = vmul.f32 %v6080, 0.125
  %v6145 = vmul.f32 %v6081, 0.125
  %v6146 = vmul.f32 %v6082, 0.125
  %v6147 = vmul.f32 %v6083, 0.125
  %v6148 = vmul.f32 %v6084, 0.125
  %v6149 = vmul.f32 %v6085, 0.125
  %v6150 = vsub.f32 %v6086, 1.0
  %v6151 = vsub.f32 %v6087, 1.0
  %v6152 = vsub.f32 %v6088, 1.0
  %v6153 = vsub.f32 %v6089, 1.0
  %v6154 = vsub.f32 %v6090, 1.0
  %v6155 = vsub.f32 %v6091, 1.0
  %v6156 = vsub.f32 %v6092, 1.0
  %v6157 = vsub.f32 %v6093, 1.0
  %v6158 = vsub.f32 %v6094, 1.0
  %v6159 = vsub.f32 %v6095, 1.0
  %v6160 = vsub.f32 %v6096, 1.0
  %v6161 = vsub.f32 %v6097, 1.0
  %v6162 = vsub.f32 %v6098, 1.0
  %v6163 = vsub.f32 %v6099, 1.0
  %v6164 = vsub.f32 %v6100, 1.0
  %v6165 = vsub.f32 %v6101, 1.0
  %v6166 = vsub.f32 %v6102, 1.0
  %v6167 = vsub.f32 %v6103, 1.0
  %v6168 = vsub.f32 %v6104, 1.0
  %v6169 = vsub.f32 %v6105, 1.0
  %v6170 = vsub.f32 %v6106, 1.0
  %v6171 = vsub.f32 %v6107, 1.0
  %v6172 = vsub.f32 %v6108, 1.0
  %v6173 = vsub.f32 %v6109, 1.0
  %v6174 = vsub.f32 %v6110, 1.0
  %v6175 = vsub.f32 %v6111, 1.0
  %v6176 = vsub.f32 %v6112, 1.0
  %v6177 = vsub.f32 %v6113, 1.0
  %v6178 = vsub.f32 %v6114, 1.0
  %v6179 = vsub.f32 %v6115, 1.0
  %v6180 = vsub.f32 %v6116, 1.0
  %v6181 = vsub.f32 %v6117, 1.0
  %v6182 = vsub.f32 %v6118, 1.0
  %v6183 = vsub.f32 %v6119, 1.0
  %v6184 = vsub.f32 %v6120, 1.0
  %v6185 = vsub.f32 %v6121, 1.0
  %v6186 = vsub.f32 %v6122, 1.0
  %v6187 = vsub.f32 %v6123, 1.0
  %v6188 = vsub.f32 %v6124, 1.0
  %v6189 = vsub.f32 %v6125, 1.0
  %v6190 = vsub.f32 %v6126, 1.0
  %v6191 = vsub.f32 %v6127, 1.0
  %v6192 = vsub.f32 %v6128, 1.0
  %v6193 = vsub.f32 %v6129, 1.0
  %v6194 = vsub.f32 %v6130, 1.0
  %v6195 = vsub.f32 %v6131, 1.0
  %v6196 = vsub.f32 %v6132, 1.0
  %v6197 = vsub.f32 %v6133, 1.0
  %v6198 = vsub.f32 %v6134, 1.0
  %v6199 = vsub.f32 %v6135, 1.0
  %v6200 = vsub.f32 %v6136, 1.0
  %v6201 = vsub.f32 %v6137, 1.0
  %v6202 = vsub.f32 %v6138, 1.0
  %v6203 = vsub.f32 %v6139, 1.0
  %v6204 = vsub.f32 %v6140, 1.0
  %v6205 = vsub.f32 %v6141, 1.0
  %v6206 = vsub.f32 %v6142, 1.0
  %v6207 = vsub.f32 %v6143, 1.0
  %v6208 = vsub.f32 %v6144, 1.0
  %v6209 = vsub.f32 %v6145, 1.0
  %v6210 = vsub.f32 %v6146, 1.0
  %v6211 = vsub.f32 %v6147, 1.0
  %v6212 = vsub.f32 %v6148, 1.0
  %v6213 = vsub.f32 %v6149, 1.0
  %v6214 = vadd.f32 %v5830, 0.5
  %v6215 = vadd.f32 %v5831, 0.5
  %v6216 = vadd.f32 %v5832, 0.5
  %v6217 = vadd.f32 %v5833, 0.5
  %v6218 = vadd.f32 %v5834, 0.5
  %v6219 = vadd.f32 %v5835, 0.5
  %v6220 = vadd.f32 %v5836, 0.5
  %v6221 = vadd.f32 %v5837, 0.5
  %v6222 = vadd.f32 %v5838, 0.5
  %v6223 = vadd.f32 %v5839, 0.5
  %v6224 = vadd.f32 %v5840, 0.5
  %v6225 = vadd.f32 %v5841, 0.5
  %v6226 = vadd.f32 %v5842, 0.5
  %v6227 = vadd.f32 %v5843, 0.5
  %v6228 = vadd.f32 %v5844, 0.5
  %v6229 = vadd.f32 %v5845, 0.5
  %v6230 = vadd.f32 %v5846, 0.5
  %v6231 = vadd.f32 %v5847, 0.5
  %v6232 = vadd.f32 %v5848, 0.5
  %v6233 = vadd.f32 %v5849, 0.5
  %v6234 = vadd.f32 %v5850, 0.5
  %v6235 = vadd.f32 %v5851, 0.5
  %v6236 = vadd.f32 %v5852, 0.5
  %v6237 = vadd.f32 %v5853, 0.5
  %v6238 = vadd.f32 %v5854, 0.5
  %v6239 = vadd.f32 %v5855, 0.5
  %v6240 = vadd.f32 %v5856, 0.5
  %v6241 = vadd.f32 %v5857, 0.5
  %v6242 = vadd.f32 %v5858, 0.5
  %v6243 = vadd.f32 %v5859, 0.5
  %v6244 = vadd.f32 %v5860, 0.5
  %v6245 = vadd.f32 %v5861, 0.5
  %v6246 = vadd.f32 %v5862, 0.5
  %v6247 = vadd.f32 %v5863, 0.5
  %v6248 = vadd.f32 %v5864, 0.5
  %v6249 = vadd.f32 %v5865, 0.5
  %v6250 = vadd.f32 %v5866, 0.5
  %v6251 = vadd.f32 %v5867, 0.5
  %v6252 = vadd.f32 %v5868, 0.5
  %v6253 = vadd.f32 %v5869, 0.5
  %v6254 = vadd.f32 %v5870, 0.5
  %v6255 = vadd.f32 %v5871, 0.5
  %v6256 = vadd.f32 %v5872, 0.5
  %v6257 = vadd.f32 %v5873, 0.5
  %v6258 = vadd.f32 %v5874, 0.5
  %v6259 = vadd.f32 %v5875, 0.5
  %v6260 = vadd.f32 %v5876, 0.5
  %v6261 = vadd.f32 %v5877, 0.5
  %v6262 = vadd.f32 %v5878, 0.5
  %v6263 = vadd.f32 %v5879, 0.5
  %v6264 = vadd.f32 %v5880, 0.5
  %v6265 = vadd.f32 %v5881, 0.5
  %v6266 = vadd.f32 %v5882, 0.5
  %v6267 = vadd.f32 %v5883, 0.5
  %v6268 = vadd.f32 %v5884, 0.5
  %v6269 = vadd.f32 %v5885, 0.5
  %v6270 = vadd.f32 %v5886, 0.5
  %v6271 = vadd.f32 %v5887, 0.5
  %v6272 = vadd.f32 %v5888, 0.5
  %v6273 = vadd.f32 %v5889, 0.5
  %v6274 = vadd.f32 %v5890, 0.5
  %v6275 = vadd.f32 %v5891, 0.5
  %v6276 = vadd.f32 %v5892, 0.5
  %v6277 = vadd.f32 %v5893, 0.5
  %v6278 = vmul.f32 %v6214, 0.125
  %v6279 = vmul.f32 %v6215, 0.125
  %v6280 = vmul.f32 %v6216, 0.125
  %v6281 = vmul.f32 %v6217, 0.125
  %v6282 = vmul.f32 %v6218, 0.125
  %v6283 = vmul.f32 %v6219, 0.125
  %v6284 = vmul.f32 %v6220, 0.125
  %v6285 = vmul.f32 %v6221, 0.125
  %v6286 = vmul.f32 %v6222, 0.125
  %v6287 = vmul.f32 %v6223, 0.125
  %v6288 = vmul.f32 %v6224, 0.125
  %v6289 = vmul.f32 %v6225, 0.125
  %v6290 = vmul.f32 %v6226, 0.125
  %v6291 = vmul.f32 %v6227, 0.125
  %v6292 = vmul.f32 %v6228, 0.125
  %v6293 = vmul.f32 %v6229, 0.125
  %v6294 = vmul.f32 %v6230, 0.125
  %v6295 = vmul.f32 %v6231, 0.125
  %v6296 = vmul.f32 %v6232, 0.125
  %v6297 = vmul.f32 %v6233, 0.125
  %v6298 = vmul.f32 %v6234, 0.125
  %v6299 = vmul.f32 %v6235, 0.125
  %v6300 = vmul.f32 %v6236, 0.125
  %v6301 = vmul.f32 %v6237, 0.125
  %v6302 = vmul.f32 %v6238, 0.125
  %v6303 = vmul.f32 %v6239, 0.125
  %v6304 = vmul.f32 %v6240, 0.125
  %v6305 = vmul.f32 %v6241, 0.125
  %v6306 = vmul.f32 %v6242, 0.125
  %v6307 = vmul.f32 %v6243, 0.125
  %v6308 = vmul.f32 %v6244, 0.125
  %v6309 = vmul.f32 %v6245, 0.125
  %v6310 = vmul.f32 %v6246, 0.125
  %v6311 = vmul.f32 %v6247, 0.125
  %v6312 = vmul.f32 %v6248, 0.125
  %v6313 = vmul.f32 %v6249, 0.125
  %v6314 = vmul.f32 %v6250, 0.125
  %v6315 = vmul.f32 %v6251, 0.125
  %v6316 = vmul.f32 %v6252, 0.125
  %v6317 = vmul.f32 %v6253, 0.125
  %v6318 = vmul.f32 %v6254, 0.125
  %v6319 = vmul.f32 %v6255, 0.125
  %v6320 = vmul.f32 %v6256, 0.125
  %v6321 = vmul.f32 %v6257, 0.125
  %v6322 = vmul.f32 %v6258, 0.125
  %v6323 = vmul.f32 %v6259, 0.125
  %v6324 = vmul.f32 %v6260, 0.125
  %v6325 = vmul.f32 %v6261, 0.125
  %v6326 = vmul.f32 %v6262, 0.125
  %v6327 = vmul.f32 %v6263, 0.125
  %v6328 = vmul.f32 %v6264, 0.125
  %v6329 = vmul.f32 %v6265, 0.125
  %v6330 = vmul.f32 %v6266, 0.125
  %v6331 = vmul.f32 %v6267, 0.125
  %v6332 = vmul.f32 %v6268, 0.125
  %v6333 = vmul.f32 %v6269, 0.125
  %v6334 = vmul.f32 %v6270, 0.125
  %v6335 = vmul.f32 %v6271, 0.125
  %v6336 = vmul.f32 %v6272, 0.125
  %v6337 = vmul.f32 %v6273, 0.125
  %v6338 = vmul.f32 %v6274, 0.125
  %v6339 = vmul.f32 %v6275, 0.125
  %v6340 = vmul.f32 %v6276, 0.125
  %v6341 = vmul.f32 %v6277, 0.125
  %v6342 = vsub.f32 %v6278, 1.0
  %v6343 = vsub.f32 %v6279, 1.0
  %v6344 = vsub.f32 %v6280, 1.0
  %v6345 = vsub.f32 %v6281, 1.0
  %v6346 = vsub.f32 %v6282, 1.0
  %v6347 = vsub.f32 %v6283, 1.0
  %v6348 = vsub.f32 %v6284, 1.0
  %v6349 = vsub.f32 %v6285, 1.0
  %v6350 = vsub.f32 %v6286, 1.0
  %v6351 = vsub.f32 %v6287, 1.0
  %v6352 = vsub.f32 %v6288, 1.0
  %v6353 = vsub.f32 %v6289, 1.0
  %v6354 = vsub.f32 %v6290, 1.0
  %v6355 = vsub.f32 %v6291, 1.0
  %v6356 = vsub.f32 %v6292, 1.0
  %v6357 = vsub.f32 %v6293, 1.0
  %v6358 = vsub.f32 %v6294, 1.0
  %v6359 = vsub.f32 %v6295, 1.0
  %v6360 = vsub.f32 %v6296, 1.0
  %v6361 = vsub.f32 %v6297, 1.0
  %v6362 = vsub.f32 %v6298, 1.0
  %v6363 = vsub.f32 %v6299, 1.0
  %v6364 = vsub.f32 %v6300, 1.0
  %v6365 = vsub.f32 %v6301, 1.0
  %v6366 = vsub.f32 %v6302, 1.0
  %v6367 = vsub.f32 %v6303, 1.0
  %v6368 = vsub.f32 %v6304, 1.0
  %v6369 = vsub.f32 %v6305, 1.0
  %v6370 = vsub.f32 %v6306, 1.0
  %v6371 = vsub.f32 %v6307, 1.0
  %v6372 = vsub.f32 %v6308, 1.0
  %v6373 = vsub.f32 %v6309, 1.0
  %v6374 = vsub.f32 %v6310, 1.0
  %v6375 = vsub.f32 %v6311, 1.0
  %v6376 = vsub.f32 %v6312, 1.0
  %v6377 = vsub.f32 %v6313, 1.0
  %v6378 = vsub.f32 %v6314, 1.0
  %v6379 = vsub.f32 %v6315, 1.0
  %v6380 = vsub.f32 %v6316, 1.0
  %v6381 = vsub.f32 %v6317, 1.0
  %v6382 = vsub.f32 %v6318, 1.0
  %v6383 = vsub.f32 %v6319, 1.0
  %v6384 = vsub.f32 %v6320, 1.0
  %v6385 = vsub.f32 %v6321, 1.0
  %v6386 = vsub.f32 %v6322, 1.0
  %v6387 = vsub.f32 %v6323, 1.0
  %v6388 = vsub.f32 %v6324, 1.0
  %v6389 = vsub.f32 %v6325, 1.0
  %v6390 = vsub.f32 %v6326, 1.0
  %v6391 = vsub.f32 %v6327, 1.0
  %v6392 = vsub.f32 %v6328, 1.0
  %v6393 = vsub.f32 %v6329, 1.0
  %v6394 = vsub.f32 %v6330, 1.0
  %v6395 = vsub.f32 %v6331, 1.0
  %v6396 = vsub.f32 %v6332, 1.0
  %v6397 = vsub.f32 %v6333, 1.0
  %v6398 = vsub.f32 %v6334, 1.0
  %v6399 = vsub.f32 %v6335, 1.0
  %v6400 = vsub.f32 %v6336, 1.0
  %v6401 = vsub.f32 %v6337, 1.0
  %v6402 = vsub.f32 %v6338, 1.0
  %v6403 = vsub.f32 %v6339, 1.0
  %v6404 = vsub.f32 %v6340, 1.0
  %v6405 = vsub.f32 %v6341, 1.0
  %v6406 = vlaneseq
  %v6407 = vand.u32 %v6406, 127
  %vm6408 = vcmp.eq.s32.totalorder %v6407, 0
  %vm6409 = vcmp.eq.s32.totalorder %v6407, 1
  %v6410 = vsel %vm6409, %v6342, 0.0
  %v6411 = vsel %vm6409, %v6343, 0.0
  %v6412 = vsel %vm6409, %v6344, 0.0
  %v6413 = vsel %vm6409, %v6345, 0.0
  %v6414 = vsel %vm6409, %v6346, 0.0
  %v6415 = vsel %vm6409, %v6347, 0.0
  %v6416 = vsel %vm6409, %v6348, 0.0
  %v6417 = vsel %vm6409, %v6349, 0.0
  %v6418 = vsel %vm6409, %v6350, 0.0
  %v6419 = vsel %vm6409, %v6351, 0.0
  %v6420 = vsel %vm6409, %v6352, 0.0
  %v6421 = vsel %vm6409, %v6353, 0.0
  %v6422 = vsel %vm6409, %v6354, 0.0
  %v6423 = vsel %vm6409, %v6355, 0.0
  %v6424 = vsel %vm6409, %v6356, 0.0
  %v6425 = vsel %vm6409, %v6357, 0.0
  %v6426 = vsel %vm6409, %v6358, 0.0
  %v6427 = vsel %vm6409, %v6359, 0.0
  %v6428 = vsel %vm6409, %v6360, 0.0
  %v6429 = vsel %vm6409, %v6361, 0.0
  %v6430 = vsel %vm6409, %v6362, 0.0
  %v6431 = vsel %vm6409, %v6363, 0.0
  %v6432 = vsel %vm6409, %v6364, 0.0
  %v6433 = vsel %vm6409, %v6365, 0.0
  %v6434 = vsel %vm6409, %v6366, 0.0
  %v6435 = vsel %vm6409, %v6367, 0.0
  %v6436 = vsel %vm6409, %v6368, 0.0
  %v6437 = vsel %vm6409, %v6369, 0.0
  %v6438 = vsel %vm6409, %v6370, 0.0
  %v6439 = vsel %vm6409, %v6371, 0.0
  %v6440 = vsel %vm6409, %v6372, 0.0
  %v6441 = vsel %vm6409, %v6373, 0.0
  %v6442 = vsel %vm6409, %v6374, 0.0
  %v6443 = vsel %vm6409, %v6375, 0.0
  %v6444 = vsel %vm6409, %v6376, 0.0
  %v6445 = vsel %vm6409, %v6377, 0.0
  %v6446 = vsel %vm6409, %v6378, 0.0
  %v6447 = vsel %vm6409, %v6379, 0.0
  %v6448 = vsel %vm6409, %v6380, 0.0
  %v6449 = vsel %vm6409, %v6381, 0.0
  %v6450 = vsel %vm6409, %v6382, 0.0
  %v6451 = vsel %vm6409, %v6383, 0.0
  %v6452 = vsel %vm6409, %v6384, 0.0
  %v6453 = vsel %vm6409, %v6385, 0.0
  %v6454 = vsel %vm6409, %v6386, 0.0
  %v6455 = vsel %vm6409, %v6387, 0.0
  %v6456 = vsel %vm6409, %v6388, 0.0
  %v6457 = vsel %vm6409, %v6389, 0.0
  %v6458 = vsel %vm6409, %v6390, 0.0
  %v6459 = vsel %vm6409, %v6391, 0.0
  %v6460 = vsel %vm6409, %v6392, 0.0
  %v6461 = vsel %vm6409, %v6393, 0.0
  %v6462 = vsel %vm6409, %v6394, 0.0
  %v6463 = vsel %vm6409, %v6395, 0.0
  %v6464 = vsel %vm6409, %v6396, 0.0
  %v6465 = vsel %vm6409, %v6397, 0.0
  %v6466 = vsel %vm6409, %v6398, 0.0
  %v6467 = vsel %vm6409, %v6399, 0.0
  %v6468 = vsel %vm6409, %v6400, 0.0
  %v6469 = vsel %vm6409, %v6401, 0.0
  %v6470 = vsel %vm6409, %v6402, 0.0
  %v6471 = vsel %vm6409, %v6403, 0.0
  %v6472 = vsel %vm6409, %v6404, 0.0
  %v6473 = vsel %vm6409, %v6405, 0.0
  %v6474 = vsel %vm6408, %v6150, %v6410
  %v6475 = vsel %vm6408, %v6151, %v6411
  %v6476 = vsel %vm6408, %v6152, %v6412
  %v6477 = vsel %vm6408, %v6153, %v6413
  %v6478 = vsel %vm6408, %v6154, %v6414
  %v6479 = vsel %vm6408, %v6155, %v6415
  %v6480 = vsel %vm6408, %v6156, %v6416
  %v6481 = vsel %vm6408, %v6157, %v6417
  %v6482 = vsel %vm6408, %v6158, %v6418
  %v6483 = vsel %vm6408, %v6159, %v6419
  %v6484 = vsel %vm6408, %v6160, %v6420
  %v6485 = vsel %vm6408, %v6161, %v6421
  %v6486 = vsel %vm6408, %v6162, %v6422
  %v6487 = vsel %vm6408, %v6163, %v6423
  %v6488 = vsel %vm6408, %v6164, %v6424
  %v6489 = vsel %vm6408, %v6165, %v6425
  %v6490 = vsel %vm6408, %v6166, %v6426
  %v6491 = vsel %vm6408, %v6167, %v6427
  %v6492 = vsel %vm6408, %v6168, %v6428
  %v6493 = vsel %vm6408, %v6169, %v6429
  %v6494 = vsel %vm6408, %v6170, %v6430
  %v6495 = vsel %vm6408, %v6171, %v6431
  %v6496 = vsel %vm6408, %v6172, %v6432
  %v6497 = vsel %vm6408, %v6173, %v6433
  %v6498 = vsel %vm6408, %v6174, %v6434
  %v6499 = vsel %vm6408, %v6175, %v6435
  %v6500 = vsel %vm6408, %v6176, %v6436
  %v6501 = vsel %vm6408, %v6177, %v6437
  %v6502 = vsel %vm6408, %v6178, %v6438
  %v6503 = vsel %vm6408, %v6179, %v6439
  %v6504 = vsel %vm6408, %v6180, %v6440
  %v6505 = vsel %vm6408, %v6181, %v6441
  %v6506 = vsel %vm6408, %v6182, %v6442
  %v6507 = vsel %vm6408, %v6183, %v6443
  %v6508 = vsel %vm6408, %v6184, %v6444
  %v6509 = vsel %vm6408, %v6185, %v6445
  %v6510 = vsel %vm6408, %v6186, %v6446
  %v6511 = vsel %vm6408, %v6187, %v6447
  %v6512 = vsel %vm6408, %v6188, %v6448
  %v6513 = vsel %vm6408, %v6189, %v6449
  %v6514 = vsel %vm6408, %v6190, %v6450
  %v6515 = vsel %vm6408, %v6191, %v6451
  %v6516 = vsel %vm6408, %v6192, %v6452
  %v6517 = vsel %vm6408, %v6193, %v6453
  %v6518 = vsel %vm6408, %v6194, %v6454
  %v6519 = vsel %vm6408, %v6195, %v6455
  %v6520 = vsel %vm6408, %v6196, %v6456
  %v6521 = vsel %vm6408, %v6197, %v6457
  %v6522 = vsel %vm6408, %v6198, %v6458
  %v6523 = vsel %vm6408, %v6199, %v6459
  %v6524 = vsel %vm6408, %v6200, %v6460
  %v6525 = vsel %vm6408, %v6201, %v6461
  %v6526 = vsel %vm6408, %v6202, %v6462
  %v6527 = vsel %vm6408, %v6203, %v6463
  %v6528 = vsel %vm6408, %v6204, %v6464
  %v6529 = vsel %vm6408, %v6205, %v6465
  %v6530 = vsel %vm6408, %v6206, %v6466
  %v6531 = vsel %vm6408, %v6207, %v6467
  %v6532 = vsel %vm6408, %v6208, %v6468
  %v6533 = vsel %vm6408, %v6209, %v6469
  %v6534 = vsel %vm6408, %v6210, %v6470
  %v6535 = vsel %vm6408, %v6211, %v6471
  %v6536 = vsel %vm6408, %v6212, %v6472
  %v6537 = vsel %vm6408, %v6213, %v6473
  %v6538 = vld [vmem:[%s2 + $0x6] sm:$0x1]
  %v6539 = vlaneseq
  %v6540 = vshrl.u32 %v6539, 7
  %v6541 = vsub.s32 0, %v6540
  %v6542 = vrot.slane %v6538, %v6541
  %v6543 = vadd.f32 %v6474, %v6542
  %v6544 = vadd.f32 %v6475, %v6542
  %v6545 = vadd.f32 %v6476, %v6542
  %v6546 = vadd.f32 %v6477, %v6542
  %v6547 = vadd.f32 %v6478, %v6542
  %v6548 = vadd.f32 %v6479, %v6542
  %v6549 = vadd.f32 %v6480, %v6542
  %v6550 = vadd.f32 %v6481, %v6542
  %v6551 = vadd.f32 %v6482, %v6542
  %v6552 = vadd.f32 %v6483, %v6542
  %v6553 = vadd.f32 %v6484, %v6542
  %v6554 = vadd.f32 %v6485, %v6542
  %v6555 = vadd.f32 %v6486, %v6542
  %v6556 = vadd.f32 %v6487, %v6542
  %v6557 = vadd.f32 %v6488, %v6542
  %v6558 = vadd.f32 %v6489, %v6542
  %v6559 = vadd.f32 %v6490, %v6542
  %v6560 = vadd.f32 %v6491, %v6542
  %v6561 = vadd.f32 %v6492, %v6542
  %v6562 = vadd.f32 %v6493, %v6542
  %v6563 = vadd.f32 %v6494, %v6542
  %v6564 = vadd.f32 %v6495, %v6542
  %v6565 = vadd.f32 %v6496, %v6542
  %v6566 = vadd.f32 %v6497, %v6542
  %v6567 = vadd.f32 %v6498, %v6542
  %v6568 = vadd.f32 %v6499, %v6542
  %v6569 = vadd.f32 %v6500, %v6542
  %v6570 = vadd.f32 %v6501, %v6542
  %v6571 = vadd.f32 %v6502, %v6542
  %v6572 = vadd.f32 %v6503, %v6542
  %v6573 = vadd.f32 %v6504, %v6542
  %v6574 = vadd.f32 %v6505, %v6542
  %v6575 = vadd.f32 %v6506, %v6542
  %v6576 = vadd.f32 %v6507, %v6542
  %v6577 = vadd.f32 %v6508, %v6542
  %v6578 = vadd.f32 %v6509, %v6542
  %v6579 = vadd.f32 %v6510, %v6542
  %v6580 = vadd.f32 %v6511, %v6542
  %v6581 = vadd.f32 %v6512, %v6542
  %v6582 = vadd.f32 %v6513, %v6542
  %v6583 = vadd.f32 %v6514, %v6542
  %v6584 = vadd.f32 %v6515, %v6542
  %v6585 = vadd.f32 %v6516, %v6542
  %v6586 = vadd.f32 %v6517, %v6542
  %v6587 = vadd.f32 %v6518, %v6542
  %v6588 = vadd.f32 %v6519, %v6542
  %v6589 = vadd.f32 %v6520, %v6542
  %v6590 = vadd.f32 %v6521, %v6542
  %v6591 = vadd.f32 %v6522, %v6542
  %v6592 = vadd.f32 %v6523, %v6542
  %v6593 = vadd.f32 %v6524, %v6542
  %v6594 = vadd.f32 %v6525, %v6542
  %v6595 = vadd.f32 %v6526, %v6542
  %v6596 = vadd.f32 %v6527, %v6542
  %v6597 = vadd.f32 %v6528, %v6542
  %v6598 = vadd.f32 %v6529, %v6542
  %v6599 = vadd.f32 %v6530, %v6542
  %v6600 = vadd.f32 %v6531, %v6542
  %v6601 = vadd.f32 %v6532, %v6542
  %v6602 = vadd.f32 %v6533, %v6542
  %v6603 = vadd.f32 %v6534, %v6542
  %v6604 = vadd.f32 %v6535, %v6542
  %v6605 = vadd.f32 %v6536, %v6542
  %v6606 = vadd.f32 %v6537, %v6542
  %v6607 = vld [vmem:[%s2 + $0x7] sm:$0x1]
  %6609 = vset.pattern.permute.xlu0 0
  %6610 = vperm.xlu0 %6609, %v5123
  %v6611 = vpop.permute.xlu0 %6610
  %6614 = vset.pattern.permute.xlu0 0
  %6615 = vperm.xlu0 %6614, %v5124
  %v6616 = vpop.permute.xlu0 %6615
  %6619 = vset.pattern.permute.xlu0 0
  %6620 = vperm.xlu0 %6619, %v5125
  %v6621 = vpop.permute.xlu0 %6620
  %6624 = vset.pattern.permute.xlu0 0
  %6625 = vperm.xlu0 %6624, %v5126
  %v6626 = vpop.permute.xlu0 %6625
  %6629 = vset.pattern.permute.xlu0 0
  %6630 = vperm.xlu0 %6629, %v5127
  %v6631 = vpop.permute.xlu0 %6630
  %6634 = vset.pattern.permute.xlu0 0
  %6635 = vperm.xlu0 %6634, %v5128
  %v6636 = vpop.permute.xlu0 %6635
  %6639 = vset.pattern.permute.xlu0 0
  %6640 = vperm.xlu0 %6639, %v5129
  %v6641 = vpop.permute.xlu0 %6640
  %6644 = vset.pattern.permute.xlu0 0
  %6645 = vperm.xlu0 %6644, %v5130
  %v6646 = vpop.permute.xlu0 %6645
  %6649 = vset.pattern.permute.xlu0 0
  %6650 = vperm.xlu0 %6649, %v5131
  %v6651 = vpop.permute.xlu0 %6650
  %6654 = vset.pattern.permute.xlu0 0
  %6655 = vperm.xlu0 %6654, %v5132
  %v6656 = vpop.permute.xlu0 %6655
  %6659 = vset.pattern.permute.xlu0 0
  %6660 = vperm.xlu0 %6659, %v5133
  %v6661 = vpop.permute.xlu0 %6660
  %6664 = vset.pattern.permute.xlu0 0
  %6665 = vperm.xlu0 %6664, %v5134
  %v6666 = vpop.permute.xlu0 %6665
  %6669 = vset.pattern.permute.xlu0 0
  %6670 = vperm.xlu0 %6669, %v5135
  %v6671 = vpop.permute.xlu0 %6670
  %6674 = vset.pattern.permute.xlu0 0
  %6675 = vperm.xlu0 %6674, %v5136
  %v6676 = vpop.permute.xlu0 %6675
  %6679 = vset.pattern.permute.xlu0 0
  %6680 = vperm.xlu0 %6679, %v5137
  %v6681 = vpop.permute.xlu0 %6680
  %6684 = vset.pattern.permute.xlu0 0
  %6685 = vperm.xlu0 %6684, %v5138
  %v6686 = vpop.permute.xlu0 %6685
  %6689 = vset.pattern.permute.xlu0 0
  %6690 = vperm.xlu0 %6689, %v5139
  %v6691 = vpop.permute.xlu0 %6690
  %6694 = vset.pattern.permute.xlu0 0
  %6695 = vperm.xlu0 %6694, %v5140
  %v6696 = vpop.permute.xlu0 %6695
  %6699 = vset.pattern.permute.xlu0 0
  %6700 = vperm.xlu0 %6699, %v5141
  %v6701 = vpop.permute.xlu0 %6700
  %6704 = vset.pattern.permute.xlu0 0
  %6705 = vperm.xlu0 %6704, %v5142
  %v6706 = vpop.permute.xlu0 %6705
  %6709 = vset.pattern.permute.xlu0 0
  %6710 = vperm.xlu0 %6709, %v5143
  %v6711 = vpop.permute.xlu0 %6710
  %6714 = vset.pattern.permute.xlu0 0
  %6715 = vperm.xlu0 %6714, %v5144
  %v6716 = vpop.permute.xlu0 %6715
  %6719 = vset.pattern.permute.xlu0 0
  %6720 = vperm.xlu0 %6719, %v5145
  %v6721 = vpop.permute.xlu0 %6720
  %6724 = vset.pattern.permute.xlu0 0
  %6725 = vperm.xlu0 %6724, %v5146
  %v6726 = vpop.permute.xlu0 %6725
  %6729 = vset.pattern.permute.xlu0 0
  %6730 = vperm.xlu0 %6729, %v5147
  %v6731 = vpop.permute.xlu0 %6730
  %6734 = vset.pattern.permute.xlu0 0
  %6735 = vperm.xlu0 %6734, %v5148
  %v6736 = vpop.permute.xlu0 %6735
  %6739 = vset.pattern.permute.xlu0 0
  %6740 = vperm.xlu0 %6739, %v5149
  %v6741 = vpop.permute.xlu0 %6740
  %6744 = vset.pattern.permute.xlu0 0
  %6745 = vperm.xlu0 %6744, %v5150
  %v6746 = vpop.permute.xlu0 %6745
  %6749 = vset.pattern.permute.xlu0 0
  %6750 = vperm.xlu0 %6749, %v5151
  %v6751 = vpop.permute.xlu0 %6750
  %6754 = vset.pattern.permute.xlu0 0
  %6755 = vperm.xlu0 %6754, %v5152
  %v6756 = vpop.permute.xlu0 %6755
  %6759 = vset.pattern.permute.xlu0 0
  %6760 = vperm.xlu0 %6759, %v5153
  %v6761 = vpop.permute.xlu0 %6760
  %6764 = vset.pattern.permute.xlu0 0
  %6765 = vperm.xlu0 %6764, %v5154
  %v6766 = vpop.permute.xlu0 %6765
  %6769 = vset.pattern.permute.xlu0 0
  %6770 = vperm.xlu0 %6769, %v5155
  %v6771 = vpop.permute.xlu0 %6770
  %6774 = vset.pattern.permute.xlu0 0
  %6775 = vperm.xlu0 %6774, %v5156
  %v6776 = vpop.permute.xlu0 %6775
  %6779 = vset.pattern.permute.xlu0 0
  %6780 = vperm.xlu0 %6779, %v5157
  %v6781 = vpop.permute.xlu0 %6780
  %6784 = vset.pattern.permute.xlu0 0
  %6785 = vperm.xlu0 %6784, %v5158
  %v6786 = vpop.permute.xlu0 %6785
  %6789 = vset.pattern.permute.xlu0 0
  %6790 = vperm.xlu0 %6789, %v5159
  %v6791 = vpop.permute.xlu0 %6790
  %6794 = vset.pattern.permute.xlu0 0
  %6795 = vperm.xlu0 %6794, %v5160
  %v6796 = vpop.permute.xlu0 %6795
  %6799 = vset.pattern.permute.xlu0 0
  %6800 = vperm.xlu0 %6799, %v5161
  %v6801 = vpop.permute.xlu0 %6800
  %6804 = vset.pattern.permute.xlu0 0
  %6805 = vperm.xlu0 %6804, %v5162
  %v6806 = vpop.permute.xlu0 %6805
  %6809 = vset.pattern.permute.xlu0 0
  %6810 = vperm.xlu0 %6809, %v5163
  %v6811 = vpop.permute.xlu0 %6810
  %6814 = vset.pattern.permute.xlu0 0
  %6815 = vperm.xlu0 %6814, %v5164
  %v6816 = vpop.permute.xlu0 %6815
  %6819 = vset.pattern.permute.xlu0 0
  %6820 = vperm.xlu0 %6819, %v5165
  %v6821 = vpop.permute.xlu0 %6820
  %6824 = vset.pattern.permute.xlu0 0
  %6825 = vperm.xlu0 %6824, %v5166
  %v6826 = vpop.permute.xlu0 %6825
  %6829 = vset.pattern.permute.xlu0 0
  %6830 = vperm.xlu0 %6829, %v5167
  %v6831 = vpop.permute.xlu0 %6830
  %6834 = vset.pattern.permute.xlu0 0
  %6835 = vperm.xlu0 %6834, %v5168
  %v6836 = vpop.permute.xlu0 %6835
  %6839 = vset.pattern.permute.xlu0 0
  %6840 = vperm.xlu0 %6839, %v5169
  %v6841 = vpop.permute.xlu0 %6840
  %6844 = vset.pattern.permute.xlu0 0
  %6845 = vperm.xlu0 %6844, %v5170
  %v6846 = vpop.permute.xlu0 %6845
  %6849 = vset.pattern.permute.xlu0 0
  %6850 = vperm.xlu0 %6849, %v5171
  %v6851 = vpop.permute.xlu0 %6850
  %6854 = vset.pattern.permute.xlu0 0
  %6855 = vperm.xlu0 %6854, %v5172
  %v6856 = vpop.permute.xlu0 %6855
  %6859 = vset.pattern.permute.xlu0 0
  %6860 = vperm.xlu0 %6859, %v5173
  %v6861 = vpop.permute.xlu0 %6860
  %6864 = vset.pattern.permute.xlu0 0
  %6865 = vperm.xlu0 %6864, %v5174
  %v6866 = vpop.permute.xlu0 %6865
  %6869 = vset.pattern.permute.xlu0 0
  %6870 = vperm.xlu0 %6869, %v5175
  %v6871 = vpop.permute.xlu0 %6870
  %6874 = vset.pattern.permute.xlu0 0
  %6875 = vperm.xlu0 %6874, %v5176
  %v6876 = vpop.permute.xlu0 %6875
  %6879 = vset.pattern.permute.xlu0 0
  %6880 = vperm.xlu0 %6879, %v5177
  %v6881 = vpop.permute.xlu0 %6880
  %6884 = vset.pattern.permute.xlu0 0
  %6885 = vperm.xlu0 %6884, %v5178
  %v6886 = vpop.permute.xlu0 %6885
  %6889 = vset.pattern.permute.xlu0 0
  %6890 = vperm.xlu0 %6889, %v5179
  %v6891 = vpop.permute.xlu0 %6890
  %6894 = vset.pattern.permute.xlu0 0
  %6895 = vperm.xlu0 %6894, %v5180
  %v6896 = vpop.permute.xlu0 %6895
  %6899 = vset.pattern.permute.xlu0 0
  %6900 = vperm.xlu0 %6899, %v5181
  %v6901 = vpop.permute.xlu0 %6900
  %6904 = vset.pattern.permute.xlu0 0
  %6905 = vperm.xlu0 %6904, %v5182
  %v6906 = vpop.permute.xlu0 %6905
  %6909 = vset.pattern.permute.xlu0 0
  %6910 = vperm.xlu0 %6909, %v5183
  %v6911 = vpop.permute.xlu0 %6910
  %6914 = vset.pattern.permute.xlu0 0
  %6915 = vperm.xlu0 %6914, %v5184
  %v6916 = vpop.permute.xlu0 %6915
  %6919 = vset.pattern.permute.xlu0 0
  %6920 = vperm.xlu0 %6919, %v5185
  %v6921 = vpop.permute.xlu0 %6920
  %6924 = vset.pattern.permute.xlu0 0
  %6925 = vperm.xlu0 %6924, %v5186
  %v6926 = vpop.permute.xlu0 %6925
  %v6928 = vlaneseq
  %v6929 = vshrl.u32 %v6928, 7
  %v6930 = vsub.s32 0, %v6929
  %v6931 = vrot.slane %v6607, %v6930
  %v6932 = vmul.f32 %v6611, %v6931
  %v6933 = vmul.f32 %v6616, %v6931
  %v6934 = vmul.f32 %v6621, %v6931
  %v6935 = vmul.f32 %v6626, %v6931
  %v6936 = vmul.f32 %v6631, %v6931
  %v6937 = vmul.f32 %v6636, %v6931
  %v6938 = vmul.f32 %v6641, %v6931
  %v6939 = vmul.f32 %v6646, %v6931
  %v6940 = vmul.f32 %v6651, %v6931
  %v6941 = vmul.f32 %v6656, %v6931
  %v6942 = vmul.f32 %v6661, %v6931
  %v6943 = vmul.f32 %v6666, %v6931
  %v6944 = vmul.f32 %v6671, %v6931
  %v6945 = vmul.f32 %v6676, %v6931
  %v6946 = vmul.f32 %v6681, %v6931
  %v6947 = vmul.f32 %v6686, %v6931
  %v6948 = vmul.f32 %v6691, %v6931
  %v6949 = vmul.f32 %v6696, %v6931
  %v6950 = vmul.f32 %v6701, %v6931
  %v6951 = vmul.f32 %v6706, %v6931
  %v6952 = vmul.f32 %v6711, %v6931
  %v6953 = vmul.f32 %v6716, %v6931
  %v6954 = vmul.f32 %v6721, %v6931
  %v6955 = vmul.f32 %v6726, %v6931
  %v6956 = vmul.f32 %v6731, %v6931
  %v6957 = vmul.f32 %v6736, %v6931
  %v6958 = vmul.f32 %v6741, %v6931
  %v6959 = vmul.f32 %v6746, %v6931
  %v6960 = vmul.f32 %v6751, %v6931
  %v6961 = vmul.f32 %v6756, %v6931
  %v6962 = vmul.f32 %v6761, %v6931
  %v6963 = vmul.f32 %v6766, %v6931
  %v6964 = vmul.f32 %v6771, %v6931
  %v6965 = vmul.f32 %v6776, %v6931
  %v6966 = vmul.f32 %v6781, %v6931
  %v6967 = vmul.f32 %v6786, %v6931
  %v6968 = vmul.f32 %v6791, %v6931
  %v6969 = vmul.f32 %v6796, %v6931
  %v6970 = vmul.f32 %v6801, %v6931
  %v6971 = vmul.f32 %v6806, %v6931
  %v6972 = vmul.f32 %v6811, %v6931
  %v6973 = vmul.f32 %v6816, %v6931
  %v6974 = vmul.f32 %v6821, %v6931
  %v6975 = vmul.f32 %v6826, %v6931
  %v6976 = vmul.f32 %v6831, %v6931
  %v6977 = vmul.f32 %v6836, %v6931
  %v6978 = vmul.f32 %v6841, %v6931
  %v6979 = vmul.f32 %v6846, %v6931
  %v6980 = vmul.f32 %v6851, %v6931
  %v6981 = vmul.f32 %v6856, %v6931
  %v6982 = vmul.f32 %v6861, %v6931
  %v6983 = vmul.f32 %v6866, %v6931
  %v6984 = vmul.f32 %v6871, %v6931
  %v6985 = vmul.f32 %v6876, %v6931
  %v6986 = vmul.f32 %v6881, %v6931
  %v6987 = vmul.f32 %v6886, %v6931
  %v6988 = vmul.f32 %v6891, %v6931
  %v6989 = vmul.f32 %v6896, %v6931
  %v6990 = vmul.f32 %v6901, %v6931
  %v6991 = vmul.f32 %v6906, %v6931
  %v6992 = vmul.f32 %v6911, %v6931
  %v6993 = vmul.f32 %v6916, %v6931
  %v6994 = vmul.f32 %v6921, %v6931
  %v6995 = vmul.f32 %v6926, %v6931
  %v6996 = vadd.f32 %v6543, %v6932
  %v6997 = vadd.f32 %v6544, %v6933
  %v6998 = vadd.f32 %v6545, %v6934
  %v6999 = vadd.f32 %v6546, %v6935
  %v7000 = vadd.f32 %v6547, %v6936
  %v7001 = vadd.f32 %v6548, %v6937
  %v7002 = vadd.f32 %v6549, %v6938
  %v7003 = vadd.f32 %v6550, %v6939
  %v7004 = vadd.f32 %v6551, %v6940
  %v7005 = vadd.f32 %v6552, %v6941
  %v7006 = vadd.f32 %v6553, %v6942
  %v7007 = vadd.f32 %v6554, %v6943
  %v7008 = vadd.f32 %v6555, %v6944
  %v7009 = vadd.f32 %v6556, %v6945
  %v7010 = vadd.f32 %v6557, %v6946
  %v7011 = vadd.f32 %v6558, %v6947
  %v7012 = vadd.f32 %v6559, %v6948
  %v7013 = vadd.f32 %v6560, %v6949
  %v7014 = vadd.f32 %v6561, %v6950
  %v7015 = vadd.f32 %v6562, %v6951
  %v7016 = vadd.f32 %v6563, %v6952
  %v7017 = vadd.f32 %v6564, %v6953
  %v7018 = vadd.f32 %v6565, %v6954
  %v7019 = vadd.f32 %v6566, %v6955
  %v7020 = vadd.f32 %v6567, %v6956
  %v7021 = vadd.f32 %v6568, %v6957
  %v7022 = vadd.f32 %v6569, %v6958
  %v7023 = vadd.f32 %v6570, %v6959
  %v7024 = vadd.f32 %v6571, %v6960
  %v7025 = vadd.f32 %v6572, %v6961
  %v7026 = vadd.f32 %v6573, %v6962
  %v7027 = vadd.f32 %v6574, %v6963
  %v7028 = vadd.f32 %v6575, %v6964
  %v7029 = vadd.f32 %v6576, %v6965
  %v7030 = vadd.f32 %v6577, %v6966
  %v7031 = vadd.f32 %v6578, %v6967
  %v7032 = vadd.f32 %v6579, %v6968
  %v7033 = vadd.f32 %v6580, %v6969
  %v7034 = vadd.f32 %v6581, %v6970
  %v7035 = vadd.f32 %v6582, %v6971
  %v7036 = vadd.f32 %v6583, %v6972
  %v7037 = vadd.f32 %v6584, %v6973
  %v7038 = vadd.f32 %v6585, %v6974
  %v7039 = vadd.f32 %v6586, %v6975
  %v7040 = vadd.f32 %v6587, %v6976
  %v7041 = vadd.f32 %v6588, %v6977
  %v7042 = vadd.f32 %v6589, %v6978
  %v7043 = vadd.f32 %v6590, %v6979
  %v7044 = vadd.f32 %v6591, %v6980
  %v7045 = vadd.f32 %v6592, %v6981
  %v7046 = vadd.f32 %v6593, %v6982
  %v7047 = vadd.f32 %v6594, %v6983
  %v7048 = vadd.f32 %v6595, %v6984
  %v7049 = vadd.f32 %v6596, %v6985
  %v7050 = vadd.f32 %v6597, %v6986
  %v7051 = vadd.f32 %v6598, %v6987
  %v7052 = vadd.f32 %v6599, %v6988
  %v7053 = vadd.f32 %v6600, %v6989
  %v7054 = vadd.f32 %v6601, %v6990
  %v7055 = vadd.f32 %v6602, %v6991
  %v7056 = vadd.f32 %v6603, %v6992
  %v7057 = vadd.f32 %v6604, %v6993
  %v7058 = vadd.f32 %v6605, %v6994
  %v7059 = vadd.f32 %v6606, %v6995
  %v7060 = vld [vmem:[%s2 + $0x8] sm:$0x1]
  %7061 = vset.pattern.permute.xlu0 1
  %7062 = vperm.xlu0 %7061, %v5123
  %v7063 = vpop.permute.xlu0 %7062
  %7065 = vset.pattern.permute.xlu0 1
  %7066 = vperm.xlu0 %7065, %v5124
  %v7067 = vpop.permute.xlu0 %7066
  %7069 = vset.pattern.permute.xlu0 1
  %7070 = vperm.xlu0 %7069, %v5125
  %v7071 = vpop.permute.xlu0 %7070
  %7073 = vset.pattern.permute.xlu0 1
  %7074 = vperm.xlu0 %7073, %v5126
  %v7075 = vpop.permute.xlu0 %7074
  %7077 = vset.pattern.permute.xlu0 1
  %7078 = vperm.xlu0 %7077, %v5127
  %v7079 = vpop.permute.xlu0 %7078
  %7081 = vset.pattern.permute.xlu0 1
  %7082 = vperm.xlu0 %7081, %v5128
  %v7083 = vpop.permute.xlu0 %7082
  %7085 = vset.pattern.permute.xlu0 1
  %7086 = vperm.xlu0 %7085, %v5129
  %v7087 = vpop.permute.xlu0 %7086
  %7089 = vset.pattern.permute.xlu0 1
  %7090 = vperm.xlu0 %7089, %v5130
  %v7091 = vpop.permute.xlu0 %7090
  %7093 = vset.pattern.permute.xlu0 1
  %7094 = vperm.xlu0 %7093, %v5131
  %v7095 = vpop.permute.xlu0 %7094
  %7097 = vset.pattern.permute.xlu0 1
  %7098 = vperm.xlu0 %7097, %v5132
  %v7099 = vpop.permute.xlu0 %7098
  %7101 = vset.pattern.permute.xlu0 1
  %7102 = vperm.xlu0 %7101, %v5133
  %v7103 = vpop.permute.xlu0 %7102
  %7105 = vset.pattern.permute.xlu0 1
  %7106 = vperm.xlu0 %7105, %v5134
  %v7107 = vpop.permute.xlu0 %7106
  %7109 = vset.pattern.permute.xlu0 1
  %7110 = vperm.xlu0 %7109, %v5135
  %v7111 = vpop.permute.xlu0 %7110
  %7113 = vset.pattern.permute.xlu0 1
  %7114 = vperm.xlu0 %7113, %v5136
  %v7115 = vpop.permute.xlu0 %7114
  %7117 = vset.pattern.permute.xlu0 1
  %7118 = vperm.xlu0 %7117, %v5137
  %v7119 = vpop.permute.xlu0 %7118
  %7121 = vset.pattern.permute.xlu0 1
  %7122 = vperm.xlu0 %7121, %v5138
  %v7123 = vpop.permute.xlu0 %7122
  %7125 = vset.pattern.permute.xlu0 1
  %7126 = vperm.xlu0 %7125, %v5139
  %v7127 = vpop.permute.xlu0 %7126
  %7129 = vset.pattern.permute.xlu0 1
  %7130 = vperm.xlu0 %7129, %v5140
  %v7131 = vpop.permute.xlu0 %7130
  %7133 = vset.pattern.permute.xlu0 1
  %7134 = vperm.xlu0 %7133, %v5141
  %v7135 = vpop.permute.xlu0 %7134
  %7137 = vset.pattern.permute.xlu0 1
  %7138 = vperm.xlu0 %7137, %v5142
  %v7139 = vpop.permute.xlu0 %7138
  %7141 = vset.pattern.permute.xlu0 1
  %7142 = vperm.xlu0 %7141, %v5143
  %v7143 = vpop.permute.xlu0 %7142
  %7145 = vset.pattern.permute.xlu0 1
  %7146 = vperm.xlu0 %7145, %v5144
  %v7147 = vpop.permute.xlu0 %7146
  %7149 = vset.pattern.permute.xlu0 1
  %7150 = vperm.xlu0 %7149, %v5145
  %v7151 = vpop.permute.xlu0 %7150
  %7153 = vset.pattern.permute.xlu0 1
  %7154 = vperm.xlu0 %7153, %v5146
  %v7155 = vpop.permute.xlu0 %7154
  %7157 = vset.pattern.permute.xlu0 1
  %7158 = vperm.xlu0 %7157, %v5147
  %v7159 = vpop.permute.xlu0 %7158
  %7161 = vset.pattern.permute.xlu0 1
  %7162 = vperm.xlu0 %7161, %v5148
  %v7163 = vpop.permute.xlu0 %7162
  %7165 = vset.pattern.permute.xlu0 1
  %7166 = vperm.xlu0 %7165, %v5149
  %v7167 = vpop.permute.xlu0 %7166
  %7169 = vset.pattern.permute.xlu0 1
  %7170 = vperm.xlu0 %7169, %v5150
  %v7171 = vpop.permute.xlu0 %7170
  %7173 = vset.pattern.permute.xlu0 1
  %7174 = vperm.xlu0 %7173, %v5151
  %v7175 = vpop.permute.xlu0 %7174
  %7177 = vset.pattern.permute.xlu0 1
  %7178 = vperm.xlu0 %7177, %v5152
  %v7179 = vpop.permute.xlu0 %7178
  %7181 = vset.pattern.permute.xlu0 1
  %7182 = vperm.xlu0 %7181, %v5153
  %v7183 = vpop.permute.xlu0 %7182
  %7185 = vset.pattern.permute.xlu0 1
  %7186 = vperm.xlu0 %7185, %v5154
  %v7187 = vpop.permute.xlu0 %7186
  %7189 = vset.pattern.permute.xlu0 1
  %7190 = vperm.xlu0 %7189, %v5155
  %v7191 = vpop.permute.xlu0 %7190
  %7193 = vset.pattern.permute.xlu0 1
  %7194 = vperm.xlu0 %7193, %v5156
  %v7195 = vpop.permute.xlu0 %7194
  %7197 = vset.pattern.permute.xlu0 1
  %7198 = vperm.xlu0 %7197, %v5157
  %v7199 = vpop.permute.xlu0 %7198
  %7201 = vset.pattern.permute.xlu0 1
  %7202 = vperm.xlu0 %7201, %v5158
  %v7203 = vpop.permute.xlu0 %7202
  %7205 = vset.pattern.permute.xlu0 1
  %7206 = vperm.xlu0 %7205, %v5159
  %v7207 = vpop.permute.xlu0 %7206
  %7209 = vset.pattern.permute.xlu0 1
  %7210 = vperm.xlu0 %7209, %v5160
  %v7211 = vpop.permute.xlu0 %7210
  %7213 = vset.pattern.permute.xlu0 1
  %7214 = vperm.xlu0 %7213, %v5161
  %v7215 = vpop.permute.xlu0 %7214
  %7217 = vset.pattern.permute.xlu0 1
  %7218 = vperm.xlu0 %7217, %v5162
  %v7219 = vpop.permute.xlu0 %7218
  %7221 = vset.pattern.permute.xlu0 1
  %7222 = vperm.xlu0 %7221, %v5163
  %v7223 = vpop.permute.xlu0 %7222
  %7225 = vset.pattern.permute.xlu0 1
  %7226 = vperm.xlu0 %7225, %v5164
  %v7227 = vpop.permute.xlu0 %7226
  %7229 = vset.pattern.permute.xlu0 1
  %7230 = vperm.xlu0 %7229, %v5165
  %v7231 = vpop.permute.xlu0 %7230
  %7233 = vset.pattern.permute.xlu0 1
  %7234 = vperm.xlu0 %7233, %v5166
  %v7235 = vpop.permute.xlu0 %7234
  %7237 = vset.pattern.permute.xlu0 1
  %7238 = vperm.xlu0 %7237, %v5167
  %v7239 = vpop.permute.xlu0 %7238
  %7241 = vset.pattern.permute.xlu0 1
  %7242 = vperm.xlu0 %7241, %v5168
  %v7243 = vpop.permute.xlu0 %7242
  %7245 = vset.pattern.permute.xlu0 1
  %7246 = vperm.xlu0 %7245, %v5169
  %v7247 = vpop.permute.xlu0 %7246
  %7249 = vset.pattern.permute.xlu0 1
  %7250 = vperm.xlu0 %7249, %v5170
  %v7251 = vpop.permute.xlu0 %7250
  %7253 = vset.pattern.permute.xlu0 1
  %7254 = vperm.xlu0 %7253, %v5171
  %v7255 = vpop.permute.xlu0 %7254
  %7257 = vset.pattern.permute.xlu0 1
  %7258 = vperm.xlu0 %7257, %v5172
  %v7259 = vpop.permute.xlu0 %7258
  %7261 = vset.pattern.permute.xlu0 1
  %7262 = vperm.xlu0 %7261, %v5173
  %v7263 = vpop.permute.xlu0 %7262
  %7265 = vset.pattern.permute.xlu0 1
  %7266 = vperm.xlu0 %7265, %v5174
  %v7267 = vpop.permute.xlu0 %7266
  %7269 = vset.pattern.permute.xlu0 1
  %7270 = vperm.xlu0 %7269, %v5175
  %v7271 = vpop.permute.xlu0 %7270
  %7273 = vset.pattern.permute.xlu0 1
  %7274 = vperm.xlu0 %7273, %v5176
  %v7275 = vpop.permute.xlu0 %7274
  %7277 = vset.pattern.permute.xlu0 1
  %7278 = vperm.xlu0 %7277, %v5177
  %v7279 = vpop.permute.xlu0 %7278
  %7281 = vset.pattern.permute.xlu0 1
  %7282 = vperm.xlu0 %7281, %v5178
  %v7283 = vpop.permute.xlu0 %7282
  %7285 = vset.pattern.permute.xlu0 1
  %7286 = vperm.xlu0 %7285, %v5179
  %v7287 = vpop.permute.xlu0 %7286
  %7289 = vset.pattern.permute.xlu0 1
  %7290 = vperm.xlu0 %7289, %v5180
  %v7291 = vpop.permute.xlu0 %7290
  %7293 = vset.pattern.permute.xlu0 1
  %7294 = vperm.xlu0 %7293, %v5181
  %v7295 = vpop.permute.xlu0 %7294
  %7297 = vset.pattern.permute.xlu0 1
  %7298 = vperm.xlu0 %7297, %v5182
  %v7299 = vpop.permute.xlu0 %7298
  %7301 = vset.pattern.permute.xlu0 1
  %7302 = vperm.xlu0 %7301, %v5183
  %v7303 = vpop.permute.xlu0 %7302
  %7305 = vset.pattern.permute.xlu0 1
  %7306 = vperm.xlu0 %7305, %v5184
  %v7307 = vpop.permute.xlu0 %7306
  %7309 = vset.pattern.permute.xlu0 1
  %7310 = vperm.xlu0 %7309, %v5185
  %v7311 = vpop.permute.xlu0 %7310
  %7313 = vset.pattern.permute.xlu0 1
  %7314 = vperm.xlu0 %7313, %v5186
  %v7315 = vpop.permute.xlu0 %7314
  %v7317 = vlaneseq
  %v7318 = vshrl.u32 %v7317, 7
  %v7319 = vsub.s32 0, %v7318
  %v7320 = vrot.slane %v7060, %v7319
  %v7321 = vmul.f32 %v7063, %v7320
  %v7322 = vmul.f32 %v7067, %v7320
  %v7323 = vmul.f32 %v7071, %v7320
  %v7324 = vmul.f32 %v7075, %v7320
  %v7325 = vmul.f32 %v7079, %v7320
  %v7326 = vmul.f32 %v7083, %v7320
  %v7327 = vmul.f32 %v7087, %v7320
  %v7328 = vmul.f32 %v7091, %v7320
  %v7329 = vmul.f32 %v7095, %v7320
  %v7330 = vmul.f32 %v7099, %v7320
  %v7331 = vmul.f32 %v7103, %v7320
  %v7332 = vmul.f32 %v7107, %v7320
  %v7333 = vmul.f32 %v7111, %v7320
  %v7334 = vmul.f32 %v7115, %v7320
  %v7335 = vmul.f32 %v7119, %v7320
  %v7336 = vmul.f32 %v7123, %v7320
  %v7337 = vmul.f32 %v7127, %v7320
  %v7338 = vmul.f32 %v7131, %v7320
  %v7339 = vmul.f32 %v7135, %v7320
  %v7340 = vmul.f32 %v7139, %v7320
  %v7341 = vmul.f32 %v7143, %v7320
  %v7342 = vmul.f32 %v7147, %v7320
  %v7343 = vmul.f32 %v7151, %v7320
  %v7344 = vmul.f32 %v7155, %v7320
  %v7345 = vmul.f32 %v7159, %v7320
  %v7346 = vmul.f32 %v7163, %v7320
  %v7347 = vmul.f32 %v7167, %v7320
  %v7348 = vmul.f32 %v7171, %v7320
  %v7349 = vmul.f32 %v7175, %v7320
  %v7350 = vmul.f32 %v7179, %v7320
  %v7351 = vmul.f32 %v7183, %v7320
  %v7352 = vmul.f32 %v7187, %v7320
  %v7353 = vmul.f32 %v7191, %v7320
  %v7354 = vmul.f32 %v7195, %v7320
  %v7355 = vmul.f32 %v7199, %v7320
  %v7356 = vmul.f32 %v7203, %v7320
  %v7357 = vmul.f32 %v7207, %v7320
  %v7358 = vmul.f32 %v7211, %v7320
  %v7359 = vmul.f32 %v7215, %v7320
  %v7360 = vmul.f32 %v7219, %v7320
  %v7361 = vmul.f32 %v7223, %v7320
  %v7362 = vmul.f32 %v7227, %v7320
  %v7363 = vmul.f32 %v7231, %v7320
  %v7364 = vmul.f32 %v7235, %v7320
  %v7365 = vmul.f32 %v7239, %v7320
  %v7366 = vmul.f32 %v7243, %v7320
  %v7367 = vmul.f32 %v7247, %v7320
  %v7368 = vmul.f32 %v7251, %v7320
  %v7369 = vmul.f32 %v7255, %v7320
  %v7370 = vmul.f32 %v7259, %v7320
  %v7371 = vmul.f32 %v7263, %v7320
  %v7372 = vmul.f32 %v7267, %v7320
  %v7373 = vmul.f32 %v7271, %v7320
  %v7374 = vmul.f32 %v7275, %v7320
  %v7375 = vmul.f32 %v7279, %v7320
  %v7376 = vmul.f32 %v7283, %v7320
  %v7377 = vmul.f32 %v7287, %v7320
  %v7378 = vmul.f32 %v7291, %v7320
  %v7379 = vmul.f32 %v7295, %v7320
  %v7380 = vmul.f32 %v7299, %v7320
  %v7381 = vmul.f32 %v7303, %v7320
  %v7382 = vmul.f32 %v7307, %v7320
  %v7383 = vmul.f32 %v7311, %v7320
  %v7384 = vmul.f32 %v7315, %v7320
  %v7385 = vadd.f32 %v6996, %v7321
  %v7386 = vadd.f32 %v6997, %v7322
  %v7387 = vadd.f32 %v6998, %v7323
  %v7388 = vadd.f32 %v6999, %v7324
  %v7389 = vadd.f32 %v7000, %v7325
  %v7390 = vadd.f32 %v7001, %v7326
  %v7391 = vadd.f32 %v7002, %v7327
  %v7392 = vadd.f32 %v7003, %v7328
  %v7393 = vadd.f32 %v7004, %v7329
  %v7394 = vadd.f32 %v7005, %v7330
  %v7395 = vadd.f32 %v7006, %v7331
  %v7396 = vadd.f32 %v7007, %v7332
  %v7397 = vadd.f32 %v7008, %v7333
  %v7398 = vadd.f32 %v7009, %v7334
  %v7399 = vadd.f32 %v7010, %v7335
  %v7400 = vadd.f32 %v7011, %v7336
  %v7401 = vadd.f32 %v7012, %v7337
  %v7402 = vadd.f32 %v7013, %v7338
  %v7403 = vadd.f32 %v7014, %v7339
  %v7404 = vadd.f32 %v7015, %v7340
  %v7405 = vadd.f32 %v7016, %v7341
  %v7406 = vadd.f32 %v7017, %v7342
  %v7407 = vadd.f32 %v7018, %v7343
  %v7408 = vadd.f32 %v7019, %v7344
  %v7409 = vadd.f32 %v7020, %v7345
  %v7410 = vadd.f32 %v7021, %v7346
  %v7411 = vadd.f32 %v7022, %v7347
  %v7412 = vadd.f32 %v7023, %v7348
  %v7413 = vadd.f32 %v7024, %v7349
  %v7414 = vadd.f32 %v7025, %v7350
  %v7415 = vadd.f32 %v7026, %v7351
  %v7416 = vadd.f32 %v7027, %v7352
  %v7417 = vadd.f32 %v7028, %v7353
  %v7418 = vadd.f32 %v7029, %v7354
  %v7419 = vadd.f32 %v7030, %v7355
  %v7420 = vadd.f32 %v7031, %v7356
  %v7421 = vadd.f32 %v7032, %v7357
  %v7422 = vadd.f32 %v7033, %v7358
  %v7423 = vadd.f32 %v7034, %v7359
  %v7424 = vadd.f32 %v7035, %v7360
  %v7425 = vadd.f32 %v7036, %v7361
  %v7426 = vadd.f32 %v7037, %v7362
  %v7427 = vadd.f32 %v7038, %v7363
  %v7428 = vadd.f32 %v7039, %v7364
  %v7429 = vadd.f32 %v7040, %v7365
  %v7430 = vadd.f32 %v7041, %v7366
  %v7431 = vadd.f32 %v7042, %v7367
  %v7432 = vadd.f32 %v7043, %v7368
  %v7433 = vadd.f32 %v7044, %v7369
  %v7434 = vadd.f32 %v7045, %v7370
  %v7435 = vadd.f32 %v7046, %v7371
  %v7436 = vadd.f32 %v7047, %v7372
  %v7437 = vadd.f32 %v7048, %v7373
  %v7438 = vadd.f32 %v7049, %v7374
  %v7439 = vadd.f32 %v7050, %v7375
  %v7440 = vadd.f32 %v7051, %v7376
  %v7441 = vadd.f32 %v7052, %v7377
  %v7442 = vadd.f32 %v7053, %v7378
  %v7443 = vadd.f32 %v7054, %v7379
  %v7444 = vadd.f32 %v7055, %v7380
  %v7445 = vadd.f32 %v7056, %v7381
  %v7446 = vadd.f32 %v7057, %v7382
  %v7447 = vadd.f32 %v7058, %v7383
  %v7448 = vadd.f32 %v7059, %v7384
  %v7449 = vld [vmem:[%s2 + $0x9] sm:$0x1]
  %7450 = vset.pattern.permute.xlu0 2
  %7451 = vperm.xlu0 %7450, %v5123
  %v7452 = vpop.permute.xlu0 %7451
  %7454 = vset.pattern.permute.xlu0 2
  %7455 = vperm.xlu0 %7454, %v5124
  %v7456 = vpop.permute.xlu0 %7455
  %7458 = vset.pattern.permute.xlu0 2
  %7459 = vperm.xlu0 %7458, %v5125
  %v7460 = vpop.permute.xlu0 %7459
  %7462 = vset.pattern.permute.xlu0 2
  %7463 = vperm.xlu0 %7462, %v5126
  %v7464 = vpop.permute.xlu0 %7463
  %7466 = vset.pattern.permute.xlu0 2
  %7467 = vperm.xlu0 %7466, %v5127
  %v7468 = vpop.permute.xlu0 %7467
  %7470 = vset.pattern.permute.xlu0 2
  %7471 = vperm.xlu0 %7470, %v5128
  %v7472 = vpop.permute.xlu0 %7471
  %7474 = vset.pattern.permute.xlu0 2
  %7475 = vperm.xlu0 %7474, %v5129
  %v7476 = vpop.permute.xlu0 %7475
  %7478 = vset.pattern.permute.xlu0 2
  %7479 = vperm.xlu0 %7478, %v5130
  %v7480 = vpop.permute.xlu0 %7479
  %7482 = vset.pattern.permute.xlu0 2
  %7483 = vperm.xlu0 %7482, %v5131
  %v7484 = vpop.permute.xlu0 %7483
  %7486 = vset.pattern.permute.xlu0 2
  %7487 = vperm.xlu0 %7486, %v5132
  %v7488 = vpop.permute.xlu0 %7487
  %7490 = vset.pattern.permute.xlu0 2
  %7491 = vperm.xlu0 %7490, %v5133
  %v7492 = vpop.permute.xlu0 %7491
  %7494 = vset.pattern.permute.xlu0 2
  %7495 = vperm.xlu0 %7494, %v5134
  %v7496 = vpop.permute.xlu0 %7495
  %7498 = vset.pattern.permute.xlu0 2
  %7499 = vperm.xlu0 %7498, %v5135
  %v7500 = vpop.permute.xlu0 %7499
  %7502 = vset.pattern.permute.xlu0 2
  %7503 = vperm.xlu0 %7502, %v5136
  %v7504 = vpop.permute.xlu0 %7503
  %7506 = vset.pattern.permute.xlu0 2
  %7507 = vperm.xlu0 %7506, %v5137
  %v7508 = vpop.permute.xlu0 %7507
  %7510 = vset.pattern.permute.xlu0 2
  %7511 = vperm.xlu0 %7510, %v5138
  %v7512 = vpop.permute.xlu0 %7511
  %7514 = vset.pattern.permute.xlu0 2
  %7515 = vperm.xlu0 %7514, %v5139
  %v7516 = vpop.permute.xlu0 %7515
  %7518 = vset.pattern.permute.xlu0 2
  %7519 = vperm.xlu0 %7518, %v5140
  %v7520 = vpop.permute.xlu0 %7519
  %7522 = vset.pattern.permute.xlu0 2
  %7523 = vperm.xlu0 %7522, %v5141
  %v7524 = vpop.permute.xlu0 %7523
  %7526 = vset.pattern.permute.xlu0 2
  %7527 = vperm.xlu0 %7526, %v5142
  %v7528 = vpop.permute.xlu0 %7527
  %7530 = vset.pattern.permute.xlu0 2
  %7531 = vperm.xlu0 %7530, %v5143
  %v7532 = vpop.permute.xlu0 %7531
  %7534 = vset.pattern.permute.xlu0 2
  %7535 = vperm.xlu0 %7534, %v5144
  %v7536 = vpop.permute.xlu0 %7535
  %7538 = vset.pattern.permute.xlu0 2
  %7539 = vperm.xlu0 %7538, %v5145
  %v7540 = vpop.permute.xlu0 %7539
  %7542 = vset.pattern.permute.xlu0 2
  %7543 = vperm.xlu0 %7542, %v5146
  %v7544 = vpop.permute.xlu0 %7543
  %7546 = vset.pattern.permute.xlu0 2
  %7547 = vperm.xlu0 %7546, %v5147
  %v7548 = vpop.permute.xlu0 %7547
  %7550 = vset.pattern.permute.xlu0 2
  %7551 = vperm.xlu0 %7550, %v5148
  %v7552 = vpop.permute.xlu0 %7551
  %7554 = vset.pattern.permute.xlu0 2
  %7555 = vperm.xlu0 %7554, %v5149
  %v7556 = vpop.permute.xlu0 %7555
  %7558 = vset.pattern.permute.xlu0 2
  %7559 = vperm.xlu0 %7558, %v5150
  %v7560 = vpop.permute.xlu0 %7559
  %7562 = vset.pattern.permute.xlu0 2
  %7563 = vperm.xlu0 %7562, %v5151
  %v7564 = vpop.permute.xlu0 %7563
  %7566 = vset.pattern.permute.xlu0 2
  %7567 = vperm.xlu0 %7566, %v5152
  %v7568 = vpop.permute.xlu0 %7567
  %7570 = vset.pattern.permute.xlu0 2
  %7571 = vperm.xlu0 %7570, %v5153
  %v7572 = vpop.permute.xlu0 %7571
  %7574 = vset.pattern.permute.xlu0 2
  %7575 = vperm.xlu0 %7574, %v5154
  %v7576 = vpop.permute.xlu0 %7575
  %7578 = vset.pattern.permute.xlu0 2
  %7579 = vperm.xlu0 %7578, %v5155
  %v7580 = vpop.permute.xlu0 %7579
  %7582 = vset.pattern.permute.xlu0 2
  %7583 = vperm.xlu0 %7582, %v5156
  %v7584 = vpop.permute.xlu0 %7583
  %7586 = vset.pattern.permute.xlu0 2
  %7587 = vperm.xlu0 %7586, %v5157
  %v7588 = vpop.permute.xlu0 %7587
  %7590 = vset.pattern.permute.xlu0 2
  %7591 = vperm.xlu0 %7590, %v5158
  %v7592 = vpop.permute.xlu0 %7591
  %7594 = vset.pattern.permute.xlu0 2
  %7595 = vperm.xlu0 %7594, %v5159
  %v7596 = vpop.permute.xlu0 %7595
  %7598 = vset.pattern.permute.xlu0 2
  %7599 = vperm.xlu0 %7598, %v5160
  %v7600 = vpop.permute.xlu0 %7599
  %7602 = vset.pattern.permute.xlu0 2
  %7603 = vperm.xlu0 %7602, %v5161
  %v7604 = vpop.permute.xlu0 %7603
  %7606 = vset.pattern.permute.xlu0 2
  %7607 = vperm.xlu0 %7606, %v5162
  %v7608 = vpop.permute.xlu0 %7607
  %7610 = vset.pattern.permute.xlu0 2
  %7611 = vperm.xlu0 %7610, %v5163
  %v7612 = vpop.permute.xlu0 %7611
  %7614 = vset.pattern.permute.xlu0 2
  %7615 = vperm.xlu0 %7614, %v5164
  %v7616 = vpop.permute.xlu0 %7615
  %7618 = vset.pattern.permute.xlu0 2
  %7619 = vperm.xlu0 %7618, %v5165
  %v7620 = vpop.permute.xlu0 %7619
  %7622 = vset.pattern.permute.xlu0 2
  %7623 = vperm.xlu0 %7622, %v5166
  %v7624 = vpop.permute.xlu0 %7623
  %7626 = vset.pattern.permute.xlu0 2
  %7627 = vperm.xlu0 %7626, %v5167
  %v7628 = vpop.permute.xlu0 %7627
  %7630 = vset.pattern.permute.xlu0 2
  %7631 = vperm.xlu0 %7630, %v5168
  %v7632 = vpop.permute.xlu0 %7631
  %7634 = vset.pattern.permute.xlu0 2
  %7635 = vperm.xlu0 %7634, %v5169
  %v7636 = vpop.permute.xlu0 %7635
  %7638 = vset.pattern.permute.xlu0 2
  %7639 = vperm.xlu0 %7638, %v5170
  %v7640 = vpop.permute.xlu0 %7639
  %7642 = vset.pattern.permute.xlu0 2
  %7643 = vperm.xlu0 %7642, %v5171
  %v7644 = vpop.permute.xlu0 %7643
  %7646 = vset.pattern.permute.xlu0 2
  %7647 = vperm.xlu0 %7646, %v5172
  %v7648 = vpop.permute.xlu0 %7647
  %7650 = vset.pattern.permute.xlu0 2
  %7651 = vperm.xlu0 %7650, %v5173
  %v7652 = vpop.permute.xlu0 %7651
  %7654 = vset.pattern.permute.xlu0 2
  %7655 = vperm.xlu0 %7654, %v5174
  %v7656 = vpop.permute.xlu0 %7655
  %7658 = vset.pattern.permute.xlu0 2
  %7659 = vperm.xlu0 %7658, %v5175
  %v7660 = vpop.permute.xlu0 %7659
  %7662 = vset.pattern.permute.xlu0 2
  %7663 = vperm.xlu0 %7662, %v5176
  %v7664 = vpop.permute.xlu0 %7663
  %7666 = vset.pattern.permute.xlu0 2
  %7667 = vperm.xlu0 %7666, %v5177
  %v7668 = vpop.permute.xlu0 %7667
  %7670 = vset.pattern.permute.xlu0 2
  %7671 = vperm.xlu0 %7670, %v5178
  %v7672 = vpop.permute.xlu0 %7671
  %7674 = vset.pattern.permute.xlu0 2
  %7675 = vperm.xlu0 %7674, %v5179
  %v7676 = vpop.permute.xlu0 %7675
  %7678 = vset.pattern.permute.xlu0 2
  %7679 = vperm.xlu0 %7678, %v5180
  %v7680 = vpop.permute.xlu0 %7679
  %7682 = vset.pattern.permute.xlu0 2
  %7683 = vperm.xlu0 %7682, %v5181
  %v7684 = vpop.permute.xlu0 %7683
  %7686 = vset.pattern.permute.xlu0 2
  %7687 = vperm.xlu0 %7686, %v5182
  %v7688 = vpop.permute.xlu0 %7687
  %7690 = vset.pattern.permute.xlu0 2
  %7691 = vperm.xlu0 %7690, %v5183
  %v7692 = vpop.permute.xlu0 %7691
  %7694 = vset.pattern.permute.xlu0 2
  %7695 = vperm.xlu0 %7694, %v5184
  %v7696 = vpop.permute.xlu0 %7695
  %7698 = vset.pattern.permute.xlu0 2
  %7699 = vperm.xlu0 %7698, %v5185
  %v7700 = vpop.permute.xlu0 %7699
  %7702 = vset.pattern.permute.xlu0 2
  %7703 = vperm.xlu0 %7702, %v5186
  %v7704 = vpop.permute.xlu0 %7703
  %v7706 = vlaneseq
  %v7707 = vshrl.u32 %v7706, 7
  %v7708 = vsub.s32 0, %v7707
  %v7709 = vrot.slane %v7449, %v7708
  %v7710 = vmul.f32 %v7452, %v7709
  %v7711 = vmul.f32 %v7456, %v7709
  %v7712 = vmul.f32 %v7460, %v7709
  %v7713 = vmul.f32 %v7464, %v7709
  %v7714 = vmul.f32 %v7468, %v7709
  %v7715 = vmul.f32 %v7472, %v7709
  %v7716 = vmul.f32 %v7476, %v7709
  %v7717 = vmul.f32 %v7480, %v7709
  %v7718 = vmul.f32 %v7484, %v7709
  %v7719 = vmul.f32 %v7488, %v7709
  %v7720 = vmul.f32 %v7492, %v7709
  %v7721 = vmul.f32 %v7496, %v7709
  %v7722 = vmul.f32 %v7500, %v7709
  %v7723 = vmul.f32 %v7504, %v7709
  %v7724 = vmul.f32 %v7508, %v7709
  %v7725 = vmul.f32 %v7512, %v7709
  %v7726 = vmul.f32 %v7516, %v7709
  %v7727 = vmul.f32 %v7520, %v7709
  %v7728 = vmul.f32 %v7524, %v7709
  %v7729 = vmul.f32 %v7528, %v7709
  %v7730 = vmul.f32 %v7532, %v7709
  %v7731 = vmul.f32 %v7536, %v7709
  %v7732 = vmul.f32 %v7540, %v7709
  %v7733 = vmul.f32 %v7544, %v7709
  %v7734 = vmul.f32 %v7548, %v7709
  %v7735 = vmul.f32 %v7552, %v7709
  %v7736 = vmul.f32 %v7556, %v7709
  %v7737 = vmul.f32 %v7560, %v7709
  %v7738 = vmul.f32 %v7564, %v7709
  %v7739 = vmul.f32 %v7568, %v7709
  %v7740 = vmul.f32 %v7572, %v7709
  %v7741 = vmul.f32 %v7576, %v7709
  %v7742 = vmul.f32 %v7580, %v7709
  %v7743 = vmul.f32 %v7584, %v7709
  %v7744 = vmul.f32 %v7588, %v7709
  %v7745 = vmul.f32 %v7592, %v7709
  %v7746 = vmul.f32 %v7596, %v7709
  %v7747 = vmul.f32 %v7600, %v7709
  %v7748 = vmul.f32 %v7604, %v7709
  %v7749 = vmul.f32 %v7608, %v7709
  %v7750 = vmul.f32 %v7612, %v7709
  %v7751 = vmul.f32 %v7616, %v7709
  %v7752 = vmul.f32 %v7620, %v7709
  %v7753 = vmul.f32 %v7624, %v7709
  %v7754 = vmul.f32 %v7628, %v7709
  %v7755 = vmul.f32 %v7632, %v7709
  %v7756 = vmul.f32 %v7636, %v7709
  %v7757 = vmul.f32 %v7640, %v7709
  %v7758 = vmul.f32 %v7644, %v7709
  %v7759 = vmul.f32 %v7648, %v7709
  %v7760 = vmul.f32 %v7652, %v7709
  %v7761 = vmul.f32 %v7656, %v7709
  %v7762 = vmul.f32 %v7660, %v7709
  %v7763 = vmul.f32 %v7664, %v7709
  %v7764 = vmul.f32 %v7668, %v7709
  %v7765 = vmul.f32 %v7672, %v7709
  %v7766 = vmul.f32 %v7676, %v7709
  %v7767 = vmul.f32 %v7680, %v7709
  %v7768 = vmul.f32 %v7684, %v7709
  %v7769 = vmul.f32 %v7688, %v7709
  %v7770 = vmul.f32 %v7692, %v7709
  %v7771 = vmul.f32 %v7696, %v7709
  %v7772 = vmul.f32 %v7700, %v7709
  %v7773 = vmul.f32 %v7704, %v7709
  %v7774 = vadd.f32 %v7385, %v7710
  %v7775 = vadd.f32 %v7386, %v7711
  %v7776 = vadd.f32 %v7387, %v7712
  %v7777 = vadd.f32 %v7388, %v7713
  %v7778 = vadd.f32 %v7389, %v7714
  %v7779 = vadd.f32 %v7390, %v7715
  %v7780 = vadd.f32 %v7391, %v7716
  %v7781 = vadd.f32 %v7392, %v7717
  %v7782 = vadd.f32 %v7393, %v7718
  %v7783 = vadd.f32 %v7394, %v7719
  %v7784 = vadd.f32 %v7395, %v7720
  %v7785 = vadd.f32 %v7396, %v7721
  %v7786 = vadd.f32 %v7397, %v7722
  %v7787 = vadd.f32 %v7398, %v7723
  %v7788 = vadd.f32 %v7399, %v7724
  %v7789 = vadd.f32 %v7400, %v7725
  %v7790 = vadd.f32 %v7401, %v7726
  %v7791 = vadd.f32 %v7402, %v7727
  %v7792 = vadd.f32 %v7403, %v7728
  %v7793 = vadd.f32 %v7404, %v7729
  %v7794 = vadd.f32 %v7405, %v7730
  %v7795 = vadd.f32 %v7406, %v7731
  %v7796 = vadd.f32 %v7407, %v7732
  %v7797 = vadd.f32 %v7408, %v7733
  %v7798 = vadd.f32 %v7409, %v7734
  %v7799 = vadd.f32 %v7410, %v7735
  %v7800 = vadd.f32 %v7411, %v7736
  %v7801 = vadd.f32 %v7412, %v7737
  %v7802 = vadd.f32 %v7413, %v7738
  %v7803 = vadd.f32 %v7414, %v7739
  %v7804 = vadd.f32 %v7415, %v7740
  %v7805 = vadd.f32 %v7416, %v7741
  %v7806 = vadd.f32 %v7417, %v7742
  %v7807 = vadd.f32 %v7418, %v7743
  %v7808 = vadd.f32 %v7419, %v7744
  %v7809 = vadd.f32 %v7420, %v7745
  %v7810 = vadd.f32 %v7421, %v7746
  %v7811 = vadd.f32 %v7422, %v7747
  %v7812 = vadd.f32 %v7423, %v7748
  %v7813 = vadd.f32 %v7424, %v7749
  %v7814 = vadd.f32 %v7425, %v7750
  %v7815 = vadd.f32 %v7426, %v7751
  %v7816 = vadd.f32 %v7427, %v7752
  %v7817 = vadd.f32 %v7428, %v7753
  %v7818 = vadd.f32 %v7429, %v7754
  %v7819 = vadd.f32 %v7430, %v7755
  %v7820 = vadd.f32 %v7431, %v7756
  %v7821 = vadd.f32 %v7432, %v7757
  %v7822 = vadd.f32 %v7433, %v7758
  %v7823 = vadd.f32 %v7434, %v7759
  %v7824 = vadd.f32 %v7435, %v7760
  %v7825 = vadd.f32 %v7436, %v7761
  %v7826 = vadd.f32 %v7437, %v7762
  %v7827 = vadd.f32 %v7438, %v7763
  %v7828 = vadd.f32 %v7439, %v7764
  %v7829 = vadd.f32 %v7440, %v7765
  %v7830 = vadd.f32 %v7441, %v7766
  %v7831 = vadd.f32 %v7442, %v7767
  %v7832 = vadd.f32 %v7443, %v7768
  %v7833 = vadd.f32 %v7444, %v7769
  %v7834 = vadd.f32 %v7445, %v7770
  %v7835 = vadd.f32 %v7446, %v7771
  %v7836 = vadd.f32 %v7447, %v7772
  %v7837 = vadd.f32 %v7448, %v7773
  %v7838 = vld [vmem:[%s2 + $0xa] sm:$0x1]
  %7839 = vset.pattern.permute.xlu0 3
  %7840 = vperm.xlu0 %7839, %v5123
  %v7841 = vpop.permute.xlu0 %7840
  %7843 = vset.pattern.permute.xlu0 3
  %7844 = vperm.xlu0 %7843, %v5124
  %v7845 = vpop.permute.xlu0 %7844
  %7847 = vset.pattern.permute.xlu0 3
  %7848 = vperm.xlu0 %7847, %v5125
  %v7849 = vpop.permute.xlu0 %7848
  %7851 = vset.pattern.permute.xlu0 3
  %7852 = vperm.xlu0 %7851, %v5126
  %v7853 = vpop.permute.xlu0 %7852
  %7855 = vset.pattern.permute.xlu0 3
  %7856 = vperm.xlu0 %7855, %v5127
  %v7857 = vpop.permute.xlu0 %7856
  %7859 = vset.pattern.permute.xlu0 3
  %7860 = vperm.xlu0 %7859, %v5128
  %v7861 = vpop.permute.xlu0 %7860
  %7863 = vset.pattern.permute.xlu0 3
  %7864 = vperm.xlu0 %7863, %v5129
  %v7865 = vpop.permute.xlu0 %7864
  %7867 = vset.pattern.permute.xlu0 3
  %7868 = vperm.xlu0 %7867, %v5130
  %v7869 = vpop.permute.xlu0 %7868
  %7871 = vset.pattern.permute.xlu0 3
  %7872 = vperm.xlu0 %7871, %v5131
  %v7873 = vpop.permute.xlu0 %7872
  %7875 = vset.pattern.permute.xlu0 3
  %7876 = vperm.xlu0 %7875, %v5132
  %v7877 = vpop.permute.xlu0 %7876
  %7879 = vset.pattern.permute.xlu0 3
  %7880 = vperm.xlu0 %7879, %v5133
  %v7881 = vpop.permute.xlu0 %7880
  %7883 = vset.pattern.permute.xlu0 3
  %7884 = vperm.xlu0 %7883, %v5134
  %v7885 = vpop.permute.xlu0 %7884
  %7887 = vset.pattern.permute.xlu0 3
  %7888 = vperm.xlu0 %7887, %v5135
  %v7889 = vpop.permute.xlu0 %7888
  %7891 = vset.pattern.permute.xlu0 3
  %7892 = vperm.xlu0 %7891, %v5136
  %v7893 = vpop.permute.xlu0 %7892
  %7895 = vset.pattern.permute.xlu0 3
  %7896 = vperm.xlu0 %7895, %v5137
  %v7897 = vpop.permute.xlu0 %7896
  %7899 = vset.pattern.permute.xlu0 3
  %7900 = vperm.xlu0 %7899, %v5138
  %v7901 = vpop.permute.xlu0 %7900
  %7903 = vset.pattern.permute.xlu0 3
  %7904 = vperm.xlu0 %7903, %v5139
  %v7905 = vpop.permute.xlu0 %7904
  %7907 = vset.pattern.permute.xlu0 3
  %7908 = vperm.xlu0 %7907, %v5140
  %v7909 = vpop.permute.xlu0 %7908
  %7911 = vset.pattern.permute.xlu0 3
  %7912 = vperm.xlu0 %7911, %v5141
  %v7913 = vpop.permute.xlu0 %7912
  %7915 = vset.pattern.permute.xlu0 3
  %7916 = vperm.xlu0 %7915, %v5142
  %v7917 = vpop.permute.xlu0 %7916
  %7919 = vset.pattern.permute.xlu0 3
  %7920 = vperm.xlu0 %7919, %v5143
  %v7921 = vpop.permute.xlu0 %7920
  %7923 = vset.pattern.permute.xlu0 3
  %7924 = vperm.xlu0 %7923, %v5144
  %v7925 = vpop.permute.xlu0 %7924
  %7927 = vset.pattern.permute.xlu0 3
  %7928 = vperm.xlu0 %7927, %v5145
  %v7929 = vpop.permute.xlu0 %7928
  %7931 = vset.pattern.permute.xlu0 3
  %7932 = vperm.xlu0 %7931, %v5146
  %v7933 = vpop.permute.xlu0 %7932
  %7935 = vset.pattern.permute.xlu0 3
  %7936 = vperm.xlu0 %7935, %v5147
  %v7937 = vpop.permute.xlu0 %7936
  %7939 = vset.pattern.permute.xlu0 3
  %7940 = vperm.xlu0 %7939, %v5148
  %v7941 = vpop.permute.xlu0 %7940
  %7943 = vset.pattern.permute.xlu0 3
  %7944 = vperm.xlu0 %7943, %v5149
  %v7945 = vpop.permute.xlu0 %7944
  %7947 = vset.pattern.permute.xlu0 3
  %7948 = vperm.xlu0 %7947, %v5150
  %v7949 = vpop.permute.xlu0 %7948
  %7951 = vset.pattern.permute.xlu0 3
  %7952 = vperm.xlu0 %7951, %v5151
  %v7953 = vpop.permute.xlu0 %7952
  %7955 = vset.pattern.permute.xlu0 3
  %7956 = vperm.xlu0 %7955, %v5152
  %v7957 = vpop.permute.xlu0 %7956
  %7959 = vset.pattern.permute.xlu0 3
  %7960 = vperm.xlu0 %7959, %v5153
  %v7961 = vpop.permute.xlu0 %7960
  %7963 = vset.pattern.permute.xlu0 3
  %7964 = vperm.xlu0 %7963, %v5154
  %v7965 = vpop.permute.xlu0 %7964
  %7967 = vset.pattern.permute.xlu0 3
  %7968 = vperm.xlu0 %7967, %v5155
  %v7969 = vpop.permute.xlu0 %7968
  %7971 = vset.pattern.permute.xlu0 3
  %7972 = vperm.xlu0 %7971, %v5156
  %v7973 = vpop.permute.xlu0 %7972
  %7975 = vset.pattern.permute.xlu0 3
  %7976 = vperm.xlu0 %7975, %v5157
  %v7977 = vpop.permute.xlu0 %7976
  %7979 = vset.pattern.permute.xlu0 3
  %7980 = vperm.xlu0 %7979, %v5158
  %v7981 = vpop.permute.xlu0 %7980
  %7983 = vset.pattern.permute.xlu0 3
  %7984 = vperm.xlu0 %7983, %v5159
  %v7985 = vpop.permute.xlu0 %7984
  %7987 = vset.pattern.permute.xlu0 3
  %7988 = vperm.xlu0 %7987, %v5160
  %v7989 = vpop.permute.xlu0 %7988
  %7991 = vset.pattern.permute.xlu0 3
  %7992 = vperm.xlu0 %7991, %v5161
  %v7993 = vpop.permute.xlu0 %7992
  %7995 = vset.pattern.permute.xlu0 3
  %7996 = vperm.xlu0 %7995, %v5162
  %v7997 = vpop.permute.xlu0 %7996
  %7999 = vset.pattern.permute.xlu0 3
  %8000 = vperm.xlu0 %7999, %v5163
  %v8001 = vpop.permute.xlu0 %8000
  %8003 = vset.pattern.permute.xlu0 3
  %8004 = vperm.xlu0 %8003, %v5164
  %v8005 = vpop.permute.xlu0 %8004
  %8007 = vset.pattern.permute.xlu0 3
  %8008 = vperm.xlu0 %8007, %v5165
  %v8009 = vpop.permute.xlu0 %8008
  %8011 = vset.pattern.permute.xlu0 3
  %8012 = vperm.xlu0 %8011, %v5166
  %v8013 = vpop.permute.xlu0 %8012
  %8015 = vset.pattern.permute.xlu0 3
  %8016 = vperm.xlu0 %8015, %v5167
  %v8017 = vpop.permute.xlu0 %8016
  %8019 = vset.pattern.permute.xlu0 3
  %8020 = vperm.xlu0 %8019, %v5168
  %v8021 = vpop.permute.xlu0 %8020
  %8023 = vset.pattern.permute.xlu0 3
  %8024 = vperm.xlu0 %8023, %v5169
  %v8025 = vpop.permute.xlu0 %8024
  %8027 = vset.pattern.permute.xlu0 3
  %8028 = vperm.xlu0 %8027, %v5170
  %v8029 = vpop.permute.xlu0 %8028
  %8031 = vset.pattern.permute.xlu0 3
  %8032 = vperm.xlu0 %8031, %v5171
  %v8033 = vpop.permute.xlu0 %8032
  %8035 = vset.pattern.permute.xlu0 3
  %8036 = vperm.xlu0 %8035, %v5172
  %v8037 = vpop.permute.xlu0 %8036
  %8039 = vset.pattern.permute.xlu0 3
  %8040 = vperm.xlu0 %8039, %v5173
  %v8041 = vpop.permute.xlu0 %8040
  %8043 = vset.pattern.permute.xlu0 3
  %8044 = vperm.xlu0 %8043, %v5174
  %v8045 = vpop.permute.xlu0 %8044
  %8047 = vset.pattern.permute.xlu0 3
  %8048 = vperm.xlu0 %8047, %v5175
  %v8049 = vpop.permute.xlu0 %8048
  %8051 = vset.pattern.permute.xlu0 3
  %8052 = vperm.xlu0 %8051, %v5176
  %v8053 = vpop.permute.xlu0 %8052
  %8055 = vset.pattern.permute.xlu0 3
  %8056 = vperm.xlu0 %8055, %v5177
  %v8057 = vpop.permute.xlu0 %8056
  %8059 = vset.pattern.permute.xlu0 3
  %8060 = vperm.xlu0 %8059, %v5178
  %v8061 = vpop.permute.xlu0 %8060
  %8063 = vset.pattern.permute.xlu0 3
  %8064 = vperm.xlu0 %8063, %v5179
  %v8065 = vpop.permute.xlu0 %8064
  %8067 = vset.pattern.permute.xlu0 3
  %8068 = vperm.xlu0 %8067, %v5180
  %v8069 = vpop.permute.xlu0 %8068
  %8071 = vset.pattern.permute.xlu0 3
  %8072 = vperm.xlu0 %8071, %v5181
  %v8073 = vpop.permute.xlu0 %8072
  %8075 = vset.pattern.permute.xlu0 3
  %8076 = vperm.xlu0 %8075, %v5182
  %v8077 = vpop.permute.xlu0 %8076
  %8079 = vset.pattern.permute.xlu0 3
  %8080 = vperm.xlu0 %8079, %v5183
  %v8081 = vpop.permute.xlu0 %8080
  %8083 = vset.pattern.permute.xlu0 3
  %8084 = vperm.xlu0 %8083, %v5184
  %v8085 = vpop.permute.xlu0 %8084
  %8087 = vset.pattern.permute.xlu0 3
  %8088 = vperm.xlu0 %8087, %v5185
  %v8089 = vpop.permute.xlu0 %8088
  %8091 = vset.pattern.permute.xlu0 3
  %8092 = vperm.xlu0 %8091, %v5186
  %v8093 = vpop.permute.xlu0 %8092
  %v8095 = vlaneseq
  %v8096 = vshrl.u32 %v8095, 7
  %v8097 = vsub.s32 0, %v8096
  %v8098 = vrot.slane %v7838, %v8097
  %v8099 = vmul.f32 %v7841, %v8098
  %v8100 = vmul.f32 %v7845, %v8098
  %v8101 = vmul.f32 %v7849, %v8098
  %v8102 = vmul.f32 %v7853, %v8098
  %v8103 = vmul.f32 %v7857, %v8098
  %v8104 = vmul.f32 %v7861, %v8098
  %v8105 = vmul.f32 %v7865, %v8098
  %v8106 = vmul.f32 %v7869, %v8098
  %v8107 = vmul.f32 %v7873, %v8098
  %v8108 = vmul.f32 %v7877, %v8098
  %v8109 = vmul.f32 %v7881, %v8098
  %v8110 = vmul.f32 %v7885, %v8098
  %v8111 = vmul.f32 %v7889, %v8098
  %v8112 = vmul.f32 %v7893, %v8098
  %v8113 = vmul.f32 %v7897, %v8098
  %v8114 = vmul.f32 %v7901, %v8098
  %v8115 = vmul.f32 %v7905, %v8098
  %v8116 = vmul.f32 %v7909, %v8098
  %v8117 = vmul.f32 %v7913, %v8098
  %v8118 = vmul.f32 %v7917, %v8098
  %v8119 = vmul.f32 %v7921, %v8098
  %v8120 = vmul.f32 %v7925, %v8098
  %v8121 = vmul.f32 %v7929, %v8098
  %v8122 = vmul.f32 %v7933, %v8098
  %v8123 = vmul.f32 %v7937, %v8098
  %v8124 = vmul.f32 %v7941, %v8098
  %v8125 = vmul.f32 %v7945, %v8098
  %v8126 = vmul.f32 %v7949, %v8098
  %v8127 = vmul.f32 %v7953, %v8098
  %v8128 = vmul.f32 %v7957, %v8098
  %v8129 = vmul.f32 %v7961, %v8098
  %v8130 = vmul.f32 %v7965, %v8098
  %v8131 = vmul.f32 %v7969, %v8098
  %v8132 = vmul.f32 %v7973, %v8098
  %v8133 = vmul.f32 %v7977, %v8098
  %v8134 = vmul.f32 %v7981, %v8098
  %v8135 = vmul.f32 %v7985, %v8098
  %v8136 = vmul.f32 %v7989, %v8098
  %v8137 = vmul.f32 %v7993, %v8098
  %v8138 = vmul.f32 %v7997, %v8098
  %v8139 = vmul.f32 %v8001, %v8098
  %v8140 = vmul.f32 %v8005, %v8098
  %v8141 = vmul.f32 %v8009, %v8098
  %v8142 = vmul.f32 %v8013, %v8098
  %v8143 = vmul.f32 %v8017, %v8098
  %v8144 = vmul.f32 %v8021, %v8098
  %v8145 = vmul.f32 %v8025, %v8098
  %v8146 = vmul.f32 %v8029, %v8098
  %v8147 = vmul.f32 %v8033, %v8098
  %v8148 = vmul.f32 %v8037, %v8098
  %v8149 = vmul.f32 %v8041, %v8098
  %v8150 = vmul.f32 %v8045, %v8098
  %v8151 = vmul.f32 %v8049, %v8098
  %v8152 = vmul.f32 %v8053, %v8098
  %v8153 = vmul.f32 %v8057, %v8098
  %v8154 = vmul.f32 %v8061, %v8098
  %v8155 = vmul.f32 %v8065, %v8098
  %v8156 = vmul.f32 %v8069, %v8098
  %v8157 = vmul.f32 %v8073, %v8098
  %v8158 = vmul.f32 %v8077, %v8098
  %v8159 = vmul.f32 %v8081, %v8098
  %v8160 = vmul.f32 %v8085, %v8098
  %v8161 = vmul.f32 %v8089, %v8098
  %v8162 = vmul.f32 %v8093, %v8098
  %v8163 = vadd.f32 %v7774, %v8099
  %v8164 = vadd.f32 %v7775, %v8100
  %v8165 = vadd.f32 %v7776, %v8101
  %v8166 = vadd.f32 %v7777, %v8102
  %v8167 = vadd.f32 %v7778, %v8103
  %v8168 = vadd.f32 %v7779, %v8104
  %v8169 = vadd.f32 %v7780, %v8105
  %v8170 = vadd.f32 %v7781, %v8106
  %v8171 = vadd.f32 %v7782, %v8107
  %v8172 = vadd.f32 %v7783, %v8108
  %v8173 = vadd.f32 %v7784, %v8109
  %v8174 = vadd.f32 %v7785, %v8110
  %v8175 = vadd.f32 %v7786, %v8111
  %v8176 = vadd.f32 %v7787, %v8112
  %v8177 = vadd.f32 %v7788, %v8113
  %v8178 = vadd.f32 %v7789, %v8114
  %v8179 = vadd.f32 %v7790, %v8115
  %v8180 = vadd.f32 %v7791, %v8116
  %v8181 = vadd.f32 %v7792, %v8117
  %v8182 = vadd.f32 %v7793, %v8118
  %v8183 = vadd.f32 %v7794, %v8119
  %v8184 = vadd.f32 %v7795, %v8120
  %v8185 = vadd.f32 %v7796, %v8121
  %v8186 = vadd.f32 %v7797, %v8122
  %v8187 = vadd.f32 %v7798, %v8123
  %v8188 = vadd.f32 %v7799, %v8124
  %v8189 = vadd.f32 %v7800, %v8125
  %v8190 = vadd.f32 %v7801, %v8126
  %v8191 = vadd.f32 %v7802, %v8127
  %v8192 = vadd.f32 %v7803, %v8128
  %v8193 = vadd.f32 %v7804, %v8129
  %v8194 = vadd.f32 %v7805, %v8130
  %v8195 = vadd.f32 %v7806, %v8131
  %v8196 = vadd.f32 %v7807, %v8132
  %v8197 = vadd.f32 %v7808, %v8133
  %v8198 = vadd.f32 %v7809, %v8134
  %v8199 = vadd.f32 %v7810, %v8135
  %v8200 = vadd.f32 %v7811, %v8136
  %v8201 = vadd.f32 %v7812, %v8137
  %v8202 = vadd.f32 %v7813, %v8138
  %v8203 = vadd.f32 %v7814, %v8139
  %v8204 = vadd.f32 %v7815, %v8140
  %v8205 = vadd.f32 %v7816, %v8141
  %v8206 = vadd.f32 %v7817, %v8142
  %v8207 = vadd.f32 %v7818, %v8143
  %v8208 = vadd.f32 %v7819, %v8144
  %v8209 = vadd.f32 %v7820, %v8145
  %v8210 = vadd.f32 %v7821, %v8146
  %v8211 = vadd.f32 %v7822, %v8147
  %v8212 = vadd.f32 %v7823, %v8148
  %v8213 = vadd.f32 %v7824, %v8149
  %v8214 = vadd.f32 %v7825, %v8150
  %v8215 = vadd.f32 %v7826, %v8151
  %v8216 = vadd.f32 %v7827, %v8152
  %v8217 = vadd.f32 %v7828, %v8153
  %v8218 = vadd.f32 %v7829, %v8154
  %v8219 = vadd.f32 %v7830, %v8155
  %v8220 = vadd.f32 %v7831, %v8156
  %v8221 = vadd.f32 %v7832, %v8157
  %v8222 = vadd.f32 %v7833, %v8158
  %v8223 = vadd.f32 %v7834, %v8159
  %v8224 = vadd.f32 %v7835, %v8160
  %v8225 = vadd.f32 %v7836, %v8161
  %v8226 = vadd.f32 %v7837, %v8162
  %8227 = vst [vmem:[%s3] sm:$0xff] %v8163
  %8228 = vst [vmem:[%s3 + $0x8] sm:$0xff] %v8164
  %8229 = vst [vmem:[%s3 + $0x10] sm:$0xff] %v8165
  %8230 = vst [vmem:[%s3 + $0x18] sm:$0xff] %v8166
  %8231 = vst [vmem:[%s3 + $0x20] sm:$0xff] %v8167
  %8232 = vst [vmem:[%s3 + $0x28] sm:$0xff] %v8168
  %8233 = vst [vmem:[%s3 + $0x30] sm:$0xff] %v8169
  %8234 = vst [vmem:[%s3 + $0x38] sm:$0xff] %v8170
  %8235 = vst [vmem:[%s3 + $0x40] sm:$0xff] %v8171
  %8236 = vst [vmem:[%s3 + $0x48] sm:$0xff] %v8172
  %8237 = vst [vmem:[%s3 + $0x50] sm:$0xff] %v8173
  %8238 = vst [vmem:[%s3 + $0x58] sm:$0xff] %v8174
  %8239 = vst [vmem:[%s3 + $0x60] sm:$0xff] %v8175
  %8240 = vst [vmem:[%s3 + $0x68] sm:$0xff] %v8176
  %8241 = vst [vmem:[%s3 + $0x70] sm:$0xff] %v8177
  %8242 = vst [vmem:[%s3 + $0x78] sm:$0xff] %v8178
  %8243 = vst [vmem:[%s3 + $0x80] sm:$0xff] %v8179
  %8244 = vst [vmem:[%s3 + $0x88] sm:$0xff] %v8180
  %8245 = vst [vmem:[%s3 + $0x90] sm:$0xff] %v8181
  %8246 = vst [vmem:[%s3 + $0x98] sm:$0xff] %v8182
  %8247 = vst [vmem:[%s3 + $0xa0] sm:$0xff] %v8183
  %8248 = vst [vmem:[%s3 + $0xa8] sm:$0xff] %v8184
  %8249 = vst [vmem:[%s3 + $0xb0] sm:$0xff] %v8185
  %8250 = vst [vmem:[%s3 + $0xb8] sm:$0xff] %v8186
  %8251 = vst [vmem:[%s3 + $0xc0] sm:$0xff] %v8187
  %8252 = vst [vmem:[%s3 + $0xc8] sm:$0xff] %v8188
  %8253 = vst [vmem:[%s3 + $0xd0] sm:$0xff] %v8189
  %8254 = vst [vmem:[%s3 + $0xd8] sm:$0xff] %v8190
  %8255 = vst [vmem:[%s3 + $0xe0] sm:$0xff] %v8191
  %8256 = vst [vmem:[%s3 + $0xe8] sm:$0xff] %v8192
  %8257 = vst [vmem:[%s3 + $0xf0] sm:$0xff] %v8193
  %8258 = vst [vmem:[%s3 + $0xf8] sm:$0xff] %v8194
  %8259 = vst [vmem:[%s3 + $0x100] sm:$0xff] %v8195
  %8260 = vst [vmem:[%s3 + $0x108] sm:$0xff] %v8196
  %8261 = vst [vmem:[%s3 + $0x110] sm:$0xff] %v8197
  %8262 = vst [vmem:[%s3 + $0x118] sm:$0xff] %v8198
  %8263 = vst [vmem:[%s3 + $0x120] sm:$0xff] %v8199
  %8264 = vst [vmem:[%s3 + $0x128] sm:$0xff] %v8200
  %8265 = vst [vmem:[%s3 + $0x130] sm:$0xff] %v8201
  %8266 = vst [vmem:[%s3 + $0x138] sm:$0xff] %v8202
  %8267 = vst [vmem:[%s3 + $0x140] sm:$0xff] %v8203
  %8268 = vst [vmem:[%s3 + $0x148] sm:$0xff] %v8204
  %8269 = vst [vmem:[%s3 + $0x150] sm:$0xff] %v8205
  %8270 = vst [vmem:[%s3 + $0x158] sm:$0xff] %v8206
  %8271 = vst [vmem:[%s3 + $0x160] sm:$0xff] %v8207
  %8272 = vst [vmem:[%s3 + $0x168] sm:$0xff] %v8208
  %8273 = vst [vmem:[%s3 + $0x170] sm:$0xff] %v8209
  %8274 = vst [vmem:[%s3 + $0x178] sm:$0xff] %v8210
  %8275 = vst [vmem:[%s3 + $0x180] sm:$0xff] %v8211
  %8276 = vst [vmem:[%s3 + $0x188] sm:$0xff] %v8212
  %8277 = vst [vmem:[%s3 + $0x190] sm:$0xff] %v8213
  %8278 = vst [vmem:[%s3 + $0x198] sm:$0xff] %v8214
  %8279 = vst [vmem:[%s3 + $0x1a0] sm:$0xff] %v8215
  %8280 = vst [vmem:[%s3 + $0x1a8] sm:$0xff] %v8216
  %8281 = vst [vmem:[%s3 + $0x1b0] sm:$0xff] %v8217
  %8282 = vst [vmem:[%s3 + $0x1b8] sm:$0xff] %v8218
  %8283 = vst [vmem:[%s3 + $0x1c0] sm:$0xff] %v8219
  %8284 = vst [vmem:[%s3 + $0x1c8] sm:$0xff] %v8220
  %8285 = vst [vmem:[%s3 + $0x1d0] sm:$0xff] %v8221
  %8286 = vst [vmem:[%s3 + $0x1d8] sm:$0xff] %v8222
  %8287 = vst [vmem:[%s3 + $0x1e0] sm:$0xff] %v8223
  %8288 = vst [vmem:[%s3 + $0x1e8] sm:$0xff] %v8224
  %8289 = vst [vmem:[%s3 + $0x1f0] sm:$0xff] %v8225
  %8290 = vst [vmem:[%s3 + $0x1f8] sm:$0xff] %v8226
  // Predicated region
  $region14: #{pixelvit_forward.3} parent=0 // pred_check
    _
  $region15: #{pixelvit_forward.3} parent=0 // pred_check_branch
    %8292 = sbr.rel (0) target = $region17
  $region16: #{pixelvit_forward.3} parent=0 // pred_region
    _
  $region17: #{pixelvit_forward.3} parent=0 // pred_fallthru
    _
  // Predicated region
  $region18: #{pixelvit_forward.3} parent=0 // pred_check
    _
  $region19: #{pixelvit_forward.3} parent=0 // pred_check_branch
    %8294 = sbr.rel (0) target = $region21
  $region20: #{pixelvit_forward.3} parent=0 // pred_region
    _
  $region21: #{pixelvit_forward.3} parent=0 // pred_fallthru
    _

</llo_original>
